<compile_context>
chip_gen: v7x
topology: tpu7x:2x2x1
jax: 0.10.0
libtpu: 0.0.40
codegen_flags: <defaults>
</compile_context>

<pallas_src>
import jax
import jax.numpy as jnp
from jax.experimental import pallas as pl
from jax.experimental.pallas import tpu as pltpu

N_ANCHORS = 25
C_IN = 512
C_MID = 512
C_OUT = 5 * N_ANCHORS          # 125
C_OUT_PAD = 128                # lane-dense output channel count
KH = KW = 3
K_IM2COL = KH * KW * C_IN      # 4608


def _rpn_kernel(x_ref, w1_ref, b1_ref, w2_ref, b2_ref, o_ref):
    # x_ref : (TM, 4608)   bf16   im2col rows (one row per output pixel)
    # w1_ref: (4608, 512)  bf16   3x3 conv weight flattened in (dy, dx, ci) order
    # b1_ref: (1, 512)     f32
    # w2_ref: (512, 128)   bf16   1x1 conv weight, zero-padded 125 -> 128
    # b2_ref: (1, 128)     f32
    # o_ref : (TM, 128)    f32    lane-dense output
    h = jnp.dot(x_ref[...], w1_ref[...], preferred_element_type=jnp.float32)
    h = jnp.maximum(h + b1_ref[...], 0.0)
    y = jnp.dot(h.astype(jnp.bfloat16), w2_ref[...],
                preferred_element_type=jnp.float32)
    o_ref[...] = y + b2_ref[...]


def _round_up(x, m):
    return ((x + m - 1) // m) * m


def _choose_tile_m(m):
    # Fewest grid steps with tiles of at most 512 rows:
    #   M <= 512  -> a single tile of round_up(M, 16) rows (one grid step),
    #   M  > 512  -> ceil(M/512) tiles, each round_up(ceil(M/ntiles), 16) rows
    #                (minimizes zero-pad waste, keeps M-streams long).
    # 16-row granularity matches the bf16 (16, 128) sublane/lane packing.
    num_tiles = -(-m // 512)
    return _round_up(-(-m // num_tiles), 16)


@jax.jit
def secondary_layers_rpn(x_nchw, w1, b1, w2, b2):
    """Forward pass.

    x_nchw: (N, 512, H, W) float32 (PyTorch NCHW layout).
    w1:     (3, 3, 512, 512)  == torch conv.weight.permute(2, 3, 1, 0)
    b1:     (1, 512)
    w2:     (512, 125)        == torch regcls.weight[:, :, 0, 0].T
    b2:     (1, 125)
    returns (N, 5, 25, H-2, W-2) float32.
    """
    N, C, H, W = x_nchw.shape
    assert C == C_IN
    Ho, Wo = H - KH + 1, W - KW + 1
    M = N * Ho * Wo

    # ---- wrapper-side layout work (XLA) -----------------------------------
    # Cast to bf16 BEFORE the layout transpose to halve the bytes it moves.
    x = jnp.transpose(x_nchw.astype(jnp.bfloat16), (0, 2, 3, 1))   # NHWC, bf16
    # im2col: K ordering (dy, dx, ci) matches w1.reshape(K_IM2COL, C_MID).
    cols = [x[:, dy:dy + Ho, dx:dx + Wo, :]
            for dy in range(KH) for dx in range(KW)]
    x_cols = jnp.concatenate(cols, axis=-1).reshape(M, K_IM2COL)

    tm = _choose_tile_m(M)
    m_pad = _round_up(M, tm)
    if m_pad != M:
        x_cols = jnp.pad(x_cols, ((0, m_pad - M), (0, 0)))
    num_tiles = m_pad // tm

    w1_flat = w1.reshape(K_IM2COL, C_MID).astype(jnp.bfloat16)
    w2_pad = jnp.pad(w2, ((0, 0), (0, C_OUT_PAD - C_OUT))).astype(jnp.bfloat16)
    b1_f32 = b1.astype(jnp.float32)
    b2_pad = jnp.pad(b2, ((0, 0), (0, C_OUT_PAD - C_OUT))).astype(jnp.float32)

    # Only offer the M axis for cross-core (megacore) sharding when there is
    # enough work to hide the duplicated constant-weight fetch on each core.
    semantics = ("parallel",) if m_pad >= 1024 else ("arbitrary",)

    y = pl.pallas_call(
        _rpn_kernel,
        out_shape=jax.ShapeDtypeStruct((m_pad, C_OUT_PAD), jnp.float32),
        grid_spec=pltpu.PrefetchScalarGridSpec(
            num_scalar_prefetch=0,
            grid=(num_tiles,),
            in_specs=[
                pl.BlockSpec((tm, K_IM2COL), lambda i: (i, 0)),
                # Constant-index blocks: fetched once, never re-DMA'd.
                pl.BlockSpec((K_IM2COL, C_MID), lambda i: (0, 0)),
                pl.BlockSpec((1, C_MID), lambda i: (0, 0)),
                pl.BlockSpec((C_MID, C_OUT_PAD), lambda i: (0, 0)),
                pl.BlockSpec((1, C_OUT_PAD), lambda i: (0, 0)),
            ],
            out_specs=pl.BlockSpec((tm, C_OUT_PAD), lambda i: (i, 0)),
        ),
        compiler_params=pltpu.CompilerParams(
            dimension_semantics=semantics,
            vmem_limit_bytes=32 << 20,   # ~19 MiB worst case at tm=512
        ),
    )(x_cols, w1_flat, b1_f32, w2_pad, b2_pad)

    # Lane-dense (m_pad, 128) -> slice padding off, back to torch layout.
    y = y[:M, :C_OUT].reshape(N, Ho, Wo, C_OUT)
    y = jnp.transpose(y, (0, 3, 1, 2))                 # (N, 125, Ho, Wo)
    # First 25 channels == z1, next 25 == z2, ... exactly the torch.stack order.
    return y.reshape(N, 5, N_ANCHORS, Ho, Wo)


def _reference_forward(x_nchw, w1, b1, w2, b2):
    # Pure-JAX f32 reference mirroring the PyTorch module.
    hi = jax.lax.Precision.HIGHEST
    w1_oihw = jnp.transpose(w1, (3, 2, 0, 1))          # (Cout, Cin, KH, KW)
    y = jax.lax.conv_general_dilated(
        x_nchw, w1_oihw, window_strides=(1, 1), padding="VALID",
        dimension_numbers=("NCHW", "OIHW", "NCHW"), precision=hi)
    y = jax.nn.relu(y + b1.reshape(1, C_MID, 1, 1))
    y = jnp.einsum("nchw,cd->ndhw", y, w2, precision=hi)
    y = y + b2.reshape(1, C_OUT, 1, 1)
    N, _, Ho, Wo = y.shape
    return y.reshape(N, 5, N_ANCHORS, Ho, Wo)


def init_params(key):
    k1, k2, k3, k4 = jax.random.split(key, 4)
    # torch Conv2d(512,512,3).weight is (Cout, Cin, KH, KW); stored here as
    # (KH, KW, Cin, Cout) (== weight.permute(2, 3, 1, 0)).
    w1 = jax.random.normal(k1, (KH, KW, C_IN, C_MID), jnp.float32) * 0.01
    b1 = jax.random.normal(k2, (1, C_MID), jnp.float32) * 0.01
    # torch Conv2d(512,125,1).weight[:, :, 0, 0].T -> (Cin, Cout).
    w2 = jax.random.normal(k3, (C_MID, C_OUT), jnp.float32) * 0.01
    b2 = jax.random.normal(k4, (1, C_OUT), jnp.float32) * 0.01
    return w1, b1, w2, b2


if __name__ == "__main__":
    key = jax.random.PRNGKey(0)
    kx, kp = jax.random.split(key)

    # Small batch/spatial; input channels fixed at 512 by the module definition.
    N, H, W = 2, 8, 8
    x = jax.random.normal(kx, (N, C_IN, H, W), jnp.float32)   # NCHW, like torch
    w1, b1, w2, b2 = init_params(kp)

    z = jax.block_until_ready(secondary_layers_rpn(x, w1, b1, w2, b2))

    assert z.shape == (N, 5, N_ANCHORS, H - 2, W - 2), z.shape
    assert z.dtype == jnp.float32

    # bf16 matmuls with f32 accumulation vs an f32 reference: check relative
    # error against the output scale (tighter than a blanket abs threshold).
    z_ref = _reference_forward(x, w1, b1, w2, b2)
    abs_err = float(jnp.max(jnp.abs(z - z_ref)))
    ref_scale = float(jnp.max(jnp.abs(z_ref))) + 1e-6
    assert abs_err / ref_scale < 3e-2, (abs_err, ref_scale)

    print("KERNEL_OK")
</pallas_src>

<mosaic_0001>
module attributes {stable_mosaic.version = 11 : i64} {
  func.func @_rpn_kernel(%arg0: i32, %arg1: memref<80x4608xbf16, #tpu.memory_space<vmem>>, %arg2: memref<4608x512xbf16, #tpu.memory_space<vmem>>, %arg3: memref<1x512xf32, #tpu.memory_space<vmem>>, %arg4: memref<512x128xbf16, #tpu.memory_space<vmem>>, %arg5: memref<1x128xf32, #tpu.memory_space<vmem>>, %arg6: memref<80x128xf32, #tpu.memory_space<vmem>>) attributes {dimension_semantics = [#tpu.dimension_semantics<arbitrary>], iteration_bounds = array<i64: 1>, scalar_prefetch = 0 : i64, scratch_operands = 0 : i64, tpu.core_type = #tpu.core_type<tc>, window_params = [{transform_indices = @transform_0, window_bounds = array<i64: 80, 4608>}, {pipeline_mode = #tpu.pipeline_mode<synchronous>, transform_indices = @transform_1, window_bounds = array<i64: 4608, 512>}, {pipeline_mode = #tpu.pipeline_mode<synchronous>, transform_indices = @transform_2, window_bounds = array<i64: 1, 512>}, {pipeline_mode = #tpu.pipeline_mode<synchronous>, transform_indices = @transform_3, window_bounds = array<i64: 512, 128>}, {pipeline_mode = #tpu.pipeline_mode<synchronous>, transform_indices = @transform_4, window_bounds = array<i64: 1, 128>}, {transform_indices = @transform_5, window_bounds = array<i64: 80, 128>}]} {
    %c0 = arith.constant 0 : index
    %c0_0 = arith.constant 0 : index
    %0 = vector.load %arg1[%c0, %c0_0] : memref<80x4608xbf16, #tpu.memory_space<vmem>>, vector<80x4608xbf16>
    %c0_1 = arith.constant 0 : index
    %c0_2 = arith.constant 0 : index
    %1 = vector.load %arg2[%c0_1, %c0_2] : memref<4608x512xbf16, #tpu.memory_space<vmem>>, vector<4608x512xbf16>
    %cst = arith.constant dense<0.000000e+00> : vector<80x512xf32>
    %2 = tpu.matmul %0, %1, %cst {dimension_numbers = #tpu.dot_dimension_numbers<[1], [0], [0], [1], [0, 0, 1, 1], [], []>} : vector<80x4608xbf16>, vector<4608x512xbf16>, vector<80x512xf32> -> vector<80x512xf32>
    %c0_3 = arith.constant 0 : index
    %c0_4 = arith.constant 0 : index
    %3 = vector.load %arg3[%c0_3, %c0_4] : memref<1x512xf32, #tpu.memory_space<vmem>>, vector<1x512xf32>
    %4 = vector.broadcast %3 : vector<1x512xf32> to vector<80x512xf32>
    %5 = arith.addf %2, %4 : vector<80x512xf32>
    %cst_5 = arith.constant 0.000000e+00 : f32
    %6 = vector.broadcast %cst_5 : f32 to vector<80x512xf32>
    %7 = arith.maximumf %5, %6 : vector<80x512xf32>
    %8 = arith.truncf %7 : vector<80x512xf32> to vector<80x512xbf16>
    %c0_6 = arith.constant 0 : index
    %c0_7 = arith.constant 0 : index
    %9 = vector.load %arg4[%c0_6, %c0_7] : memref<512x128xbf16, #tpu.memory_space<vmem>>, vector<512x128xbf16>
    %cst_8 = arith.constant dense<0.000000e+00> : vector<80x128xf32>
    %10 = tpu.matmul %8, %9, %cst_8 {dimension_numbers = #tpu.dot_dimension_numbers<[1], [0], [0], [1], [0, 0, 1, 1], [], []>} : vector<80x512xbf16>, vector<512x128xbf16>, vector<80x128xf32> -> vector<80x128xf32>
    %c0_9 = arith.constant 0 : index
    %c0_10 = arith.constant 0 : index
    %11 = vector.load %arg5[%c0_9, %c0_10] : memref<1x128xf32, #tpu.memory_space<vmem>>, vector<1x128xf32>
    %12 = vector.broadcast %11 : vector<1x128xf32> to vector<80x128xf32>
    %13 = arith.addf %10, %12 : vector<80x128xf32>
    %c0_11 = arith.constant 0 : index
    %c0_12 = arith.constant 0 : index
    %14 = vector.load %arg6[%c0_11, %c0_12] : memref<80x128xf32, #tpu.memory_space<vmem>>, vector<80x128xf32>
    tpu.vector_store %arg6[%c0_11, %c0_12], %13 {strides = array<i32>} : memref<80x128xf32, #tpu.memory_space<vmem>>, vector<80x128xf32>,
    return
  }
  func.func @transform_0(%arg0: i32) -> (i32, i32) {
    %c0_i32 = arith.constant 0 : i32
    %c0_i32_0 = arith.constant 0 : i32
    return %arg0, %c0_i32 : i32, i32
  }
  func.func @transform_1(%arg0: i32) -> (i32, i32) {
    %c0_i32 = arith.constant 0 : i32
    %c0_i32_0 = arith.constant 0 : i32
    %c0_i32_1 = arith.constant 0 : i32
    return %c0_i32, %c0_i32_0 : i32, i32
  }
  func.func @transform_2(%arg0: i32) -> (i32, i32) {
    %c0_i32 = arith.constant 0 : i32
    %c0_i32_0 = arith.constant 0 : i32
    %c0_i32_1 = arith.constant 0 : i32
    return %c0_i32, %c0_i32_0 : i32, i32
  }
  func.func @transform_3(%arg0: i32) -> (i32, i32) {
    %c0_i32 = arith.constant 0 : i32
    %c0_i32_0 = arith.constant 0 : i32
    %c0_i32_1 = arith.constant 0 : i32
    return %c0_i32, %c0_i32_0 : i32, i32
  }
  func.func @transform_4(%arg0: i32) -> (i32, i32) {
    %c0_i32 = arith.constant 0 : i32
    %c0_i32_0 = arith.constant 0 : i32
    %c0_i32_1 = arith.constant 0 : i32
    return %c0_i32, %c0_i32_0 : i32, i32
  }
  func.func @transform_5(%arg0: i32) -> (i32, i32) {
    %c0_i32 = arith.constant 0 : i32
    %c0_i32_0 = arith.constant 0 : i32
    return %arg0, %c0_i32 : i32, i32
  }
}

</mosaic_0001>

<llo_original>
// kernel: secondary_layers_rpn.1
$region0: #{secondary_layers_rpn.1}
  #allocation0 [shape = 'u32[]', space=smem, size = 0x4, offset = 0x4, fixed_abs, tag = 'smem constant byte address 0x4 - core index']
  #allocation1 [shape = 'u32[144,128]{1,0:T(1,128)}', space=vmem, size = 0x12000, scoped, tag = 'internal scratch']
  %s0 = inlined_call_operand.vmem [shape: bf16[80,4608], index: 0, kind: input, shape index: {}]
  %s1 = inlined_call_operand.vmem [shape: bf16[4608,512], index: 1, kind: input, shape index: {}]
  %s2 = inlined_call_operand.vmem [shape: f32[1,512], index: 2, kind: input, shape index: {}]
  %s3 = inlined_call_operand.vmem [shape: bf16[512,128], index: 3, kind: input, shape index: {}]
  %s4 = inlined_call_operand.vmem [shape: f32[1,128], index: 4, kind: input, shape index: {}]
  %s5 = inlined_call_operand.vmem [shape: f32[80,128], index: 5, kind: output, shape index: {}]
  %s6 = sld [smem:[#allocation0]]
  $region30: #{secondary_layers_rpn.1} parent=0
    _
  %s8 = ssub.s32 1, %s6
  %s9 = scalar_select 0, %s8, %s6
  // Predicated region
  $region2: #{secondary_layers_rpn.1} parent=0 // pred_check
    _
  $region3: #{secondary_layers_rpn.1} parent=0 // pred_check_branch
    %11 = sbr.rel (0) target = $region5
  $region4: #{secondary_layers_rpn.1} parent=0 // pred_region
    _
  $region5: #{secondary_layers_rpn.1} parent=0 // pred_fallthru
    _
  // Predicated region
  $region6: #{secondary_layers_rpn.1} parent=0 // pred_check
    _
  $region7: #{secondary_layers_rpn.1} parent=0 // pred_check_branch
    %13 = sbr.rel (0) target = $region9
  $region8: #{secondary_layers_rpn.1} parent=0 // pred_region
    _
  $region9: #{secondary_layers_rpn.1} parent=0 // pred_fallthru
    _
  // Predicated region
  $region10: #{secondary_layers_rpn.1} parent=0 // pred_check
    _
  $region11: #{secondary_layers_rpn.1} parent=0 // pred_check_branch
    %15 = sbr.rel (0) target = $region13
  $region12: #{secondary_layers_rpn.1} parent=0 // pred_region
    _
  $region13: #{secondary_layers_rpn.1} parent=0 // pred_fallthru
    _
  // Predicated region
  $region14: #{secondary_layers_rpn.1} parent=0 // pred_check
    _
  $region15: #{secondary_layers_rpn.1} parent=0 // pred_check_branch
    %17 = sbr.rel (0) target = $region17
  $region16: #{secondary_layers_rpn.1} parent=0 // pred_region
    _
  $region17: #{secondary_layers_rpn.1} parent=0 // pred_fallthru
    _
  // Predicated region
  $region18: #{secondary_layers_rpn.1} parent=0 // pred_check
    _
  $region19: #{secondary_layers_rpn.1} parent=0 // pred_check_branch
    %19 = sbr.rel (0) target = $region21
  $region20: #{secondary_layers_rpn.1} parent=0 // pred_region
    _
  $region21: #{secondary_layers_rpn.1} parent=0 // pred_fallthru
    _
  %v21 = vld [vmem:[%s0] sm:$0xff]
  %v22 = vld [vmem:[%s0 + $0x8] sm:$0xff]
  %v23 = vld [vmem:[%s0 + $0x10] sm:$0xff]
  %v24 = vld [vmem:[%s0 + $0x18] sm:$0xff]
  %v25 = vld [vmem:[%s0 + $0x20] sm:$0xff]
  %v26 = vld [vmem:[%s0 + $0x28] sm:$0xff]
  %v27 = vld [vmem:[%s0 + $0x30] sm:$0xff]
  %v28 = vld [vmem:[%s0 + $0x38] sm:$0xff]
  %v29 = vld [vmem:[%s0 + $0x40] sm:$0xff]
  %v30 = vld [vmem:[%s0 + $0x48] sm:$0xff]
  %v31 = vld [vmem:[%s0 + $0x50] sm:$0xff]
  %v32 = vld [vmem:[%s0 + $0x58] sm:$0xff]
  %v33 = vld [vmem:[%s0 + $0x60] sm:$0xff]
  %v34 = vld [vmem:[%s0 + $0x68] sm:$0xff]
  %v35 = vld [vmem:[%s0 + $0x70] sm:$0xff]
  %v36 = vld [vmem:[%s0 + $0x78] sm:$0xff]
  %v37 = vld [vmem:[%s0 + $0x80] sm:$0xff]
  %v38 = vld [vmem:[%s0 + $0x88] sm:$0xff]
  %v39 = vld [vmem:[%s0 + $0x90] sm:$0xff]
  %v40 = vld [vmem:[%s0 + $0x98] sm:$0xff]
  %v41 = vld [vmem:[%s0 + $0xa0] sm:$0xff]
  %v42 = vld [vmem:[%s0 + $0xa8] sm:$0xff]
  %v43 = vld [vmem:[%s0 + $0xb0] sm:$0xff]
  %v44 = vld [vmem:[%s0 + $0xb8] sm:$0xff]
  %v45 = vld [vmem:[%s0 + $0xc0] sm:$0xff]
  %v46 = vld [vmem:[%s0 + $0xc8] sm:$0xff]
  %v47 = vld [vmem:[%s0 + $0xd0] sm:$0xff]
  %v48 = vld [vmem:[%s0 + $0xd8] sm:$0xff]
  %v49 = vld [vmem:[%s0 + $0xe0] sm:$0xff]
  %v50 = vld [vmem:[%s0 + $0xe8] sm:$0xff]
  %v51 = vld [vmem:[%s0 + $0xf0] sm:$0xff]
  %v52 = vld [vmem:[%s0 + $0xf8] sm:$0xff]
  %v53 = vld [vmem:[%s0 + $0x100] sm:$0xff]
  %v54 = vld [vmem:[%s0 + $0x108] sm:$0xff]
  %v55 = vld [vmem:[%s0 + $0x110] sm:$0xff]
  %v56 = vld [vmem:[%s0 + $0x118] sm:$0xff]
  %v57 = vld [vmem:[%s0 + $0x120] sm:$0xff]
  %v58 = vld [vmem:[%s0 + $0x128] sm:$0xff]
  %v59 = vld [vmem:[%s0 + $0x130] sm:$0xff]
  %v60 = vld [vmem:[%s0 + $0x138] sm:$0xff]
  %v61 = vld [vmem:[%s0 + $0x140] sm:$0xff]
  %v62 = vld [vmem:[%s0 + $0x148] sm:$0xff]
  %v63 = vld [vmem:[%s0 + $0x150] sm:$0xff]
  %v64 = vld [vmem:[%s0 + $0x158] sm:$0xff]
  %v65 = vld [vmem:[%s0 + $0x160] sm:$0xff]
  %v66 = vld [vmem:[%s0 + $0x168] sm:$0xff]
  %v67 = vld [vmem:[%s0 + $0x170] sm:$0xff]
  %v68 = vld [vmem:[%s0 + $0x178] sm:$0xff]
  %v69 = vld [vmem:[%s0 + $0x180] sm:$0xff]
  %v70 = vld [vmem:[%s0 + $0x188] sm:$0xff]
  %v71 = vld [vmem:[%s0 + $0x190] sm:$0xff]
  %v72 = vld [vmem:[%s0 + $0x198] sm:$0xff]
  %v73 = vld [vmem:[%s0 + $0x1a0] sm:$0xff]
  %v74 = vld [vmem:[%s0 + $0x1a8] sm:$0xff]
  %v75 = vld [vmem:[%s0 + $0x1b0] sm:$0xff]
  %v76 = vld [vmem:[%s0 + $0x1b8] sm:$0xff]
  %v77 = vld [vmem:[%s0 + $0x1c0] sm:$0xff]
  %v78 = vld [vmem:[%s0 + $0x1c8] sm:$0xff]
  %v79 = vld [vmem:[%s0 + $0x1d0] sm:$0xff]
  %v80 = vld [vmem:[%s0 + $0x1d8] sm:$0xff]
  %v81 = vld [vmem:[%s0 + $0x1e0] sm:$0xff]
  %v82 = vld [vmem:[%s0 + $0x1e8] sm:$0xff]
  %v83 = vld [vmem:[%s0 + $0x1f0] sm:$0xff]
  %v84 = vld [vmem:[%s0 + $0x1f8] sm:$0xff]
  %v85 = vld [vmem:[%s0 + $0x200] sm:$0xff]
  %v86 = vld [vmem:[%s0 + $0x208] sm:$0xff]
  %v87 = vld [vmem:[%s0 + $0x210] sm:$0xff]
  %v88 = vld [vmem:[%s0 + $0x218] sm:$0xff]
  %v89 = vld [vmem:[%s0 + $0x220] sm:$0xff]
  %v90 = vld [vmem:[%s0 + $0x228] sm:$0xff]
  %v91 = vld [vmem:[%s0 + $0x230] sm:$0xff]
  %v92 = vld [vmem:[%s0 + $0x238] sm:$0xff]
  %v93 = vld [vmem:[%s0 + $0x240] sm:$0xff]
  %v94 = vld [vmem:[%s0 + $0x248] sm:$0xff]
  %v95 = vld [vmem:[%s0 + $0x250] sm:$0xff]
  %v96 = vld [vmem:[%s0 + $0x258] sm:$0xff]
  %v97 = vld [vmem:[%s0 + $0x260] sm:$0xff]
  %v98 = vld [vmem:[%s0 + $0x268] sm:$0xff]
  %v99 = vld [vmem:[%s0 + $0x270] sm:$0xff]
  %v100 = vld [vmem:[%s0 + $0x278] sm:$0xff]
  %v101 = vld [vmem:[%s0 + $0x280] sm:$0xff]
  %v102 = vld [vmem:[%s0 + $0x288] sm:$0xff]
  %v103 = vld [vmem:[%s0 + $0x290] sm:$0xff]
  %v104 = vld [vmem:[%s0 + $0x298] sm:$0xff]
  %v105 = vld [vmem:[%s0 + $0x2a0] sm:$0xff]
  %v106 = vld [vmem:[%s0 + $0x2a8] sm:$0xff]
  %v107 = vld [vmem:[%s0 + $0x2b0] sm:$0xff]
  %v108 = vld [vmem:[%s0 + $0x2b8] sm:$0xff]
  %v109 = vld [vmem:[%s0 + $0x2c0] sm:$0xff]
  %v110 = vld [vmem:[%s0 + $0x2c8] sm:$0xff]
  %v111 = vld [vmem:[%s0 + $0x2d0] sm:$0xff]
  %v112 = vld [vmem:[%s0 + $0x2d8] sm:$0xff]
  %v113 = vld [vmem:[%s0 + $0x2e0] sm:$0xff]
  %v114 = vld [vmem:[%s0 + $0x2e8] sm:$0xff]
  %v115 = vld [vmem:[%s0 + $0x2f0] sm:$0xff]
  %v116 = vld [vmem:[%s0 + $0x2f8] sm:$0xff]
  %v117 = vld [vmem:[%s0 + $0x300] sm:$0xff]
  %v118 = vld [vmem:[%s0 + $0x308] sm:$0xff]
  %v119 = vld [vmem:[%s0 + $0x310] sm:$0xff]
  %v120 = vld [vmem:[%s0 + $0x318] sm:$0xff]
  %v121 = vld [vmem:[%s0 + $0x320] sm:$0xff]
  %v122 = vld [vmem:[%s0 + $0x328] sm:$0xff]
  %v123 = vld [vmem:[%s0 + $0x330] sm:$0xff]
  %v124 = vld [vmem:[%s0 + $0x338] sm:$0xff]
  %v125 = vld [vmem:[%s0 + $0x340] sm:$0xff]
  %v126 = vld [vmem:[%s0 + $0x348] sm:$0xff]
  %v127 = vld [vmem:[%s0 + $0x350] sm:$0xff]
  %v128 = vld [vmem:[%s0 + $0x358] sm:$0xff]
  %v129 = vld [vmem:[%s0 + $0x360] sm:$0xff]
  %v130 = vld [vmem:[%s0 + $0x368] sm:$0xff]
  %v131 = vld [vmem:[%s0 + $0x370] sm:$0xff]
  %v132 = vld [vmem:[%s0 + $0x378] sm:$0xff]
  %v133 = vld [vmem:[%s0 + $0x380] sm:$0xff]
  %v134 = vld [vmem:[%s0 + $0x388] sm:$0xff]
  %v135 = vld [vmem:[%s0 + $0x390] sm:$0xff]
  %v136 = vld [vmem:[%s0 + $0x398] sm:$0xff]
  %v137 = vld [vmem:[%s0 + $0x3a0] sm:$0xff]
  %v138 = vld [vmem:[%s0 + $0x3a8] sm:$0xff]
  %v139 = vld [vmem:[%s0 + $0x3b0] sm:$0xff]
  %v140 = vld [vmem:[%s0 + $0x3b8] sm:$0xff]
  %v141 = vld [vmem:[%s0 + $0x3c0] sm:$0xff]
  %v142 = vld [vmem:[%s0 + $0x3c8] sm:$0xff]
  %v143 = vld [vmem:[%s0 + $0x3d0] sm:$0xff]
  %v144 = vld [vmem:[%s0 + $0x3d8] sm:$0xff]
  %v145 = vld [vmem:[%s0 + $0x3e0] sm:$0xff]
  %v146 = vld [vmem:[%s0 + $0x3e8] sm:$0xff]
  %v147 = vld [vmem:[%s0 + $0x3f0] sm:$0xff]
  %v148 = vld [vmem:[%s0 + $0x3f8] sm:$0xff]
  %v149 = vld [vmem:[%s0 + $0x400] sm:$0xff]
  %v150 = vld [vmem:[%s0 + $0x408] sm:$0xff]
  %v151 = vld [vmem:[%s0 + $0x410] sm:$0xff]
  %v152 = vld [vmem:[%s0 + $0x418] sm:$0xff]
  %v153 = vld [vmem:[%s0 + $0x420] sm:$0xff]
  %v154 = vld [vmem:[%s0 + $0x428] sm:$0xff]
  %v155 = vld [vmem:[%s0 + $0x430] sm:$0xff]
  %v156 = vld [vmem:[%s0 + $0x438] sm:$0xff]
  %v157 = vld [vmem:[%s0 + $0x440] sm:$0xff]
  %v158 = vld [vmem:[%s0 + $0x448] sm:$0xff]
  %v159 = vld [vmem:[%s0 + $0x450] sm:$0xff]
  %v160 = vld [vmem:[%s0 + $0x458] sm:$0xff]
  %v161 = vld [vmem:[%s0 + $0x460] sm:$0xff]
  %v162 = vld [vmem:[%s0 + $0x468] sm:$0xff]
  %v163 = vld [vmem:[%s0 + $0x470] sm:$0xff]
  %v164 = vld [vmem:[%s0 + $0x478] sm:$0xff]
  %v165 = vld [vmem:[%s0 + $0x480] sm:$0xff]
  %v166 = vld [vmem:[%s0 + $0x488] sm:$0xff]
  %v167 = vld [vmem:[%s0 + $0x490] sm:$0xff]
  %v168 = vld [vmem:[%s0 + $0x498] sm:$0xff]
  %v169 = vld [vmem:[%s0 + $0x4a0] sm:$0xff]
  %v170 = vld [vmem:[%s0 + $0x4a8] sm:$0xff]
  %v171 = vld [vmem:[%s0 + $0x4b0] sm:$0xff]
  %v172 = vld [vmem:[%s0 + $0x4b8] sm:$0xff]
  %v173 = vld [vmem:[%s0 + $0x4c0] sm:$0xff]
  %v174 = vld [vmem:[%s0 + $0x4c8] sm:$0xff]
  %v175 = vld [vmem:[%s0 + $0x4d0] sm:$0xff]
  %v176 = vld [vmem:[%s0 + $0x4d8] sm:$0xff]
  %v177 = vld [vmem:[%s0 + $0x4e0] sm:$0xff]
  %v178 = vld [vmem:[%s0 + $0x4e8] sm:$0xff]
  %v179 = vld [vmem:[%s0 + $0x4f0] sm:$0xff]
  %v180 = vld [vmem:[%s0 + $0x4f8] sm:$0xff]
  %v181 = vld [vmem:[%s0 + $0x500] sm:$0xff]
  %v182 = vld [vmem:[%s0 + $0x508] sm:$0xff]
  %v183 = vld [vmem:[%s0 + $0x510] sm:$0xff]
  %v184 = vld [vmem:[%s0 + $0x518] sm:$0xff]
  %v185 = vld [vmem:[%s0 + $0x520] sm:$0xff]
  %v186 = vld [vmem:[%s0 + $0x528] sm:$0xff]
  %v187 = vld [vmem:[%s0 + $0x530] sm:$0xff]
  %v188 = vld [vmem:[%s0 + $0x538] sm:$0xff]
  %v189 = vld [vmem:[%s0 + $0x540] sm:$0xff]
  %v190 = vld [vmem:[%s0 + $0x548] sm:$0xff]
  %v191 = vld [vmem:[%s0 + $0x550] sm:$0xff]
  %v192 = vld [vmem:[%s0 + $0x558] sm:$0xff]
  %v193 = vld [vmem:[%s0 + $0x560] sm:$0xff]
  %v194 = vld [vmem:[%s0 + $0x568] sm:$0xff]
  %v195 = vld [vmem:[%s0 + $0x570] sm:$0xff]
  %v196 = vld [vmem:[%s0 + $0x578] sm:$0xff]
  %v197 = vld [vmem:[%s0 + $0x580] sm:$0xff]
  %v198 = vld [vmem:[%s0 + $0x588] sm:$0xff]
  %v199 = vld [vmem:[%s0 + $0x590] sm:$0xff]
  %v200 = vld [vmem:[%s0 + $0x598] sm:$0xff]
  %v201 = vld [vmem:[%s1] sm:$0xff]
  %v202 = vld [vmem:[%s1 + $0x8] sm:$0xff]
  %v203 = vld [vmem:[%s1 + $0x10] sm:$0xff]
  %v204 = vld [vmem:[%s1 + $0x18] sm:$0xff]
  %v205 = vld [vmem:[%s1 + $0x20] sm:$0xff]
  %v206 = vld [vmem:[%s1 + $0x28] sm:$0xff]
  %v207 = vld [vmem:[%s1 + $0x30] sm:$0xff]
  %v208 = vld [vmem:[%s1 + $0x38] sm:$0xff]
  %v209 = vld [vmem:[%s1 + $0x40] sm:$0xff]
  %v210 = vld [vmem:[%s1 + $0x48] sm:$0xff]
  %v211 = vld [vmem:[%s1 + $0x50] sm:$0xff]
  %v212 = vld [vmem:[%s1 + $0x58] sm:$0xff]
  %v213 = vld [vmem:[%s1 + $0x60] sm:$0xff]
  %v214 = vld [vmem:[%s1 + $0x68] sm:$0xff]
  %v215 = vld [vmem:[%s1 + $0x70] sm:$0xff]
  %v216 = vld [vmem:[%s1 + $0x78] sm:$0xff]
  %v217 = vld [vmem:[%s1 + $0x80] sm:$0xff]
  %v218 = vld [vmem:[%s1 + $0x88] sm:$0xff]
  %v219 = vld [vmem:[%s1 + $0x90] sm:$0xff]
  %v220 = vld [vmem:[%s1 + $0x98] sm:$0xff]
  %v221 = vld [vmem:[%s1 + $0xa0] sm:$0xff]
  %v222 = vld [vmem:[%s1 + $0xa8] sm:$0xff]
  %v223 = vld [vmem:[%s1 + $0xb0] sm:$0xff]
  %v224 = vld [vmem:[%s1 + $0xb8] sm:$0xff]
  %v225 = vld [vmem:[%s1 + $0xc0] sm:$0xff]
  %v226 = vld [vmem:[%s1 + $0xc8] sm:$0xff]
  %v227 = vld [vmem:[%s1 + $0xd0] sm:$0xff]
  %v228 = vld [vmem:[%s1 + $0xd8] sm:$0xff]
  %v229 = vld [vmem:[%s1 + $0xe0] sm:$0xff]
  %v230 = vld [vmem:[%s1 + $0xe8] sm:$0xff]
  %v231 = vld [vmem:[%s1 + $0xf0] sm:$0xff]
  %v232 = vld [vmem:[%s1 + $0xf8] sm:$0xff]
  %v233 = vld [vmem:[%s1 + $0x100] sm:$0xff]
  %v234 = vld [vmem:[%s1 + $0x108] sm:$0xff]
  %v235 = vld [vmem:[%s1 + $0x110] sm:$0xff]
  %v236 = vld [vmem:[%s1 + $0x118] sm:$0xff]
  %v237 = vld [vmem:[%s1 + $0x120] sm:$0xff]
  %v238 = vld [vmem:[%s1 + $0x128] sm:$0xff]
  %v239 = vld [vmem:[%s1 + $0x130] sm:$0xff]
  %v240 = vld [vmem:[%s1 + $0x138] sm:$0xff]
  %v241 = vld [vmem:[%s1 + $0x140] sm:$0xff]
  %v242 = vld [vmem:[%s1 + $0x148] sm:$0xff]
  %v243 = vld [vmem:[%s1 + $0x150] sm:$0xff]
  %v244 = vld [vmem:[%s1 + $0x158] sm:$0xff]
  %v245 = vld [vmem:[%s1 + $0x160] sm:$0xff]
  %v246 = vld [vmem:[%s1 + $0x168] sm:$0xff]
  %v247 = vld [vmem:[%s1 + $0x170] sm:$0xff]
  %v248 = vld [vmem:[%s1 + $0x178] sm:$0xff]
  %v249 = vld [vmem:[%s1 + $0x180] sm:$0xff]
  %v250 = vld [vmem:[%s1 + $0x188] sm:$0xff]
  %v251 = vld [vmem:[%s1 + $0x190] sm:$0xff]
  %v252 = vld [vmem:[%s1 + $0x198] sm:$0xff]
  %v253 = vld [vmem:[%s1 + $0x1a0] sm:$0xff]
  %v254 = vld [vmem:[%s1 + $0x1a8] sm:$0xff]
  %v255 = vld [vmem:[%s1 + $0x1b0] sm:$0xff]
  %v256 = vld [vmem:[%s1 + $0x1b8] sm:$0xff]
  %v257 = vld [vmem:[%s1 + $0x1c0] sm:$0xff]
  %v258 = vld [vmem:[%s1 + $0x1c8] sm:$0xff]
  %v259 = vld [vmem:[%s1 + $0x1d0] sm:$0xff]
  %v260 = vld [vmem:[%s1 + $0x1d8] sm:$0xff]
  %v261 = vld [vmem:[%s1 + $0x1e0] sm:$0xff]
  %v262 = vld [vmem:[%s1 + $0x1e8] sm:$0xff]
  %v263 = vld [vmem:[%s1 + $0x1f0] sm:$0xff]
  %v264 = vld [vmem:[%s1 + $0x1f8] sm:$0xff]
  %v265 = vld [vmem:[%s1 + $0x200] sm:$0xff]
  %v266 = vld [vmem:[%s1 + $0x208] sm:$0xff]
  %v267 = vld [vmem:[%s1 + $0x210] sm:$0xff]
  %v268 = vld [vmem:[%s1 + $0x218] sm:$0xff]
  %v269 = vld [vmem:[%s1 + $0x220] sm:$0xff]
  %v270 = vld [vmem:[%s1 + $0x228] sm:$0xff]
  %v271 = vld [vmem:[%s1 + $0x230] sm:$0xff]
  %v272 = vld [vmem:[%s1 + $0x238] sm:$0xff]
  %v273 = vld [vmem:[%s1 + $0x240] sm:$0xff]
  %v274 = vld [vmem:[%s1 + $0x248] sm:$0xff]
  %v275 = vld [vmem:[%s1 + $0x250] sm:$0xff]
  %v276 = vld [vmem:[%s1 + $0x258] sm:$0xff]
  %v277 = vld [vmem:[%s1 + $0x260] sm:$0xff]
  %v278 = vld [vmem:[%s1 + $0x268] sm:$0xff]
  %v279 = vld [vmem:[%s1 + $0x270] sm:$0xff]
  %v280 = vld [vmem:[%s1 + $0x278] sm:$0xff]
  %v281 = vld [vmem:[%s1 + $0x280] sm:$0xff]
  %v282 = vld [vmem:[%s1 + $0x288] sm:$0xff]
  %v283 = vld [vmem:[%s1 + $0x290] sm:$0xff]
  %v284 = vld [vmem:[%s1 + $0x298] sm:$0xff]
  %v285 = vld [vmem:[%s1 + $0x2a0] sm:$0xff]
  %v286 = vld [vmem:[%s1 + $0x2a8] sm:$0xff]
  %v287 = vld [vmem:[%s1 + $0x2b0] sm:$0xff]
  %v288 = vld [vmem:[%s1 + $0x2b8] sm:$0xff]
  %v289 = vld [vmem:[%s1 + $0x2c0] sm:$0xff]
  %v290 = vld [vmem:[%s1 + $0x2c8] sm:$0xff]
  %v291 = vld [vmem:[%s1 + $0x2d0] sm:$0xff]
  %v292 = vld [vmem:[%s1 + $0x2d8] sm:$0xff]
  %v293 = vld [vmem:[%s1 + $0x2e0] sm:$0xff]
  %v294 = vld [vmem:[%s1 + $0x2e8] sm:$0xff]
  %v295 = vld [vmem:[%s1 + $0x2f0] sm:$0xff]
  %v296 = vld [vmem:[%s1 + $0x2f8] sm:$0xff]
  %v297 = vld [vmem:[%s1 + $0x300] sm:$0xff]
  %v298 = vld [vmem:[%s1 + $0x308] sm:$0xff]
  %v299 = vld [vmem:[%s1 + $0x310] sm:$0xff]
  %v300 = vld [vmem:[%s1 + $0x318] sm:$0xff]
  %v301 = vld [vmem:[%s1 + $0x320] sm:$0xff]
  %v302 = vld [vmem:[%s1 + $0x328] sm:$0xff]
  %v303 = vld [vmem:[%s1 + $0x330] sm:$0xff]
  %v304 = vld [vmem:[%s1 + $0x338] sm:$0xff]
  %v305 = vld [vmem:[%s1 + $0x340] sm:$0xff]
  %v306 = vld [vmem:[%s1 + $0x348] sm:$0xff]
  %v307 = vld [vmem:[%s1 + $0x350] sm:$0xff]
  %v308 = vld [vmem:[%s1 + $0x358] sm:$0xff]
  %v309 = vld [vmem:[%s1 + $0x360] sm:$0xff]
  %v310 = vld [vmem:[%s1 + $0x368] sm:$0xff]
  %v311 = vld [vmem:[%s1 + $0x370] sm:$0xff]
  %v312 = vld [vmem:[%s1 + $0x378] sm:$0xff]
  %v313 = vld [vmem:[%s1 + $0x380] sm:$0xff]
  %v314 = vld [vmem:[%s1 + $0x388] sm:$0xff]
  %v315 = vld [vmem:[%s1 + $0x390] sm:$0xff]
  %v316 = vld [vmem:[%s1 + $0x398] sm:$0xff]
  %v317 = vld [vmem:[%s1 + $0x3a0] sm:$0xff]
  %v318 = vld [vmem:[%s1 + $0x3a8] sm:$0xff]
  %v319 = vld [vmem:[%s1 + $0x3b0] sm:$0xff]
  %v320 = vld [vmem:[%s1 + $0x3b8] sm:$0xff]
  %v321 = vld [vmem:[%s1 + $0x3c0] sm:$0xff]
  %v322 = vld [vmem:[%s1 + $0x3c8] sm:$0xff]
  %v323 = vld [vmem:[%s1 + $0x3d0] sm:$0xff]
  %v324 = vld [vmem:[%s1 + $0x3d8] sm:$0xff]
  %v325 = vld [vmem:[%s1 + $0x3e0] sm:$0xff]
  %v326 = vld [vmem:[%s1 + $0x3e8] sm:$0xff]
  %v327 = vld [vmem:[%s1 + $0x3f0] sm:$0xff]
  %v328 = vld [vmem:[%s1 + $0x3f8] sm:$0xff]
  %v329 = vld [vmem:[%s1 + $0x400] sm:$0xff]
  %v330 = vld [vmem:[%s1 + $0x408] sm:$0xff]
  %v331 = vld [vmem:[%s1 + $0x410] sm:$0xff]
  %v332 = vld [vmem:[%s1 + $0x418] sm:$0xff]
  %v333 = vld [vmem:[%s1 + $0x420] sm:$0xff]
  %v334 = vld [vmem:[%s1 + $0x428] sm:$0xff]
  %v335 = vld [vmem:[%s1 + $0x430] sm:$0xff]
  %v336 = vld [vmem:[%s1 + $0x438] sm:$0xff]
  %v337 = vld [vmem:[%s1 + $0x440] sm:$0xff]
  %v338 = vld [vmem:[%s1 + $0x448] sm:$0xff]
  %v339 = vld [vmem:[%s1 + $0x450] sm:$0xff]
  %v340 = vld [vmem:[%s1 + $0x458] sm:$0xff]
  %v341 = vld [vmem:[%s1 + $0x460] sm:$0xff]
  %v342 = vld [vmem:[%s1 + $0x468] sm:$0xff]
  %v343 = vld [vmem:[%s1 + $0x470] sm:$0xff]
  %v344 = vld [vmem:[%s1 + $0x478] sm:$0xff]
  %v345 = vld [vmem:[%s1 + $0x480] sm:$0xff]
  %v346 = vld [vmem:[%s1 + $0x488] sm:$0xff]
  %v347 = vld [vmem:[%s1 + $0x490] sm:$0xff]
  %v348 = vld [vmem:[%s1 + $0x498] sm:$0xff]
  %v349 = vld [vmem:[%s1 + $0x4a0] sm:$0xff]
  %v350 = vld [vmem:[%s1 + $0x4a8] sm:$0xff]
  %v351 = vld [vmem:[%s1 + $0x4b0] sm:$0xff]
  %v352 = vld [vmem:[%s1 + $0x4b8] sm:$0xff]
  %v353 = vld [vmem:[%s1 + $0x4c0] sm:$0xff]
  %v354 = vld [vmem:[%s1 + $0x4c8] sm:$0xff]
  %v355 = vld [vmem:[%s1 + $0x4d0] sm:$0xff]
  %v356 = vld [vmem:[%s1 + $0x4d8] sm:$0xff]
  %v357 = vld [vmem:[%s1 + $0x4e0] sm:$0xff]
  %v358 = vld [vmem:[%s1 + $0x4e8] sm:$0xff]
  %v359 = vld [vmem:[%s1 + $0x4f0] sm:$0xff]
  %v360 = vld [vmem:[%s1 + $0x4f8] sm:$0xff]
  %v361 = vld [vmem:[%s1 + $0x500] sm:$0xff]
  %v362 = vld [vmem:[%s1 + $0x508] sm:$0xff]
  %v363 = vld [vmem:[%s1 + $0x510] sm:$0xff]
  %v364 = vld [vmem:[%s1 + $0x518] sm:$0xff]
  %v365 = vld [vmem:[%s1 + $0x520] sm:$0xff]
  %v366 = vld [vmem:[%s1 + $0x528] sm:$0xff]
  %v367 = vld [vmem:[%s1 + $0x530] sm:$0xff]
  %v368 = vld [vmem:[%s1 + $0x538] sm:$0xff]
  %v369 = vld [vmem:[%s1 + $0x540] sm:$0xff]
  %v370 = vld [vmem:[%s1 + $0x548] sm:$0xff]
  %v371 = vld [vmem:[%s1 + $0x550] sm:$0xff]
  %v372 = vld [vmem:[%s1 + $0x558] sm:$0xff]
  %v373 = vld [vmem:[%s1 + $0x560] sm:$0xff]
  %v374 = vld [vmem:[%s1 + $0x568] sm:$0xff]
  %v375 = vld [vmem:[%s1 + $0x570] sm:$0xff]
  %v376 = vld [vmem:[%s1 + $0x578] sm:$0xff]
  %v377 = vld [vmem:[%s1 + $0x580] sm:$0xff]
  %v378 = vld [vmem:[%s1 + $0x588] sm:$0xff]
  %v379 = vld [vmem:[%s1 + $0x590] sm:$0xff]
  %v380 = vld [vmem:[%s1 + $0x598] sm:$0xff]
  %v381 = vld [vmem:[%s1 + $0x5a0] sm:$0xff]
  %v382 = vld [vmem:[%s1 + $0x5a8] sm:$0xff]
  %v383 = vld [vmem:[%s1 + $0x5b0] sm:$0xff]
  %v384 = vld [vmem:[%s1 + $0x5b8] sm:$0xff]
  %v385 = vld [vmem:[%s1 + $0x5c0] sm:$0xff]
  %v386 = vld [vmem:[%s1 + $0x5c8] sm:$0xff]
  %v387 = vld [vmem:[%s1 + $0x5d0] sm:$0xff]
  %v388 = vld [vmem:[%s1 + $0x5d8] sm:$0xff]
  %v389 = vld [vmem:[%s1 + $0x5e0] sm:$0xff]
  %v390 = vld [vmem:[%s1 + $0x5e8] sm:$0xff]
  %v391 = vld [vmem:[%s1 + $0x5f0] sm:$0xff]
  %v392 = vld [vmem:[%s1 + $0x5f8] sm:$0xff]
  %v393 = vld [vmem:[%s1 + $0x600] sm:$0xff]
  %v394 = vld [vmem:[%s1 + $0x608] sm:$0xff]
  %v395 = vld [vmem:[%s1 + $0x610] sm:$0xff]
  %v396 = vld [vmem:[%s1 + $0x618] sm:$0xff]
  %v397 = vld [vmem:[%s1 + $0x620] sm:$0xff]
  %v398 = vld [vmem:[%s1 + $0x628] sm:$0xff]
  %v399 = vld [vmem:[%s1 + $0x630] sm:$0xff]
  %v400 = vld [vmem:[%s1 + $0x638] sm:$0xff]
  %v401 = vld [vmem:[%s1 + $0x640] sm:$0xff]
  %v402 = vld [vmem:[%s1 + $0x648] sm:$0xff]
  %v403 = vld [vmem:[%s1 + $0x650] sm:$0xff]
  %v404 = vld [vmem:[%s1 + $0x658] sm:$0xff]
  %v405 = vld [vmem:[%s1 + $0x660] sm:$0xff]
  %v406 = vld [vmem:[%s1 + $0x668] sm:$0xff]
  %v407 = vld [vmem:[%s1 + $0x670] sm:$0xff]
  %v408 = vld [vmem:[%s1 + $0x678] sm:$0xff]
  %v409 = vld [vmem:[%s1 + $0x680] sm:$0xff]
  %v410 = vld [vmem:[%s1 + $0x688] sm:$0xff]
  %v411 = vld [vmem:[%s1 + $0x690] sm:$0xff]
  %v412 = vld [vmem:[%s1 + $0x698] sm:$0xff]
  %v413 = vld [vmem:[%s1 + $0x6a0] sm:$0xff]
  %v414 = vld [vmem:[%s1 + $0x6a8] sm:$0xff]
  %v415 = vld [vmem:[%s1 + $0x6b0] sm:$0xff]
  %v416 = vld [vmem:[%s1 + $0x6b8] sm:$0xff]
  %v417 = vld [vmem:[%s1 + $0x6c0] sm:$0xff]
  %v418 = vld [vmem:[%s1 + $0x6c8] sm:$0xff]
  %v419 = vld [vmem:[%s1 + $0x6d0] sm:$0xff]
  %v420 = vld [vmem:[%s1 + $0x6d8] sm:$0xff]
  %v421 = vld [vmem:[%s1 + $0x6e0] sm:$0xff]
  %v422 = vld [vmem:[%s1 + $0x6e8] sm:$0xff]
  %v423 = vld [vmem:[%s1 + $0x6f0] sm:$0xff]
  %v424 = vld [vmem:[%s1 + $0x6f8] sm:$0xff]
  %v425 = vld [vmem:[%s1 + $0x700] sm:$0xff]
  %v426 = vld [vmem:[%s1 + $0x708] sm:$0xff]
  %v427 = vld [vmem:[%s1 + $0x710] sm:$0xff]
  %v428 = vld [vmem:[%s1 + $0x718] sm:$0xff]
  %v429 = vld [vmem:[%s1 + $0x720] sm:$0xff]
  %v430 = vld [vmem:[%s1 + $0x728] sm:$0xff]
  %v431 = vld [vmem:[%s1 + $0x730] sm:$0xff]
  %v432 = vld [vmem:[%s1 + $0x738] sm:$0xff]
  %v433 = vld [vmem:[%s1 + $0x740] sm:$0xff]
  %v434 = vld [vmem:[%s1 + $0x748] sm:$0xff]
  %v435 = vld [vmem:[%s1 + $0x750] sm:$0xff]
  %v436 = vld [vmem:[%s1 + $0x758] sm:$0xff]
  %v437 = vld [vmem:[%s1 + $0x760] sm:$0xff]
  %v438 = vld [vmem:[%s1 + $0x768] sm:$0xff]
  %v439 = vld [vmem:[%s1 + $0x770] sm:$0xff]
  %v440 = vld [vmem:[%s1 + $0x778] sm:$0xff]
  %v441 = vld [vmem:[%s1 + $0x780] sm:$0xff]
  %v442 = vld [vmem:[%s1 + $0x788] sm:$0xff]
  %v443 = vld [vmem:[%s1 + $0x790] sm:$0xff]
  %v444 = vld [vmem:[%s1 + $0x798] sm:$0xff]
  %v445 = vld [vmem:[%s1 + $0x7a0] sm:$0xff]
  %v446 = vld [vmem:[%s1 + $0x7a8] sm:$0xff]
  %v447 = vld [vmem:[%s1 + $0x7b0] sm:$0xff]
  %v448 = vld [vmem:[%s1 + $0x7b8] sm:$0xff]
  %v449 = vld [vmem:[%s1 + $0x7c0] sm:$0xff]
  %v450 = vld [vmem:[%s1 + $0x7c8] sm:$0xff]
  %v451 = vld [vmem:[%s1 + $0x7d0] sm:$0xff]
  %v452 = vld [vmem:[%s1 + $0x7d8] sm:$0xff]
  %v453 = vld [vmem:[%s1 + $0x7e0] sm:$0xff]
  %v454 = vld [vmem:[%s1 + $0x7e8] sm:$0xff]
  %v455 = vld [vmem:[%s1 + $0x7f0] sm:$0xff]
  %v456 = vld [vmem:[%s1 + $0x7f8] sm:$0xff]
  %v457 = vld [vmem:[%s1 + $0x800] sm:$0xff]
  %v458 = vld [vmem:[%s1 + $0x808] sm:$0xff]
  %v459 = vld [vmem:[%s1 + $0x810] sm:$0xff]
  %v460 = vld [vmem:[%s1 + $0x818] sm:$0xff]
  %v461 = vld [vmem:[%s1 + $0x820] sm:$0xff]
  %v462 = vld [vmem:[%s1 + $0x828] sm:$0xff]
  %v463 = vld [vmem:[%s1 + $0x830] sm:$0xff]
  %v464 = vld [vmem:[%s1 + $0x838] sm:$0xff]
  %v465 = vld [vmem:[%s1 + $0x840] sm:$0xff]
  %v466 = vld [vmem:[%s1 + $0x848] sm:$0xff]
  %v467 = vld [vmem:[%s1 + $0x850] sm:$0xff]
  %v468 = vld [vmem:[%s1 + $0x858] sm:$0xff]
  %v469 = vld [vmem:[%s1 + $0x860] sm:$0xff]
  %v470 = vld [vmem:[%s1 + $0x868] sm:$0xff]
  %v471 = vld [vmem:[%s1 + $0x870] sm:$0xff]
  %v472 = vld [vmem:[%s1 + $0x878] sm:$0xff]
  %v473 = vld [vmem:[%s1 + $0x880] sm:$0xff]
  %v474 = vld [vmem:[%s1 + $0x888] sm:$0xff]
  %v475 = vld [vmem:[%s1 + $0x890] sm:$0xff]
  %v476 = vld [vmem:[%s1 + $0x898] sm:$0xff]
  %v477 = vld [vmem:[%s1 + $0x8a0] sm:$0xff]
  %v478 = vld [vmem:[%s1 + $0x8a8] sm:$0xff]
  %v479 = vld [vmem:[%s1 + $0x8b0] sm:$0xff]
  %v480 = vld [vmem:[%s1 + $0x8b8] sm:$0xff]
  %v481 = vld [vmem:[%s1 + $0x8c0] sm:$0xff]
  %v482 = vld [vmem:[%s1 + $0x8c8] sm:$0xff]
  %v483 = vld [vmem:[%s1 + $0x8d0] sm:$0xff]
  %v484 = vld [vmem:[%s1 + $0x8d8] sm:$0xff]
  %v485 = vld [vmem:[%s1 + $0x8e0] sm:$0xff]
  %v486 = vld [vmem:[%s1 + $0x8e8] sm:$0xff]
  %v487 = vld [vmem:[%s1 + $0x8f0] sm:$0xff]
  %v488 = vld [vmem:[%s1 + $0x8f8] sm:$0xff]
  %v489 = vld [vmem:[%s1 + $0x900] sm:$0xff]
  %v490 = vld [vmem:[%s1 + $0x908] sm:$0xff]
  %v491 = vld [vmem:[%s1 + $0x910] sm:$0xff]
  %v492 = vld [vmem:[%s1 + $0x918] sm:$0xff]
  %v493 = vld [vmem:[%s1 + $0x920] sm:$0xff]
  %v494 = vld [vmem:[%s1 + $0x928] sm:$0xff]
  %v495 = vld [vmem:[%s1 + $0x930] sm:$0xff]
  %v496 = vld [vmem:[%s1 + $0x938] sm:$0xff]
  %v497 = vld [vmem:[%s1 + $0x940] sm:$0xff]
  %v498 = vld [vmem:[%s1 + $0x948] sm:$0xff]
  %v499 = vld [vmem:[%s1 + $0x950] sm:$0xff]
  %v500 = vld [vmem:[%s1 + $0x958] sm:$0xff]
  %v501 = vld [vmem:[%s1 + $0x960] sm:$0xff]
  %v502 = vld [vmem:[%s1 + $0x968] sm:$0xff]
  %v503 = vld [vmem:[%s1 + $0x970] sm:$0xff]
  %v504 = vld [vmem:[%s1 + $0x978] sm:$0xff]
  %v505 = vld [vmem:[%s1 + $0x980] sm:$0xff]
  %v506 = vld [vmem:[%s1 + $0x988] sm:$0xff]
  %v507 = vld [vmem:[%s1 + $0x990] sm:$0xff]
  %v508 = vld [vmem:[%s1 + $0x998] sm:$0xff]
  %v509 = vld [vmem:[%s1 + $0x9a0] sm:$0xff]
  %v510 = vld [vmem:[%s1 + $0x9a8] sm:$0xff]
  %v511 = vld [vmem:[%s1 + $0x9b0] sm:$0xff]
  %v512 = vld [vmem:[%s1 + $0x9b8] sm:$0xff]
  %v513 = vld [vmem:[%s1 + $0x9c0] sm:$0xff]
  %v514 = vld [vmem:[%s1 + $0x9c8] sm:$0xff]
  %v515 = vld [vmem:[%s1 + $0x9d0] sm:$0xff]
  %v516 = vld [vmem:[%s1 + $0x9d8] sm:$0xff]
  %v517 = vld [vmem:[%s1 + $0x9e0] sm:$0xff]
  %v518 = vld [vmem:[%s1 + $0x9e8] sm:$0xff]
  %v519 = vld [vmem:[%s1 + $0x9f0] sm:$0xff]
  %v520 = vld [vmem:[%s1 + $0x9f8] sm:$0xff]
  %v521 = vld [vmem:[%s1 + $0xa00] sm:$0xff]
  %v522 = vld [vmem:[%s1 + $0xa08] sm:$0xff]
  %v523 = vld [vmem:[%s1 + $0xa10] sm:$0xff]
  %v524 = vld [vmem:[%s1 + $0xa18] sm:$0xff]
  %v525 = vld [vmem:[%s1 + $0xa20] sm:$0xff]
  %v526 = vld [vmem:[%s1 + $0xa28] sm:$0xff]
  %v527 = vld [vmem:[%s1 + $0xa30] sm:$0xff]
  %v528 = vld [vmem:[%s1 + $0xa38] sm:$0xff]
  %v529 = vld [vmem:[%s1 + $0xa40] sm:$0xff]
  %v530 = vld [vmem:[%s1 + $0xa48] sm:$0xff]
  %v531 = vld [vmem:[%s1 + $0xa50] sm:$0xff]
  %v532 = vld [vmem:[%s1 + $0xa58] sm:$0xff]
  %v533 = vld [vmem:[%s1 + $0xa60] sm:$0xff]
  %v534 = vld [vmem:[%s1 + $0xa68] sm:$0xff]
  %v535 = vld [vmem:[%s1 + $0xa70] sm:$0xff]
  %v536 = vld [vmem:[%s1 + $0xa78] sm:$0xff]
  %v537 = vld [vmem:[%s1 + $0xa80] sm:$0xff]
  %v538 = vld [vmem:[%s1 + $0xa88] sm:$0xff]
  %v539 = vld [vmem:[%s1 + $0xa90] sm:$0xff]
  %v540 = vld [vmem:[%s1 + $0xa98] sm:$0xff]
  %v541 = vld [vmem:[%s1 + $0xaa0] sm:$0xff]
  %v542 = vld [vmem:[%s1 + $0xaa8] sm:$0xff]
  %v543 = vld [vmem:[%s1 + $0xab0] sm:$0xff]
  %v544 = vld [vmem:[%s1 + $0xab8] sm:$0xff]
  %v545 = vld [vmem:[%s1 + $0xac0] sm:$0xff]
  %v546 = vld [vmem:[%s1 + $0xac8] sm:$0xff]
  %v547 = vld [vmem:[%s1 + $0xad0] sm:$0xff]
  %v548 = vld [vmem:[%s1 + $0xad8] sm:$0xff]
  %v549 = vld [vmem:[%s1 + $0xae0] sm:$0xff]
  %v550 = vld [vmem:[%s1 + $0xae8] sm:$0xff]
  %v551 = vld [vmem:[%s1 + $0xaf0] sm:$0xff]
  %v552 = vld [vmem:[%s1 + $0xaf8] sm:$0xff]
  %v553 = vld [vmem:[%s1 + $0xb00] sm:$0xff]
  %v554 = vld [vmem:[%s1 + $0xb08] sm:$0xff]
  %v555 = vld [vmem:[%s1 + $0xb10] sm:$0xff]
  %v556 = vld [vmem:[%s1 + $0xb18] sm:$0xff]
  %v557 = vld [vmem:[%s1 + $0xb20] sm:$0xff]
  %v558 = vld [vmem:[%s1 + $0xb28] sm:$0xff]
  %v559 = vld [vmem:[%s1 + $0xb30] sm:$0xff]
  %v560 = vld [vmem:[%s1 + $0xb38] sm:$0xff]
  %v561 = vld [vmem:[%s1 + $0xb40] sm:$0xff]
  %v562 = vld [vmem:[%s1 + $0xb48] sm:$0xff]
  %v563 = vld [vmem:[%s1 + $0xb50] sm:$0xff]
  %v564 = vld [vmem:[%s1 + $0xb58] sm:$0xff]
  %v565 = vld [vmem:[%s1 + $0xb60] sm:$0xff]
  %v566 = vld [vmem:[%s1 + $0xb68] sm:$0xff]
  %v567 = vld [vmem:[%s1 + $0xb70] sm:$0xff]
  %v568 = vld [vmem:[%s1 + $0xb78] sm:$0xff]
  %v569 = vld [vmem:[%s1 + $0xb80] sm:$0xff]
  %v570 = vld [vmem:[%s1 + $0xb88] sm:$0xff]
  %v571 = vld [vmem:[%s1 + $0xb90] sm:$0xff]
  %v572 = vld [vmem:[%s1 + $0xb98] sm:$0xff]
  %v573 = vld [vmem:[%s1 + $0xba0] sm:$0xff]
  %v574 = vld [vmem:[%s1 + $0xba8] sm:$0xff]
  %v575 = vld [vmem:[%s1 + $0xbb0] sm:$0xff]
  %v576 = vld [vmem:[%s1 + $0xbb8] sm:$0xff]
  %v577 = vld [vmem:[%s1 + $0xbc0] sm:$0xff]
  %v578 = vld [vmem:[%s1 + $0xbc8] sm:$0xff]
  %v579 = vld [vmem:[%s1 + $0xbd0] sm:$0xff]
  %v580 = vld [vmem:[%s1 + $0xbd8] sm:$0xff]
  %v581 = vld [vmem:[%s1 + $0xbe0] sm:$0xff]
  %v582 = vld [vmem:[%s1 + $0xbe8] sm:$0xff]
  %v583 = vld [vmem:[%s1 + $0xbf0] sm:$0xff]
  %v584 = vld [vmem:[%s1 + $0xbf8] sm:$0xff]
  %v585 = vld [vmem:[%s1 + $0xc00] sm:$0xff]
  %v586 = vld [vmem:[%s1 + $0xc08] sm:$0xff]
  %v587 = vld [vmem:[%s1 + $0xc10] sm:$0xff]
  %v588 = vld [vmem:[%s1 + $0xc18] sm:$0xff]
  %v589 = vld [vmem:[%s1 + $0xc20] sm:$0xff]
  %v590 = vld [vmem:[%s1 + $0xc28] sm:$0xff]
  %v591 = vld [vmem:[%s1 + $0xc30] sm:$0xff]
  %v592 = vld [vmem:[%s1 + $0xc38] sm:$0xff]
  %v593 = vld [vmem:[%s1 + $0xc40] sm:$0xff]
  %v594 = vld [vmem:[%s1 + $0xc48] sm:$0xff]
  %v595 = vld [vmem:[%s1 + $0xc50] sm:$0xff]
  %v596 = vld [vmem:[%s1 + $0xc58] sm:$0xff]
  %v597 = vld [vmem:[%s1 + $0xc60] sm:$0xff]
  %v598 = vld [vmem:[%s1 + $0xc68] sm:$0xff]
  %v599 = vld [vmem:[%s1 + $0xc70] sm:$0xff]
  %v600 = vld [vmem:[%s1 + $0xc78] sm:$0xff]
  %v601 = vld [vmem:[%s1 + $0xc80] sm:$0xff]
  %v602 = vld [vmem:[%s1 + $0xc88] sm:$0xff]
  %v603 = vld [vmem:[%s1 + $0xc90] sm:$0xff]
  %v604 = vld [vmem:[%s1 + $0xc98] sm:$0xff]
  %v605 = vld [vmem:[%s1 + $0xca0] sm:$0xff]
  %v606 = vld [vmem:[%s1 + $0xca8] sm:$0xff]
  %v607 = vld [vmem:[%s1 + $0xcb0] sm:$0xff]
  %v608 = vld [vmem:[%s1 + $0xcb8] sm:$0xff]
  %v609 = vld [vmem:[%s1 + $0xcc0] sm:$0xff]
  %v610 = vld [vmem:[%s1 + $0xcc8] sm:$0xff]
  %v611 = vld [vmem:[%s1 + $0xcd0] sm:$0xff]
  %v612 = vld [vmem:[%s1 + $0xcd8] sm:$0xff]
  %v613 = vld [vmem:[%s1 + $0xce0] sm:$0xff]
  %v614 = vld [vmem:[%s1 + $0xce8] sm:$0xff]
  %v615 = vld [vmem:[%s1 + $0xcf0] sm:$0xff]
  %v616 = vld [vmem:[%s1 + $0xcf8] sm:$0xff]
  %v617 = vld [vmem:[%s1 + $0xd00] sm:$0xff]
  %v618 = vld [vmem:[%s1 + $0xd08] sm:$0xff]
  %v619 = vld [vmem:[%s1 + $0xd10] sm:$0xff]
  %v620 = vld [vmem:[%s1 + $0xd18] sm:$0xff]
  %v621 = vld [vmem:[%s1 + $0xd20] sm:$0xff]
  %v622 = vld [vmem:[%s1 + $0xd28] sm:$0xff]
  %v623 = vld [vmem:[%s1 + $0xd30] sm:$0xff]
  %v624 = vld [vmem:[%s1 + $0xd38] sm:$0xff]
  %v625 = vld [vmem:[%s1 + $0xd40] sm:$0xff]
  %v626 = vld [vmem:[%s1 + $0xd48] sm:$0xff]
  %v627 = vld [vmem:[%s1 + $0xd50] sm:$0xff]
  %v628 = vld [vmem:[%s1 + $0xd58] sm:$0xff]
  %v629 = vld [vmem:[%s1 + $0xd60] sm:$0xff]
  %v630 = vld [vmem:[%s1 + $0xd68] sm:$0xff]
  %v631 = vld [vmem:[%s1 + $0xd70] sm:$0xff]
  %v632 = vld [vmem:[%s1 + $0xd78] sm:$0xff]
  %v633 = vld [vmem:[%s1 + $0xd80] sm:$0xff]
  %v634 = vld [vmem:[%s1 + $0xd88] sm:$0xff]
  %v635 = vld [vmem:[%s1 + $0xd90] sm:$0xff]
  %v636 = vld [vmem:[%s1 + $0xd98] sm:$0xff]
  %v637 = vld [vmem:[%s1 + $0xda0] sm:$0xff]
  %v638 = vld [vmem:[%s1 + $0xda8] sm:$0xff]
  %v639 = vld [vmem:[%s1 + $0xdb0] sm:$0xff]
  %v640 = vld [vmem:[%s1 + $0xdb8] sm:$0xff]
  %v641 = vld [vmem:[%s1 + $0xdc0] sm:$0xff]
  %v642 = vld [vmem:[%s1 + $0xdc8] sm:$0xff]
  %v643 = vld [vmem:[%s1 + $0xdd0] sm:$0xff]
  %v644 = vld [vmem:[%s1 + $0xdd8] sm:$0xff]
  %v645 = vld [vmem:[%s1 + $0xde0] sm:$0xff]
  %v646 = vld [vmem:[%s1 + $0xde8] sm:$0xff]
  %v647 = vld [vmem:[%s1 + $0xdf0] sm:$0xff]
  %v648 = vld [vmem:[%s1 + $0xdf8] sm:$0xff]
  %v649 = vld [vmem:[%s1 + $0xe00] sm:$0xff]
  %v650 = vld [vmem:[%s1 + $0xe08] sm:$0xff]
  %v651 = vld [vmem:[%s1 + $0xe10] sm:$0xff]
  %v652 = vld [vmem:[%s1 + $0xe18] sm:$0xff]
  %v653 = vld [vmem:[%s1 + $0xe20] sm:$0xff]
  %v654 = vld [vmem:[%s1 + $0xe28] sm:$0xff]
  %v655 = vld [vmem:[%s1 + $0xe30] sm:$0xff]
  %v656 = vld [vmem:[%s1 + $0xe38] sm:$0xff]
  %v657 = vld [vmem:[%s1 + $0xe40] sm:$0xff]
  %v658 = vld [vmem:[%s1 + $0xe48] sm:$0xff]
  %v659 = vld [vmem:[%s1 + $0xe50] sm:$0xff]
  %v660 = vld [vmem:[%s1 + $0xe58] sm:$0xff]
  %v661 = vld [vmem:[%s1 + $0xe60] sm:$0xff]
  %v662 = vld [vmem:[%s1 + $0xe68] sm:$0xff]
  %v663 = vld [vmem:[%s1 + $0xe70] sm:$0xff]
  %v664 = vld [vmem:[%s1 + $0xe78] sm:$0xff]
  %v665 = vld [vmem:[%s1 + $0xe80] sm:$0xff]
  %v666 = vld [vmem:[%s1 + $0xe88] sm:$0xff]
  %v667 = vld [vmem:[%s1 + $0xe90] sm:$0xff]
  %v668 = vld [vmem:[%s1 + $0xe98] sm:$0xff]
  %v669 = vld [vmem:[%s1 + $0xea0] sm:$0xff]
  %v670 = vld [vmem:[%s1 + $0xea8] sm:$0xff]
  %v671 = vld [vmem:[%s1 + $0xeb0] sm:$0xff]
  %v672 = vld [vmem:[%s1 + $0xeb8] sm:$0xff]
  %v673 = vld [vmem:[%s1 + $0xec0] sm:$0xff]
  %v674 = vld [vmem:[%s1 + $0xec8] sm:$0xff]
  %v675 = vld [vmem:[%s1 + $0xed0] sm:$0xff]
  %v676 = vld [vmem:[%s1 + $0xed8] sm:$0xff]
  %v677 = vld [vmem:[%s1 + $0xee0] sm:$0xff]
  %v678 = vld [vmem:[%s1 + $0xee8] sm:$0xff]
  %v679 = vld [vmem:[%s1 + $0xef0] sm:$0xff]
  %v680 = vld [vmem:[%s1 + $0xef8] sm:$0xff]
  %v681 = vld [vmem:[%s1 + $0xf00] sm:$0xff]
  %v682 = vld [vmem:[%s1 + $0xf08] sm:$0xff]
  %v683 = vld [vmem:[%s1 + $0xf10] sm:$0xff]
  %v684 = vld [vmem:[%s1 + $0xf18] sm:$0xff]
  %v685 = vld [vmem:[%s1 + $0xf20] sm:$0xff]
  %v686 = vld [vmem:[%s1 + $0xf28] sm:$0xff]
  %v687 = vld [vmem:[%s1 + $0xf30] sm:$0xff]
  %v688 = vld [vmem:[%s1 + $0xf38] sm:$0xff]
  %v689 = vld [vmem:[%s1 + $0xf40] sm:$0xff]
  %v690 = vld [vmem:[%s1 + $0xf48] sm:$0xff]
  %v691 = vld [vmem:[%s1 + $0xf50] sm:$0xff]
  %v692 = vld [vmem:[%s1 + $0xf58] sm:$0xff]
  %v693 = vld [vmem:[%s1 + $0xf60] sm:$0xff]
  %v694 = vld [vmem:[%s1 + $0xf68] sm:$0xff]
  %v695 = vld [vmem:[%s1 + $0xf70] sm:$0xff]
  %v696 = vld [vmem:[%s1 + $0xf78] sm:$0xff]
  %v697 = vld [vmem:[%s1 + $0xf80] sm:$0xff]
  %v698 = vld [vmem:[%s1 + $0xf88] sm:$0xff]
  %v699 = vld [vmem:[%s1 + $0xf90] sm:$0xff]
  %v700 = vld [vmem:[%s1 + $0xf98] sm:$0xff]
  %v701 = vld [vmem:[%s1 + $0xfa0] sm:$0xff]
  %v702 = vld [vmem:[%s1 + $0xfa8] sm:$0xff]
  %v703 = vld [vmem:[%s1 + $0xfb0] sm:$0xff]
  %v704 = vld [vmem:[%s1 + $0xfb8] sm:$0xff]
  %v705 = vld [vmem:[%s1 + $0xfc0] sm:$0xff]
  %v706 = vld [vmem:[%s1 + $0xfc8] sm:$0xff]
  %v707 = vld [vmem:[%s1 + $0xfd0] sm:$0xff]
  %v708 = vld [vmem:[%s1 + $0xfd8] sm:$0xff]
  %v709 = vld [vmem:[%s1 + $0xfe0] sm:$0xff]
  %v710 = vld [vmem:[%s1 + $0xfe8] sm:$0xff]
  %v711 = vld [vmem:[%s1 + $0xff0] sm:$0xff]
  %v712 = vld [vmem:[%s1 + $0xff8] sm:$0xff]
  %v713 = vld [vmem:[%s1 + $0x1000] sm:$0xff]
  %v714 = vld [vmem:[%s1 + $0x1008] sm:$0xff]
  %v715 = vld [vmem:[%s1 + $0x1010] sm:$0xff]
  %v716 = vld [vmem:[%s1 + $0x1018] sm:$0xff]
  %v717 = vld [vmem:[%s1 + $0x1020] sm:$0xff]
  %v718 = vld [vmem:[%s1 + $0x1028] sm:$0xff]
  %v719 = vld [vmem:[%s1 + $0x1030] sm:$0xff]
  %v720 = vld [vmem:[%s1 + $0x1038] sm:$0xff]
  %v721 = vld [vmem:[%s1 + $0x1040] sm:$0xff]
  %v722 = vld [vmem:[%s1 + $0x1048] sm:$0xff]
  %v723 = vld [vmem:[%s1 + $0x1050] sm:$0xff]
  %v724 = vld [vmem:[%s1 + $0x1058] sm:$0xff]
  %v725 = vld [vmem:[%s1 + $0x1060] sm:$0xff]
  %v726 = vld [vmem:[%s1 + $0x1068] sm:$0xff]
  %v727 = vld [vmem:[%s1 + $0x1070] sm:$0xff]
  %v728 = vld [vmem:[%s1 + $0x1078] sm:$0xff]
  %v729 = vld [vmem:[%s1 + $0x1080] sm:$0xff]
  %v730 = vld [vmem:[%s1 + $0x1088] sm:$0xff]
  %v731 = vld [vmem:[%s1 + $0x1090] sm:$0xff]
  %v732 = vld [vmem:[%s1 + $0x1098] sm:$0xff]
  %v733 = vld [vmem:[%s1 + $0x10a0] sm:$0xff]
  %v734 = vld [vmem:[%s1 + $0x10a8] sm:$0xff]
  %v735 = vld [vmem:[%s1 + $0x10b0] sm:$0xff]
  %v736 = vld [vmem:[%s1 + $0x10b8] sm:$0xff]
  %v737 = vld [vmem:[%s1 + $0x10c0] sm:$0xff]
  %v738 = vld [vmem:[%s1 + $0x10c8] sm:$0xff]
  %v739 = vld [vmem:[%s1 + $0x10d0] sm:$0xff]
  %v740 = vld [vmem:[%s1 + $0x10d8] sm:$0xff]
  %v741 = vld [vmem:[%s1 + $0x10e0] sm:$0xff]
  %v742 = vld [vmem:[%s1 + $0x10e8] sm:$0xff]
  %v743 = vld [vmem:[%s1 + $0x10f0] sm:$0xff]
  %v744 = vld [vmem:[%s1 + $0x10f8] sm:$0xff]
  %v745 = vld [vmem:[%s1 + $0x1100] sm:$0xff]
  %v746 = vld [vmem:[%s1 + $0x1108] sm:$0xff]
  %v747 = vld [vmem:[%s1 + $0x1110] sm:$0xff]
  %v748 = vld [vmem:[%s1 + $0x1118] sm:$0xff]
  %v749 = vld [vmem:[%s1 + $0x1120] sm:$0xff]
  %v750 = vld [vmem:[%s1 + $0x1128] sm:$0xff]
  %v751 = vld [vmem:[%s1 + $0x1130] sm:$0xff]
  %v752 = vld [vmem:[%s1 + $0x1138] sm:$0xff]
  %v753 = vld [vmem:[%s1 + $0x1140] sm:$0xff]
  %v754 = vld [vmem:[%s1 + $0x1148] sm:$0xff]
  %v755 = vld [vmem:[%s1 + $0x1150] sm:$0xff]
  %v756 = vld [vmem:[%s1 + $0x1158] sm:$0xff]
  %v757 = vld [vmem:[%s1 + $0x1160] sm:$0xff]
  %v758 = vld [vmem:[%s1 + $0x1168] sm:$0xff]
  %v759 = vld [vmem:[%s1 + $0x1170] sm:$0xff]
  %v760 = vld [vmem:[%s1 + $0x1178] sm:$0xff]
  %v761 = vld [vmem:[%s1 + $0x1180] sm:$0xff]
  %v762 = vld [vmem:[%s1 + $0x1188] sm:$0xff]
  %v763 = vld [vmem:[%s1 + $0x1190] sm:$0xff]
  %v764 = vld [vmem:[%s1 + $0x1198] sm:$0xff]
  %v765 = vld [vmem:[%s1 + $0x11a0] sm:$0xff]
  %v766 = vld [vmem:[%s1 + $0x11a8] sm:$0xff]
  %v767 = vld [vmem:[%s1 + $0x11b0] sm:$0xff]
  %v768 = vld [vmem:[%s1 + $0x11b8] sm:$0xff]
  %v769 = vld [vmem:[%s1 + $0x11c0] sm:$0xff]
  %v770 = vld [vmem:[%s1 + $0x11c8] sm:$0xff]
  %v771 = vld [vmem:[%s1 + $0x11d0] sm:$0xff]
  %v772 = vld [vmem:[%s1 + $0x11d8] sm:$0xff]
  %v773 = vld [vmem:[%s1 + $0x11e0] sm:$0xff]
  %v774 = vld [vmem:[%s1 + $0x11e8] sm:$0xff]
  %v775 = vld [vmem:[%s1 + $0x11f0] sm:$0xff]
  %v776 = vld [vmem:[%s1 + $0x11f8] sm:$0xff]
  %v777 = vld [vmem:[%s1 + $0x1200] sm:$0xff]
  %v778 = vld [vmem:[%s1 + $0x1208] sm:$0xff]
  %v779 = vld [vmem:[%s1 + $0x1210] sm:$0xff]
  %v780 = vld [vmem:[%s1 + $0x1218] sm:$0xff]
  %v781 = vld [vmem:[%s1 + $0x1220] sm:$0xff]
  %v782 = vld [vmem:[%s1 + $0x1228] sm:$0xff]
  %v783 = vld [vmem:[%s1 + $0x1230] sm:$0xff]
  %v784 = vld [vmem:[%s1 + $0x1238] sm:$0xff]
  %v785 = vld [vmem:[%s1 + $0x1240] sm:$0xff]
  %v786 = vld [vmem:[%s1 + $0x1248] sm:$0xff]
  %v787 = vld [vmem:[%s1 + $0x1250] sm:$0xff]
  %v788 = vld [vmem:[%s1 + $0x1258] sm:$0xff]
  %v789 = vld [vmem:[%s1 + $0x1260] sm:$0xff]
  %v790 = vld [vmem:[%s1 + $0x1268] sm:$0xff]
  %v791 = vld [vmem:[%s1 + $0x1270] sm:$0xff]
  %v792 = vld [vmem:[%s1 + $0x1278] sm:$0xff]
  %v793 = vld [vmem:[%s1 + $0x1280] sm:$0xff]
  %v794 = vld [vmem:[%s1 + $0x1288] sm:$0xff]
  %v795 = vld [vmem:[%s1 + $0x1290] sm:$0xff]
  %v796 = vld [vmem:[%s1 + $0x1298] sm:$0xff]
  %v797 = vld [vmem:[%s1 + $0x12a0] sm:$0xff]
  %v798 = vld [vmem:[%s1 + $0x12a8] sm:$0xff]
  %v799 = vld [vmem:[%s1 + $0x12b0] sm:$0xff]
  %v800 = vld [vmem:[%s1 + $0x12b8] sm:$0xff]
  %v801 = vld [vmem:[%s1 + $0x12c0] sm:$0xff]
  %v802 = vld [vmem:[%s1 + $0x12c8] sm:$0xff]
  %v803 = vld [vmem:[%s1 + $0x12d0] sm:$0xff]
  %v804 = vld [vmem:[%s1 + $0x12d8] sm:$0xff]
  %v805 = vld [vmem:[%s1 + $0x12e0] sm:$0xff]
  %v806 = vld [vmem:[%s1 + $0x12e8] sm:$0xff]
  %v807 = vld [vmem:[%s1 + $0x12f0] sm:$0xff]
  %v808 = vld [vmem:[%s1 + $0x12f8] sm:$0xff]
  %v809 = vld [vmem:[%s1 + $0x1300] sm:$0xff]
  %v810 = vld [vmem:[%s1 + $0x1308] sm:$0xff]
  %v811 = vld [vmem:[%s1 + $0x1310] sm:$0xff]
  %v812 = vld [vmem:[%s1 + $0x1318] sm:$0xff]
  %v813 = vld [vmem:[%s1 + $0x1320] sm:$0xff]
  %v814 = vld [vmem:[%s1 + $0x1328] sm:$0xff]
  %v815 = vld [vmem:[%s1 + $0x1330] sm:$0xff]
  %v816 = vld [vmem:[%s1 + $0x1338] sm:$0xff]
  %v817 = vld [vmem:[%s1 + $0x1340] sm:$0xff]
  %v818 = vld [vmem:[%s1 + $0x1348] sm:$0xff]
  %v819 = vld [vmem:[%s1 + $0x1350] sm:$0xff]
  %v820 = vld [vmem:[%s1 + $0x1358] sm:$0xff]
  %v821 = vld [vmem:[%s1 + $0x1360] sm:$0xff]
  %v822 = vld [vmem:[%s1 + $0x1368] sm:$0xff]
  %v823 = vld [vmem:[%s1 + $0x1370] sm:$0xff]
  %v824 = vld [vmem:[%s1 + $0x1378] sm:$0xff]
  %v825 = vld [vmem:[%s1 + $0x1380] sm:$0xff]
  %v826 = vld [vmem:[%s1 + $0x1388] sm:$0xff]
  %v827 = vld [vmem:[%s1 + $0x1390] sm:$0xff]
  %v828 = vld [vmem:[%s1 + $0x1398] sm:$0xff]
  %v829 = vld [vmem:[%s1 + $0x13a0] sm:$0xff]
  %v830 = vld [vmem:[%s1 + $0x13a8] sm:$0xff]
  %v831 = vld [vmem:[%s1 + $0x13b0] sm:$0xff]
  %v832 = vld [vmem:[%s1 + $0x13b8] sm:$0xff]
  %v833 = vld [vmem:[%s1 + $0x13c0] sm:$0xff]
  %v834 = vld [vmem:[%s1 + $0x13c8] sm:$0xff]
  %v835 = vld [vmem:[%s1 + $0x13d0] sm:$0xff]
  %v836 = vld [vmem:[%s1 + $0x13d8] sm:$0xff]
  %v837 = vld [vmem:[%s1 + $0x13e0] sm:$0xff]
  %v838 = vld [vmem:[%s1 + $0x13e8] sm:$0xff]
  %v839 = vld [vmem:[%s1 + $0x13f0] sm:$0xff]
  %v840 = vld [vmem:[%s1 + $0x13f8] sm:$0xff]
  %v841 = vld [vmem:[%s1 + $0x1400] sm:$0xff]
  %v842 = vld [vmem:[%s1 + $0x1408] sm:$0xff]
  %v843 = vld [vmem:[%s1 + $0x1410] sm:$0xff]
  %v844 = vld [vmem:[%s1 + $0x1418] sm:$0xff]
  %v845 = vld [vmem:[%s1 + $0x1420] sm:$0xff]
  %v846 = vld [vmem:[%s1 + $0x1428] sm:$0xff]
  %v847 = vld [vmem:[%s1 + $0x1430] sm:$0xff]
  %v848 = vld [vmem:[%s1 + $0x1438] sm:$0xff]
  %v849 = vld [vmem:[%s1 + $0x1440] sm:$0xff]
  %v850 = vld [vmem:[%s1 + $0x1448] sm:$0xff]
  %v851 = vld [vmem:[%s1 + $0x1450] sm:$0xff]
  %v852 = vld [vmem:[%s1 + $0x1458] sm:$0xff]
  %v853 = vld [vmem:[%s1 + $0x1460] sm:$0xff]
  %v854 = vld [vmem:[%s1 + $0x1468] sm:$0xff]
  %v855 = vld [vmem:[%s1 + $0x1470] sm:$0xff]
  %v856 = vld [vmem:[%s1 + $0x1478] sm:$0xff]
  %v857 = vld [vmem:[%s1 + $0x1480] sm:$0xff]
  %v858 = vld [vmem:[%s1 + $0x1488] sm:$0xff]
  %v859 = vld [vmem:[%s1 + $0x1490] sm:$0xff]
  %v860 = vld [vmem:[%s1 + $0x1498] sm:$0xff]
  %v861 = vld [vmem:[%s1 + $0x14a0] sm:$0xff]
  %v862 = vld [vmem:[%s1 + $0x14a8] sm:$0xff]
  %v863 = vld [vmem:[%s1 + $0x14b0] sm:$0xff]
  %v864 = vld [vmem:[%s1 + $0x14b8] sm:$0xff]
  %v865 = vld [vmem:[%s1 + $0x14c0] sm:$0xff]
  %v866 = vld [vmem:[%s1 + $0x14c8] sm:$0xff]
  %v867 = vld [vmem:[%s1 + $0x14d0] sm:$0xff]
  %v868 = vld [vmem:[%s1 + $0x14d8] sm:$0xff]
  %v869 = vld [vmem:[%s1 + $0x14e0] sm:$0xff]
  %v870 = vld [vmem:[%s1 + $0x14e8] sm:$0xff]
  %v871 = vld [vmem:[%s1 + $0x14f0] sm:$0xff]
  %v872 = vld [vmem:[%s1 + $0x14f8] sm:$0xff]
  %v873 = vld [vmem:[%s1 + $0x1500] sm:$0xff]
  %v874 = vld [vmem:[%s1 + $0x1508] sm:$0xff]
  %v875 = vld [vmem:[%s1 + $0x1510] sm:$0xff]
  %v876 = vld [vmem:[%s1 + $0x1518] sm:$0xff]
  %v877 = vld [vmem:[%s1 + $0x1520] sm:$0xff]
  %v878 = vld [vmem:[%s1 + $0x1528] sm:$0xff]
  %v879 = vld [vmem:[%s1 + $0x1530] sm:$0xff]
  %v880 = vld [vmem:[%s1 + $0x1538] sm:$0xff]
  %v881 = vld [vmem:[%s1 + $0x1540] sm:$0xff]
  %v882 = vld [vmem:[%s1 + $0x1548] sm:$0xff]
  %v883 = vld [vmem:[%s1 + $0x1550] sm:$0xff]
  %v884 = vld [vmem:[%s1 + $0x1558] sm:$0xff]
  %v885 = vld [vmem:[%s1 + $0x1560] sm:$0xff]
  %v886 = vld [vmem:[%s1 + $0x1568] sm:$0xff]
  %v887 = vld [vmem:[%s1 + $0x1570] sm:$0xff]
  %v888 = vld [vmem:[%s1 + $0x1578] sm:$0xff]
  %v889 = vld [vmem:[%s1 + $0x1580] sm:$0xff]
  %v890 = vld [vmem:[%s1 + $0x1588] sm:$0xff]
  %v891 = vld [vmem:[%s1 + $0x1590] sm:$0xff]
  %v892 = vld [vmem:[%s1 + $0x1598] sm:$0xff]
  %v893 = vld [vmem:[%s1 + $0x15a0] sm:$0xff]
  %v894 = vld [vmem:[%s1 + $0x15a8] sm:$0xff]
  %v895 = vld [vmem:[%s1 + $0x15b0] sm:$0xff]
  %v896 = vld [vmem:[%s1 + $0x15b8] sm:$0xff]
  %v897 = vld [vmem:[%s1 + $0x15c0] sm:$0xff]
  %v898 = vld [vmem:[%s1 + $0x15c8] sm:$0xff]
  %v899 = vld [vmem:[%s1 + $0x15d0] sm:$0xff]
  %v900 = vld [vmem:[%s1 + $0x15d8] sm:$0xff]
  %v901 = vld [vmem:[%s1 + $0x15e0] sm:$0xff]
  %v902 = vld [vmem:[%s1 + $0x15e8] sm:$0xff]
  %v903 = vld [vmem:[%s1 + $0x15f0] sm:$0xff]
  %v904 = vld [vmem:[%s1 + $0x15f8] sm:$0xff]
  %v905 = vld [vmem:[%s1 + $0x1600] sm:$0xff]
  %v906 = vld [vmem:[%s1 + $0x1608] sm:$0xff]
  %v907 = vld [vmem:[%s1 + $0x1610] sm:$0xff]
  %v908 = vld [vmem:[%s1 + $0x1618] sm:$0xff]
  %v909 = vld [vmem:[%s1 + $0x1620] sm:$0xff]
  %v910 = vld [vmem:[%s1 + $0x1628] sm:$0xff]
  %v911 = vld [vmem:[%s1 + $0x1630] sm:$0xff]
  %v912 = vld [vmem:[%s1 + $0x1638] sm:$0xff]
  %v913 = vld [vmem:[%s1 + $0x1640] sm:$0xff]
  %v914 = vld [vmem:[%s1 + $0x1648] sm:$0xff]
  %v915 = vld [vmem:[%s1 + $0x1650] sm:$0xff]
  %v916 = vld [vmem:[%s1 + $0x1658] sm:$0xff]
  %v917 = vld [vmem:[%s1 + $0x1660] sm:$0xff]
  %v918 = vld [vmem:[%s1 + $0x1668] sm:$0xff]
  %v919 = vld [vmem:[%s1 + $0x1670] sm:$0xff]
  %v920 = vld [vmem:[%s1 + $0x1678] sm:$0xff]
  %v921 = vld [vmem:[%s1 + $0x1680] sm:$0xff]
  %v922 = vld [vmem:[%s1 + $0x1688] sm:$0xff]
  %v923 = vld [vmem:[%s1 + $0x1690] sm:$0xff]
  %v924 = vld [vmem:[%s1 + $0x1698] sm:$0xff]
  %v925 = vld [vmem:[%s1 + $0x16a0] sm:$0xff]
  %v926 = vld [vmem:[%s1 + $0x16a8] sm:$0xff]
  %v927 = vld [vmem:[%s1 + $0x16b0] sm:$0xff]
  %v928 = vld [vmem:[%s1 + $0x16b8] sm:$0xff]
  %v929 = vld [vmem:[%s1 + $0x16c0] sm:$0xff]
  %v930 = vld [vmem:[%s1 + $0x16c8] sm:$0xff]
  %v931 = vld [vmem:[%s1 + $0x16d0] sm:$0xff]
  %v932 = vld [vmem:[%s1 + $0x16d8] sm:$0xff]
  %v933 = vld [vmem:[%s1 + $0x16e0] sm:$0xff]
  %v934 = vld [vmem:[%s1 + $0x16e8] sm:$0xff]
  %v935 = vld [vmem:[%s1 + $0x16f0] sm:$0xff]
  %v936 = vld [vmem:[%s1 + $0x16f8] sm:$0xff]
  %v937 = vld [vmem:[%s1 + $0x1700] sm:$0xff]
  %v938 = vld [vmem:[%s1 + $0x1708] sm:$0xff]
  %v939 = vld [vmem:[%s1 + $0x1710] sm:$0xff]
  %v940 = vld [vmem:[%s1 + $0x1718] sm:$0xff]
  %v941 = vld [vmem:[%s1 + $0x1720] sm:$0xff]
  %v942 = vld [vmem:[%s1 + $0x1728] sm:$0xff]
  %v943 = vld [vmem:[%s1 + $0x1730] sm:$0xff]
  %v944 = vld [vmem:[%s1 + $0x1738] sm:$0xff]
  %v945 = vld [vmem:[%s1 + $0x1740] sm:$0xff]
  %v946 = vld [vmem:[%s1 + $0x1748] sm:$0xff]
  %v947 = vld [vmem:[%s1 + $0x1750] sm:$0xff]
  %v948 = vld [vmem:[%s1 + $0x1758] sm:$0xff]
  %v949 = vld [vmem:[%s1 + $0x1760] sm:$0xff]
  %v950 = vld [vmem:[%s1 + $0x1768] sm:$0xff]
  %v951 = vld [vmem:[%s1 + $0x1770] sm:$0xff]
  %v952 = vld [vmem:[%s1 + $0x1778] sm:$0xff]
  %v953 = vld [vmem:[%s1 + $0x1780] sm:$0xff]
  %v954 = vld [vmem:[%s1 + $0x1788] sm:$0xff]
  %v955 = vld [vmem:[%s1 + $0x1790] sm:$0xff]
  %v956 = vld [vmem:[%s1 + $0x1798] sm:$0xff]
  %v957 = vld [vmem:[%s1 + $0x17a0] sm:$0xff]
  %v958 = vld [vmem:[%s1 + $0x17a8] sm:$0xff]
  %v959 = vld [vmem:[%s1 + $0x17b0] sm:$0xff]
  %v960 = vld [vmem:[%s1 + $0x17b8] sm:$0xff]
  %v961 = vld [vmem:[%s1 + $0x17c0] sm:$0xff]
  %v962 = vld [vmem:[%s1 + $0x17c8] sm:$0xff]
  %v963 = vld [vmem:[%s1 + $0x17d0] sm:$0xff]
  %v964 = vld [vmem:[%s1 + $0x17d8] sm:$0xff]
  %v965 = vld [vmem:[%s1 + $0x17e0] sm:$0xff]
  %v966 = vld [vmem:[%s1 + $0x17e8] sm:$0xff]
  %v967 = vld [vmem:[%s1 + $0x17f0] sm:$0xff]
  %v968 = vld [vmem:[%s1 + $0x17f8] sm:$0xff]
  %v969 = vld [vmem:[%s1 + $0x1800] sm:$0xff]
  %v970 = vld [vmem:[%s1 + $0x1808] sm:$0xff]
  %v971 = vld [vmem:[%s1 + $0x1810] sm:$0xff]
  %v972 = vld [vmem:[%s1 + $0x1818] sm:$0xff]
  %v973 = vld [vmem:[%s1 + $0x1820] sm:$0xff]
  %v974 = vld [vmem:[%s1 + $0x1828] sm:$0xff]
  %v975 = vld [vmem:[%s1 + $0x1830] sm:$0xff]
  %v976 = vld [vmem:[%s1 + $0x1838] sm:$0xff]
  %v977 = vld [vmem:[%s1 + $0x1840] sm:$0xff]
  %v978 = vld [vmem:[%s1 + $0x1848] sm:$0xff]
  %v979 = vld [vmem:[%s1 + $0x1850] sm:$0xff]
  %v980 = vld [vmem:[%s1 + $0x1858] sm:$0xff]
  %v981 = vld [vmem:[%s1 + $0x1860] sm:$0xff]
  %v982 = vld [vmem:[%s1 + $0x1868] sm:$0xff]
  %v983 = vld [vmem:[%s1 + $0x1870] sm:$0xff]
  %v984 = vld [vmem:[%s1 + $0x1878] sm:$0xff]
  %v985 = vld [vmem:[%s1 + $0x1880] sm:$0xff]
  %v986 = vld [vmem:[%s1 + $0x1888] sm:$0xff]
  %v987 = vld [vmem:[%s1 + $0x1890] sm:$0xff]
  %v988 = vld [vmem:[%s1 + $0x1898] sm:$0xff]
  %v989 = vld [vmem:[%s1 + $0x18a0] sm:$0xff]
  %v990 = vld [vmem:[%s1 + $0x18a8] sm:$0xff]
  %v991 = vld [vmem:[%s1 + $0x18b0] sm:$0xff]
  %v992 = vld [vmem:[%s1 + $0x18b8] sm:$0xff]
  %v993 = vld [vmem:[%s1 + $0x18c0] sm:$0xff]
  %v994 = vld [vmem:[%s1 + $0x18c8] sm:$0xff]
  %v995 = vld [vmem:[%s1 + $0x18d0] sm:$0xff]
  %v996 = vld [vmem:[%s1 + $0x18d8] sm:$0xff]
  %v997 = vld [vmem:[%s1 + $0x18e0] sm:$0xff]
  %v998 = vld [vmem:[%s1 + $0x18e8] sm:$0xff]
  %v999 = vld [vmem:[%s1 + $0x18f0] sm:$0xff]
  %v1000 = vld [vmem:[%s1 + $0x18f8] sm:$0xff]
  %v1001 = vld [vmem:[%s1 + $0x1900] sm:$0xff]
  %v1002 = vld [vmem:[%s1 + $0x1908] sm:$0xff]
  %v1003 = vld [vmem:[%s1 + $0x1910] sm:$0xff]
  %v1004 = vld [vmem:[%s1 + $0x1918] sm:$0xff]
  %v1005 = vld [vmem:[%s1 + $0x1920] sm:$0xff]
  %v1006 = vld [vmem:[%s1 + $0x1928] sm:$0xff]
  %v1007 = vld [vmem:[%s1 + $0x1930] sm:$0xff]
  %v1008 = vld [vmem:[%s1 + $0x1938] sm:$0xff]
  %v1009 = vld [vmem:[%s1 + $0x1940] sm:$0xff]
  %v1010 = vld [vmem:[%s1 + $0x1948] sm:$0xff]
  %v1011 = vld [vmem:[%s1 + $0x1950] sm:$0xff]
  %v1012 = vld [vmem:[%s1 + $0x1958] sm:$0xff]
  %v1013 = vld [vmem:[%s1 + $0x1960] sm:$0xff]
  %v1014 = vld [vmem:[%s1 + $0x1968] sm:$0xff]
  %v1015 = vld [vmem:[%s1 + $0x1970] sm:$0xff]
  %v1016 = vld [vmem:[%s1 + $0x1978] sm:$0xff]
  %v1017 = vld [vmem:[%s1 + $0x1980] sm:$0xff]
  %v1018 = vld [vmem:[%s1 + $0x1988] sm:$0xff]
  %v1019 = vld [vmem:[%s1 + $0x1990] sm:$0xff]
  %v1020 = vld [vmem:[%s1 + $0x1998] sm:$0xff]
  %v1021 = vld [vmem:[%s1 + $0x19a0] sm:$0xff]
  %v1022 = vld [vmem:[%s1 + $0x19a8] sm:$0xff]
  %v1023 = vld [vmem:[%s1 + $0x19b0] sm:$0xff]
  %v1024 = vld [vmem:[%s1 + $0x19b8] sm:$0xff]
  %v1025 = vld [vmem:[%s1 + $0x19c0] sm:$0xff]
  %v1026 = vld [vmem:[%s1 + $0x19c8] sm:$0xff]
  %v1027 = vld [vmem:[%s1 + $0x19d0] sm:$0xff]
  %v1028 = vld [vmem:[%s1 + $0x19d8] sm:$0xff]
  %v1029 = vld [vmem:[%s1 + $0x19e0] sm:$0xff]
  %v1030 = vld [vmem:[%s1 + $0x19e8] sm:$0xff]
  %v1031 = vld [vmem:[%s1 + $0x19f0] sm:$0xff]
  %v1032 = vld [vmem:[%s1 + $0x19f8] sm:$0xff]
  %v1033 = vld [vmem:[%s1 + $0x1a00] sm:$0xff]
  %v1034 = vld [vmem:[%s1 + $0x1a08] sm:$0xff]
  %v1035 = vld [vmem:[%s1 + $0x1a10] sm:$0xff]
  %v1036 = vld [vmem:[%s1 + $0x1a18] sm:$0xff]
  %v1037 = vld [vmem:[%s1 + $0x1a20] sm:$0xff]
  %v1038 = vld [vmem:[%s1 + $0x1a28] sm:$0xff]
  %v1039 = vld [vmem:[%s1 + $0x1a30] sm:$0xff]
  %v1040 = vld [vmem:[%s1 + $0x1a38] sm:$0xff]
  %v1041 = vld [vmem:[%s1 + $0x1a40] sm:$0xff]
  %v1042 = vld [vmem:[%s1 + $0x1a48] sm:$0xff]
  %v1043 = vld [vmem:[%s1 + $0x1a50] sm:$0xff]
  %v1044 = vld [vmem:[%s1 + $0x1a58] sm:$0xff]
  %v1045 = vld [vmem:[%s1 + $0x1a60] sm:$0xff]
  %v1046 = vld [vmem:[%s1 + $0x1a68] sm:$0xff]
  %v1047 = vld [vmem:[%s1 + $0x1a70] sm:$0xff]
  %v1048 = vld [vmem:[%s1 + $0x1a78] sm:$0xff]
  %v1049 = vld [vmem:[%s1 + $0x1a80] sm:$0xff]
  %v1050 = vld [vmem:[%s1 + $0x1a88] sm:$0xff]
  %v1051 = vld [vmem:[%s1 + $0x1a90] sm:$0xff]
  %v1052 = vld [vmem:[%s1 + $0x1a98] sm:$0xff]
  %v1053 = vld [vmem:[%s1 + $0x1aa0] sm:$0xff]
  %v1054 = vld [vmem:[%s1 + $0x1aa8] sm:$0xff]
  %v1055 = vld [vmem:[%s1 + $0x1ab0] sm:$0xff]
  %v1056 = vld [vmem:[%s1 + $0x1ab8] sm:$0xff]
  %v1057 = vld [vmem:[%s1 + $0x1ac0] sm:$0xff]
  %v1058 = vld [vmem:[%s1 + $0x1ac8] sm:$0xff]
  %v1059 = vld [vmem:[%s1 + $0x1ad0] sm:$0xff]
  %v1060 = vld [vmem:[%s1 + $0x1ad8] sm:$0xff]
  %v1061 = vld [vmem:[%s1 + $0x1ae0] sm:$0xff]
  %v1062 = vld [vmem:[%s1 + $0x1ae8] sm:$0xff]
  %v1063 = vld [vmem:[%s1 + $0x1af0] sm:$0xff]
  %v1064 = vld [vmem:[%s1 + $0x1af8] sm:$0xff]
  %v1065 = vld [vmem:[%s1 + $0x1b00] sm:$0xff]
  %v1066 = vld [vmem:[%s1 + $0x1b08] sm:$0xff]
  %v1067 = vld [vmem:[%s1 + $0x1b10] sm:$0xff]
  %v1068 = vld [vmem:[%s1 + $0x1b18] sm:$0xff]
  %v1069 = vld [vmem:[%s1 + $0x1b20] sm:$0xff]
  %v1070 = vld [vmem:[%s1 + $0x1b28] sm:$0xff]
  %v1071 = vld [vmem:[%s1 + $0x1b30] sm:$0xff]
  %v1072 = vld [vmem:[%s1 + $0x1b38] sm:$0xff]
  %v1073 = vld [vmem:[%s1 + $0x1b40] sm:$0xff]
  %v1074 = vld [vmem:[%s1 + $0x1b48] sm:$0xff]
  %v1075 = vld [vmem:[%s1 + $0x1b50] sm:$0xff]
  %v1076 = vld [vmem:[%s1 + $0x1b58] sm:$0xff]
  %v1077 = vld [vmem:[%s1 + $0x1b60] sm:$0xff]
  %v1078 = vld [vmem:[%s1 + $0x1b68] sm:$0xff]
  %v1079 = vld [vmem:[%s1 + $0x1b70] sm:$0xff]
  %v1080 = vld [vmem:[%s1 + $0x1b78] sm:$0xff]
  %v1081 = vld [vmem:[%s1 + $0x1b80] sm:$0xff]
  %v1082 = vld [vmem:[%s1 + $0x1b88] sm:$0xff]
  %v1083 = vld [vmem:[%s1 + $0x1b90] sm:$0xff]
  %v1084 = vld [vmem:[%s1 + $0x1b98] sm:$0xff]
  %v1085 = vld [vmem:[%s1 + $0x1ba0] sm:$0xff]
  %v1086 = vld [vmem:[%s1 + $0x1ba8] sm:$0xff]
  %v1087 = vld [vmem:[%s1 + $0x1bb0] sm:$0xff]
  %v1088 = vld [vmem:[%s1 + $0x1bb8] sm:$0xff]
  %v1089 = vld [vmem:[%s1 + $0x1bc0] sm:$0xff]
  %v1090 = vld [vmem:[%s1 + $0x1bc8] sm:$0xff]
  %v1091 = vld [vmem:[%s1 + $0x1bd0] sm:$0xff]
  %v1092 = vld [vmem:[%s1 + $0x1bd8] sm:$0xff]
  %v1093 = vld [vmem:[%s1 + $0x1be0] sm:$0xff]
  %v1094 = vld [vmem:[%s1 + $0x1be8] sm:$0xff]
  %v1095 = vld [vmem:[%s1 + $0x1bf0] sm:$0xff]
  %v1096 = vld [vmem:[%s1 + $0x1bf8] sm:$0xff]
  %v1097 = vld [vmem:[%s1 + $0x1c00] sm:$0xff]
  %v1098 = vld [vmem:[%s1 + $0x1c08] sm:$0xff]
  %v1099 = vld [vmem:[%s1 + $0x1c10] sm:$0xff]
  %v1100 = vld [vmem:[%s1 + $0x1c18] sm:$0xff]
  %v1101 = vld [vmem:[%s1 + $0x1c20] sm:$0xff]
  %v1102 = vld [vmem:[%s1 + $0x1c28] sm:$0xff]
  %v1103 = vld [vmem:[%s1 + $0x1c30] sm:$0xff]
  %v1104 = vld [vmem:[%s1 + $0x1c38] sm:$0xff]
  %v1105 = vld [vmem:[%s1 + $0x1c40] sm:$0xff]
  %v1106 = vld [vmem:[%s1 + $0x1c48] sm:$0xff]
  %v1107 = vld [vmem:[%s1 + $0x1c50] sm:$0xff]
  %v1108 = vld [vmem:[%s1 + $0x1c58] sm:$0xff]
  %v1109 = vld [vmem:[%s1 + $0x1c60] sm:$0xff]
  %v1110 = vld [vmem:[%s1 + $0x1c68] sm:$0xff]
  %v1111 = vld [vmem:[%s1 + $0x1c70] sm:$0xff]
  %v1112 = vld [vmem:[%s1 + $0x1c78] sm:$0xff]
  %v1113 = vld [vmem:[%s1 + $0x1c80] sm:$0xff]
  %v1114 = vld [vmem:[%s1 + $0x1c88] sm:$0xff]
  %v1115 = vld [vmem:[%s1 + $0x1c90] sm:$0xff]
  %v1116 = vld [vmem:[%s1 + $0x1c98] sm:$0xff]
  %v1117 = vld [vmem:[%s1 + $0x1ca0] sm:$0xff]
  %v1118 = vld [vmem:[%s1 + $0x1ca8] sm:$0xff]
  %v1119 = vld [vmem:[%s1 + $0x1cb0] sm:$0xff]
  %v1120 = vld [vmem:[%s1 + $0x1cb8] sm:$0xff]
  %v1121 = vld [vmem:[%s1 + $0x1cc0] sm:$0xff]
  %v1122 = vld [vmem:[%s1 + $0x1cc8] sm:$0xff]
  %v1123 = vld [vmem:[%s1 + $0x1cd0] sm:$0xff]
  %v1124 = vld [vmem:[%s1 + $0x1cd8] sm:$0xff]
  %v1125 = vld [vmem:[%s1 + $0x1ce0] sm:$0xff]
  %v1126 = vld [vmem:[%s1 + $0x1ce8] sm:$0xff]
  %v1127 = vld [vmem:[%s1 + $0x1cf0] sm:$0xff]
  %v1128 = vld [vmem:[%s1 + $0x1cf8] sm:$0xff]
  %v1129 = vld [vmem:[%s1 + $0x1d00] sm:$0xff]
  %v1130 = vld [vmem:[%s1 + $0x1d08] sm:$0xff]
  %v1131 = vld [vmem:[%s1 + $0x1d10] sm:$0xff]
  %v1132 = vld [vmem:[%s1 + $0x1d18] sm:$0xff]
  %v1133 = vld [vmem:[%s1 + $0x1d20] sm:$0xff]
  %v1134 = vld [vmem:[%s1 + $0x1d28] sm:$0xff]
  %v1135 = vld [vmem:[%s1 + $0x1d30] sm:$0xff]
  %v1136 = vld [vmem:[%s1 + $0x1d38] sm:$0xff]
  %v1137 = vld [vmem:[%s1 + $0x1d40] sm:$0xff]
  %v1138 = vld [vmem:[%s1 + $0x1d48] sm:$0xff]
  %v1139 = vld [vmem:[%s1 + $0x1d50] sm:$0xff]
  %v1140 = vld [vmem:[%s1 + $0x1d58] sm:$0xff]
  %v1141 = vld [vmem:[%s1 + $0x1d60] sm:$0xff]
  %v1142 = vld [vmem:[%s1 + $0x1d68] sm:$0xff]
  %v1143 = vld [vmem:[%s1 + $0x1d70] sm:$0xff]
  %v1144 = vld [vmem:[%s1 + $0x1d78] sm:$0xff]
  %v1145 = vld [vmem:[%s1 + $0x1d80] sm:$0xff]
  %v1146 = vld [vmem:[%s1 + $0x1d88] sm:$0xff]
  %v1147 = vld [vmem:[%s1 + $0x1d90] sm:$0xff]
  %v1148 = vld [vmem:[%s1 + $0x1d98] sm:$0xff]
  %v1149 = vld [vmem:[%s1 + $0x1da0] sm:$0xff]
  %v1150 = vld [vmem:[%s1 + $0x1da8] sm:$0xff]
  %v1151 = vld [vmem:[%s1 + $0x1db0] sm:$0xff]
  %v1152 = vld [vmem:[%s1 + $0x1db8] sm:$0xff]
  %v1153 = vld [vmem:[%s1 + $0x1dc0] sm:$0xff]
  %v1154 = vld [vmem:[%s1 + $0x1dc8] sm:$0xff]
  %v1155 = vld [vmem:[%s1 + $0x1dd0] sm:$0xff]
  %v1156 = vld [vmem:[%s1 + $0x1dd8] sm:$0xff]
  %v1157 = vld [vmem:[%s1 + $0x1de0] sm:$0xff]
  %v1158 = vld [vmem:[%s1 + $0x1de8] sm:$0xff]
  %v1159 = vld [vmem:[%s1 + $0x1df0] sm:$0xff]
  %v1160 = vld [vmem:[%s1 + $0x1df8] sm:$0xff]
  %v1161 = vld [vmem:[%s1 + $0x1e00] sm:$0xff]
  %v1162 = vld [vmem:[%s1 + $0x1e08] sm:$0xff]
  %v1163 = vld [vmem:[%s1 + $0x1e10] sm:$0xff]
  %v1164 = vld [vmem:[%s1 + $0x1e18] sm:$0xff]
  %v1165 = vld [vmem:[%s1 + $0x1e20] sm:$0xff]
  %v1166 = vld [vmem:[%s1 + $0x1e28] sm:$0xff]
  %v1167 = vld [vmem:[%s1 + $0x1e30] sm:$0xff]
  %v1168 = vld [vmem:[%s1 + $0x1e38] sm:$0xff]
  %v1169 = vld [vmem:[%s1 + $0x1e40] sm:$0xff]
  %v1170 = vld [vmem:[%s1 + $0x1e48] sm:$0xff]
  %v1171 = vld [vmem:[%s1 + $0x1e50] sm:$0xff]
  %v1172 = vld [vmem:[%s1 + $0x1e58] sm:$0xff]
  %v1173 = vld [vmem:[%s1 + $0x1e60] sm:$0xff]
  %v1174 = vld [vmem:[%s1 + $0x1e68] sm:$0xff]
  %v1175 = vld [vmem:[%s1 + $0x1e70] sm:$0xff]
  %v1176 = vld [vmem:[%s1 + $0x1e78] sm:$0xff]
  %v1177 = vld [vmem:[%s1 + $0x1e80] sm:$0xff]
  %v1178 = vld [vmem:[%s1 + $0x1e88] sm:$0xff]
  %v1179 = vld [vmem:[%s1 + $0x1e90] sm:$0xff]
  %v1180 = vld [vmem:[%s1 + $0x1e98] sm:$0xff]
  %v1181 = vld [vmem:[%s1 + $0x1ea0] sm:$0xff]
  %v1182 = vld [vmem:[%s1 + $0x1ea8] sm:$0xff]
  %v1183 = vld [vmem:[%s1 + $0x1eb0] sm:$0xff]
  %v1184 = vld [vmem:[%s1 + $0x1eb8] sm:$0xff]
  %v1185 = vld [vmem:[%s1 + $0x1ec0] sm:$0xff]
  %v1186 = vld [vmem:[%s1 + $0x1ec8] sm:$0xff]
  %v1187 = vld [vmem:[%s1 + $0x1ed0] sm:$0xff]
  %v1188 = vld [vmem:[%s1 + $0x1ed8] sm:$0xff]
  %v1189 = vld [vmem:[%s1 + $0x1ee0] sm:$0xff]
  %v1190 = vld [vmem:[%s1 + $0x1ee8] sm:$0xff]
  %v1191 = vld [vmem:[%s1 + $0x1ef0] sm:$0xff]
  %v1192 = vld [vmem:[%s1 + $0x1ef8] sm:$0xff]
  %v1193 = vld [vmem:[%s1 + $0x1f00] sm:$0xff]
  %v1194 = vld [vmem:[%s1 + $0x1f08] sm:$0xff]
  %v1195 = vld [vmem:[%s1 + $0x1f10] sm:$0xff]
  %v1196 = vld [vmem:[%s1 + $0x1f18] sm:$0xff]
  %v1197 = vld [vmem:[%s1 + $0x1f20] sm:$0xff]
  %v1198 = vld [vmem:[%s1 + $0x1f28] sm:$0xff]
  %v1199 = vld [vmem:[%s1 + $0x1f30] sm:$0xff]
  %v1200 = vld [vmem:[%s1 + $0x1f38] sm:$0xff]
  %v1201 = vld [vmem:[%s1 + $0x1f40] sm:$0xff]
  %v1202 = vld [vmem:[%s1 + $0x1f48] sm:$0xff]
  %v1203 = vld [vmem:[%s1 + $0x1f50] sm:$0xff]
  %v1204 = vld [vmem:[%s1 + $0x1f58] sm:$0xff]
  %v1205 = vld [vmem:[%s1 + $0x1f60] sm:$0xff]
  %v1206 = vld [vmem:[%s1 + $0x1f68] sm:$0xff]
  %v1207 = vld [vmem:[%s1 + $0x1f70] sm:$0xff]
  %v1208 = vld [vmem:[%s1 + $0x1f78] sm:$0xff]
  %v1209 = vld [vmem:[%s1 + $0x1f80] sm:$0xff]
  %v1210 = vld [vmem:[%s1 + $0x1f88] sm:$0xff]
  %v1211 = vld [vmem:[%s1 + $0x1f90] sm:$0xff]
  %v1212 = vld [vmem:[%s1 + $0x1f98] sm:$0xff]
  %v1213 = vld [vmem:[%s1 + $0x1fa0] sm:$0xff]
  %v1214 = vld [vmem:[%s1 + $0x1fa8] sm:$0xff]
  %v1215 = vld [vmem:[%s1 + $0x1fb0] sm:$0xff]
  %v1216 = vld [vmem:[%s1 + $0x1fb8] sm:$0xff]
  %v1217 = vld [vmem:[%s1 + $0x1fc0] sm:$0xff]
  %v1218 = vld [vmem:[%s1 + $0x1fc8] sm:$0xff]
  %v1219 = vld [vmem:[%s1 + $0x1fd0] sm:$0xff]
  %v1220 = vld [vmem:[%s1 + $0x1fd8] sm:$0xff]
  %v1221 = vld [vmem:[%s1 + $0x1fe0] sm:$0xff]
  %v1222 = vld [vmem:[%s1 + $0x1fe8] sm:$0xff]
  %v1223 = vld [vmem:[%s1 + $0x1ff0] sm:$0xff]
  %v1224 = vld [vmem:[%s1 + $0x1ff8] sm:$0xff]
  %v1225 = vld [vmem:[%s1 + $0x2000] sm:$0xff]
  %v1226 = vld [vmem:[%s1 + $0x2008] sm:$0xff]
  %v1227 = vld [vmem:[%s1 + $0x2010] sm:$0xff]
  %v1228 = vld [vmem:[%s1 + $0x2018] sm:$0xff]
  %v1229 = vld [vmem:[%s1 + $0x2020] sm:$0xff]
  %v1230 = vld [vmem:[%s1 + $0x2028] sm:$0xff]
  %v1231 = vld [vmem:[%s1 + $0x2030] sm:$0xff]
  %v1232 = vld [vmem:[%s1 + $0x2038] sm:$0xff]
  %v1233 = vld [vmem:[%s1 + $0x2040] sm:$0xff]
  %v1234 = vld [vmem:[%s1 + $0x2048] sm:$0xff]
  %v1235 = vld [vmem:[%s1 + $0x2050] sm:$0xff]
  %v1236 = vld [vmem:[%s1 + $0x2058] sm:$0xff]
  %v1237 = vld [vmem:[%s1 + $0x2060] sm:$0xff]
  %v1238 = vld [vmem:[%s1 + $0x2068] sm:$0xff]
  %v1239 = vld [vmem:[%s1 + $0x2070] sm:$0xff]
  %v1240 = vld [vmem:[%s1 + $0x2078] sm:$0xff]
  %v1241 = vld [vmem:[%s1 + $0x2080] sm:$0xff]
  %v1242 = vld [vmem:[%s1 + $0x2088] sm:$0xff]
  %v1243 = vld [vmem:[%s1 + $0x2090] sm:$0xff]
  %v1244 = vld [vmem:[%s1 + $0x2098] sm:$0xff]
  %v1245 = vld [vmem:[%s1 + $0x20a0] sm:$0xff]
  %v1246 = vld [vmem:[%s1 + $0x20a8] sm:$0xff]
  %v1247 = vld [vmem:[%s1 + $0x20b0] sm:$0xff]
  %v1248 = vld [vmem:[%s1 + $0x20b8] sm:$0xff]
  %v1249 = vld [vmem:[%s1 + $0x20c0] sm:$0xff]
  %v1250 = vld [vmem:[%s1 + $0x20c8] sm:$0xff]
  %v1251 = vld [vmem:[%s1 + $0x20d0] sm:$0xff]
  %v1252 = vld [vmem:[%s1 + $0x20d8] sm:$0xff]
  %v1253 = vld [vmem:[%s1 + $0x20e0] sm:$0xff]
  %v1254 = vld [vmem:[%s1 + $0x20e8] sm:$0xff]
  %v1255 = vld [vmem:[%s1 + $0x20f0] sm:$0xff]
  %v1256 = vld [vmem:[%s1 + $0x20f8] sm:$0xff]
  %v1257 = vld [vmem:[%s1 + $0x2100] sm:$0xff]
  %v1258 = vld [vmem:[%s1 + $0x2108] sm:$0xff]
  %v1259 = vld [vmem:[%s1 + $0x2110] sm:$0xff]
  %v1260 = vld [vmem:[%s1 + $0x2118] sm:$0xff]
  %v1261 = vld [vmem:[%s1 + $0x2120] sm:$0xff]
  %v1262 = vld [vmem:[%s1 + $0x2128] sm:$0xff]
  %v1263 = vld [vmem:[%s1 + $0x2130] sm:$0xff]
  %v1264 = vld [vmem:[%s1 + $0x2138] sm:$0xff]
  %v1265 = vld [vmem:[%s1 + $0x2140] sm:$0xff]
  %v1266 = vld [vmem:[%s1 + $0x2148] sm:$0xff]
  %v1267 = vld [vmem:[%s1 + $0x2150] sm:$0xff]
  %v1268 = vld [vmem:[%s1 + $0x2158] sm:$0xff]
  %v1269 = vld [vmem:[%s1 + $0x2160] sm:$0xff]
  %v1270 = vld [vmem:[%s1 + $0x2168] sm:$0xff]
  %v1271 = vld [vmem:[%s1 + $0x2170] sm:$0xff]
  %v1272 = vld [vmem:[%s1 + $0x2178] sm:$0xff]
  %v1273 = vld [vmem:[%s1 + $0x2180] sm:$0xff]
  %v1274 = vld [vmem:[%s1 + $0x2188] sm:$0xff]
  %v1275 = vld [vmem:[%s1 + $0x2190] sm:$0xff]
  %v1276 = vld [vmem:[%s1 + $0x2198] sm:$0xff]
  %v1277 = vld [vmem:[%s1 + $0x21a0] sm:$0xff]
  %v1278 = vld [vmem:[%s1 + $0x21a8] sm:$0xff]
  %v1279 = vld [vmem:[%s1 + $0x21b0] sm:$0xff]
  %v1280 = vld [vmem:[%s1 + $0x21b8] sm:$0xff]
  %v1281 = vld [vmem:[%s1 + $0x21c0] sm:$0xff]
  %v1282 = vld [vmem:[%s1 + $0x21c8] sm:$0xff]
  %v1283 = vld [vmem:[%s1 + $0x21d0] sm:$0xff]
  %v1284 = vld [vmem:[%s1 + $0x21d8] sm:$0xff]
  %v1285 = vld [vmem:[%s1 + $0x21e0] sm:$0xff]
  %v1286 = vld [vmem:[%s1 + $0x21e8] sm:$0xff]
  %v1287 = vld [vmem:[%s1 + $0x21f0] sm:$0xff]
  %v1288 = vld [vmem:[%s1 + $0x21f8] sm:$0xff]
  %v1289 = vld [vmem:[%s1 + $0x2200] sm:$0xff]
  %v1290 = vld [vmem:[%s1 + $0x2208] sm:$0xff]
  %v1291 = vld [vmem:[%s1 + $0x2210] sm:$0xff]
  %v1292 = vld [vmem:[%s1 + $0x2218] sm:$0xff]
  %v1293 = vld [vmem:[%s1 + $0x2220] sm:$0xff]
  %v1294 = vld [vmem:[%s1 + $0x2228] sm:$0xff]
  %v1295 = vld [vmem:[%s1 + $0x2230] sm:$0xff]
  %v1296 = vld [vmem:[%s1 + $0x2238] sm:$0xff]
  %v1297 = vld [vmem:[%s1 + $0x2240] sm:$0xff]
  %v1298 = vld [vmem:[%s1 + $0x2248] sm:$0xff]
  %v1299 = vld [vmem:[%s1 + $0x2250] sm:$0xff]
  %v1300 = vld [vmem:[%s1 + $0x2258] sm:$0xff]
  %v1301 = vld [vmem:[%s1 + $0x2260] sm:$0xff]
  %v1302 = vld [vmem:[%s1 + $0x2268] sm:$0xff]
  %v1303 = vld [vmem:[%s1 + $0x2270] sm:$0xff]
  %v1304 = vld [vmem:[%s1 + $0x2278] sm:$0xff]
  %v1305 = vld [vmem:[%s1 + $0x2280] sm:$0xff]
  %v1306 = vld [vmem:[%s1 + $0x2288] sm:$0xff]
  %v1307 = vld [vmem:[%s1 + $0x2290] sm:$0xff]
  %v1308 = vld [vmem:[%s1 + $0x2298] sm:$0xff]
  %v1309 = vld [vmem:[%s1 + $0x22a0] sm:$0xff]
  %v1310 = vld [vmem:[%s1 + $0x22a8] sm:$0xff]
  %v1311 = vld [vmem:[%s1 + $0x22b0] sm:$0xff]
  %v1312 = vld [vmem:[%s1 + $0x22b8] sm:$0xff]
  %v1313 = vld [vmem:[%s1 + $0x22c0] sm:$0xff]
  %v1314 = vld [vmem:[%s1 + $0x22c8] sm:$0xff]
  %v1315 = vld [vmem:[%s1 + $0x22d0] sm:$0xff]
  %v1316 = vld [vmem:[%s1 + $0x22d8] sm:$0xff]
  %v1317 = vld [vmem:[%s1 + $0x22e0] sm:$0xff]
  %v1318 = vld [vmem:[%s1 + $0x22e8] sm:$0xff]
  %v1319 = vld [vmem:[%s1 + $0x22f0] sm:$0xff]
  %v1320 = vld [vmem:[%s1 + $0x22f8] sm:$0xff]
  %v1321 = vld [vmem:[%s1 + $0x2300] sm:$0xff]
  %v1322 = vld [vmem:[%s1 + $0x2308] sm:$0xff]
  %v1323 = vld [vmem:[%s1 + $0x2310] sm:$0xff]
  %v1324 = vld [vmem:[%s1 + $0x2318] sm:$0xff]
  %v1325 = vld [vmem:[%s1 + $0x2320] sm:$0xff]
  %v1326 = vld [vmem:[%s1 + $0x2328] sm:$0xff]
  %v1327 = vld [vmem:[%s1 + $0x2330] sm:$0xff]
  %v1328 = vld [vmem:[%s1 + $0x2338] sm:$0xff]
  %v1329 = vld [vmem:[%s1 + $0x2340] sm:$0xff]
  %v1330 = vld [vmem:[%s1 + $0x2348] sm:$0xff]
  %v1331 = vld [vmem:[%s1 + $0x2350] sm:$0xff]
  %v1332 = vld [vmem:[%s1 + $0x2358] sm:$0xff]
  %v1333 = vld [vmem:[%s1 + $0x2360] sm:$0xff]
  %v1334 = vld [vmem:[%s1 + $0x2368] sm:$0xff]
  %v1335 = vld [vmem:[%s1 + $0x2370] sm:$0xff]
  %v1336 = vld [vmem:[%s1 + $0x2378] sm:$0xff]
  %v1337 = vld [vmem:[%s1 + $0x2380] sm:$0xff]
  %v1338 = vld [vmem:[%s1 + $0x2388] sm:$0xff]
  %v1339 = vld [vmem:[%s1 + $0x2390] sm:$0xff]
  %v1340 = vld [vmem:[%s1 + $0x2398] sm:$0xff]
  %v1341 = vld [vmem:[%s1 + $0x23a0] sm:$0xff]
  %v1342 = vld [vmem:[%s1 + $0x23a8] sm:$0xff]
  %v1343 = vld [vmem:[%s1 + $0x23b0] sm:$0xff]
  %v1344 = vld [vmem:[%s1 + $0x23b8] sm:$0xff]
  %v1345 = vld [vmem:[%s1 + $0x23c0] sm:$0xff]
  %v1346 = vld [vmem:[%s1 + $0x23c8] sm:$0xff]
  %v1347 = vld [vmem:[%s1 + $0x23d0] sm:$0xff]
  %v1348 = vld [vmem:[%s1 + $0x23d8] sm:$0xff]
  %v1349 = vld [vmem:[%s1 + $0x23e0] sm:$0xff]
  %v1350 = vld [vmem:[%s1 + $0x23e8] sm:$0xff]
  %v1351 = vld [vmem:[%s1 + $0x23f0] sm:$0xff]
  %v1352 = vld [vmem:[%s1 + $0x23f8] sm:$0xff]
  %v1353 = vld [vmem:[%s2] sm:$0xf]
  %v1355 = vlaneseq
  %v1356 = vshrl.u32 %v1355, 7
  %v1357 = vsub.s32 0, %v1356
  %v1358 = vrot.slane %v1353, %v1357
  %v1359 = vlaneseq
  %v1360 = vshrl.u32 %v1359, 7
  %v1361 = vsub.s32 1, %v1360
  %v1362 = vrot.slane %v1353, %v1361
  %v1363 = vlaneseq
  %v1364 = vshrl.u32 %v1363, 7
  %v1365 = vsub.s32 2, %v1364
  %v1366 = vrot.slane %v1353, %v1365
  %v1367 = vlaneseq
  %v1368 = vshrl.u32 %v1367, 7
  %v1369 = vsub.s32 3, %v1368
  %v1370 = vrot.slane %v1353, %v1369
  %v1555 = vunpack.c.l.b16 %v21
  %v1556 = vunpack.c.h.b16 %v21
  %v1557 = vunpack.c.l.b16 %v22
  %v1558 = vunpack.c.h.b16 %v22
  %v1559 = vunpack.c.l.b16 %v23
  %v1560 = vunpack.c.h.b16 %v23
  %v1561 = vunpack.c.l.b16 %v24
  %v1562 = vunpack.c.h.b16 %v24
  %v1563 = vunpack.c.l.b16 %v25
  %v1564 = vunpack.c.h.b16 %v25
  %v1565 = vunpack.c.l.b16 %v26
  %v1566 = vunpack.c.h.b16 %v26
  %v1567 = vunpack.c.l.b16 %v27
  %v1568 = vunpack.c.h.b16 %v27
  %v1569 = vunpack.c.l.b16 %v28
  %v1570 = vunpack.c.h.b16 %v28
  %v1571 = vunpack.c.l.b16 %v29
  %v1572 = vunpack.c.h.b16 %v29
  %v1573 = vunpack.c.l.b16 %v30
  %v1574 = vunpack.c.h.b16 %v30
  %v1575 = vunpack.c.l.b16 %v31
  %v1576 = vunpack.c.h.b16 %v31
  %v1577 = vunpack.c.l.b16 %v32
  %v1578 = vunpack.c.h.b16 %v32
  %v1579 = vunpack.c.l.b16 %v33
  %v1580 = vunpack.c.h.b16 %v33
  %v1581 = vunpack.c.l.b16 %v34
  %v1582 = vunpack.c.h.b16 %v34
  %v1583 = vunpack.c.l.b16 %v35
  %v1584 = vunpack.c.h.b16 %v35
  %v1585 = vunpack.c.l.b16 %v36
  %v1586 = vunpack.c.h.b16 %v36
  %v1587 = vunpack.c.l.b16 %v37
  %v1588 = vunpack.c.h.b16 %v37
  %v1589 = vunpack.c.l.b16 %v38
  %v1590 = vunpack.c.h.b16 %v38
  %v1591 = vunpack.c.l.b16 %v39
  %v1592 = vunpack.c.h.b16 %v39
  %v1593 = vunpack.c.l.b16 %v40
  %v1594 = vunpack.c.h.b16 %v40
  %v1595 = vunpack.c.l.b16 %v41
  %v1596 = vunpack.c.h.b16 %v41
  %v1597 = vunpack.c.l.b16 %v42
  %v1598 = vunpack.c.h.b16 %v42
  %v1599 = vunpack.c.l.b16 %v43
  %v1600 = vunpack.c.h.b16 %v43
  %v1601 = vunpack.c.l.b16 %v44
  %v1602 = vunpack.c.h.b16 %v44
  %v1603 = vunpack.c.l.b16 %v45
  %v1604 = vunpack.c.h.b16 %v45
  %v1605 = vunpack.c.l.b16 %v46
  %v1606 = vunpack.c.h.b16 %v46
  %v1607 = vunpack.c.l.b16 %v47
  %v1608 = vunpack.c.h.b16 %v47
  %v1609 = vunpack.c.l.b16 %v48
  %v1610 = vunpack.c.h.b16 %v48
  %v1611 = vunpack.c.l.b16 %v49
  %v1612 = vunpack.c.h.b16 %v49
  %v1613 = vunpack.c.l.b16 %v50
  %v1614 = vunpack.c.h.b16 %v50
  %v1615 = vunpack.c.l.b16 %v51
  %v1616 = vunpack.c.h.b16 %v51
  %v1617 = vunpack.c.l.b16 %v52
  %v1618 = vunpack.c.h.b16 %v52
  %v1619 = vunpack.c.l.b16 %v53
  %v1620 = vunpack.c.h.b16 %v53
  %v1621 = vunpack.c.l.b16 %v54
  %v1622 = vunpack.c.h.b16 %v54
  %v1623 = vunpack.c.l.b16 %v55
  %v1624 = vunpack.c.h.b16 %v55
  %v1625 = vunpack.c.l.b16 %v56
  %v1626 = vunpack.c.h.b16 %v56
  %v1627 = vunpack.c.l.b16 %v57
  %v1628 = vunpack.c.h.b16 %v57
  %v1629 = vunpack.c.l.b16 %v58
  %v1630 = vunpack.c.h.b16 %v58
  %v1631 = vunpack.c.l.b16 %v59
  %v1632 = vunpack.c.h.b16 %v59
  %v1633 = vunpack.c.l.b16 %v60
  %v1634 = vunpack.c.h.b16 %v60
  %v1635 = vunpack.c.l.b16 %v61
  %v1636 = vunpack.c.h.b16 %v61
  %v1637 = vunpack.c.l.b16 %v62
  %v1638 = vunpack.c.h.b16 %v62
  %v1639 = vunpack.c.l.b16 %v63
  %v1640 = vunpack.c.h.b16 %v63
  %v1641 = vunpack.c.l.b16 %v64
  %v1642 = vunpack.c.h.b16 %v64
  %v1643 = vunpack.c.l.b16 %v65
  %v1644 = vunpack.c.h.b16 %v65
  %v1645 = vunpack.c.l.b16 %v66
  %v1646 = vunpack.c.h.b16 %v66
  %v1647 = vunpack.c.l.b16 %v67
  %v1648 = vunpack.c.h.b16 %v67
  %v1649 = vunpack.c.l.b16 %v68
  %v1650 = vunpack.c.h.b16 %v68
  %v1651 = vunpack.c.l.b16 %v69
  %v1652 = vunpack.c.h.b16 %v69
  %v1653 = vunpack.c.l.b16 %v70
  %v1654 = vunpack.c.h.b16 %v70
  %v1655 = vunpack.c.l.b16 %v71
  %v1656 = vunpack.c.h.b16 %v71
  %v1657 = vunpack.c.l.b16 %v72
  %v1658 = vunpack.c.h.b16 %v72
  %v1659 = vunpack.c.l.b16 %v73
  %v1660 = vunpack.c.h.b16 %v73
  %v1661 = vunpack.c.l.b16 %v74
  %v1662 = vunpack.c.h.b16 %v74
  %v1663 = vunpack.c.l.b16 %v75
  %v1664 = vunpack.c.h.b16 %v75
  %v1665 = vunpack.c.l.b16 %v76
  %v1666 = vunpack.c.h.b16 %v76
  %v1667 = vunpack.c.l.b16 %v77
  %v1668 = vunpack.c.h.b16 %v77
  %v1669 = vunpack.c.l.b16 %v78
  %v1670 = vunpack.c.h.b16 %v78
  %v1671 = vunpack.c.l.b16 %v79
  %v1672 = vunpack.c.h.b16 %v79
  %v1673 = vunpack.c.l.b16 %v80
  %v1674 = vunpack.c.h.b16 %v80
  %v1675 = vunpack.c.l.b16 %v81
  %v1676 = vunpack.c.h.b16 %v81
  %v1677 = vunpack.c.l.b16 %v82
  %v1678 = vunpack.c.h.b16 %v82
  %v1679 = vunpack.c.l.b16 %v83
  %v1680 = vunpack.c.h.b16 %v83
  %v1681 = vunpack.c.l.b16 %v84
  %v1682 = vunpack.c.h.b16 %v84
  %v1683 = vunpack.c.l.b16 %v85
  %v1684 = vunpack.c.h.b16 %v85
  %v1685 = vunpack.c.l.b16 %v86
  %v1686 = vunpack.c.h.b16 %v86
  %v1687 = vunpack.c.l.b16 %v87
  %v1688 = vunpack.c.h.b16 %v87
  %v1689 = vunpack.c.l.b16 %v88
  %v1690 = vunpack.c.h.b16 %v88
  %v1691 = vunpack.c.l.b16 %v89
  %v1692 = vunpack.c.h.b16 %v89
  %v1693 = vunpack.c.l.b16 %v90
  %v1694 = vunpack.c.h.b16 %v90
  %v1695 = vunpack.c.l.b16 %v91
  %v1696 = vunpack.c.h.b16 %v91
  %v1697 = vunpack.c.l.b16 %v92
  %v1698 = vunpack.c.h.b16 %v92
  %v1699 = vunpack.c.l.b16 %v93
  %v1700 = vunpack.c.h.b16 %v93
  %v1701 = vunpack.c.l.b16 %v94
  %v1702 = vunpack.c.h.b16 %v94
  %v1703 = vunpack.c.l.b16 %v95
  %v1704 = vunpack.c.h.b16 %v95
  %v1705 = vunpack.c.l.b16 %v96
  %v1706 = vunpack.c.h.b16 %v96
  %v1707 = vunpack.c.l.b16 %v97
  %v1708 = vunpack.c.h.b16 %v97
  %v1709 = vunpack.c.l.b16 %v98
  %v1710 = vunpack.c.h.b16 %v98
  %v1711 = vunpack.c.l.b16 %v99
  %v1712 = vunpack.c.h.b16 %v99
  %v1713 = vunpack.c.l.b16 %v100
  %v1714 = vunpack.c.h.b16 %v100
  %v1715 = vunpack.c.l.b16 %v101
  %v1716 = vunpack.c.h.b16 %v101
  %v1717 = vunpack.c.l.b16 %v102
  %v1718 = vunpack.c.h.b16 %v102
  %v1719 = vunpack.c.l.b16 %v103
  %v1720 = vunpack.c.h.b16 %v103
  %v1721 = vunpack.c.l.b16 %v104
  %v1722 = vunpack.c.h.b16 %v104
  %v1723 = vunpack.c.l.b16 %v105
  %v1724 = vunpack.c.h.b16 %v105
  %v1725 = vunpack.c.l.b16 %v106
  %v1726 = vunpack.c.h.b16 %v106
  %v1727 = vunpack.c.l.b16 %v107
  %v1728 = vunpack.c.h.b16 %v107
  %v1729 = vunpack.c.l.b16 %v108
  %v1730 = vunpack.c.h.b16 %v108
  %v1731 = vunpack.c.l.b16 %v109
  %v1732 = vunpack.c.h.b16 %v109
  %v1733 = vunpack.c.l.b16 %v110
  %v1734 = vunpack.c.h.b16 %v110
  %v1735 = vunpack.c.l.b16 %v111
  %v1736 = vunpack.c.h.b16 %v111
  %v1737 = vunpack.c.l.b16 %v112
  %v1738 = vunpack.c.h.b16 %v112
  %v1739 = vunpack.c.l.b16 %v113
  %v1740 = vunpack.c.h.b16 %v113
  %v1741 = vunpack.c.l.b16 %v114
  %v1742 = vunpack.c.h.b16 %v114
  %v1743 = vunpack.c.l.b16 %v115
  %v1744 = vunpack.c.h.b16 %v115
  %v1745 = vunpack.c.l.b16 %v116
  %v1746 = vunpack.c.h.b16 %v116
  %v1747 = vunpack.c.l.b16 %v117
  %v1748 = vunpack.c.h.b16 %v117
  %v1749 = vunpack.c.l.b16 %v118
  %v1750 = vunpack.c.h.b16 %v118
  %v1751 = vunpack.c.l.b16 %v119
  %v1752 = vunpack.c.h.b16 %v119
  %v1753 = vunpack.c.l.b16 %v120
  %v1754 = vunpack.c.h.b16 %v120
  %v1755 = vunpack.c.l.b16 %v121
  %v1756 = vunpack.c.h.b16 %v121
  %v1757 = vunpack.c.l.b16 %v122
  %v1758 = vunpack.c.h.b16 %v122
  %v1759 = vunpack.c.l.b16 %v123
  %v1760 = vunpack.c.h.b16 %v123
  %v1761 = vunpack.c.l.b16 %v124
  %v1762 = vunpack.c.h.b16 %v124
  %v1763 = vunpack.c.l.b16 %v125
  %v1764 = vunpack.c.h.b16 %v125
  %v1765 = vunpack.c.l.b16 %v126
  %v1766 = vunpack.c.h.b16 %v126
  %v1767 = vunpack.c.l.b16 %v127
  %v1768 = vunpack.c.h.b16 %v127
  %v1769 = vunpack.c.l.b16 %v128
  %v1770 = vunpack.c.h.b16 %v128
  %v1771 = vunpack.c.l.b16 %v129
  %v1772 = vunpack.c.h.b16 %v129
  %v1773 = vunpack.c.l.b16 %v130
  %v1774 = vunpack.c.h.b16 %v130
  %v1775 = vunpack.c.l.b16 %v131
  %v1776 = vunpack.c.h.b16 %v131
  %v1777 = vunpack.c.l.b16 %v132
  %v1778 = vunpack.c.h.b16 %v132
  %v1779 = vunpack.c.l.b16 %v133
  %v1780 = vunpack.c.h.b16 %v133
  %v1781 = vunpack.c.l.b16 %v134
  %v1782 = vunpack.c.h.b16 %v134
  %v1783 = vunpack.c.l.b16 %v135
  %v1784 = vunpack.c.h.b16 %v135
  %v1785 = vunpack.c.l.b16 %v136
  %v1786 = vunpack.c.h.b16 %v136
  %v1787 = vunpack.c.l.b16 %v137
  %v1788 = vunpack.c.h.b16 %v137
  %v1789 = vunpack.c.l.b16 %v138
  %v1790 = vunpack.c.h.b16 %v138
  %v1791 = vunpack.c.l.b16 %v139
  %v1792 = vunpack.c.h.b16 %v139
  %v1793 = vunpack.c.l.b16 %v140
  %v1794 = vunpack.c.h.b16 %v140
  %v1795 = vunpack.c.l.b16 %v141
  %v1796 = vunpack.c.h.b16 %v141
  %v1797 = vunpack.c.l.b16 %v142
  %v1798 = vunpack.c.h.b16 %v142
  %v1799 = vunpack.c.l.b16 %v143
  %v1800 = vunpack.c.h.b16 %v143
  %v1801 = vunpack.c.l.b16 %v144
  %v1802 = vunpack.c.h.b16 %v144
  %v1803 = vunpack.c.l.b16 %v145
  %v1804 = vunpack.c.h.b16 %v145
  %v1805 = vunpack.c.l.b16 %v146
  %v1806 = vunpack.c.h.b16 %v146
  %v1807 = vunpack.c.l.b16 %v147
  %v1808 = vunpack.c.h.b16 %v147
  %v1809 = vunpack.c.l.b16 %v148
  %v1810 = vunpack.c.h.b16 %v148
  %v1811 = vunpack.c.l.b16 %v149
  %v1812 = vunpack.c.h.b16 %v149
  %v1813 = vunpack.c.l.b16 %v150
  %v1814 = vunpack.c.h.b16 %v150
  %v1815 = vunpack.c.l.b16 %v151
  %v1816 = vunpack.c.h.b16 %v151
  %v1817 = vunpack.c.l.b16 %v152
  %v1818 = vunpack.c.h.b16 %v152
  %v1819 = vunpack.c.l.b16 %v153
  %v1820 = vunpack.c.h.b16 %v153
  %v1821 = vunpack.c.l.b16 %v154
  %v1822 = vunpack.c.h.b16 %v154
  %v1823 = vunpack.c.l.b16 %v155
  %v1824 = vunpack.c.h.b16 %v155
  %v1825 = vunpack.c.l.b16 %v156
  %v1826 = vunpack.c.h.b16 %v156
  %v1827 = vunpack.c.l.b16 %v157
  %v1828 = vunpack.c.h.b16 %v157
  %v1829 = vunpack.c.l.b16 %v158
  %v1830 = vunpack.c.h.b16 %v158
  %v1831 = vunpack.c.l.b16 %v159
  %v1832 = vunpack.c.h.b16 %v159
  %v1833 = vunpack.c.l.b16 %v160
  %v1834 = vunpack.c.h.b16 %v160
  %v1835 = vunpack.c.l.b16 %v161
  %v1836 = vunpack.c.h.b16 %v161
  %v1837 = vunpack.c.l.b16 %v162
  %v1838 = vunpack.c.h.b16 %v162
  %v1839 = vunpack.c.l.b16 %v163
  %v1840 = vunpack.c.h.b16 %v163
  %v1841 = vunpack.c.l.b16 %v164
  %v1842 = vunpack.c.h.b16 %v164
  %v1843 = vunpack.c.l.b16 %v165
  %v1844 = vunpack.c.h.b16 %v165
  %v1845 = vunpack.c.l.b16 %v166
  %v1846 = vunpack.c.h.b16 %v166
  %v1847 = vunpack.c.l.b16 %v167
  %v1848 = vunpack.c.h.b16 %v167
  %v1849 = vunpack.c.l.b16 %v168
  %v1850 = vunpack.c.h.b16 %v168
  %v1851 = vunpack.c.l.b16 %v169
  %v1852 = vunpack.c.h.b16 %v169
  %v1853 = vunpack.c.l.b16 %v170
  %v1854 = vunpack.c.h.b16 %v170
  %v1855 = vunpack.c.l.b16 %v171
  %v1856 = vunpack.c.h.b16 %v171
  %v1857 = vunpack.c.l.b16 %v172
  %v1858 = vunpack.c.h.b16 %v172
  %v1859 = vunpack.c.l.b16 %v173
  %v1860 = vunpack.c.h.b16 %v173
  %v1861 = vunpack.c.l.b16 %v174
  %v1862 = vunpack.c.h.b16 %v174
  %v1863 = vunpack.c.l.b16 %v175
  %v1864 = vunpack.c.h.b16 %v175
  %v1865 = vunpack.c.l.b16 %v176
  %v1866 = vunpack.c.h.b16 %v176
  %v1867 = vunpack.c.l.b16 %v177
  %v1868 = vunpack.c.h.b16 %v177
  %v1869 = vunpack.c.l.b16 %v178
  %v1870 = vunpack.c.h.b16 %v178
  %v1871 = vunpack.c.l.b16 %v179
  %v1872 = vunpack.c.h.b16 %v179
  %v1873 = vunpack.c.l.b16 %v180
  %v1874 = vunpack.c.h.b16 %v180
  %v1875 = vunpack.c.l.b16 %v181
  %v1876 = vunpack.c.h.b16 %v181
  %v1877 = vunpack.c.l.b16 %v182
  %v1878 = vunpack.c.h.b16 %v182
  %v1879 = vunpack.c.l.b16 %v183
  %v1880 = vunpack.c.h.b16 %v183
  %v1881 = vunpack.c.l.b16 %v184
  %v1882 = vunpack.c.h.b16 %v184
  %v1883 = vunpack.c.l.b16 %v185
  %v1884 = vunpack.c.h.b16 %v185
  %v1885 = vunpack.c.l.b16 %v186
  %v1886 = vunpack.c.h.b16 %v186
  %v1887 = vunpack.c.l.b16 %v187
  %v1888 = vunpack.c.h.b16 %v187
  %v1889 = vunpack.c.l.b16 %v188
  %v1890 = vunpack.c.h.b16 %v188
  %v1891 = vunpack.c.l.b16 %v189
  %v1892 = vunpack.c.h.b16 %v189
  %v1893 = vunpack.c.l.b16 %v190
  %v1894 = vunpack.c.h.b16 %v190
  %v1895 = vunpack.c.l.b16 %v191
  %v1896 = vunpack.c.h.b16 %v191
  %v1897 = vunpack.c.l.b16 %v192
  %v1898 = vunpack.c.h.b16 %v192
  %v1899 = vunpack.c.l.b16 %v193
  %v1900 = vunpack.c.h.b16 %v193
  %v1901 = vunpack.c.l.b16 %v194
  %v1902 = vunpack.c.h.b16 %v194
  %v1903 = vunpack.c.l.b16 %v195
  %v1904 = vunpack.c.h.b16 %v195
  %v1905 = vunpack.c.l.b16 %v196
  %v1906 = vunpack.c.h.b16 %v196
  %v1907 = vunpack.c.l.b16 %v197
  %v1908 = vunpack.c.h.b16 %v197
  %v1909 = vunpack.c.l.b16 %v198
  %v1910 = vunpack.c.h.b16 %v198
  %v1911 = vunpack.c.l.b16 %v199
  %v1912 = vunpack.c.h.b16 %v199
  %v1913 = vunpack.c.l.b16 %v200
  %v1914 = vunpack.c.h.b16 %v200
  %v1915 = vpack.c.b16 %v1591, %v1555
  %v1916 = vpack.c.b16 %v1592, %v1556
  %v1917 = vpack.c.b16 %v1593, %v1557
  %v1918 = vpack.c.b16 %v1594, %v1558
  %v1919 = vpack.c.b16 %v1595, %v1559
  %v1920 = vpack.c.b16 %v1596, %v1560
  %v1921 = vpack.c.b16 %v1597, %v1561
  %v1922 = vpack.c.b16 %v1598, %v1562
  %v1923 = vpack.c.b16 %v1599, %v1563
  %v1924 = vpack.c.b16 %v1600, %v1564
  %v1925 = vpack.c.b16 %v1601, %v1565
  %v1926 = vpack.c.b16 %v1602, %v1566
  %v1927 = vpack.c.b16 %v1603, %v1567
  %v1928 = vpack.c.b16 %v1604, %v1568
  %v1929 = vpack.c.b16 %v1605, %v1569
  %v1930 = vpack.c.b16 %v1606, %v1570
  %v1931 = vpack.c.b16 %v1607, %v1571
  %v1932 = vpack.c.b16 %v1608, %v1572
  %v1933 = vpack.c.b16 %v1609, %v1573
  %v1934 = vpack.c.b16 %v1610, %v1574
  %v1935 = vpack.c.b16 %v1611, %v1575
  %v1936 = vpack.c.b16 %v1612, %v1576
  %v1937 = vpack.c.b16 %v1613, %v1577
  %v1938 = vpack.c.b16 %v1614, %v1578
  %v1939 = vpack.c.b16 %v1615, %v1579
  %v1940 = vpack.c.b16 %v1616, %v1580
  %v1941 = vpack.c.b16 %v1617, %v1581
  %v1942 = vpack.c.b16 %v1618, %v1582
  %v1943 = vpack.c.b16 %v1619, %v1583
  %v1944 = vpack.c.b16 %v1620, %v1584
  %v1945 = vpack.c.b16 %v1621, %v1585
  %v1946 = vpack.c.b16 %v1622, %v1586
  %v1947 = vpack.c.b16 %v1623, %v1587
  %v1948 = vpack.c.b16 %v1624, %v1588
  %v1949 = vpack.c.b16 %v1625, %v1589
  %v1950 = vpack.c.b16 %v1626, %v1590
  %v1951 = vpack.c.b16 %v1663, %v1627
  %v1952 = vpack.c.b16 %v1664, %v1628
  %v1953 = vpack.c.b16 %v1665, %v1629
  %v1954 = vpack.c.b16 %v1666, %v1630
  %v1955 = vpack.c.b16 %v1667, %v1631
  %v1956 = vpack.c.b16 %v1668, %v1632
  %v1957 = vpack.c.b16 %v1669, %v1633
  %v1958 = vpack.c.b16 %v1670, %v1634
  %v1959 = vpack.c.b16 %v1671, %v1635
  %v1960 = vpack.c.b16 %v1672, %v1636
  %v1961 = vpack.c.b16 %v1673, %v1637
  %v1962 = vpack.c.b16 %v1674, %v1638
  %v1963 = vpack.c.b16 %v1675, %v1639
  %v1964 = vpack.c.b16 %v1676, %v1640
  %v1965 = vpack.c.b16 %v1677, %v1641
  %v1966 = vpack.c.b16 %v1678, %v1642
  %v1967 = vpack.c.b16 %v1679, %v1643
  %v1968 = vpack.c.b16 %v1680, %v1644
  %v1969 = vpack.c.b16 %v1681, %v1645
  %v1970 = vpack.c.b16 %v1682, %v1646
  %v1971 = vpack.c.b16 %v1683, %v1647
  %v1972 = vpack.c.b16 %v1684, %v1648
  %v1973 = vpack.c.b16 %v1685, %v1649
  %v1974 = vpack.c.b16 %v1686, %v1650
  %v1975 = vpack.c.b16 %v1687, %v1651
  %v1976 = vpack.c.b16 %v1688, %v1652
  %v1977 = vpack.c.b16 %v1689, %v1653
  %v1978 = vpack.c.b16 %v1690, %v1654
  %v1979 = vpack.c.b16 %v1691, %v1655
  %v1980 = vpack.c.b16 %v1692, %v1656
  %v1981 = vpack.c.b16 %v1693, %v1657
  %v1982 = vpack.c.b16 %v1694, %v1658
  %v1983 = vpack.c.b16 %v1695, %v1659
  %v1984 = vpack.c.b16 %v1696, %v1660
  %v1985 = vpack.c.b16 %v1697, %v1661
  %v1986 = vpack.c.b16 %v1698, %v1662
  %v1987 = vpack.c.b16 %v1735, %v1699
  %v1988 = vpack.c.b16 %v1736, %v1700
  %v1989 = vpack.c.b16 %v1737, %v1701
  %v1990 = vpack.c.b16 %v1738, %v1702
  %v1991 = vpack.c.b16 %v1739, %v1703
  %v1992 = vpack.c.b16 %v1740, %v1704
  %v1993 = vpack.c.b16 %v1741, %v1705
  %v1994 = vpack.c.b16 %v1742, %v1706
  %v1995 = vpack.c.b16 %v1743, %v1707
  %v1996 = vpack.c.b16 %v1744, %v1708
  %v1997 = vpack.c.b16 %v1745, %v1709
  %v1998 = vpack.c.b16 %v1746, %v1710
  %v1999 = vpack.c.b16 %v1747, %v1711
  %v2000 = vpack.c.b16 %v1748, %v1712
  %v2001 = vpack.c.b16 %v1749, %v1713
  %v2002 = vpack.c.b16 %v1750, %v1714
  %v2003 = vpack.c.b16 %v1751, %v1715
  %v2004 = vpack.c.b16 %v1752, %v1716
  %v2005 = vpack.c.b16 %v1753, %v1717
  %v2006 = vpack.c.b16 %v1754, %v1718
  %v2007 = vpack.c.b16 %v1755, %v1719
  %v2008 = vpack.c.b16 %v1756, %v1720
  %v2009 = vpack.c.b16 %v1757, %v1721
  %v2010 = vpack.c.b16 %v1758, %v1722
  %v2011 = vpack.c.b16 %v1759, %v1723
  %v2012 = vpack.c.b16 %v1760, %v1724
  %v2013 = vpack.c.b16 %v1761, %v1725
  %v2014 = vpack.c.b16 %v1762, %v1726
  %v2015 = vpack.c.b16 %v1763, %v1727
  %v2016 = vpack.c.b16 %v1764, %v1728
  %v2017 = vpack.c.b16 %v1765, %v1729
  %v2018 = vpack.c.b16 %v1766, %v1730
  %v2019 = vpack.c.b16 %v1767, %v1731
  %v2020 = vpack.c.b16 %v1768, %v1732
  %v2021 = vpack.c.b16 %v1769, %v1733
  %v2022 = vpack.c.b16 %v1770, %v1734
  %v2023 = vpack.c.b16 %v1807, %v1771
  %v2024 = vpack.c.b16 %v1808, %v1772
  %v2025 = vpack.c.b16 %v1809, %v1773
  %v2026 = vpack.c.b16 %v1810, %v1774
  %v2027 = vpack.c.b16 %v1811, %v1775
  %v2028 = vpack.c.b16 %v1812, %v1776
  %v2029 = vpack.c.b16 %v1813, %v1777
  %v2030 = vpack.c.b16 %v1814, %v1778
  %v2031 = vpack.c.b16 %v1815, %v1779
  %v2032 = vpack.c.b16 %v1816, %v1780
  %v2033 = vpack.c.b16 %v1817, %v1781
  %v2034 = vpack.c.b16 %v1818, %v1782
  %v2035 = vpack.c.b16 %v1819, %v1783
  %v2036 = vpack.c.b16 %v1820, %v1784
  %v2037 = vpack.c.b16 %v1821, %v1785
  %v2038 = vpack.c.b16 %v1822, %v1786
  %v2039 = vpack.c.b16 %v1823, %v1787
  %v2040 = vpack.c.b16 %v1824, %v1788
  %v2041 = vpack.c.b16 %v1825, %v1789
  %v2042 = vpack.c.b16 %v1826, %v1790
  %v2043 = vpack.c.b16 %v1827, %v1791
  %v2044 = vpack.c.b16 %v1828, %v1792
  %v2045 = vpack.c.b16 %v1829, %v1793
  %v2046 = vpack.c.b16 %v1830, %v1794
  %v2047 = vpack.c.b16 %v1831, %v1795
  %v2048 = vpack.c.b16 %v1832, %v1796
  %v2049 = vpack.c.b16 %v1833, %v1797
  %v2050 = vpack.c.b16 %v1834, %v1798
  %v2051 = vpack.c.b16 %v1835, %v1799
  %v2052 = vpack.c.b16 %v1836, %v1800
  %v2053 = vpack.c.b16 %v1837, %v1801
  %v2054 = vpack.c.b16 %v1838, %v1802
  %v2055 = vpack.c.b16 %v1839, %v1803
  %v2056 = vpack.c.b16 %v1840, %v1804
  %v2057 = vpack.c.b16 %v1841, %v1805
  %v2058 = vpack.c.b16 %v1842, %v1806
  %v2059 = vpack.c.b16 %v1879, %v1843
  %v2060 = vpack.c.b16 %v1880, %v1844
  %v2061 = vpack.c.b16 %v1881, %v1845
  %v2062 = vpack.c.b16 %v1882, %v1846
  %v2063 = vpack.c.b16 %v1883, %v1847
  %v2064 = vpack.c.b16 %v1884, %v1848
  %v2065 = vpack.c.b16 %v1885, %v1849
  %v2066 = vpack.c.b16 %v1886, %v1850
  %v2067 = vpack.c.b16 %v1887, %v1851
  %v2068 = vpack.c.b16 %v1888, %v1852
  %v2069 = vpack.c.b16 %v1889, %v1853
  %v2070 = vpack.c.b16 %v1890, %v1854
  %v2071 = vpack.c.b16 %v1891, %v1855
  %v2072 = vpack.c.b16 %v1892, %v1856
  %v2073 = vpack.c.b16 %v1893, %v1857
  %v2074 = vpack.c.b16 %v1894, %v1858
  %v2075 = vpack.c.b16 %v1895, %v1859
  %v2076 = vpack.c.b16 %v1896, %v1860
  %v2077 = vpack.c.b16 %v1897, %v1861
  %v2078 = vpack.c.b16 %v1898, %v1862
  %v2079 = vpack.c.b16 %v1899, %v1863
  %v2080 = vpack.c.b16 %v1900, %v1864
  %v2081 = vpack.c.b16 %v1901, %v1865
  %v2082 = vpack.c.b16 %v1902, %v1866
  %v2083 = vpack.c.b16 %v1903, %v1867
  %v2084 = vpack.c.b16 %v1904, %v1868
  %v2085 = vpack.c.b16 %v1905, %v1869
  %v2086 = vpack.c.b16 %v1906, %v1870
  %v2087 = vpack.c.b16 %v1907, %v1871
  %v2088 = vpack.c.b16 %v1908, %v1872
  %v2089 = vpack.c.b16 %v1909, %v1873
  %v2090 = vpack.c.b16 %v1910, %v1874
  %v2091 = vpack.c.b16 %v1911, %v1875
  %v2092 = vpack.c.b16 %v1912, %v1876
  %v2093 = vpack.c.b16 %v1913, %v1877
  %v2094 = vpack.c.b16 %v1914, %v1878
  %v3427 = vunpack.c.l.b16 %v201
  %v3428 = vunpack.c.h.b16 %v201
  %v3429 = vunpack.c.l.b16 %v202
  %v3430 = vunpack.c.h.b16 %v202
  %v3431 = vunpack.c.l.b16 %v203
  %v3432 = vunpack.c.h.b16 %v203
  %v3433 = vunpack.c.l.b16 %v204
  %v3434 = vunpack.c.h.b16 %v204
  %v3435 = vunpack.c.l.b16 %v205
  %v3436 = vunpack.c.h.b16 %v205
  %v3437 = vunpack.c.l.b16 %v206
  %v3438 = vunpack.c.h.b16 %v206
  %v3439 = vunpack.c.l.b16 %v207
  %v3440 = vunpack.c.h.b16 %v207
  %v3441 = vunpack.c.l.b16 %v208
  %v3442 = vunpack.c.h.b16 %v208
  %v3443 = vunpack.c.l.b16 %v209
  %v3444 = vunpack.c.h.b16 %v209
  %v3445 = vunpack.c.l.b16 %v210
  %v3446 = vunpack.c.h.b16 %v210
  %v3447 = vunpack.c.l.b16 %v211
  %v3448 = vunpack.c.h.b16 %v211
  %v3449 = vunpack.c.l.b16 %v212
  %v3450 = vunpack.c.h.b16 %v212
  %v3451 = vunpack.c.l.b16 %v213
  %v3452 = vunpack.c.h.b16 %v213
  %v3453 = vunpack.c.l.b16 %v214
  %v3454 = vunpack.c.h.b16 %v214
  %v3455 = vunpack.c.l.b16 %v215
  %v3456 = vunpack.c.h.b16 %v215
  %v3457 = vunpack.c.l.b16 %v216
  %v3458 = vunpack.c.h.b16 %v216
  %v3459 = vunpack.c.l.b16 %v217
  %v3460 = vunpack.c.h.b16 %v217
  %v3461 = vunpack.c.l.b16 %v218
  %v3462 = vunpack.c.h.b16 %v218
  %v3463 = vunpack.c.l.b16 %v219
  %v3464 = vunpack.c.h.b16 %v219
  %v3465 = vunpack.c.l.b16 %v220
  %v3466 = vunpack.c.h.b16 %v220
  %v3467 = vunpack.c.l.b16 %v221
  %v3468 = vunpack.c.h.b16 %v221
  %v3469 = vunpack.c.l.b16 %v222
  %v3470 = vunpack.c.h.b16 %v222
  %v3471 = vunpack.c.l.b16 %v223
  %v3472 = vunpack.c.h.b16 %v223
  %v3473 = vunpack.c.l.b16 %v224
  %v3474 = vunpack.c.h.b16 %v224
  %v3475 = vunpack.c.l.b16 %v225
  %v3476 = vunpack.c.h.b16 %v225
  %v3477 = vunpack.c.l.b16 %v226
  %v3478 = vunpack.c.h.b16 %v226
  %v3479 = vunpack.c.l.b16 %v227
  %v3480 = vunpack.c.h.b16 %v227
  %v3481 = vunpack.c.l.b16 %v228
  %v3482 = vunpack.c.h.b16 %v228
  %v3483 = vunpack.c.l.b16 %v229
  %v3484 = vunpack.c.h.b16 %v229
  %v3485 = vunpack.c.l.b16 %v230
  %v3486 = vunpack.c.h.b16 %v230
  %v3487 = vunpack.c.l.b16 %v231
  %v3488 = vunpack.c.h.b16 %v231
  %v3489 = vunpack.c.l.b16 %v232
  %v3490 = vunpack.c.h.b16 %v232
  %v3491 = vunpack.c.l.b16 %v233
  %v3492 = vunpack.c.h.b16 %v233
  %v3493 = vunpack.c.l.b16 %v234
  %v3494 = vunpack.c.h.b16 %v234
  %v3495 = vunpack.c.l.b16 %v235
  %v3496 = vunpack.c.h.b16 %v235
  %v3497 = vunpack.c.l.b16 %v236
  %v3498 = vunpack.c.h.b16 %v236
  %v3499 = vunpack.c.l.b16 %v237
  %v3500 = vunpack.c.h.b16 %v237
  %v3501 = vunpack.c.l.b16 %v238
  %v3502 = vunpack.c.h.b16 %v238
  %v3503 = vunpack.c.l.b16 %v239
  %v3504 = vunpack.c.h.b16 %v239
  %v3505 = vunpack.c.l.b16 %v240
  %v3506 = vunpack.c.h.b16 %v240
  %v3507 = vunpack.c.l.b16 %v241
  %v3508 = vunpack.c.h.b16 %v241
  %v3509 = vunpack.c.l.b16 %v242
  %v3510 = vunpack.c.h.b16 %v242
  %v3511 = vunpack.c.l.b16 %v243
  %v3512 = vunpack.c.h.b16 %v243
  %v3513 = vunpack.c.l.b16 %v244
  %v3514 = vunpack.c.h.b16 %v244
  %v3515 = vunpack.c.l.b16 %v245
  %v3516 = vunpack.c.h.b16 %v245
  %v3517 = vunpack.c.l.b16 %v246
  %v3518 = vunpack.c.h.b16 %v246
  %v3519 = vunpack.c.l.b16 %v247
  %v3520 = vunpack.c.h.b16 %v247
  %v3521 = vunpack.c.l.b16 %v248
  %v3522 = vunpack.c.h.b16 %v248
  %v3523 = vunpack.c.l.b16 %v249
  %v3524 = vunpack.c.h.b16 %v249
  %v3525 = vunpack.c.l.b16 %v250
  %v3526 = vunpack.c.h.b16 %v250
  %v3527 = vunpack.c.l.b16 %v251
  %v3528 = vunpack.c.h.b16 %v251
  %v3529 = vunpack.c.l.b16 %v252
  %v3530 = vunpack.c.h.b16 %v252
  %v3531 = vunpack.c.l.b16 %v253
  %v3532 = vunpack.c.h.b16 %v253
  %v3533 = vunpack.c.l.b16 %v254
  %v3534 = vunpack.c.h.b16 %v254
  %v3535 = vunpack.c.l.b16 %v255
  %v3536 = vunpack.c.h.b16 %v255
  %v3537 = vunpack.c.l.b16 %v256
  %v3538 = vunpack.c.h.b16 %v256
  %v3539 = vunpack.c.l.b16 %v257
  %v3540 = vunpack.c.h.b16 %v257
  %v3541 = vunpack.c.l.b16 %v258
  %v3542 = vunpack.c.h.b16 %v258
  %v3543 = vunpack.c.l.b16 %v259
  %v3544 = vunpack.c.h.b16 %v259
  %v3545 = vunpack.c.l.b16 %v260
  %v3546 = vunpack.c.h.b16 %v260
  %v3547 = vunpack.c.l.b16 %v261
  %v3548 = vunpack.c.h.b16 %v261
  %v3549 = vunpack.c.l.b16 %v262
  %v3550 = vunpack.c.h.b16 %v262
  %v3551 = vunpack.c.l.b16 %v263
  %v3552 = vunpack.c.h.b16 %v263
  %v3553 = vunpack.c.l.b16 %v264
  %v3554 = vunpack.c.h.b16 %v264
  %v3555 = vunpack.c.l.b16 %v265
  %v3556 = vunpack.c.h.b16 %v265
  %v3557 = vunpack.c.l.b16 %v266
  %v3558 = vunpack.c.h.b16 %v266
  %v3559 = vunpack.c.l.b16 %v267
  %v3560 = vunpack.c.h.b16 %v267
  %v3561 = vunpack.c.l.b16 %v268
  %v3562 = vunpack.c.h.b16 %v268
  %v3563 = vunpack.c.l.b16 %v269
  %v3564 = vunpack.c.h.b16 %v269
  %v3565 = vunpack.c.l.b16 %v270
  %v3566 = vunpack.c.h.b16 %v270
  %v3567 = vunpack.c.l.b16 %v271
  %v3568 = vunpack.c.h.b16 %v271
  %v3569 = vunpack.c.l.b16 %v272
  %v3570 = vunpack.c.h.b16 %v272
  %v3571 = vunpack.c.l.b16 %v273
  %v3572 = vunpack.c.h.b16 %v273
  %v3573 = vunpack.c.l.b16 %v274
  %v3574 = vunpack.c.h.b16 %v274
  %v3575 = vunpack.c.l.b16 %v275
  %v3576 = vunpack.c.h.b16 %v275
  %v3577 = vunpack.c.l.b16 %v276
  %v3578 = vunpack.c.h.b16 %v276
  %v3579 = vunpack.c.l.b16 %v277
  %v3580 = vunpack.c.h.b16 %v277
  %v3581 = vunpack.c.l.b16 %v278
  %v3582 = vunpack.c.h.b16 %v278
  %v3583 = vunpack.c.l.b16 %v279
  %v3584 = vunpack.c.h.b16 %v279
  %v3585 = vunpack.c.l.b16 %v280
  %v3586 = vunpack.c.h.b16 %v280
  %v3587 = vunpack.c.l.b16 %v281
  %v3588 = vunpack.c.h.b16 %v281
  %v3589 = vunpack.c.l.b16 %v282
  %v3590 = vunpack.c.h.b16 %v282
  %v3591 = vunpack.c.l.b16 %v283
  %v3592 = vunpack.c.h.b16 %v283
  %v3593 = vunpack.c.l.b16 %v284
  %v3594 = vunpack.c.h.b16 %v284
  %v3595 = vunpack.c.l.b16 %v285
  %v3596 = vunpack.c.h.b16 %v285
  %v3597 = vunpack.c.l.b16 %v286
  %v3598 = vunpack.c.h.b16 %v286
  %v3599 = vunpack.c.l.b16 %v287
  %v3600 = vunpack.c.h.b16 %v287
  %v3601 = vunpack.c.l.b16 %v288
  %v3602 = vunpack.c.h.b16 %v288
  %v3603 = vunpack.c.l.b16 %v289
  %v3604 = vunpack.c.h.b16 %v289
  %v3605 = vunpack.c.l.b16 %v290
  %v3606 = vunpack.c.h.b16 %v290
  %v3607 = vunpack.c.l.b16 %v291
  %v3608 = vunpack.c.h.b16 %v291
  %v3609 = vunpack.c.l.b16 %v292
  %v3610 = vunpack.c.h.b16 %v292
  %v3611 = vunpack.c.l.b16 %v293
  %v3612 = vunpack.c.h.b16 %v293
  %v3613 = vunpack.c.l.b16 %v294
  %v3614 = vunpack.c.h.b16 %v294
  %v3615 = vunpack.c.l.b16 %v295
  %v3616 = vunpack.c.h.b16 %v295
  %v3617 = vunpack.c.l.b16 %v296
  %v3618 = vunpack.c.h.b16 %v296
  %v3619 = vunpack.c.l.b16 %v297
  %v3620 = vunpack.c.h.b16 %v297
  %v3621 = vunpack.c.l.b16 %v298
  %v3622 = vunpack.c.h.b16 %v298
  %v3623 = vunpack.c.l.b16 %v299
  %v3624 = vunpack.c.h.b16 %v299
  %v3625 = vunpack.c.l.b16 %v300
  %v3626 = vunpack.c.h.b16 %v300
  %v3627 = vunpack.c.l.b16 %v301
  %v3628 = vunpack.c.h.b16 %v301
  %v3629 = vunpack.c.l.b16 %v302
  %v3630 = vunpack.c.h.b16 %v302
  %v3631 = vunpack.c.l.b16 %v303
  %v3632 = vunpack.c.h.b16 %v303
  %v3633 = vunpack.c.l.b16 %v304
  %v3634 = vunpack.c.h.b16 %v304
  %v3635 = vunpack.c.l.b16 %v305
  %v3636 = vunpack.c.h.b16 %v305
  %v3637 = vunpack.c.l.b16 %v306
  %v3638 = vunpack.c.h.b16 %v306
  %v3639 = vunpack.c.l.b16 %v307
  %v3640 = vunpack.c.h.b16 %v307
  %v3641 = vunpack.c.l.b16 %v308
  %v3642 = vunpack.c.h.b16 %v308
  %v3643 = vunpack.c.l.b16 %v309
  %v3644 = vunpack.c.h.b16 %v309
  %v3645 = vunpack.c.l.b16 %v310
  %v3646 = vunpack.c.h.b16 %v310
  %v3647 = vunpack.c.l.b16 %v311
  %v3648 = vunpack.c.h.b16 %v311
  %v3649 = vunpack.c.l.b16 %v312
  %v3650 = vunpack.c.h.b16 %v312
  %v3651 = vunpack.c.l.b16 %v313
  %v3652 = vunpack.c.h.b16 %v313
  %v3653 = vunpack.c.l.b16 %v314
  %v3654 = vunpack.c.h.b16 %v314
  %v3655 = vunpack.c.l.b16 %v315
  %v3656 = vunpack.c.h.b16 %v315
  %v3657 = vunpack.c.l.b16 %v316
  %v3658 = vunpack.c.h.b16 %v316
  %v3659 = vunpack.c.l.b16 %v317
  %v3660 = vunpack.c.h.b16 %v317
  %v3661 = vunpack.c.l.b16 %v318
  %v3662 = vunpack.c.h.b16 %v318
  %v3663 = vunpack.c.l.b16 %v319
  %v3664 = vunpack.c.h.b16 %v319
  %v3665 = vunpack.c.l.b16 %v320
  %v3666 = vunpack.c.h.b16 %v320
  %v3667 = vunpack.c.l.b16 %v321
  %v3668 = vunpack.c.h.b16 %v321
  %v3669 = vunpack.c.l.b16 %v322
  %v3670 = vunpack.c.h.b16 %v322
  %v3671 = vunpack.c.l.b16 %v323
  %v3672 = vunpack.c.h.b16 %v323
  %v3673 = vunpack.c.l.b16 %v324
  %v3674 = vunpack.c.h.b16 %v324
  %v3675 = vunpack.c.l.b16 %v325
  %v3676 = vunpack.c.h.b16 %v325
  %v3677 = vunpack.c.l.b16 %v326
  %v3678 = vunpack.c.h.b16 %v326
  %v3679 = vunpack.c.l.b16 %v327
  %v3680 = vunpack.c.h.b16 %v327
  %v3681 = vunpack.c.l.b16 %v328
  %v3682 = vunpack.c.h.b16 %v328
  %v3683 = vunpack.c.l.b16 %v329
  %v3684 = vunpack.c.h.b16 %v329
  %v3685 = vunpack.c.l.b16 %v330
  %v3686 = vunpack.c.h.b16 %v330
  %v3687 = vunpack.c.l.b16 %v331
  %v3688 = vunpack.c.h.b16 %v331
  %v3689 = vunpack.c.l.b16 %v332
  %v3690 = vunpack.c.h.b16 %v332
  %v3691 = vunpack.c.l.b16 %v333
  %v3692 = vunpack.c.h.b16 %v333
  %v3693 = vunpack.c.l.b16 %v334
  %v3694 = vunpack.c.h.b16 %v334
  %v3695 = vunpack.c.l.b16 %v335
  %v3696 = vunpack.c.h.b16 %v335
  %v3697 = vunpack.c.l.b16 %v336
  %v3698 = vunpack.c.h.b16 %v336
  %v3699 = vunpack.c.l.b16 %v337
  %v3700 = vunpack.c.h.b16 %v337
  %v3701 = vunpack.c.l.b16 %v338
  %v3702 = vunpack.c.h.b16 %v338
  %v3703 = vunpack.c.l.b16 %v339
  %v3704 = vunpack.c.h.b16 %v339
  %v3705 = vunpack.c.l.b16 %v340
  %v3706 = vunpack.c.h.b16 %v340
  %v3707 = vunpack.c.l.b16 %v341
  %v3708 = vunpack.c.h.b16 %v341
  %v3709 = vunpack.c.l.b16 %v342
  %v3710 = vunpack.c.h.b16 %v342
  %v3711 = vunpack.c.l.b16 %v343
  %v3712 = vunpack.c.h.b16 %v343
  %v3713 = vunpack.c.l.b16 %v344
  %v3714 = vunpack.c.h.b16 %v344
  %v3715 = vunpack.c.l.b16 %v345
  %v3716 = vunpack.c.h.b16 %v345
  %v3717 = vunpack.c.l.b16 %v346
  %v3718 = vunpack.c.h.b16 %v346
  %v3719 = vunpack.c.l.b16 %v347
  %v3720 = vunpack.c.h.b16 %v347
  %v3721 = vunpack.c.l.b16 %v348
  %v3722 = vunpack.c.h.b16 %v348
  %v3723 = vunpack.c.l.b16 %v349
  %v3724 = vunpack.c.h.b16 %v349
  %v3725 = vunpack.c.l.b16 %v350
  %v3726 = vunpack.c.h.b16 %v350
  %v3727 = vunpack.c.l.b16 %v351
  %v3728 = vunpack.c.h.b16 %v351
  %v3729 = vunpack.c.l.b16 %v352
  %v3730 = vunpack.c.h.b16 %v352
  %v3731 = vunpack.c.l.b16 %v353
  %v3732 = vunpack.c.h.b16 %v353
  %v3733 = vunpack.c.l.b16 %v354
  %v3734 = vunpack.c.h.b16 %v354
  %v3735 = vunpack.c.l.b16 %v355
  %v3736 = vunpack.c.h.b16 %v355
  %v3737 = vunpack.c.l.b16 %v356
  %v3738 = vunpack.c.h.b16 %v356
  %v3739 = vunpack.c.l.b16 %v357
  %v3740 = vunpack.c.h.b16 %v357
  %v3741 = vunpack.c.l.b16 %v358
  %v3742 = vunpack.c.h.b16 %v358
  %v3743 = vunpack.c.l.b16 %v359
  %v3744 = vunpack.c.h.b16 %v359
  %v3745 = vunpack.c.l.b16 %v360
  %v3746 = vunpack.c.h.b16 %v360
  %v3747 = vunpack.c.l.b16 %v361
  %v3748 = vunpack.c.h.b16 %v361
  %v3749 = vunpack.c.l.b16 %v362
  %v3750 = vunpack.c.h.b16 %v362
  %v3751 = vunpack.c.l.b16 %v363
  %v3752 = vunpack.c.h.b16 %v363
  %v3753 = vunpack.c.l.b16 %v364
  %v3754 = vunpack.c.h.b16 %v364
  %v3755 = vunpack.c.l.b16 %v365
  %v3756 = vunpack.c.h.b16 %v365
  %v3757 = vunpack.c.l.b16 %v366
  %v3758 = vunpack.c.h.b16 %v366
  %v3759 = vunpack.c.l.b16 %v367
  %v3760 = vunpack.c.h.b16 %v367
  %v3761 = vunpack.c.l.b16 %v368
  %v3762 = vunpack.c.h.b16 %v368
  %v3763 = vunpack.c.l.b16 %v369
  %v3764 = vunpack.c.h.b16 %v369
  %v3765 = vunpack.c.l.b16 %v370
  %v3766 = vunpack.c.h.b16 %v370
  %v3767 = vunpack.c.l.b16 %v371
  %v3768 = vunpack.c.h.b16 %v371
  %v3769 = vunpack.c.l.b16 %v372
  %v3770 = vunpack.c.h.b16 %v372
  %v3771 = vunpack.c.l.b16 %v373
  %v3772 = vunpack.c.h.b16 %v373
  %v3773 = vunpack.c.l.b16 %v374
  %v3774 = vunpack.c.h.b16 %v374
  %v3775 = vunpack.c.l.b16 %v375
  %v3776 = vunpack.c.h.b16 %v375
  %v3777 = vunpack.c.l.b16 %v376
  %v3778 = vunpack.c.h.b16 %v376
  %v3779 = vunpack.c.l.b16 %v377
  %v3780 = vunpack.c.h.b16 %v377
  %v3781 = vunpack.c.l.b16 %v378
  %v3782 = vunpack.c.h.b16 %v378
  %v3783 = vunpack.c.l.b16 %v379
  %v3784 = vunpack.c.h.b16 %v379
  %v3785 = vunpack.c.l.b16 %v380
  %v3786 = vunpack.c.h.b16 %v380
  %v3787 = vunpack.c.l.b16 %v381
  %v3788 = vunpack.c.h.b16 %v381
  %v3789 = vunpack.c.l.b16 %v382
  %v3790 = vunpack.c.h.b16 %v382
  %v3791 = vunpack.c.l.b16 %v383
  %v3792 = vunpack.c.h.b16 %v383
  %v3793 = vunpack.c.l.b16 %v384
  %v3794 = vunpack.c.h.b16 %v384
  %v3795 = vunpack.c.l.b16 %v385
  %v3796 = vunpack.c.h.b16 %v385
  %v3797 = vunpack.c.l.b16 %v386
  %v3798 = vunpack.c.h.b16 %v386
  %v3799 = vunpack.c.l.b16 %v387
  %v3800 = vunpack.c.h.b16 %v387
  %v3801 = vunpack.c.l.b16 %v388
  %v3802 = vunpack.c.h.b16 %v388
  %v3803 = vunpack.c.l.b16 %v389
  %v3804 = vunpack.c.h.b16 %v389
  %v3805 = vunpack.c.l.b16 %v390
  %v3806 = vunpack.c.h.b16 %v390
  %v3807 = vunpack.c.l.b16 %v391
  %v3808 = vunpack.c.h.b16 %v391
  %v3809 = vunpack.c.l.b16 %v392
  %v3810 = vunpack.c.h.b16 %v392
  %v3811 = vunpack.c.l.b16 %v393
  %v3812 = vunpack.c.h.b16 %v393
  %v3813 = vunpack.c.l.b16 %v394
  %v3814 = vunpack.c.h.b16 %v394
  %v3815 = vunpack.c.l.b16 %v395
  %v3816 = vunpack.c.h.b16 %v395
  %v3817 = vunpack.c.l.b16 %v396
  %v3818 = vunpack.c.h.b16 %v396
  %v3819 = vunpack.c.l.b16 %v397
  %v3820 = vunpack.c.h.b16 %v397
  %v3821 = vunpack.c.l.b16 %v398
  %v3822 = vunpack.c.h.b16 %v398
  %v3823 = vunpack.c.l.b16 %v399
  %v3824 = vunpack.c.h.b16 %v399
  %v3825 = vunpack.c.l.b16 %v400
  %v3826 = vunpack.c.h.b16 %v400
  %v3827 = vunpack.c.l.b16 %v401
  %v3828 = vunpack.c.h.b16 %v401
  %v3829 = vunpack.c.l.b16 %v402
  %v3830 = vunpack.c.h.b16 %v402
  %v3831 = vunpack.c.l.b16 %v403
  %v3832 = vunpack.c.h.b16 %v403
  %v3833 = vunpack.c.l.b16 %v404
  %v3834 = vunpack.c.h.b16 %v404
  %v3835 = vunpack.c.l.b16 %v405
  %v3836 = vunpack.c.h.b16 %v405
  %v3837 = vunpack.c.l.b16 %v406
  %v3838 = vunpack.c.h.b16 %v406
  %v3839 = vunpack.c.l.b16 %v407
  %v3840 = vunpack.c.h.b16 %v407
  %v3841 = vunpack.c.l.b16 %v408
  %v3842 = vunpack.c.h.b16 %v408
  %v3843 = vunpack.c.l.b16 %v409
  %v3844 = vunpack.c.h.b16 %v409
  %v3845 = vunpack.c.l.b16 %v410
  %v3846 = vunpack.c.h.b16 %v410
  %v3847 = vunpack.c.l.b16 %v411
  %v3848 = vunpack.c.h.b16 %v411
  %v3849 = vunpack.c.l.b16 %v412
  %v3850 = vunpack.c.h.b16 %v412
  %v3851 = vunpack.c.l.b16 %v413
  %v3852 = vunpack.c.h.b16 %v413
  %v3853 = vunpack.c.l.b16 %v414
  %v3854 = vunpack.c.h.b16 %v414
  %v3855 = vunpack.c.l.b16 %v415
  %v3856 = vunpack.c.h.b16 %v415
  %v3857 = vunpack.c.l.b16 %v416
  %v3858 = vunpack.c.h.b16 %v416
  %v3859 = vunpack.c.l.b16 %v417
  %v3860 = vunpack.c.h.b16 %v417
  %v3861 = vunpack.c.l.b16 %v418
  %v3862 = vunpack.c.h.b16 %v418
  %v3863 = vunpack.c.l.b16 %v419
  %v3864 = vunpack.c.h.b16 %v419
  %v3865 = vunpack.c.l.b16 %v420
  %v3866 = vunpack.c.h.b16 %v420
  %v3867 = vunpack.c.l.b16 %v421
  %v3868 = vunpack.c.h.b16 %v421
  %v3869 = vunpack.c.l.b16 %v422
  %v3870 = vunpack.c.h.b16 %v422
  %v3871 = vunpack.c.l.b16 %v423
  %v3872 = vunpack.c.h.b16 %v423
  %v3873 = vunpack.c.l.b16 %v424
  %v3874 = vunpack.c.h.b16 %v424
  %v3875 = vunpack.c.l.b16 %v425
  %v3876 = vunpack.c.h.b16 %v425
  %v3877 = vunpack.c.l.b16 %v426
  %v3878 = vunpack.c.h.b16 %v426
  %v3879 = vunpack.c.l.b16 %v427
  %v3880 = vunpack.c.h.b16 %v427
  %v3881 = vunpack.c.l.b16 %v428
  %v3882 = vunpack.c.h.b16 %v428
  %v3883 = vunpack.c.l.b16 %v429
  %v3884 = vunpack.c.h.b16 %v429
  %v3885 = vunpack.c.l.b16 %v430
  %v3886 = vunpack.c.h.b16 %v430
  %v3887 = vunpack.c.l.b16 %v431
  %v3888 = vunpack.c.h.b16 %v431
  %v3889 = vunpack.c.l.b16 %v432
  %v3890 = vunpack.c.h.b16 %v432
  %v3891 = vunpack.c.l.b16 %v433
  %v3892 = vunpack.c.h.b16 %v433
  %v3893 = vunpack.c.l.b16 %v434
  %v3894 = vunpack.c.h.b16 %v434
  %v3895 = vunpack.c.l.b16 %v435
  %v3896 = vunpack.c.h.b16 %v435
  %v3897 = vunpack.c.l.b16 %v436
  %v3898 = vunpack.c.h.b16 %v436
  %v3899 = vunpack.c.l.b16 %v437
  %v3900 = vunpack.c.h.b16 %v437
  %v3901 = vunpack.c.l.b16 %v438
  %v3902 = vunpack.c.h.b16 %v438
  %v3903 = vunpack.c.l.b16 %v439
  %v3904 = vunpack.c.h.b16 %v439
  %v3905 = vunpack.c.l.b16 %v440
  %v3906 = vunpack.c.h.b16 %v440
  %v3907 = vunpack.c.l.b16 %v441
  %v3908 = vunpack.c.h.b16 %v441
  %v3909 = vunpack.c.l.b16 %v442
  %v3910 = vunpack.c.h.b16 %v442
  %v3911 = vunpack.c.l.b16 %v443
  %v3912 = vunpack.c.h.b16 %v443
  %v3913 = vunpack.c.l.b16 %v444
  %v3914 = vunpack.c.h.b16 %v444
  %v3915 = vunpack.c.l.b16 %v445
  %v3916 = vunpack.c.h.b16 %v445
  %v3917 = vunpack.c.l.b16 %v446
  %v3918 = vunpack.c.h.b16 %v446
  %v3919 = vunpack.c.l.b16 %v447
  %v3920 = vunpack.c.h.b16 %v447
  %v3921 = vunpack.c.l.b16 %v448
  %v3922 = vunpack.c.h.b16 %v448
  %v3923 = vunpack.c.l.b16 %v449
  %v3924 = vunpack.c.h.b16 %v449
  %v3925 = vunpack.c.l.b16 %v450
  %v3926 = vunpack.c.h.b16 %v450
  %v3927 = vunpack.c.l.b16 %v451
  %v3928 = vunpack.c.h.b16 %v451
  %v3929 = vunpack.c.l.b16 %v452
  %v3930 = vunpack.c.h.b16 %v452
  %v3931 = vunpack.c.l.b16 %v453
  %v3932 = vunpack.c.h.b16 %v453
  %v3933 = vunpack.c.l.b16 %v454
  %v3934 = vunpack.c.h.b16 %v454
  %v3935 = vunpack.c.l.b16 %v455
  %v3936 = vunpack.c.h.b16 %v455
  %v3937 = vunpack.c.l.b16 %v456
  %v3938 = vunpack.c.h.b16 %v456
  %v3939 = vunpack.c.l.b16 %v457
  %v3940 = vunpack.c.h.b16 %v457
  %v3941 = vunpack.c.l.b16 %v458
  %v3942 = vunpack.c.h.b16 %v458
  %v3943 = vunpack.c.l.b16 %v459
  %v3944 = vunpack.c.h.b16 %v459
  %v3945 = vunpack.c.l.b16 %v460
  %v3946 = vunpack.c.h.b16 %v460
  %v3947 = vunpack.c.l.b16 %v461
  %v3948 = vunpack.c.h.b16 %v461
  %v3949 = vunpack.c.l.b16 %v462
  %v3950 = vunpack.c.h.b16 %v462
  %v3951 = vunpack.c.l.b16 %v463
  %v3952 = vunpack.c.h.b16 %v463
  %v3953 = vunpack.c.l.b16 %v464
  %v3954 = vunpack.c.h.b16 %v464
  %v3955 = vunpack.c.l.b16 %v465
  %v3956 = vunpack.c.h.b16 %v465
  %v3957 = vunpack.c.l.b16 %v466
  %v3958 = vunpack.c.h.b16 %v466
  %v3959 = vunpack.c.l.b16 %v467
  %v3960 = vunpack.c.h.b16 %v467
  %v3961 = vunpack.c.l.b16 %v468
  %v3962 = vunpack.c.h.b16 %v468
  %v3963 = vunpack.c.l.b16 %v469
  %v3964 = vunpack.c.h.b16 %v469
  %v3965 = vunpack.c.l.b16 %v470
  %v3966 = vunpack.c.h.b16 %v470
  %v3967 = vunpack.c.l.b16 %v471
  %v3968 = vunpack.c.h.b16 %v471
  %v3969 = vunpack.c.l.b16 %v472
  %v3970 = vunpack.c.h.b16 %v472
  %v3971 = vunpack.c.l.b16 %v473
  %v3972 = vunpack.c.h.b16 %v473
  %v3973 = vunpack.c.l.b16 %v474
  %v3974 = vunpack.c.h.b16 %v474
  %v3975 = vunpack.c.l.b16 %v475
  %v3976 = vunpack.c.h.b16 %v475
  %v3977 = vunpack.c.l.b16 %v476
  %v3978 = vunpack.c.h.b16 %v476
  %v3979 = vunpack.c.l.b16 %v477
  %v3980 = vunpack.c.h.b16 %v477
  %v3981 = vunpack.c.l.b16 %v478
  %v3982 = vunpack.c.h.b16 %v478
  %v3983 = vunpack.c.l.b16 %v479
  %v3984 = vunpack.c.h.b16 %v479
  %v3985 = vunpack.c.l.b16 %v480
  %v3986 = vunpack.c.h.b16 %v480
  %v3987 = vunpack.c.l.b16 %v481
  %v3988 = vunpack.c.h.b16 %v481
  %v3989 = vunpack.c.l.b16 %v482
  %v3990 = vunpack.c.h.b16 %v482
  %v3991 = vunpack.c.l.b16 %v483
  %v3992 = vunpack.c.h.b16 %v483
  %v3993 = vunpack.c.l.b16 %v484
  %v3994 = vunpack.c.h.b16 %v484
  %v3995 = vunpack.c.l.b16 %v485
  %v3996 = vunpack.c.h.b16 %v485
  %v3997 = vunpack.c.l.b16 %v486
  %v3998 = vunpack.c.h.b16 %v486
  %v3999 = vunpack.c.l.b16 %v487
  %v4000 = vunpack.c.h.b16 %v487
  %v4001 = vunpack.c.l.b16 %v488
  %v4002 = vunpack.c.h.b16 %v488
  %v4003 = vunpack.c.l.b16 %v489
  %v4004 = vunpack.c.h.b16 %v489
  %v4005 = vunpack.c.l.b16 %v490
  %v4006 = vunpack.c.h.b16 %v490
  %v4007 = vunpack.c.l.b16 %v491
  %v4008 = vunpack.c.h.b16 %v491
  %v4009 = vunpack.c.l.b16 %v492
  %v4010 = vunpack.c.h.b16 %v492
  %v4011 = vunpack.c.l.b16 %v493
  %v4012 = vunpack.c.h.b16 %v493
  %v4013 = vunpack.c.l.b16 %v494
  %v4014 = vunpack.c.h.b16 %v494
  %v4015 = vunpack.c.l.b16 %v495
  %v4016 = vunpack.c.h.b16 %v495
  %v4017 = vunpack.c.l.b16 %v496
  %v4018 = vunpack.c.h.b16 %v496
  %v4019 = vunpack.c.l.b16 %v497
  %v4020 = vunpack.c.h.b16 %v497
  %v4021 = vunpack.c.l.b16 %v498
  %v4022 = vunpack.c.h.b16 %v498
  %v4023 = vunpack.c.l.b16 %v499
  %v4024 = vunpack.c.h.b16 %v499
  %v4025 = vunpack.c.l.b16 %v500
  %v4026 = vunpack.c.h.b16 %v500
  %v4027 = vunpack.c.l.b16 %v501
  %v4028 = vunpack.c.h.b16 %v501
  %v4029 = vunpack.c.l.b16 %v502
  %v4030 = vunpack.c.h.b16 %v502
  %v4031 = vunpack.c.l.b16 %v503
  %v4032 = vunpack.c.h.b16 %v503
  %v4033 = vunpack.c.l.b16 %v504
  %v4034 = vunpack.c.h.b16 %v504
  %v4035 = vunpack.c.l.b16 %v505
  %v4036 = vunpack.c.h.b16 %v505
  %v4037 = vunpack.c.l.b16 %v506
  %v4038 = vunpack.c.h.b16 %v506
  %v4039 = vunpack.c.l.b16 %v507
  %v4040 = vunpack.c.h.b16 %v507
  %v4041 = vunpack.c.l.b16 %v508
  %v4042 = vunpack.c.h.b16 %v508
  %v4043 = vunpack.c.l.b16 %v509
  %v4044 = vunpack.c.h.b16 %v509
  %v4045 = vunpack.c.l.b16 %v510
  %v4046 = vunpack.c.h.b16 %v510
  %v4047 = vunpack.c.l.b16 %v511
  %v4048 = vunpack.c.h.b16 %v511
  %v4049 = vunpack.c.l.b16 %v512
  %v4050 = vunpack.c.h.b16 %v512
  %v4051 = vunpack.c.l.b16 %v513
  %v4052 = vunpack.c.h.b16 %v513
  %v4053 = vunpack.c.l.b16 %v514
  %v4054 = vunpack.c.h.b16 %v514
  %v4055 = vunpack.c.l.b16 %v515
  %v4056 = vunpack.c.h.b16 %v515
  %v4057 = vunpack.c.l.b16 %v516
  %v4058 = vunpack.c.h.b16 %v516
  %v4059 = vunpack.c.l.b16 %v517
  %v4060 = vunpack.c.h.b16 %v517
  %v4061 = vunpack.c.l.b16 %v518
  %v4062 = vunpack.c.h.b16 %v518
  %v4063 = vunpack.c.l.b16 %v519
  %v4064 = vunpack.c.h.b16 %v519
  %v4065 = vunpack.c.l.b16 %v520
  %v4066 = vunpack.c.h.b16 %v520
  %v4067 = vunpack.c.l.b16 %v521
  %v4068 = vunpack.c.h.b16 %v521
  %v4069 = vunpack.c.l.b16 %v522
  %v4070 = vunpack.c.h.b16 %v522
  %v4071 = vunpack.c.l.b16 %v523
  %v4072 = vunpack.c.h.b16 %v523
  %v4073 = vunpack.c.l.b16 %v524
  %v4074 = vunpack.c.h.b16 %v524
  %v4075 = vunpack.c.l.b16 %v525
  %v4076 = vunpack.c.h.b16 %v525
  %v4077 = vunpack.c.l.b16 %v526
  %v4078 = vunpack.c.h.b16 %v526
  %v4079 = vunpack.c.l.b16 %v527
  %v4080 = vunpack.c.h.b16 %v527
  %v4081 = vunpack.c.l.b16 %v528
  %v4082 = vunpack.c.h.b16 %v528
  %v4083 = vunpack.c.l.b16 %v529
  %v4084 = vunpack.c.h.b16 %v529
  %v4085 = vunpack.c.l.b16 %v530
  %v4086 = vunpack.c.h.b16 %v530
  %v4087 = vunpack.c.l.b16 %v531
  %v4088 = vunpack.c.h.b16 %v531
  %v4089 = vunpack.c.l.b16 %v532
  %v4090 = vunpack.c.h.b16 %v532
  %v4091 = vunpack.c.l.b16 %v533
  %v4092 = vunpack.c.h.b16 %v533
  %v4093 = vunpack.c.l.b16 %v534
  %v4094 = vunpack.c.h.b16 %v534
  %v4095 = vunpack.c.l.b16 %v535
  %v4096 = vunpack.c.h.b16 %v535
  %v4097 = vunpack.c.l.b16 %v536
  %v4098 = vunpack.c.h.b16 %v536
  %v4099 = vunpack.c.l.b16 %v537
  %v4100 = vunpack.c.h.b16 %v537
  %v4101 = vunpack.c.l.b16 %v538
  %v4102 = vunpack.c.h.b16 %v538
  %v4103 = vunpack.c.l.b16 %v539
  %v4104 = vunpack.c.h.b16 %v539
  %v4105 = vunpack.c.l.b16 %v540
  %v4106 = vunpack.c.h.b16 %v540
  %v4107 = vunpack.c.l.b16 %v541
  %v4108 = vunpack.c.h.b16 %v541
  %v4109 = vunpack.c.l.b16 %v542
  %v4110 = vunpack.c.h.b16 %v542
  %v4111 = vunpack.c.l.b16 %v543
  %v4112 = vunpack.c.h.b16 %v543
  %v4113 = vunpack.c.l.b16 %v544
  %v4114 = vunpack.c.h.b16 %v544
  %v4115 = vunpack.c.l.b16 %v545
  %v4116 = vunpack.c.h.b16 %v545
  %v4117 = vunpack.c.l.b16 %v546
  %v4118 = vunpack.c.h.b16 %v546
  %v4119 = vunpack.c.l.b16 %v547
  %v4120 = vunpack.c.h.b16 %v547
  %v4121 = vunpack.c.l.b16 %v548
  %v4122 = vunpack.c.h.b16 %v548
  %v4123 = vunpack.c.l.b16 %v549
  %v4124 = vunpack.c.h.b16 %v549
  %v4125 = vunpack.c.l.b16 %v550
  %v4126 = vunpack.c.h.b16 %v550
  %v4127 = vunpack.c.l.b16 %v551
  %v4128 = vunpack.c.h.b16 %v551
  %v4129 = vunpack.c.l.b16 %v552
  %v4130 = vunpack.c.h.b16 %v552
  %v4131 = vunpack.c.l.b16 %v553
  %v4132 = vunpack.c.h.b16 %v553
  %v4133 = vunpack.c.l.b16 %v554
  %v4134 = vunpack.c.h.b16 %v554
  %v4135 = vunpack.c.l.b16 %v555
  %v4136 = vunpack.c.h.b16 %v555
  %v4137 = vunpack.c.l.b16 %v556
  %v4138 = vunpack.c.h.b16 %v556
  %v4139 = vunpack.c.l.b16 %v557
  %v4140 = vunpack.c.h.b16 %v557
  %v4141 = vunpack.c.l.b16 %v558
  %v4142 = vunpack.c.h.b16 %v558
  %v4143 = vunpack.c.l.b16 %v559
  %v4144 = vunpack.c.h.b16 %v559
  %v4145 = vunpack.c.l.b16 %v560
  %v4146 = vunpack.c.h.b16 %v560
  %v4147 = vunpack.c.l.b16 %v561
  %v4148 = vunpack.c.h.b16 %v561
  %v4149 = vunpack.c.l.b16 %v562
  %v4150 = vunpack.c.h.b16 %v562
  %v4151 = vunpack.c.l.b16 %v563
  %v4152 = vunpack.c.h.b16 %v563
  %v4153 = vunpack.c.l.b16 %v564
  %v4154 = vunpack.c.h.b16 %v564
  %v4155 = vunpack.c.l.b16 %v565
  %v4156 = vunpack.c.h.b16 %v565
  %v4157 = vunpack.c.l.b16 %v566
  %v4158 = vunpack.c.h.b16 %v566
  %v4159 = vunpack.c.l.b16 %v567
  %v4160 = vunpack.c.h.b16 %v567
  %v4161 = vunpack.c.l.b16 %v568
  %v4162 = vunpack.c.h.b16 %v568
  %v4163 = vunpack.c.l.b16 %v569
  %v4164 = vunpack.c.h.b16 %v569
  %v4165 = vunpack.c.l.b16 %v570
  %v4166 = vunpack.c.h.b16 %v570
  %v4167 = vunpack.c.l.b16 %v571
  %v4168 = vunpack.c.h.b16 %v571
  %v4169 = vunpack.c.l.b16 %v572
  %v4170 = vunpack.c.h.b16 %v572
  %v4171 = vunpack.c.l.b16 %v573
  %v4172 = vunpack.c.h.b16 %v573
  %v4173 = vunpack.c.l.b16 %v574
  %v4174 = vunpack.c.h.b16 %v574
  %v4175 = vunpack.c.l.b16 %v575
  %v4176 = vunpack.c.h.b16 %v575
  %v4177 = vunpack.c.l.b16 %v576
  %v4178 = vunpack.c.h.b16 %v576
  %v4179 = vunpack.c.l.b16 %v577
  %v4180 = vunpack.c.h.b16 %v577
  %v4181 = vunpack.c.l.b16 %v578
  %v4182 = vunpack.c.h.b16 %v578
  %v4183 = vunpack.c.l.b16 %v579
  %v4184 = vunpack.c.h.b16 %v579
  %v4185 = vunpack.c.l.b16 %v580
  %v4186 = vunpack.c.h.b16 %v580
  %v4187 = vunpack.c.l.b16 %v581
  %v4188 = vunpack.c.h.b16 %v581
  %v4189 = vunpack.c.l.b16 %v582
  %v4190 = vunpack.c.h.b16 %v582
  %v4191 = vunpack.c.l.b16 %v583
  %v4192 = vunpack.c.h.b16 %v583
  %v4193 = vunpack.c.l.b16 %v584
  %v4194 = vunpack.c.h.b16 %v584
  %v4195 = vunpack.c.l.b16 %v585
  %v4196 = vunpack.c.h.b16 %v585
  %v4197 = vunpack.c.l.b16 %v586
  %v4198 = vunpack.c.h.b16 %v586
  %v4199 = vunpack.c.l.b16 %v587
  %v4200 = vunpack.c.h.b16 %v587
  %v4201 = vunpack.c.l.b16 %v588
  %v4202 = vunpack.c.h.b16 %v588
  %v4203 = vunpack.c.l.b16 %v589
  %v4204 = vunpack.c.h.b16 %v589
  %v4205 = vunpack.c.l.b16 %v590
  %v4206 = vunpack.c.h.b16 %v590
  %v4207 = vunpack.c.l.b16 %v591
  %v4208 = vunpack.c.h.b16 %v591
  %v4209 = vunpack.c.l.b16 %v592
  %v4210 = vunpack.c.h.b16 %v592
  %v4211 = vunpack.c.l.b16 %v593
  %v4212 = vunpack.c.h.b16 %v593
  %v4213 = vunpack.c.l.b16 %v594
  %v4214 = vunpack.c.h.b16 %v594
  %v4215 = vunpack.c.l.b16 %v595
  %v4216 = vunpack.c.h.b16 %v595
  %v4217 = vunpack.c.l.b16 %v596
  %v4218 = vunpack.c.h.b16 %v596
  %v4219 = vunpack.c.l.b16 %v597
  %v4220 = vunpack.c.h.b16 %v597
  %v4221 = vunpack.c.l.b16 %v598
  %v4222 = vunpack.c.h.b16 %v598
  %v4223 = vunpack.c.l.b16 %v599
  %v4224 = vunpack.c.h.b16 %v599
  %v4225 = vunpack.c.l.b16 %v600
  %v4226 = vunpack.c.h.b16 %v600
  %v4227 = vunpack.c.l.b16 %v601
  %v4228 = vunpack.c.h.b16 %v601
  %v4229 = vunpack.c.l.b16 %v602
  %v4230 = vunpack.c.h.b16 %v602
  %v4231 = vunpack.c.l.b16 %v603
  %v4232 = vunpack.c.h.b16 %v603
  %v4233 = vunpack.c.l.b16 %v604
  %v4234 = vunpack.c.h.b16 %v604
  %v4235 = vunpack.c.l.b16 %v605
  %v4236 = vunpack.c.h.b16 %v605
  %v4237 = vunpack.c.l.b16 %v606
  %v4238 = vunpack.c.h.b16 %v606
  %v4239 = vunpack.c.l.b16 %v607
  %v4240 = vunpack.c.h.b16 %v607
  %v4241 = vunpack.c.l.b16 %v608
  %v4242 = vunpack.c.h.b16 %v608
  %v4243 = vunpack.c.l.b16 %v609
  %v4244 = vunpack.c.h.b16 %v609
  %v4245 = vunpack.c.l.b16 %v610
  %v4246 = vunpack.c.h.b16 %v610
  %v4247 = vunpack.c.l.b16 %v611
  %v4248 = vunpack.c.h.b16 %v611
  %v4249 = vunpack.c.l.b16 %v612
  %v4250 = vunpack.c.h.b16 %v612
  %v4251 = vunpack.c.l.b16 %v613
  %v4252 = vunpack.c.h.b16 %v613
  %v4253 = vunpack.c.l.b16 %v614
  %v4254 = vunpack.c.h.b16 %v614
  %v4255 = vunpack.c.l.b16 %v615
  %v4256 = vunpack.c.h.b16 %v615
  %v4257 = vunpack.c.l.b16 %v616
  %v4258 = vunpack.c.h.b16 %v616
  %v4259 = vunpack.c.l.b16 %v617
  %v4260 = vunpack.c.h.b16 %v617
  %v4261 = vunpack.c.l.b16 %v618
  %v4262 = vunpack.c.h.b16 %v618
  %v4263 = vunpack.c.l.b16 %v619
  %v4264 = vunpack.c.h.b16 %v619
  %v4265 = vunpack.c.l.b16 %v620
  %v4266 = vunpack.c.h.b16 %v620
  %v4267 = vunpack.c.l.b16 %v621
  %v4268 = vunpack.c.h.b16 %v621
  %v4269 = vunpack.c.l.b16 %v622
  %v4270 = vunpack.c.h.b16 %v622
  %v4271 = vunpack.c.l.b16 %v623
  %v4272 = vunpack.c.h.b16 %v623
  %v4273 = vunpack.c.l.b16 %v624
  %v4274 = vunpack.c.h.b16 %v624
  %v4275 = vunpack.c.l.b16 %v625
  %v4276 = vunpack.c.h.b16 %v625
  %v4277 = vunpack.c.l.b16 %v626
  %v4278 = vunpack.c.h.b16 %v626
  %v4279 = vunpack.c.l.b16 %v627
  %v4280 = vunpack.c.h.b16 %v627
  %v4281 = vunpack.c.l.b16 %v628
  %v4282 = vunpack.c.h.b16 %v628
  %v4283 = vunpack.c.l.b16 %v629
  %v4284 = vunpack.c.h.b16 %v629
  %v4285 = vunpack.c.l.b16 %v630
  %v4286 = vunpack.c.h.b16 %v630
  %v4287 = vunpack.c.l.b16 %v631
  %v4288 = vunpack.c.h.b16 %v631
  %v4289 = vunpack.c.l.b16 %v632
  %v4290 = vunpack.c.h.b16 %v632
  %v4291 = vunpack.c.l.b16 %v633
  %v4292 = vunpack.c.h.b16 %v633
  %v4293 = vunpack.c.l.b16 %v634
  %v4294 = vunpack.c.h.b16 %v634
  %v4295 = vunpack.c.l.b16 %v635
  %v4296 = vunpack.c.h.b16 %v635
  %v4297 = vunpack.c.l.b16 %v636
  %v4298 = vunpack.c.h.b16 %v636
  %v4299 = vunpack.c.l.b16 %v637
  %v4300 = vunpack.c.h.b16 %v637
  %v4301 = vunpack.c.l.b16 %v638
  %v4302 = vunpack.c.h.b16 %v638
  %v4303 = vunpack.c.l.b16 %v639
  %v4304 = vunpack.c.h.b16 %v639
  %v4305 = vunpack.c.l.b16 %v640
  %v4306 = vunpack.c.h.b16 %v640
  %v4307 = vunpack.c.l.b16 %v641
  %v4308 = vunpack.c.h.b16 %v641
  %v4309 = vunpack.c.l.b16 %v642
  %v4310 = vunpack.c.h.b16 %v642
  %v4311 = vunpack.c.l.b16 %v643
  %v4312 = vunpack.c.h.b16 %v643
  %v4313 = vunpack.c.l.b16 %v644
  %v4314 = vunpack.c.h.b16 %v644
  %v4315 = vunpack.c.l.b16 %v645
  %v4316 = vunpack.c.h.b16 %v645
  %v4317 = vunpack.c.l.b16 %v646
  %v4318 = vunpack.c.h.b16 %v646
  %v4319 = vunpack.c.l.b16 %v647
  %v4320 = vunpack.c.h.b16 %v647
  %v4321 = vunpack.c.l.b16 %v648
  %v4322 = vunpack.c.h.b16 %v648
  %v4323 = vunpack.c.l.b16 %v649
  %v4324 = vunpack.c.h.b16 %v649
  %v4325 = vunpack.c.l.b16 %v650
  %v4326 = vunpack.c.h.b16 %v650
  %v4327 = vunpack.c.l.b16 %v651
  %v4328 = vunpack.c.h.b16 %v651
  %v4329 = vunpack.c.l.b16 %v652
  %v4330 = vunpack.c.h.b16 %v652
  %v4331 = vunpack.c.l.b16 %v653
  %v4332 = vunpack.c.h.b16 %v653
  %v4333 = vunpack.c.l.b16 %v654
  %v4334 = vunpack.c.h.b16 %v654
  %v4335 = vunpack.c.l.b16 %v655
  %v4336 = vunpack.c.h.b16 %v655
  %v4337 = vunpack.c.l.b16 %v656
  %v4338 = vunpack.c.h.b16 %v656
  %v4339 = vunpack.c.l.b16 %v657
  %v4340 = vunpack.c.h.b16 %v657
  %v4341 = vunpack.c.l.b16 %v658
  %v4342 = vunpack.c.h.b16 %v658
  %v4343 = vunpack.c.l.b16 %v659
  %v4344 = vunpack.c.h.b16 %v659
  %v4345 = vunpack.c.l.b16 %v660
  %v4346 = vunpack.c.h.b16 %v660
  %v4347 = vunpack.c.l.b16 %v661
  %v4348 = vunpack.c.h.b16 %v661
  %v4349 = vunpack.c.l.b16 %v662
  %v4350 = vunpack.c.h.b16 %v662
  %v4351 = vunpack.c.l.b16 %v663
  %v4352 = vunpack.c.h.b16 %v663
  %v4353 = vunpack.c.l.b16 %v664
  %v4354 = vunpack.c.h.b16 %v664
  %v4355 = vunpack.c.l.b16 %v665
  %v4356 = vunpack.c.h.b16 %v665
  %v4357 = vunpack.c.l.b16 %v666
  %v4358 = vunpack.c.h.b16 %v666
  %v4359 = vunpack.c.l.b16 %v667
  %v4360 = vunpack.c.h.b16 %v667
  %v4361 = vunpack.c.l.b16 %v668
  %v4362 = vunpack.c.h.b16 %v668
  %v4363 = vunpack.c.l.b16 %v669
  %v4364 = vunpack.c.h.b16 %v669
  %v4365 = vunpack.c.l.b16 %v670
  %v4366 = vunpack.c.h.b16 %v670
  %v4367 = vunpack.c.l.b16 %v671
  %v4368 = vunpack.c.h.b16 %v671
  %v4369 = vunpack.c.l.b16 %v672
  %v4370 = vunpack.c.h.b16 %v672
  %v4371 = vunpack.c.l.b16 %v673
  %v4372 = vunpack.c.h.b16 %v673
  %v4373 = vunpack.c.l.b16 %v674
  %v4374 = vunpack.c.h.b16 %v674
  %v4375 = vunpack.c.l.b16 %v675
  %v4376 = vunpack.c.h.b16 %v675
  %v4377 = vunpack.c.l.b16 %v676
  %v4378 = vunpack.c.h.b16 %v676
  %v4379 = vunpack.c.l.b16 %v677
  %v4380 = vunpack.c.h.b16 %v677
  %v4381 = vunpack.c.l.b16 %v678
  %v4382 = vunpack.c.h.b16 %v678
  %v4383 = vunpack.c.l.b16 %v679
  %v4384 = vunpack.c.h.b16 %v679
  %v4385 = vunpack.c.l.b16 %v680
  %v4386 = vunpack.c.h.b16 %v680
  %v4387 = vunpack.c.l.b16 %v681
  %v4388 = vunpack.c.h.b16 %v681
  %v4389 = vunpack.c.l.b16 %v682
  %v4390 = vunpack.c.h.b16 %v682
  %v4391 = vunpack.c.l.b16 %v683
  %v4392 = vunpack.c.h.b16 %v683
  %v4393 = vunpack.c.l.b16 %v684
  %v4394 = vunpack.c.h.b16 %v684
  %v4395 = vunpack.c.l.b16 %v685
  %v4396 = vunpack.c.h.b16 %v685
  %v4397 = vunpack.c.l.b16 %v686
  %v4398 = vunpack.c.h.b16 %v686
  %v4399 = vunpack.c.l.b16 %v687
  %v4400 = vunpack.c.h.b16 %v687
  %v4401 = vunpack.c.l.b16 %v688
  %v4402 = vunpack.c.h.b16 %v688
  %v4403 = vunpack.c.l.b16 %v689
  %v4404 = vunpack.c.h.b16 %v689
  %v4405 = vunpack.c.l.b16 %v690
  %v4406 = vunpack.c.h.b16 %v690
  %v4407 = vunpack.c.l.b16 %v691
  %v4408 = vunpack.c.h.b16 %v691
  %v4409 = vunpack.c.l.b16 %v692
  %v4410 = vunpack.c.h.b16 %v692
  %v4411 = vunpack.c.l.b16 %v693
  %v4412 = vunpack.c.h.b16 %v693
  %v4413 = vunpack.c.l.b16 %v694
  %v4414 = vunpack.c.h.b16 %v694
  %v4415 = vunpack.c.l.b16 %v695
  %v4416 = vunpack.c.h.b16 %v695
  %v4417 = vunpack.c.l.b16 %v696
  %v4418 = vunpack.c.h.b16 %v696
  %v4419 = vunpack.c.l.b16 %v697
  %v4420 = vunpack.c.h.b16 %v697
  %v4421 = vunpack.c.l.b16 %v698
  %v4422 = vunpack.c.h.b16 %v698
  %v4423 = vunpack.c.l.b16 %v699
  %v4424 = vunpack.c.h.b16 %v699
  %v4425 = vunpack.c.l.b16 %v700
  %v4426 = vunpack.c.h.b16 %v700
  %v4427 = vunpack.c.l.b16 %v701
  %v4428 = vunpack.c.h.b16 %v701
  %v4429 = vunpack.c.l.b16 %v702
  %v4430 = vunpack.c.h.b16 %v702
  %v4431 = vunpack.c.l.b16 %v703
  %v4432 = vunpack.c.h.b16 %v703
  %v4433 = vunpack.c.l.b16 %v704
  %v4434 = vunpack.c.h.b16 %v704
  %v4435 = vunpack.c.l.b16 %v705
  %v4436 = vunpack.c.h.b16 %v705
  %v4437 = vunpack.c.l.b16 %v706
  %v4438 = vunpack.c.h.b16 %v706
  %v4439 = vunpack.c.l.b16 %v707
  %v4440 = vunpack.c.h.b16 %v707
  %v4441 = vunpack.c.l.b16 %v708
  %v4442 = vunpack.c.h.b16 %v708
  %v4443 = vunpack.c.l.b16 %v709
  %v4444 = vunpack.c.h.b16 %v709
  %v4445 = vunpack.c.l.b16 %v710
  %v4446 = vunpack.c.h.b16 %v710
  %v4447 = vunpack.c.l.b16 %v711
  %v4448 = vunpack.c.h.b16 %v711
  %v4449 = vunpack.c.l.b16 %v712
  %v4450 = vunpack.c.h.b16 %v712
  %v4451 = vunpack.c.l.b16 %v713
  %v4452 = vunpack.c.h.b16 %v713
  %v4453 = vunpack.c.l.b16 %v714
  %v4454 = vunpack.c.h.b16 %v714
  %v4455 = vunpack.c.l.b16 %v715
  %v4456 = vunpack.c.h.b16 %v715
  %v4457 = vunpack.c.l.b16 %v716
  %v4458 = vunpack.c.h.b16 %v716
  %v4459 = vunpack.c.l.b16 %v717
  %v4460 = vunpack.c.h.b16 %v717
  %v4461 = vunpack.c.l.b16 %v718
  %v4462 = vunpack.c.h.b16 %v718
  %v4463 = vunpack.c.l.b16 %v719
  %v4464 = vunpack.c.h.b16 %v719
  %v4465 = vunpack.c.l.b16 %v720
  %v4466 = vunpack.c.h.b16 %v720
  %v4467 = vunpack.c.l.b16 %v721
  %v4468 = vunpack.c.h.b16 %v721
  %v4469 = vunpack.c.l.b16 %v722
  %v4470 = vunpack.c.h.b16 %v722
  %v4471 = vunpack.c.l.b16 %v723
  %v4472 = vunpack.c.h.b16 %v723
  %v4473 = vunpack.c.l.b16 %v724
  %v4474 = vunpack.c.h.b16 %v724
  %v4475 = vunpack.c.l.b16 %v725
  %v4476 = vunpack.c.h.b16 %v725
  %v4477 = vunpack.c.l.b16 %v726
  %v4478 = vunpack.c.h.b16 %v726
  %v4479 = vunpack.c.l.b16 %v727
  %v4480 = vunpack.c.h.b16 %v727
  %v4481 = vunpack.c.l.b16 %v728
  %v4482 = vunpack.c.h.b16 %v728
  %v4483 = vunpack.c.l.b16 %v729
  %v4484 = vunpack.c.h.b16 %v729
  %v4485 = vunpack.c.l.b16 %v730
  %v4486 = vunpack.c.h.b16 %v730
  %v4487 = vunpack.c.l.b16 %v731
  %v4488 = vunpack.c.h.b16 %v731
  %v4489 = vunpack.c.l.b16 %v732
  %v4490 = vunpack.c.h.b16 %v732
  %v4491 = vunpack.c.l.b16 %v733
  %v4492 = vunpack.c.h.b16 %v733
  %v4493 = vunpack.c.l.b16 %v734
  %v4494 = vunpack.c.h.b16 %v734
  %v4495 = vunpack.c.l.b16 %v735
  %v4496 = vunpack.c.h.b16 %v735
  %v4497 = vunpack.c.l.b16 %v736
  %v4498 = vunpack.c.h.b16 %v736
  %v4499 = vunpack.c.l.b16 %v737
  %v4500 = vunpack.c.h.b16 %v737
  %v4501 = vunpack.c.l.b16 %v738
  %v4502 = vunpack.c.h.b16 %v738
  %v4503 = vunpack.c.l.b16 %v739
  %v4504 = vunpack.c.h.b16 %v739
  %v4505 = vunpack.c.l.b16 %v740
  %v4506 = vunpack.c.h.b16 %v740
  %v4507 = vunpack.c.l.b16 %v741
  %v4508 = vunpack.c.h.b16 %v741
  %v4509 = vunpack.c.l.b16 %v742
  %v4510 = vunpack.c.h.b16 %v742
  %v4511 = vunpack.c.l.b16 %v743
  %v4512 = vunpack.c.h.b16 %v743
  %v4513 = vunpack.c.l.b16 %v744
  %v4514 = vunpack.c.h.b16 %v744
  %v4515 = vunpack.c.l.b16 %v745
  %v4516 = vunpack.c.h.b16 %v745
  %v4517 = vunpack.c.l.b16 %v746
  %v4518 = vunpack.c.h.b16 %v746
  %v4519 = vunpack.c.l.b16 %v747
  %v4520 = vunpack.c.h.b16 %v747
  %v4521 = vunpack.c.l.b16 %v748
  %v4522 = vunpack.c.h.b16 %v748
  %v4523 = vunpack.c.l.b16 %v749
  %v4524 = vunpack.c.h.b16 %v749
  %v4525 = vunpack.c.l.b16 %v750
  %v4526 = vunpack.c.h.b16 %v750
  %v4527 = vunpack.c.l.b16 %v751
  %v4528 = vunpack.c.h.b16 %v751
  %v4529 = vunpack.c.l.b16 %v752
  %v4530 = vunpack.c.h.b16 %v752
  %v4531 = vunpack.c.l.b16 %v753
  %v4532 = vunpack.c.h.b16 %v753
  %v4533 = vunpack.c.l.b16 %v754
  %v4534 = vunpack.c.h.b16 %v754
  %v4535 = vunpack.c.l.b16 %v755
  %v4536 = vunpack.c.h.b16 %v755
  %v4537 = vunpack.c.l.b16 %v756
  %v4538 = vunpack.c.h.b16 %v756
  %v4539 = vunpack.c.l.b16 %v757
  %v4540 = vunpack.c.h.b16 %v757
  %v4541 = vunpack.c.l.b16 %v758
  %v4542 = vunpack.c.h.b16 %v758
  %v4543 = vunpack.c.l.b16 %v759
  %v4544 = vunpack.c.h.b16 %v759
  %v4545 = vunpack.c.l.b16 %v760
  %v4546 = vunpack.c.h.b16 %v760
  %v4547 = vunpack.c.l.b16 %v761
  %v4548 = vunpack.c.h.b16 %v761
  %v4549 = vunpack.c.l.b16 %v762
  %v4550 = vunpack.c.h.b16 %v762
  %v4551 = vunpack.c.l.b16 %v763
  %v4552 = vunpack.c.h.b16 %v763
  %v4553 = vunpack.c.l.b16 %v764
  %v4554 = vunpack.c.h.b16 %v764
  %v4555 = vunpack.c.l.b16 %v765
  %v4556 = vunpack.c.h.b16 %v765
  %v4557 = vunpack.c.l.b16 %v766
  %v4558 = vunpack.c.h.b16 %v766
  %v4559 = vunpack.c.l.b16 %v767
  %v4560 = vunpack.c.h.b16 %v767
  %v4561 = vunpack.c.l.b16 %v768
  %v4562 = vunpack.c.h.b16 %v768
  %v4563 = vunpack.c.l.b16 %v769
  %v4564 = vunpack.c.h.b16 %v769
  %v4565 = vunpack.c.l.b16 %v770
  %v4566 = vunpack.c.h.b16 %v770
  %v4567 = vunpack.c.l.b16 %v771
  %v4568 = vunpack.c.h.b16 %v771
  %v4569 = vunpack.c.l.b16 %v772
  %v4570 = vunpack.c.h.b16 %v772
  %v4571 = vunpack.c.l.b16 %v773
  %v4572 = vunpack.c.h.b16 %v773
  %v4573 = vunpack.c.l.b16 %v774
  %v4574 = vunpack.c.h.b16 %v774
  %v4575 = vunpack.c.l.b16 %v775
  %v4576 = vunpack.c.h.b16 %v775
  %v4577 = vunpack.c.l.b16 %v776
  %v4578 = vunpack.c.h.b16 %v776
  %v4579 = vunpack.c.l.b16 %v777
  %v4580 = vunpack.c.h.b16 %v777
  %v4581 = vunpack.c.l.b16 %v778
  %v4582 = vunpack.c.h.b16 %v778
  %v4583 = vunpack.c.l.b16 %v779
  %v4584 = vunpack.c.h.b16 %v779
  %v4585 = vunpack.c.l.b16 %v780
  %v4586 = vunpack.c.h.b16 %v780
  %v4587 = vunpack.c.l.b16 %v781
  %v4588 = vunpack.c.h.b16 %v781
  %v4589 = vunpack.c.l.b16 %v782
  %v4590 = vunpack.c.h.b16 %v782
  %v4591 = vunpack.c.l.b16 %v783
  %v4592 = vunpack.c.h.b16 %v783
  %v4593 = vunpack.c.l.b16 %v784
  %v4594 = vunpack.c.h.b16 %v784
  %v4595 = vunpack.c.l.b16 %v785
  %v4596 = vunpack.c.h.b16 %v785
  %v4597 = vunpack.c.l.b16 %v786
  %v4598 = vunpack.c.h.b16 %v786
  %v4599 = vunpack.c.l.b16 %v787
  %v4600 = vunpack.c.h.b16 %v787
  %v4601 = vunpack.c.l.b16 %v788
  %v4602 = vunpack.c.h.b16 %v788
  %v4603 = vunpack.c.l.b16 %v789
  %v4604 = vunpack.c.h.b16 %v789
  %v4605 = vunpack.c.l.b16 %v790
  %v4606 = vunpack.c.h.b16 %v790
  %v4607 = vunpack.c.l.b16 %v791
  %v4608 = vunpack.c.h.b16 %v791
  %v4609 = vunpack.c.l.b16 %v792
  %v4610 = vunpack.c.h.b16 %v792
  %v4611 = vunpack.c.l.b16 %v793
  %v4612 = vunpack.c.h.b16 %v793
  %v4613 = vunpack.c.l.b16 %v794
  %v4614 = vunpack.c.h.b16 %v794
  %v4615 = vunpack.c.l.b16 %v795
  %v4616 = vunpack.c.h.b16 %v795
  %v4617 = vunpack.c.l.b16 %v796
  %v4618 = vunpack.c.h.b16 %v796
  %v4619 = vunpack.c.l.b16 %v797
  %v4620 = vunpack.c.h.b16 %v797
  %v4621 = vunpack.c.l.b16 %v798
  %v4622 = vunpack.c.h.b16 %v798
  %v4623 = vunpack.c.l.b16 %v799
  %v4624 = vunpack.c.h.b16 %v799
  %v4625 = vunpack.c.l.b16 %v800
  %v4626 = vunpack.c.h.b16 %v800
  %v4627 = vunpack.c.l.b16 %v801
  %v4628 = vunpack.c.h.b16 %v801
  %v4629 = vunpack.c.l.b16 %v802
  %v4630 = vunpack.c.h.b16 %v802
  %v4631 = vunpack.c.l.b16 %v803
  %v4632 = vunpack.c.h.b16 %v803
  %v4633 = vunpack.c.l.b16 %v804
  %v4634 = vunpack.c.h.b16 %v804
  %v4635 = vunpack.c.l.b16 %v805
  %v4636 = vunpack.c.h.b16 %v805
  %v4637 = vunpack.c.l.b16 %v806
  %v4638 = vunpack.c.h.b16 %v806
  %v4639 = vunpack.c.l.b16 %v807
  %v4640 = vunpack.c.h.b16 %v807
  %v4641 = vunpack.c.l.b16 %v808
  %v4642 = vunpack.c.h.b16 %v808
  %v4643 = vunpack.c.l.b16 %v809
  %v4644 = vunpack.c.h.b16 %v809
  %v4645 = vunpack.c.l.b16 %v810
  %v4646 = vunpack.c.h.b16 %v810
  %v4647 = vunpack.c.l.b16 %v811
  %v4648 = vunpack.c.h.b16 %v811
  %v4649 = vunpack.c.l.b16 %v812
  %v4650 = vunpack.c.h.b16 %v812
  %v4651 = vunpack.c.l.b16 %v813
  %v4652 = vunpack.c.h.b16 %v813
  %v4653 = vunpack.c.l.b16 %v814
  %v4654 = vunpack.c.h.b16 %v814
  %v4655 = vunpack.c.l.b16 %v815
  %v4656 = vunpack.c.h.b16 %v815
  %v4657 = vunpack.c.l.b16 %v816
  %v4658 = vunpack.c.h.b16 %v816
  %v4659 = vunpack.c.l.b16 %v817
  %v4660 = vunpack.c.h.b16 %v817
  %v4661 = vunpack.c.l.b16 %v818
  %v4662 = vunpack.c.h.b16 %v818
  %v4663 = vunpack.c.l.b16 %v819
  %v4664 = vunpack.c.h.b16 %v819
  %v4665 = vunpack.c.l.b16 %v820
  %v4666 = vunpack.c.h.b16 %v820
  %v4667 = vunpack.c.l.b16 %v821
  %v4668 = vunpack.c.h.b16 %v821
  %v4669 = vunpack.c.l.b16 %v822
  %v4670 = vunpack.c.h.b16 %v822
  %v4671 = vunpack.c.l.b16 %v823
  %v4672 = vunpack.c.h.b16 %v823
  %v4673 = vunpack.c.l.b16 %v824
  %v4674 = vunpack.c.h.b16 %v824
  %v4675 = vunpack.c.l.b16 %v825
  %v4676 = vunpack.c.h.b16 %v825
  %v4677 = vunpack.c.l.b16 %v826
  %v4678 = vunpack.c.h.b16 %v826
  %v4679 = vunpack.c.l.b16 %v827
  %v4680 = vunpack.c.h.b16 %v827
  %v4681 = vunpack.c.l.b16 %v828
  %v4682 = vunpack.c.h.b16 %v828
  %v4683 = vunpack.c.l.b16 %v829
  %v4684 = vunpack.c.h.b16 %v829
  %v4685 = vunpack.c.l.b16 %v830
  %v4686 = vunpack.c.h.b16 %v830
  %v4687 = vunpack.c.l.b16 %v831
  %v4688 = vunpack.c.h.b16 %v831
  %v4689 = vunpack.c.l.b16 %v832
  %v4690 = vunpack.c.h.b16 %v832
  %v4691 = vunpack.c.l.b16 %v833
  %v4692 = vunpack.c.h.b16 %v833
  %v4693 = vunpack.c.l.b16 %v834
  %v4694 = vunpack.c.h.b16 %v834
  %v4695 = vunpack.c.l.b16 %v835
  %v4696 = vunpack.c.h.b16 %v835
  %v4697 = vunpack.c.l.b16 %v836
  %v4698 = vunpack.c.h.b16 %v836
  %v4699 = vunpack.c.l.b16 %v837
  %v4700 = vunpack.c.h.b16 %v837
  %v4701 = vunpack.c.l.b16 %v838
  %v4702 = vunpack.c.h.b16 %v838
  %v4703 = vunpack.c.l.b16 %v839
  %v4704 = vunpack.c.h.b16 %v839
  %v4705 = vunpack.c.l.b16 %v840
  %v4706 = vunpack.c.h.b16 %v840
  %v4707 = vunpack.c.l.b16 %v841
  %v4708 = vunpack.c.h.b16 %v841
  %v4709 = vunpack.c.l.b16 %v842
  %v4710 = vunpack.c.h.b16 %v842
  %v4711 = vunpack.c.l.b16 %v843
  %v4712 = vunpack.c.h.b16 %v843
  %v4713 = vunpack.c.l.b16 %v844
  %v4714 = vunpack.c.h.b16 %v844
  %v4715 = vunpack.c.l.b16 %v845
  %v4716 = vunpack.c.h.b16 %v845
  %v4717 = vunpack.c.l.b16 %v846
  %v4718 = vunpack.c.h.b16 %v846
  %v4719 = vunpack.c.l.b16 %v847
  %v4720 = vunpack.c.h.b16 %v847
  %v4721 = vunpack.c.l.b16 %v848
  %v4722 = vunpack.c.h.b16 %v848
  %v4723 = vunpack.c.l.b16 %v849
  %v4724 = vunpack.c.h.b16 %v849
  %v4725 = vunpack.c.l.b16 %v850
  %v4726 = vunpack.c.h.b16 %v850
  %v4727 = vunpack.c.l.b16 %v851
  %v4728 = vunpack.c.h.b16 %v851
  %v4729 = vunpack.c.l.b16 %v852
  %v4730 = vunpack.c.h.b16 %v852
  %v4731 = vunpack.c.l.b16 %v853
  %v4732 = vunpack.c.h.b16 %v853
  %v4733 = vunpack.c.l.b16 %v854
  %v4734 = vunpack.c.h.b16 %v854
  %v4735 = vunpack.c.l.b16 %v855
  %v4736 = vunpack.c.h.b16 %v855
  %v4737 = vunpack.c.l.b16 %v856
  %v4738 = vunpack.c.h.b16 %v856
  %v4739 = vunpack.c.l.b16 %v857
  %v4740 = vunpack.c.h.b16 %v857
  %v4741 = vunpack.c.l.b16 %v858
  %v4742 = vunpack.c.h.b16 %v858
  %v4743 = vunpack.c.l.b16 %v859
  %v4744 = vunpack.c.h.b16 %v859
  %v4745 = vunpack.c.l.b16 %v860
  %v4746 = vunpack.c.h.b16 %v860
  %v4747 = vunpack.c.l.b16 %v861
  %v4748 = vunpack.c.h.b16 %v861
  %v4749 = vunpack.c.l.b16 %v862
  %v4750 = vunpack.c.h.b16 %v862
  %v4751 = vunpack.c.l.b16 %v863
  %v4752 = vunpack.c.h.b16 %v863
  %v4753 = vunpack.c.l.b16 %v864
  %v4754 = vunpack.c.h.b16 %v864
  %v4755 = vunpack.c.l.b16 %v865
  %v4756 = vunpack.c.h.b16 %v865
  %v4757 = vunpack.c.l.b16 %v866
  %v4758 = vunpack.c.h.b16 %v866
  %v4759 = vunpack.c.l.b16 %v867
  %v4760 = vunpack.c.h.b16 %v867
  %v4761 = vunpack.c.l.b16 %v868
  %v4762 = vunpack.c.h.b16 %v868
  %v4763 = vunpack.c.l.b16 %v869
  %v4764 = vunpack.c.h.b16 %v869
  %v4765 = vunpack.c.l.b16 %v870
  %v4766 = vunpack.c.h.b16 %v870
  %v4767 = vunpack.c.l.b16 %v871
  %v4768 = vunpack.c.h.b16 %v871
  %v4769 = vunpack.c.l.b16 %v872
  %v4770 = vunpack.c.h.b16 %v872
  %v4771 = vunpack.c.l.b16 %v873
  %v4772 = vunpack.c.h.b16 %v873
  %v4773 = vunpack.c.l.b16 %v874
  %v4774 = vunpack.c.h.b16 %v874
  %v4775 = vunpack.c.l.b16 %v875
  %v4776 = vunpack.c.h.b16 %v875
  %v4777 = vunpack.c.l.b16 %v876
  %v4778 = vunpack.c.h.b16 %v876
  %v4779 = vunpack.c.l.b16 %v877
  %v4780 = vunpack.c.h.b16 %v877
  %v4781 = vunpack.c.l.b16 %v878
  %v4782 = vunpack.c.h.b16 %v878
  %v4783 = vunpack.c.l.b16 %v879
  %v4784 = vunpack.c.h.b16 %v879
  %v4785 = vunpack.c.l.b16 %v880
  %v4786 = vunpack.c.h.b16 %v880
  %v4787 = vunpack.c.l.b16 %v881
  %v4788 = vunpack.c.h.b16 %v881
  %v4789 = vunpack.c.l.b16 %v882
  %v4790 = vunpack.c.h.b16 %v882
  %v4791 = vunpack.c.l.b16 %v883
  %v4792 = vunpack.c.h.b16 %v883
  %v4793 = vunpack.c.l.b16 %v884
  %v4794 = vunpack.c.h.b16 %v884
  %v4795 = vunpack.c.l.b16 %v885
  %v4796 = vunpack.c.h.b16 %v885
  %v4797 = vunpack.c.l.b16 %v886
  %v4798 = vunpack.c.h.b16 %v886
  %v4799 = vunpack.c.l.b16 %v887
  %v4800 = vunpack.c.h.b16 %v887
  %v4801 = vunpack.c.l.b16 %v888
  %v4802 = vunpack.c.h.b16 %v888
  %v4803 = vunpack.c.l.b16 %v889
  %v4804 = vunpack.c.h.b16 %v889
  %v4805 = vunpack.c.l.b16 %v890
  %v4806 = vunpack.c.h.b16 %v890
  %v4807 = vunpack.c.l.b16 %v891
  %v4808 = vunpack.c.h.b16 %v891
  %v4809 = vunpack.c.l.b16 %v892
  %v4810 = vunpack.c.h.b16 %v892
  %v4811 = vunpack.c.l.b16 %v893
  %v4812 = vunpack.c.h.b16 %v893
  %v4813 = vunpack.c.l.b16 %v894
  %v4814 = vunpack.c.h.b16 %v894
  %v4815 = vunpack.c.l.b16 %v895
  %v4816 = vunpack.c.h.b16 %v895
  %v4817 = vunpack.c.l.b16 %v896
  %v4818 = vunpack.c.h.b16 %v896
  %v4819 = vunpack.c.l.b16 %v897
  %v4820 = vunpack.c.h.b16 %v897
  %v4821 = vunpack.c.l.b16 %v898
  %v4822 = vunpack.c.h.b16 %v898
  %v4823 = vunpack.c.l.b16 %v899
  %v4824 = vunpack.c.h.b16 %v899
  %v4825 = vunpack.c.l.b16 %v900
  %v4826 = vunpack.c.h.b16 %v900
  %v4827 = vunpack.c.l.b16 %v901
  %v4828 = vunpack.c.h.b16 %v901
  %v4829 = vunpack.c.l.b16 %v902
  %v4830 = vunpack.c.h.b16 %v902
  %v4831 = vunpack.c.l.b16 %v903
  %v4832 = vunpack.c.h.b16 %v903
  %v4833 = vunpack.c.l.b16 %v904
  %v4834 = vunpack.c.h.b16 %v904
  %v4835 = vunpack.c.l.b16 %v905
  %v4836 = vunpack.c.h.b16 %v905
  %v4837 = vunpack.c.l.b16 %v906
  %v4838 = vunpack.c.h.b16 %v906
  %v4839 = vunpack.c.l.b16 %v907
  %v4840 = vunpack.c.h.b16 %v907
  %v4841 = vunpack.c.l.b16 %v908
  %v4842 = vunpack.c.h.b16 %v908
  %v4843 = vunpack.c.l.b16 %v909
  %v4844 = vunpack.c.h.b16 %v909
  %v4845 = vunpack.c.l.b16 %v910
  %v4846 = vunpack.c.h.b16 %v910
  %v4847 = vunpack.c.l.b16 %v911
  %v4848 = vunpack.c.h.b16 %v911
  %v4849 = vunpack.c.l.b16 %v912
  %v4850 = vunpack.c.h.b16 %v912
  %v4851 = vunpack.c.l.b16 %v913
  %v4852 = vunpack.c.h.b16 %v913
  %v4853 = vunpack.c.l.b16 %v914
  %v4854 = vunpack.c.h.b16 %v914
  %v4855 = vunpack.c.l.b16 %v915
  %v4856 = vunpack.c.h.b16 %v915
  %v4857 = vunpack.c.l.b16 %v916
  %v4858 = vunpack.c.h.b16 %v916
  %v4859 = vunpack.c.l.b16 %v917
  %v4860 = vunpack.c.h.b16 %v917
  %v4861 = vunpack.c.l.b16 %v918
  %v4862 = vunpack.c.h.b16 %v918
  %v4863 = vunpack.c.l.b16 %v919
  %v4864 = vunpack.c.h.b16 %v919
  %v4865 = vunpack.c.l.b16 %v920
  %v4866 = vunpack.c.h.b16 %v920
  %v4867 = vunpack.c.l.b16 %v921
  %v4868 = vunpack.c.h.b16 %v921
  %v4869 = vunpack.c.l.b16 %v922
  %v4870 = vunpack.c.h.b16 %v922
  %v4871 = vunpack.c.l.b16 %v923
  %v4872 = vunpack.c.h.b16 %v923
  %v4873 = vunpack.c.l.b16 %v924
  %v4874 = vunpack.c.h.b16 %v924
  %v4875 = vunpack.c.l.b16 %v925
  %v4876 = vunpack.c.h.b16 %v925
  %v4877 = vunpack.c.l.b16 %v926
  %v4878 = vunpack.c.h.b16 %v926
  %v4879 = vunpack.c.l.b16 %v927
  %v4880 = vunpack.c.h.b16 %v927
  %v4881 = vunpack.c.l.b16 %v928
  %v4882 = vunpack.c.h.b16 %v928
  %v4883 = vunpack.c.l.b16 %v929
  %v4884 = vunpack.c.h.b16 %v929
  %v4885 = vunpack.c.l.b16 %v930
  %v4886 = vunpack.c.h.b16 %v930
  %v4887 = vunpack.c.l.b16 %v931
  %v4888 = vunpack.c.h.b16 %v931
  %v4889 = vunpack.c.l.b16 %v932
  %v4890 = vunpack.c.h.b16 %v932
  %v4891 = vunpack.c.l.b16 %v933
  %v4892 = vunpack.c.h.b16 %v933
  %v4893 = vunpack.c.l.b16 %v934
  %v4894 = vunpack.c.h.b16 %v934
  %v4895 = vunpack.c.l.b16 %v935
  %v4896 = vunpack.c.h.b16 %v935
  %v4897 = vunpack.c.l.b16 %v936
  %v4898 = vunpack.c.h.b16 %v936
  %v4899 = vunpack.c.l.b16 %v937
  %v4900 = vunpack.c.h.b16 %v937
  %v4901 = vunpack.c.l.b16 %v938
  %v4902 = vunpack.c.h.b16 %v938
  %v4903 = vunpack.c.l.b16 %v939
  %v4904 = vunpack.c.h.b16 %v939
  %v4905 = vunpack.c.l.b16 %v940
  %v4906 = vunpack.c.h.b16 %v940
  %v4907 = vunpack.c.l.b16 %v941
  %v4908 = vunpack.c.h.b16 %v941
  %v4909 = vunpack.c.l.b16 %v942
  %v4910 = vunpack.c.h.b16 %v942
  %v4911 = vunpack.c.l.b16 %v943
  %v4912 = vunpack.c.h.b16 %v943
  %v4913 = vunpack.c.l.b16 %v944
  %v4914 = vunpack.c.h.b16 %v944
  %v4915 = vunpack.c.l.b16 %v945
  %v4916 = vunpack.c.h.b16 %v945
  %v4917 = vunpack.c.l.b16 %v946
  %v4918 = vunpack.c.h.b16 %v946
  %v4919 = vunpack.c.l.b16 %v947
  %v4920 = vunpack.c.h.b16 %v947
  %v4921 = vunpack.c.l.b16 %v948
  %v4922 = vunpack.c.h.b16 %v948
  %v4923 = vunpack.c.l.b16 %v949
  %v4924 = vunpack.c.h.b16 %v949
  %v4925 = vunpack.c.l.b16 %v950
  %v4926 = vunpack.c.h.b16 %v950
  %v4927 = vunpack.c.l.b16 %v951
  %v4928 = vunpack.c.h.b16 %v951
  %v4929 = vunpack.c.l.b16 %v952
  %v4930 = vunpack.c.h.b16 %v952
  %v4931 = vunpack.c.l.b16 %v953
  %v4932 = vunpack.c.h.b16 %v953
  %v4933 = vunpack.c.l.b16 %v954
  %v4934 = vunpack.c.h.b16 %v954
  %v4935 = vunpack.c.l.b16 %v955
  %v4936 = vunpack.c.h.b16 %v955
  %v4937 = vunpack.c.l.b16 %v956
  %v4938 = vunpack.c.h.b16 %v956
  %v4939 = vunpack.c.l.b16 %v957
  %v4940 = vunpack.c.h.b16 %v957
  %v4941 = vunpack.c.l.b16 %v958
  %v4942 = vunpack.c.h.b16 %v958
  %v4943 = vunpack.c.l.b16 %v959
  %v4944 = vunpack.c.h.b16 %v959
  %v4945 = vunpack.c.l.b16 %v960
  %v4946 = vunpack.c.h.b16 %v960
  %v4947 = vunpack.c.l.b16 %v961
  %v4948 = vunpack.c.h.b16 %v961
  %v4949 = vunpack.c.l.b16 %v962
  %v4950 = vunpack.c.h.b16 %v962
  %v4951 = vunpack.c.l.b16 %v963
  %v4952 = vunpack.c.h.b16 %v963
  %v4953 = vunpack.c.l.b16 %v964
  %v4954 = vunpack.c.h.b16 %v964
  %v4955 = vunpack.c.l.b16 %v965
  %v4956 = vunpack.c.h.b16 %v965
  %v4957 = vunpack.c.l.b16 %v966
  %v4958 = vunpack.c.h.b16 %v966
  %v4959 = vunpack.c.l.b16 %v967
  %v4960 = vunpack.c.h.b16 %v967
  %v4961 = vunpack.c.l.b16 %v968
  %v4962 = vunpack.c.h.b16 %v968
  %v4963 = vunpack.c.l.b16 %v969
  %v4964 = vunpack.c.h.b16 %v969
  %v4965 = vunpack.c.l.b16 %v970
  %v4966 = vunpack.c.h.b16 %v970
  %v4967 = vunpack.c.l.b16 %v971
  %v4968 = vunpack.c.h.b16 %v971
  %v4969 = vunpack.c.l.b16 %v972
  %v4970 = vunpack.c.h.b16 %v972
  %v4971 = vunpack.c.l.b16 %v973
  %v4972 = vunpack.c.h.b16 %v973
  %v4973 = vunpack.c.l.b16 %v974
  %v4974 = vunpack.c.h.b16 %v974
  %v4975 = vunpack.c.l.b16 %v975
  %v4976 = vunpack.c.h.b16 %v975
  %v4977 = vunpack.c.l.b16 %v976
  %v4978 = vunpack.c.h.b16 %v976
  %v4979 = vunpack.c.l.b16 %v977
  %v4980 = vunpack.c.h.b16 %v977
  %v4981 = vunpack.c.l.b16 %v978
  %v4982 = vunpack.c.h.b16 %v978
  %v4983 = vunpack.c.l.b16 %v979
  %v4984 = vunpack.c.h.b16 %v979
  %v4985 = vunpack.c.l.b16 %v980
  %v4986 = vunpack.c.h.b16 %v980
  %v4987 = vunpack.c.l.b16 %v981
  %v4988 = vunpack.c.h.b16 %v981
  %v4989 = vunpack.c.l.b16 %v982
  %v4990 = vunpack.c.h.b16 %v982
  %v4991 = vunpack.c.l.b16 %v983
  %v4992 = vunpack.c.h.b16 %v983
  %v4993 = vunpack.c.l.b16 %v984
  %v4994 = vunpack.c.h.b16 %v984
  %v4995 = vunpack.c.l.b16 %v985
  %v4996 = vunpack.c.h.b16 %v985
  %v4997 = vunpack.c.l.b16 %v986
  %v4998 = vunpack.c.h.b16 %v986
  %v4999 = vunpack.c.l.b16 %v987
  %v5000 = vunpack.c.h.b16 %v987
  %v5001 = vunpack.c.l.b16 %v988
  %v5002 = vunpack.c.h.b16 %v988
  %v5003 = vunpack.c.l.b16 %v989
  %v5004 = vunpack.c.h.b16 %v989
  %v5005 = vunpack.c.l.b16 %v990
  %v5006 = vunpack.c.h.b16 %v990
  %v5007 = vunpack.c.l.b16 %v991
  %v5008 = vunpack.c.h.b16 %v991
  %v5009 = vunpack.c.l.b16 %v992
  %v5010 = vunpack.c.h.b16 %v992
  %v5011 = vunpack.c.l.b16 %v993
  %v5012 = vunpack.c.h.b16 %v993
  %v5013 = vunpack.c.l.b16 %v994
  %v5014 = vunpack.c.h.b16 %v994
  %v5015 = vunpack.c.l.b16 %v995
  %v5016 = vunpack.c.h.b16 %v995
  %v5017 = vunpack.c.l.b16 %v996
  %v5018 = vunpack.c.h.b16 %v996
  %v5019 = vunpack.c.l.b16 %v997
  %v5020 = vunpack.c.h.b16 %v997
  %v5021 = vunpack.c.l.b16 %v998
  %v5022 = vunpack.c.h.b16 %v998
  %v5023 = vunpack.c.l.b16 %v999
  %v5024 = vunpack.c.h.b16 %v999
  %v5025 = vunpack.c.l.b16 %v1000
  %v5026 = vunpack.c.h.b16 %v1000
  %v5027 = vunpack.c.l.b16 %v1001
  %v5028 = vunpack.c.h.b16 %v1001
  %v5029 = vunpack.c.l.b16 %v1002
  %v5030 = vunpack.c.h.b16 %v1002
  %v5031 = vunpack.c.l.b16 %v1003
  %v5032 = vunpack.c.h.b16 %v1003
  %v5033 = vunpack.c.l.b16 %v1004
  %v5034 = vunpack.c.h.b16 %v1004
  %v5035 = vunpack.c.l.b16 %v1005
  %v5036 = vunpack.c.h.b16 %v1005
  %v5037 = vunpack.c.l.b16 %v1006
  %v5038 = vunpack.c.h.b16 %v1006
  %v5039 = vunpack.c.l.b16 %v1007
  %v5040 = vunpack.c.h.b16 %v1007
  %v5041 = vunpack.c.l.b16 %v1008
  %v5042 = vunpack.c.h.b16 %v1008
  %v5043 = vunpack.c.l.b16 %v1009
  %v5044 = vunpack.c.h.b16 %v1009
  %v5045 = vunpack.c.l.b16 %v1010
  %v5046 = vunpack.c.h.b16 %v1010
  %v5047 = vunpack.c.l.b16 %v1011
  %v5048 = vunpack.c.h.b16 %v1011
  %v5049 = vunpack.c.l.b16 %v1012
  %v5050 = vunpack.c.h.b16 %v1012
  %v5051 = vunpack.c.l.b16 %v1013
  %v5052 = vunpack.c.h.b16 %v1013
  %v5053 = vunpack.c.l.b16 %v1014
  %v5054 = vunpack.c.h.b16 %v1014
  %v5055 = vunpack.c.l.b16 %v1015
  %v5056 = vunpack.c.h.b16 %v1015
  %v5057 = vunpack.c.l.b16 %v1016
  %v5058 = vunpack.c.h.b16 %v1016
  %v5059 = vunpack.c.l.b16 %v1017
  %v5060 = vunpack.c.h.b16 %v1017
  %v5061 = vunpack.c.l.b16 %v1018
  %v5062 = vunpack.c.h.b16 %v1018
  %v5063 = vunpack.c.l.b16 %v1019
  %v5064 = vunpack.c.h.b16 %v1019
  %v5065 = vunpack.c.l.b16 %v1020
  %v5066 = vunpack.c.h.b16 %v1020
  %v5067 = vunpack.c.l.b16 %v1021
  %v5068 = vunpack.c.h.b16 %v1021
  %v5069 = vunpack.c.l.b16 %v1022
  %v5070 = vunpack.c.h.b16 %v1022
  %v5071 = vunpack.c.l.b16 %v1023
  %v5072 = vunpack.c.h.b16 %v1023
  %v5073 = vunpack.c.l.b16 %v1024
  %v5074 = vunpack.c.h.b16 %v1024
  %v5075 = vunpack.c.l.b16 %v1025
  %v5076 = vunpack.c.h.b16 %v1025
  %v5077 = vunpack.c.l.b16 %v1026
  %v5078 = vunpack.c.h.b16 %v1026
  %v5079 = vunpack.c.l.b16 %v1027
  %v5080 = vunpack.c.h.b16 %v1027
  %v5081 = vunpack.c.l.b16 %v1028
  %v5082 = vunpack.c.h.b16 %v1028
  %v5083 = vunpack.c.l.b16 %v1029
  %v5084 = vunpack.c.h.b16 %v1029
  %v5085 = vunpack.c.l.b16 %v1030
  %v5086 = vunpack.c.h.b16 %v1030
  %v5087 = vunpack.c.l.b16 %v1031
  %v5088 = vunpack.c.h.b16 %v1031
  %v5089 = vunpack.c.l.b16 %v1032
  %v5090 = vunpack.c.h.b16 %v1032
  %v5091 = vunpack.c.l.b16 %v1033
  %v5092 = vunpack.c.h.b16 %v1033
  %v5093 = vunpack.c.l.b16 %v1034
  %v5094 = vunpack.c.h.b16 %v1034
  %v5095 = vunpack.c.l.b16 %v1035
  %v5096 = vunpack.c.h.b16 %v1035
  %v5097 = vunpack.c.l.b16 %v1036
  %v5098 = vunpack.c.h.b16 %v1036
  %v5099 = vunpack.c.l.b16 %v1037
  %v5100 = vunpack.c.h.b16 %v1037
  %v5101 = vunpack.c.l.b16 %v1038
  %v5102 = vunpack.c.h.b16 %v1038
  %v5103 = vunpack.c.l.b16 %v1039
  %v5104 = vunpack.c.h.b16 %v1039
  %v5105 = vunpack.c.l.b16 %v1040
  %v5106 = vunpack.c.h.b16 %v1040
  %v5107 = vunpack.c.l.b16 %v1041
  %v5108 = vunpack.c.h.b16 %v1041
  %v5109 = vunpack.c.l.b16 %v1042
  %v5110 = vunpack.c.h.b16 %v1042
  %v5111 = vunpack.c.l.b16 %v1043
  %v5112 = vunpack.c.h.b16 %v1043
  %v5113 = vunpack.c.l.b16 %v1044
  %v5114 = vunpack.c.h.b16 %v1044
  %v5115 = vunpack.c.l.b16 %v1045
  %v5116 = vunpack.c.h.b16 %v1045
  %v5117 = vunpack.c.l.b16 %v1046
  %v5118 = vunpack.c.h.b16 %v1046
  %v5119 = vunpack.c.l.b16 %v1047
  %v5120 = vunpack.c.h.b16 %v1047
  %v5121 = vunpack.c.l.b16 %v1048
  %v5122 = vunpack.c.h.b16 %v1048
  %v5123 = vunpack.c.l.b16 %v1049
  %v5124 = vunpack.c.h.b16 %v1049
  %v5125 = vunpack.c.l.b16 %v1050
  %v5126 = vunpack.c.h.b16 %v1050
  %v5127 = vunpack.c.l.b16 %v1051
  %v5128 = vunpack.c.h.b16 %v1051
  %v5129 = vunpack.c.l.b16 %v1052
  %v5130 = vunpack.c.h.b16 %v1052
  %v5131 = vunpack.c.l.b16 %v1053
  %v5132 = vunpack.c.h.b16 %v1053
  %v5133 = vunpack.c.l.b16 %v1054
  %v5134 = vunpack.c.h.b16 %v1054
  %v5135 = vunpack.c.l.b16 %v1055
  %v5136 = vunpack.c.h.b16 %v1055
  %v5137 = vunpack.c.l.b16 %v1056
  %v5138 = vunpack.c.h.b16 %v1056
  %v5139 = vunpack.c.l.b16 %v1057
  %v5140 = vunpack.c.h.b16 %v1057
  %v5141 = vunpack.c.l.b16 %v1058
  %v5142 = vunpack.c.h.b16 %v1058
  %v5143 = vunpack.c.l.b16 %v1059
  %v5144 = vunpack.c.h.b16 %v1059
  %v5145 = vunpack.c.l.b16 %v1060
  %v5146 = vunpack.c.h.b16 %v1060
  %v5147 = vunpack.c.l.b16 %v1061
  %v5148 = vunpack.c.h.b16 %v1061
  %v5149 = vunpack.c.l.b16 %v1062
  %v5150 = vunpack.c.h.b16 %v1062
  %v5151 = vunpack.c.l.b16 %v1063
  %v5152 = vunpack.c.h.b16 %v1063
  %v5153 = vunpack.c.l.b16 %v1064
  %v5154 = vunpack.c.h.b16 %v1064
  %v5155 = vunpack.c.l.b16 %v1065
  %v5156 = vunpack.c.h.b16 %v1065
  %v5157 = vunpack.c.l.b16 %v1066
  %v5158 = vunpack.c.h.b16 %v1066
  %v5159 = vunpack.c.l.b16 %v1067
  %v5160 = vunpack.c.h.b16 %v1067
  %v5161 = vunpack.c.l.b16 %v1068
  %v5162 = vunpack.c.h.b16 %v1068
  %v5163 = vunpack.c.l.b16 %v1069
  %v5164 = vunpack.c.h.b16 %v1069
  %v5165 = vunpack.c.l.b16 %v1070
  %v5166 = vunpack.c.h.b16 %v1070
  %v5167 = vunpack.c.l.b16 %v1071
  %v5168 = vunpack.c.h.b16 %v1071
  %v5169 = vunpack.c.l.b16 %v1072
  %v5170 = vunpack.c.h.b16 %v1072
  %v5171 = vunpack.c.l.b16 %v1073
  %v5172 = vunpack.c.h.b16 %v1073
  %v5173 = vunpack.c.l.b16 %v1074
  %v5174 = vunpack.c.h.b16 %v1074
  %v5175 = vunpack.c.l.b16 %v1075
  %v5176 = vunpack.c.h.b16 %v1075
  %v5177 = vunpack.c.l.b16 %v1076
  %v5178 = vunpack.c.h.b16 %v1076
  %v5179 = vunpack.c.l.b16 %v1077
  %v5180 = vunpack.c.h.b16 %v1077
  %v5181 = vunpack.c.l.b16 %v1078
  %v5182 = vunpack.c.h.b16 %v1078
  %v5183 = vunpack.c.l.b16 %v1079
  %v5184 = vunpack.c.h.b16 %v1079
  %v5185 = vunpack.c.l.b16 %v1080
  %v5186 = vunpack.c.h.b16 %v1080
  %v5187 = vunpack.c.l.b16 %v1081
  %v5188 = vunpack.c.h.b16 %v1081
  %v5189 = vunpack.c.l.b16 %v1082
  %v5190 = vunpack.c.h.b16 %v1082
  %v5191 = vunpack.c.l.b16 %v1083
  %v5192 = vunpack.c.h.b16 %v1083
  %v5193 = vunpack.c.l.b16 %v1084
  %v5194 = vunpack.c.h.b16 %v1084
  %v5195 = vunpack.c.l.b16 %v1085
  %v5196 = vunpack.c.h.b16 %v1085
  %v5197 = vunpack.c.l.b16 %v1086
  %v5198 = vunpack.c.h.b16 %v1086
  %v5199 = vunpack.c.l.b16 %v1087
  %v5200 = vunpack.c.h.b16 %v1087
  %v5201 = vunpack.c.l.b16 %v1088
  %v5202 = vunpack.c.h.b16 %v1088
  %v5203 = vunpack.c.l.b16 %v1089
  %v5204 = vunpack.c.h.b16 %v1089
  %v5205 = vunpack.c.l.b16 %v1090
  %v5206 = vunpack.c.h.b16 %v1090
  %v5207 = vunpack.c.l.b16 %v1091
  %v5208 = vunpack.c.h.b16 %v1091
  %v5209 = vunpack.c.l.b16 %v1092
  %v5210 = vunpack.c.h.b16 %v1092
  %v5211 = vunpack.c.l.b16 %v1093
  %v5212 = vunpack.c.h.b16 %v1093
  %v5213 = vunpack.c.l.b16 %v1094
  %v5214 = vunpack.c.h.b16 %v1094
  %v5215 = vunpack.c.l.b16 %v1095
  %v5216 = vunpack.c.h.b16 %v1095
  %v5217 = vunpack.c.l.b16 %v1096
  %v5218 = vunpack.c.h.b16 %v1096
  %v5219 = vunpack.c.l.b16 %v1097
  %v5220 = vunpack.c.h.b16 %v1097
  %v5221 = vunpack.c.l.b16 %v1098
  %v5222 = vunpack.c.h.b16 %v1098
  %v5223 = vunpack.c.l.b16 %v1099
  %v5224 = vunpack.c.h.b16 %v1099
  %v5225 = vunpack.c.l.b16 %v1100
  %v5226 = vunpack.c.h.b16 %v1100
  %v5227 = vunpack.c.l.b16 %v1101
  %v5228 = vunpack.c.h.b16 %v1101
  %v5229 = vunpack.c.l.b16 %v1102
  %v5230 = vunpack.c.h.b16 %v1102
  %v5231 = vunpack.c.l.b16 %v1103
  %v5232 = vunpack.c.h.b16 %v1103
  %v5233 = vunpack.c.l.b16 %v1104
  %v5234 = vunpack.c.h.b16 %v1104
  %v5235 = vunpack.c.l.b16 %v1105
  %v5236 = vunpack.c.h.b16 %v1105
  %v5237 = vunpack.c.l.b16 %v1106
  %v5238 = vunpack.c.h.b16 %v1106
  %v5239 = vunpack.c.l.b16 %v1107
  %v5240 = vunpack.c.h.b16 %v1107
  %v5241 = vunpack.c.l.b16 %v1108
  %v5242 = vunpack.c.h.b16 %v1108
  %v5243 = vunpack.c.l.b16 %v1109
  %v5244 = vunpack.c.h.b16 %v1109
  %v5245 = vunpack.c.l.b16 %v1110
  %v5246 = vunpack.c.h.b16 %v1110
  %v5247 = vunpack.c.l.b16 %v1111
  %v5248 = vunpack.c.h.b16 %v1111
  %v5249 = vunpack.c.l.b16 %v1112
  %v5250 = vunpack.c.h.b16 %v1112
  %v5251 = vunpack.c.l.b16 %v1113
  %v5252 = vunpack.c.h.b16 %v1113
  %v5253 = vunpack.c.l.b16 %v1114
  %v5254 = vunpack.c.h.b16 %v1114
  %v5255 = vunpack.c.l.b16 %v1115
  %v5256 = vunpack.c.h.b16 %v1115
  %v5257 = vunpack.c.l.b16 %v1116
  %v5258 = vunpack.c.h.b16 %v1116
  %v5259 = vunpack.c.l.b16 %v1117
  %v5260 = vunpack.c.h.b16 %v1117
  %v5261 = vunpack.c.l.b16 %v1118
  %v5262 = vunpack.c.h.b16 %v1118
  %v5263 = vunpack.c.l.b16 %v1119
  %v5264 = vunpack.c.h.b16 %v1119
  %v5265 = vunpack.c.l.b16 %v1120
  %v5266 = vunpack.c.h.b16 %v1120
  %v5267 = vunpack.c.l.b16 %v1121
  %v5268 = vunpack.c.h.b16 %v1121
  %v5269 = vunpack.c.l.b16 %v1122
  %v5270 = vunpack.c.h.b16 %v1122
  %v5271 = vunpack.c.l.b16 %v1123
  %v5272 = vunpack.c.h.b16 %v1123
  %v5273 = vunpack.c.l.b16 %v1124
  %v5274 = vunpack.c.h.b16 %v1124
  %v5275 = vunpack.c.l.b16 %v1125
  %v5276 = vunpack.c.h.b16 %v1125
  %v5277 = vunpack.c.l.b16 %v1126
  %v5278 = vunpack.c.h.b16 %v1126
  %v5279 = vunpack.c.l.b16 %v1127
  %v5280 = vunpack.c.h.b16 %v1127
  %v5281 = vunpack.c.l.b16 %v1128
  %v5282 = vunpack.c.h.b16 %v1128
  %v5283 = vunpack.c.l.b16 %v1129
  %v5284 = vunpack.c.h.b16 %v1129
  %v5285 = vunpack.c.l.b16 %v1130
  %v5286 = vunpack.c.h.b16 %v1130
  %v5287 = vunpack.c.l.b16 %v1131
  %v5288 = vunpack.c.h.b16 %v1131
  %v5289 = vunpack.c.l.b16 %v1132
  %v5290 = vunpack.c.h.b16 %v1132
  %v5291 = vunpack.c.l.b16 %v1133
  %v5292 = vunpack.c.h.b16 %v1133
  %v5293 = vunpack.c.l.b16 %v1134
  %v5294 = vunpack.c.h.b16 %v1134
  %v5295 = vunpack.c.l.b16 %v1135
  %v5296 = vunpack.c.h.b16 %v1135
  %v5297 = vunpack.c.l.b16 %v1136
  %v5298 = vunpack.c.h.b16 %v1136
  %v5299 = vunpack.c.l.b16 %v1137
  %v5300 = vunpack.c.h.b16 %v1137
  %v5301 = vunpack.c.l.b16 %v1138
  %v5302 = vunpack.c.h.b16 %v1138
  %v5303 = vunpack.c.l.b16 %v1139
  %v5304 = vunpack.c.h.b16 %v1139
  %v5305 = vunpack.c.l.b16 %v1140
  %v5306 = vunpack.c.h.b16 %v1140
  %v5307 = vunpack.c.l.b16 %v1141
  %v5308 = vunpack.c.h.b16 %v1141
  %v5309 = vunpack.c.l.b16 %v1142
  %v5310 = vunpack.c.h.b16 %v1142
  %v5311 = vunpack.c.l.b16 %v1143
  %v5312 = vunpack.c.h.b16 %v1143
  %v5313 = vunpack.c.l.b16 %v1144
  %v5314 = vunpack.c.h.b16 %v1144
  %v5315 = vunpack.c.l.b16 %v1145
  %v5316 = vunpack.c.h.b16 %v1145
  %v5317 = vunpack.c.l.b16 %v1146
  %v5318 = vunpack.c.h.b16 %v1146
  %v5319 = vunpack.c.l.b16 %v1147
  %v5320 = vunpack.c.h.b16 %v1147
  %v5321 = vunpack.c.l.b16 %v1148
  %v5322 = vunpack.c.h.b16 %v1148
  %v5323 = vunpack.c.l.b16 %v1149
  %v5324 = vunpack.c.h.b16 %v1149
  %v5325 = vunpack.c.l.b16 %v1150
  %v5326 = vunpack.c.h.b16 %v1150
  %v5327 = vunpack.c.l.b16 %v1151
  %v5328 = vunpack.c.h.b16 %v1151
  %v5329 = vunpack.c.l.b16 %v1152
  %v5330 = vunpack.c.h.b16 %v1152
  %v5331 = vunpack.c.l.b16 %v1153
  %v5332 = vunpack.c.h.b16 %v1153
  %v5333 = vunpack.c.l.b16 %v1154
  %v5334 = vunpack.c.h.b16 %v1154
  %v5335 = vunpack.c.l.b16 %v1155
  %v5336 = vunpack.c.h.b16 %v1155
  %v5337 = vunpack.c.l.b16 %v1156
  %v5338 = vunpack.c.h.b16 %v1156
  %v5339 = vunpack.c.l.b16 %v1157
  %v5340 = vunpack.c.h.b16 %v1157
  %v5341 = vunpack.c.l.b16 %v1158
  %v5342 = vunpack.c.h.b16 %v1158
  %v5343 = vunpack.c.l.b16 %v1159
  %v5344 = vunpack.c.h.b16 %v1159
  %v5345 = vunpack.c.l.b16 %v1160
  %v5346 = vunpack.c.h.b16 %v1160
  %v5347 = vunpack.c.l.b16 %v1161
  %v5348 = vunpack.c.h.b16 %v1161
  %v5349 = vunpack.c.l.b16 %v1162
  %v5350 = vunpack.c.h.b16 %v1162
  %v5351 = vunpack.c.l.b16 %v1163
  %v5352 = vunpack.c.h.b16 %v1163
  %v5353 = vunpack.c.l.b16 %v1164
  %v5354 = vunpack.c.h.b16 %v1164
  %v5355 = vunpack.c.l.b16 %v1165
  %v5356 = vunpack.c.h.b16 %v1165
  %v5357 = vunpack.c.l.b16 %v1166
  %v5358 = vunpack.c.h.b16 %v1166
  %v5359 = vunpack.c.l.b16 %v1167
  %v5360 = vunpack.c.h.b16 %v1167
  %v5361 = vunpack.c.l.b16 %v1168
  %v5362 = vunpack.c.h.b16 %v1168
  %v5363 = vunpack.c.l.b16 %v1169
  %v5364 = vunpack.c.h.b16 %v1169
  %v5365 = vunpack.c.l.b16 %v1170
  %v5366 = vunpack.c.h.b16 %v1170
  %v5367 = vunpack.c.l.b16 %v1171
  %v5368 = vunpack.c.h.b16 %v1171
  %v5369 = vunpack.c.l.b16 %v1172
  %v5370 = vunpack.c.h.b16 %v1172
  %v5371 = vunpack.c.l.b16 %v1173
  %v5372 = vunpack.c.h.b16 %v1173
  %v5373 = vunpack.c.l.b16 %v1174
  %v5374 = vunpack.c.h.b16 %v1174
  %v5375 = vunpack.c.l.b16 %v1175
  %v5376 = vunpack.c.h.b16 %v1175
  %v5377 = vunpack.c.l.b16 %v1176
  %v5378 = vunpack.c.h.b16 %v1176
  %v5379 = vunpack.c.l.b16 %v1177
  %v5380 = vunpack.c.h.b16 %v1177
  %v5381 = vunpack.c.l.b16 %v1178
  %v5382 = vunpack.c.h.b16 %v1178
  %v5383 = vunpack.c.l.b16 %v1179
  %v5384 = vunpack.c.h.b16 %v1179
  %v5385 = vunpack.c.l.b16 %v1180
  %v5386 = vunpack.c.h.b16 %v1180
  %v5387 = vunpack.c.l.b16 %v1181
  %v5388 = vunpack.c.h.b16 %v1181
  %v5389 = vunpack.c.l.b16 %v1182
  %v5390 = vunpack.c.h.b16 %v1182
  %v5391 = vunpack.c.l.b16 %v1183
  %v5392 = vunpack.c.h.b16 %v1183
  %v5393 = vunpack.c.l.b16 %v1184
  %v5394 = vunpack.c.h.b16 %v1184
  %v5395 = vunpack.c.l.b16 %v1185
  %v5396 = vunpack.c.h.b16 %v1185
  %v5397 = vunpack.c.l.b16 %v1186
  %v5398 = vunpack.c.h.b16 %v1186
  %v5399 = vunpack.c.l.b16 %v1187
  %v5400 = vunpack.c.h.b16 %v1187
  %v5401 = vunpack.c.l.b16 %v1188
  %v5402 = vunpack.c.h.b16 %v1188
  %v5403 = vunpack.c.l.b16 %v1189
  %v5404 = vunpack.c.h.b16 %v1189
  %v5405 = vunpack.c.l.b16 %v1190
  %v5406 = vunpack.c.h.b16 %v1190
  %v5407 = vunpack.c.l.b16 %v1191
  %v5408 = vunpack.c.h.b16 %v1191
  %v5409 = vunpack.c.l.b16 %v1192
  %v5410 = vunpack.c.h.b16 %v1192
  %v5411 = vunpack.c.l.b16 %v1193
  %v5412 = vunpack.c.h.b16 %v1193
  %v5413 = vunpack.c.l.b16 %v1194
  %v5414 = vunpack.c.h.b16 %v1194
  %v5415 = vunpack.c.l.b16 %v1195
  %v5416 = vunpack.c.h.b16 %v1195
  %v5417 = vunpack.c.l.b16 %v1196
  %v5418 = vunpack.c.h.b16 %v1196
  %v5419 = vunpack.c.l.b16 %v1197
  %v5420 = vunpack.c.h.b16 %v1197
  %v5421 = vunpack.c.l.b16 %v1198
  %v5422 = vunpack.c.h.b16 %v1198
  %v5423 = vunpack.c.l.b16 %v1199
  %v5424 = vunpack.c.h.b16 %v1199
  %v5425 = vunpack.c.l.b16 %v1200
  %v5426 = vunpack.c.h.b16 %v1200
  %v5427 = vunpack.c.l.b16 %v1201
  %v5428 = vunpack.c.h.b16 %v1201
  %v5429 = vunpack.c.l.b16 %v1202
  %v5430 = vunpack.c.h.b16 %v1202
  %v5431 = vunpack.c.l.b16 %v1203
  %v5432 = vunpack.c.h.b16 %v1203
  %v5433 = vunpack.c.l.b16 %v1204
  %v5434 = vunpack.c.h.b16 %v1204
  %v5435 = vunpack.c.l.b16 %v1205
  %v5436 = vunpack.c.h.b16 %v1205
  %v5437 = vunpack.c.l.b16 %v1206
  %v5438 = vunpack.c.h.b16 %v1206
  %v5439 = vunpack.c.l.b16 %v1207
  %v5440 = vunpack.c.h.b16 %v1207
  %v5441 = vunpack.c.l.b16 %v1208
  %v5442 = vunpack.c.h.b16 %v1208
  %v5443 = vunpack.c.l.b16 %v1209
  %v5444 = vunpack.c.h.b16 %v1209
  %v5445 = vunpack.c.l.b16 %v1210
  %v5446 = vunpack.c.h.b16 %v1210
  %v5447 = vunpack.c.l.b16 %v1211
  %v5448 = vunpack.c.h.b16 %v1211
  %v5449 = vunpack.c.l.b16 %v1212
  %v5450 = vunpack.c.h.b16 %v1212
  %v5451 = vunpack.c.l.b16 %v1213
  %v5452 = vunpack.c.h.b16 %v1213
  %v5453 = vunpack.c.l.b16 %v1214
  %v5454 = vunpack.c.h.b16 %v1214
  %v5455 = vunpack.c.l.b16 %v1215
  %v5456 = vunpack.c.h.b16 %v1215
  %v5457 = vunpack.c.l.b16 %v1216
  %v5458 = vunpack.c.h.b16 %v1216
  %v5459 = vunpack.c.l.b16 %v1217
  %v5460 = vunpack.c.h.b16 %v1217
  %v5461 = vunpack.c.l.b16 %v1218
  %v5462 = vunpack.c.h.b16 %v1218
  %v5463 = vunpack.c.l.b16 %v1219
  %v5464 = vunpack.c.h.b16 %v1219
  %v5465 = vunpack.c.l.b16 %v1220
  %v5466 = vunpack.c.h.b16 %v1220
  %v5467 = vunpack.c.l.b16 %v1221
  %v5468 = vunpack.c.h.b16 %v1221
  %v5469 = vunpack.c.l.b16 %v1222
  %v5470 = vunpack.c.h.b16 %v1222
  %v5471 = vunpack.c.l.b16 %v1223
  %v5472 = vunpack.c.h.b16 %v1223
  %v5473 = vunpack.c.l.b16 %v1224
  %v5474 = vunpack.c.h.b16 %v1224
  %v5475 = vunpack.c.l.b16 %v1225
  %v5476 = vunpack.c.h.b16 %v1225
  %v5477 = vunpack.c.l.b16 %v1226
  %v5478 = vunpack.c.h.b16 %v1226
  %v5479 = vunpack.c.l.b16 %v1227
  %v5480 = vunpack.c.h.b16 %v1227
  %v5481 = vunpack.c.l.b16 %v1228
  %v5482 = vunpack.c.h.b16 %v1228
  %v5483 = vunpack.c.l.b16 %v1229
  %v5484 = vunpack.c.h.b16 %v1229
  %v5485 = vunpack.c.l.b16 %v1230
  %v5486 = vunpack.c.h.b16 %v1230
  %v5487 = vunpack.c.l.b16 %v1231
  %v5488 = vunpack.c.h.b16 %v1231
  %v5489 = vunpack.c.l.b16 %v1232
  %v5490 = vunpack.c.h.b16 %v1232
  %v5491 = vunpack.c.l.b16 %v1233
  %v5492 = vunpack.c.h.b16 %v1233
  %v5493 = vunpack.c.l.b16 %v1234
  %v5494 = vunpack.c.h.b16 %v1234
  %v5495 = vunpack.c.l.b16 %v1235
  %v5496 = vunpack.c.h.b16 %v1235
  %v5497 = vunpack.c.l.b16 %v1236
  %v5498 = vunpack.c.h.b16 %v1236
  %v5499 = vunpack.c.l.b16 %v1237
  %v5500 = vunpack.c.h.b16 %v1237
  %v5501 = vunpack.c.l.b16 %v1238
  %v5502 = vunpack.c.h.b16 %v1238
  %v5503 = vunpack.c.l.b16 %v1239
  %v5504 = vunpack.c.h.b16 %v1239
  %v5505 = vunpack.c.l.b16 %v1240
  %v5506 = vunpack.c.h.b16 %v1240
  %v5507 = vunpack.c.l.b16 %v1241
  %v5508 = vunpack.c.h.b16 %v1241
  %v5509 = vunpack.c.l.b16 %v1242
  %v5510 = vunpack.c.h.b16 %v1242
  %v5511 = vunpack.c.l.b16 %v1243
  %v5512 = vunpack.c.h.b16 %v1243
  %v5513 = vunpack.c.l.b16 %v1244
  %v5514 = vunpack.c.h.b16 %v1244
  %v5515 = vunpack.c.l.b16 %v1245
  %v5516 = vunpack.c.h.b16 %v1245
  %v5517 = vunpack.c.l.b16 %v1246
  %v5518 = vunpack.c.h.b16 %v1246
  %v5519 = vunpack.c.l.b16 %v1247
  %v5520 = vunpack.c.h.b16 %v1247
  %v5521 = vunpack.c.l.b16 %v1248
  %v5522 = vunpack.c.h.b16 %v1248
  %v5523 = vunpack.c.l.b16 %v1249
  %v5524 = vunpack.c.h.b16 %v1249
  %v5525 = vunpack.c.l.b16 %v1250
  %v5526 = vunpack.c.h.b16 %v1250
  %v5527 = vunpack.c.l.b16 %v1251
  %v5528 = vunpack.c.h.b16 %v1251
  %v5529 = vunpack.c.l.b16 %v1252
  %v5530 = vunpack.c.h.b16 %v1252
  %v5531 = vunpack.c.l.b16 %v1253
  %v5532 = vunpack.c.h.b16 %v1253
  %v5533 = vunpack.c.l.b16 %v1254
  %v5534 = vunpack.c.h.b16 %v1254
  %v5535 = vunpack.c.l.b16 %v1255
  %v5536 = vunpack.c.h.b16 %v1255
  %v5537 = vunpack.c.l.b16 %v1256
  %v5538 = vunpack.c.h.b16 %v1256
  %v5539 = vunpack.c.l.b16 %v1257
  %v5540 = vunpack.c.h.b16 %v1257
  %v5541 = vunpack.c.l.b16 %v1258
  %v5542 = vunpack.c.h.b16 %v1258
  %v5543 = vunpack.c.l.b16 %v1259
  %v5544 = vunpack.c.h.b16 %v1259
  %v5545 = vunpack.c.l.b16 %v1260
  %v5546 = vunpack.c.h.b16 %v1260
  %v5547 = vunpack.c.l.b16 %v1261
  %v5548 = vunpack.c.h.b16 %v1261
  %v5549 = vunpack.c.l.b16 %v1262
  %v5550 = vunpack.c.h.b16 %v1262
  %v5551 = vunpack.c.l.b16 %v1263
  %v5552 = vunpack.c.h.b16 %v1263
  %v5553 = vunpack.c.l.b16 %v1264
  %v5554 = vunpack.c.h.b16 %v1264
  %v5555 = vunpack.c.l.b16 %v1265
  %v5556 = vunpack.c.h.b16 %v1265
  %v5557 = vunpack.c.l.b16 %v1266
  %v5558 = vunpack.c.h.b16 %v1266
  %v5559 = vunpack.c.l.b16 %v1267
  %v5560 = vunpack.c.h.b16 %v1267
  %v5561 = vunpack.c.l.b16 %v1268
  %v5562 = vunpack.c.h.b16 %v1268
  %v5563 = vunpack.c.l.b16 %v1269
  %v5564 = vunpack.c.h.b16 %v1269
  %v5565 = vunpack.c.l.b16 %v1270
  %v5566 = vunpack.c.h.b16 %v1270
  %v5567 = vunpack.c.l.b16 %v1271
  %v5568 = vunpack.c.h.b16 %v1271
  %v5569 = vunpack.c.l.b16 %v1272
  %v5570 = vunpack.c.h.b16 %v1272
  %v5571 = vunpack.c.l.b16 %v1273
  %v5572 = vunpack.c.h.b16 %v1273
  %v5573 = vunpack.c.l.b16 %v1274
  %v5574 = vunpack.c.h.b16 %v1274
  %v5575 = vunpack.c.l.b16 %v1275
  %v5576 = vunpack.c.h.b16 %v1275
  %v5577 = vunpack.c.l.b16 %v1276
  %v5578 = vunpack.c.h.b16 %v1276
  %v5579 = vunpack.c.l.b16 %v1277
  %v5580 = vunpack.c.h.b16 %v1277
  %v5581 = vunpack.c.l.b16 %v1278
  %v5582 = vunpack.c.h.b16 %v1278
  %v5583 = vunpack.c.l.b16 %v1279
  %v5584 = vunpack.c.h.b16 %v1279
  %v5585 = vunpack.c.l.b16 %v1280
  %v5586 = vunpack.c.h.b16 %v1280
  %v5587 = vunpack.c.l.b16 %v1281
  %v5588 = vunpack.c.h.b16 %v1281
  %v5589 = vunpack.c.l.b16 %v1282
  %v5590 = vunpack.c.h.b16 %v1282
  %v5591 = vunpack.c.l.b16 %v1283
  %v5592 = vunpack.c.h.b16 %v1283
  %v5593 = vunpack.c.l.b16 %v1284
  %v5594 = vunpack.c.h.b16 %v1284
  %v5595 = vunpack.c.l.b16 %v1285
  %v5596 = vunpack.c.h.b16 %v1285
  %v5597 = vunpack.c.l.b16 %v1286
  %v5598 = vunpack.c.h.b16 %v1286
  %v5599 = vunpack.c.l.b16 %v1287
  %v5600 = vunpack.c.h.b16 %v1287
  %v5601 = vunpack.c.l.b16 %v1288
  %v5602 = vunpack.c.h.b16 %v1288
  %v5603 = vunpack.c.l.b16 %v1289
  %v5604 = vunpack.c.h.b16 %v1289
  %v5605 = vunpack.c.l.b16 %v1290
  %v5606 = vunpack.c.h.b16 %v1290
  %v5607 = vunpack.c.l.b16 %v1291
  %v5608 = vunpack.c.h.b16 %v1291
  %v5609 = vunpack.c.l.b16 %v1292
  %v5610 = vunpack.c.h.b16 %v1292
  %v5611 = vunpack.c.l.b16 %v1293
  %v5612 = vunpack.c.h.b16 %v1293
  %v5613 = vunpack.c.l.b16 %v1294
  %v5614 = vunpack.c.h.b16 %v1294
  %v5615 = vunpack.c.l.b16 %v1295
  %v5616 = vunpack.c.h.b16 %v1295
  %v5617 = vunpack.c.l.b16 %v1296
  %v5618 = vunpack.c.h.b16 %v1296
  %v5619 = vunpack.c.l.b16 %v1297
  %v5620 = vunpack.c.h.b16 %v1297
  %v5621 = vunpack.c.l.b16 %v1298
  %v5622 = vunpack.c.h.b16 %v1298
  %v5623 = vunpack.c.l.b16 %v1299
  %v5624 = vunpack.c.h.b16 %v1299
  %v5625 = vunpack.c.l.b16 %v1300
  %v5626 = vunpack.c.h.b16 %v1300
  %v5627 = vunpack.c.l.b16 %v1301
  %v5628 = vunpack.c.h.b16 %v1301
  %v5629 = vunpack.c.l.b16 %v1302
  %v5630 = vunpack.c.h.b16 %v1302
  %v5631 = vunpack.c.l.b16 %v1303
  %v5632 = vunpack.c.h.b16 %v1303
  %v5633 = vunpack.c.l.b16 %v1304
  %v5634 = vunpack.c.h.b16 %v1304
  %v5635 = vunpack.c.l.b16 %v1305
  %v5636 = vunpack.c.h.b16 %v1305
  %v5637 = vunpack.c.l.b16 %v1306
  %v5638 = vunpack.c.h.b16 %v1306
  %v5639 = vunpack.c.l.b16 %v1307
  %v5640 = vunpack.c.h.b16 %v1307
  %v5641 = vunpack.c.l.b16 %v1308
  %v5642 = vunpack.c.h.b16 %v1308
  %v5643 = vunpack.c.l.b16 %v1309
  %v5644 = vunpack.c.h.b16 %v1309
  %v5645 = vunpack.c.l.b16 %v1310
  %v5646 = vunpack.c.h.b16 %v1310
  %v5647 = vunpack.c.l.b16 %v1311
  %v5648 = vunpack.c.h.b16 %v1311
  %v5649 = vunpack.c.l.b16 %v1312
  %v5650 = vunpack.c.h.b16 %v1312
  %v5651 = vunpack.c.l.b16 %v1313
  %v5652 = vunpack.c.h.b16 %v1313
  %v5653 = vunpack.c.l.b16 %v1314
  %v5654 = vunpack.c.h.b16 %v1314
  %v5655 = vunpack.c.l.b16 %v1315
  %v5656 = vunpack.c.h.b16 %v1315
  %v5657 = vunpack.c.l.b16 %v1316
  %v5658 = vunpack.c.h.b16 %v1316
  %v5659 = vunpack.c.l.b16 %v1317
  %v5660 = vunpack.c.h.b16 %v1317
  %v5661 = vunpack.c.l.b16 %v1318
  %v5662 = vunpack.c.h.b16 %v1318
  %v5663 = vunpack.c.l.b16 %v1319
  %v5664 = vunpack.c.h.b16 %v1319
  %v5665 = vunpack.c.l.b16 %v1320
  %v5666 = vunpack.c.h.b16 %v1320
  %v5667 = vunpack.c.l.b16 %v1321
  %v5668 = vunpack.c.h.b16 %v1321
  %v5669 = vunpack.c.l.b16 %v1322
  %v5670 = vunpack.c.h.b16 %v1322
  %v5671 = vunpack.c.l.b16 %v1323
  %v5672 = vunpack.c.h.b16 %v1323
  %v5673 = vunpack.c.l.b16 %v1324
  %v5674 = vunpack.c.h.b16 %v1324
  %v5675 = vunpack.c.l.b16 %v1325
  %v5676 = vunpack.c.h.b16 %v1325
  %v5677 = vunpack.c.l.b16 %v1326
  %v5678 = vunpack.c.h.b16 %v1326
  %v5679 = vunpack.c.l.b16 %v1327
  %v5680 = vunpack.c.h.b16 %v1327
  %v5681 = vunpack.c.l.b16 %v1328
  %v5682 = vunpack.c.h.b16 %v1328
  %v5683 = vunpack.c.l.b16 %v1329
  %v5684 = vunpack.c.h.b16 %v1329
  %v5685 = vunpack.c.l.b16 %v1330
  %v5686 = vunpack.c.h.b16 %v1330
  %v5687 = vunpack.c.l.b16 %v1331
  %v5688 = vunpack.c.h.b16 %v1331
  %v5689 = vunpack.c.l.b16 %v1332
  %v5690 = vunpack.c.h.b16 %v1332
  %v5691 = vunpack.c.l.b16 %v1333
  %v5692 = vunpack.c.h.b16 %v1333
  %v5693 = vunpack.c.l.b16 %v1334
  %v5694 = vunpack.c.h.b16 %v1334
  %v5695 = vunpack.c.l.b16 %v1335
  %v5696 = vunpack.c.h.b16 %v1335
  %v5697 = vunpack.c.l.b16 %v1336
  %v5698 = vunpack.c.h.b16 %v1336
  %v5699 = vunpack.c.l.b16 %v1337
  %v5700 = vunpack.c.h.b16 %v1337
  %v5701 = vunpack.c.l.b16 %v1338
  %v5702 = vunpack.c.h.b16 %v1338
  %v5703 = vunpack.c.l.b16 %v1339
  %v5704 = vunpack.c.h.b16 %v1339
  %v5705 = vunpack.c.l.b16 %v1340
  %v5706 = vunpack.c.h.b16 %v1340
  %v5707 = vunpack.c.l.b16 %v1341
  %v5708 = vunpack.c.h.b16 %v1341
  %v5709 = vunpack.c.l.b16 %v1342
  %v5710 = vunpack.c.h.b16 %v1342
  %v5711 = vunpack.c.l.b16 %v1343
  %v5712 = vunpack.c.h.b16 %v1343
  %v5713 = vunpack.c.l.b16 %v1344
  %v5714 = vunpack.c.h.b16 %v1344
  %v5715 = vunpack.c.l.b16 %v1345
  %v5716 = vunpack.c.h.b16 %v1345
  %v5717 = vunpack.c.l.b16 %v1346
  %v5718 = vunpack.c.h.b16 %v1346
  %v5719 = vunpack.c.l.b16 %v1347
  %v5720 = vunpack.c.h.b16 %v1347
  %v5721 = vunpack.c.l.b16 %v1348
  %v5722 = vunpack.c.h.b16 %v1348
  %v5723 = vunpack.c.l.b16 %v1349
  %v5724 = vunpack.c.h.b16 %v1349
  %v5725 = vunpack.c.l.b16 %v1350
  %v5726 = vunpack.c.h.b16 %v1350
  %v5727 = vunpack.c.l.b16 %v1351
  %v5728 = vunpack.c.h.b16 %v1351
  %v5729 = vunpack.c.l.b16 %v1352
  %v5730 = vunpack.c.h.b16 %v1352
  %v5731 = vpack.c.b16 %v3431, %v3427
  %v5732 = vpack.c.b16 %v3432, %v3428
  %v5733 = vpack.c.b16 %v3433, %v3429
  %v5734 = vpack.c.b16 %v3434, %v3430
  %v5735 = vpack.c.b16 %v3439, %v3435
  %v5736 = vpack.c.b16 %v3440, %v3436
  %v5737 = vpack.c.b16 %v3441, %v3437
  %v5738 = vpack.c.b16 %v3442, %v3438
  %v5739 = vpack.c.b16 %v3447, %v3443
  %v5740 = vpack.c.b16 %v3448, %v3444
  %v5741 = vpack.c.b16 %v3449, %v3445
  %v5742 = vpack.c.b16 %v3450, %v3446
  %v5743 = vpack.c.b16 %v3455, %v3451
  %v5744 = vpack.c.b16 %v3456, %v3452
  %v5745 = vpack.c.b16 %v3457, %v3453
  %v5746 = vpack.c.b16 %v3458, %v3454
  %v5747 = vpack.c.b16 %v3463, %v3459
  %v5748 = vpack.c.b16 %v3464, %v3460
  %v5749 = vpack.c.b16 %v3465, %v3461
  %v5750 = vpack.c.b16 %v3466, %v3462
  %v5751 = vpack.c.b16 %v3471, %v3467
  %v5752 = vpack.c.b16 %v3472, %v3468
  %v5753 = vpack.c.b16 %v3473, %v3469
  %v5754 = vpack.c.b16 %v3474, %v3470
  %v5755 = vpack.c.b16 %v3479, %v3475
  %v5756 = vpack.c.b16 %v3480, %v3476
  %v5757 = vpack.c.b16 %v3481, %v3477
  %v5758 = vpack.c.b16 %v3482, %v3478
  %v5759 = vpack.c.b16 %v3487, %v3483
  %v5760 = vpack.c.b16 %v3488, %v3484
  %v5761 = vpack.c.b16 %v3489, %v3485
  %v5762 = vpack.c.b16 %v3490, %v3486
  %v5763 = vpack.c.b16 %v3495, %v3491
  %v5764 = vpack.c.b16 %v3496, %v3492
  %v5765 = vpack.c.b16 %v3497, %v3493
  %v5766 = vpack.c.b16 %v3498, %v3494
  %v5767 = vpack.c.b16 %v3503, %v3499
  %v5768 = vpack.c.b16 %v3504, %v3500
  %v5769 = vpack.c.b16 %v3505, %v3501
  %v5770 = vpack.c.b16 %v3506, %v3502
  %v5771 = vpack.c.b16 %v3511, %v3507
  %v5772 = vpack.c.b16 %v3512, %v3508
  %v5773 = vpack.c.b16 %v3513, %v3509
  %v5774 = vpack.c.b16 %v3514, %v3510
  %v5775 = vpack.c.b16 %v3519, %v3515
  %v5776 = vpack.c.b16 %v3520, %v3516
  %v5777 = vpack.c.b16 %v3521, %v3517
  %v5778 = vpack.c.b16 %v3522, %v3518
  %v5779 = vpack.c.b16 %v3527, %v3523
  %v5780 = vpack.c.b16 %v3528, %v3524
  %v5781 = vpack.c.b16 %v3529, %v3525
  %v5782 = vpack.c.b16 %v3530, %v3526
  %v5783 = vpack.c.b16 %v3535, %v3531
  %v5784 = vpack.c.b16 %v3536, %v3532
  %v5785 = vpack.c.b16 %v3537, %v3533
  %v5786 = vpack.c.b16 %v3538, %v3534
  %v5787 = vpack.c.b16 %v3543, %v3539
  %v5788 = vpack.c.b16 %v3544, %v3540
  %v5789 = vpack.c.b16 %v3545, %v3541
  %v5790 = vpack.c.b16 %v3546, %v3542
  %v5791 = vpack.c.b16 %v3551, %v3547
  %v5792 = vpack.c.b16 %v3552, %v3548
  %v5793 = vpack.c.b16 %v3553, %v3549
  %v5794 = vpack.c.b16 %v3554, %v3550
  %v5795 = vpack.c.b16 %v3559, %v3555
  %v5796 = vpack.c.b16 %v3560, %v3556
  %v5797 = vpack.c.b16 %v3561, %v3557
  %v5798 = vpack.c.b16 %v3562, %v3558
  %v5799 = vpack.c.b16 %v3567, %v3563
  %v5800 = vpack.c.b16 %v3568, %v3564
  %v5801 = vpack.c.b16 %v3569, %v3565
  %v5802 = vpack.c.b16 %v3570, %v3566
  %v5803 = vpack.c.b16 %v3575, %v3571
  %v5804 = vpack.c.b16 %v3576, %v3572
  %v5805 = vpack.c.b16 %v3577, %v3573
  %v5806 = vpack.c.b16 %v3578, %v3574
  %v5807 = vpack.c.b16 %v3583, %v3579
  %v5808 = vpack.c.b16 %v3584, %v3580
  %v5809 = vpack.c.b16 %v3585, %v3581
  %v5810 = vpack.c.b16 %v3586, %v3582
  %v5811 = vpack.c.b16 %v3591, %v3587
  %v5812 = vpack.c.b16 %v3592, %v3588
  %v5813 = vpack.c.b16 %v3593, %v3589
  %v5814 = vpack.c.b16 %v3594, %v3590
  %v5815 = vpack.c.b16 %v3599, %v3595
  %v5816 = vpack.c.b16 %v3600, %v3596
  %v5817 = vpack.c.b16 %v3601, %v3597
  %v5818 = vpack.c.b16 %v3602, %v3598
  %v5819 = vpack.c.b16 %v3607, %v3603
  %v5820 = vpack.c.b16 %v3608, %v3604
  %v5821 = vpack.c.b16 %v3609, %v3605
  %v5822 = vpack.c.b16 %v3610, %v3606
  %v5823 = vpack.c.b16 %v3615, %v3611
  %v5824 = vpack.c.b16 %v3616, %v3612
  %v5825 = vpack.c.b16 %v3617, %v3613
  %v5826 = vpack.c.b16 %v3618, %v3614
  %v5827 = vpack.c.b16 %v3623, %v3619
  %v5828 = vpack.c.b16 %v3624, %v3620
  %v5829 = vpack.c.b16 %v3625, %v3621
  %v5830 = vpack.c.b16 %v3626, %v3622
  %v5831 = vpack.c.b16 %v3631, %v3627
  %v5832 = vpack.c.b16 %v3632, %v3628
  %v5833 = vpack.c.b16 %v3633, %v3629
  %v5834 = vpack.c.b16 %v3634, %v3630
  %v5835 = vpack.c.b16 %v3639, %v3635
  %v5836 = vpack.c.b16 %v3640, %v3636
  %v5837 = vpack.c.b16 %v3641, %v3637
  %v5838 = vpack.c.b16 %v3642, %v3638
  %v5839 = vpack.c.b16 %v3647, %v3643
  %v5840 = vpack.c.b16 %v3648, %v3644
  %v5841 = vpack.c.b16 %v3649, %v3645
  %v5842 = vpack.c.b16 %v3650, %v3646
  %v5843 = vpack.c.b16 %v3655, %v3651
  %v5844 = vpack.c.b16 %v3656, %v3652
  %v5845 = vpack.c.b16 %v3657, %v3653
  %v5846 = vpack.c.b16 %v3658, %v3654
  %v5847 = vpack.c.b16 %v3663, %v3659
  %v5848 = vpack.c.b16 %v3664, %v3660
  %v5849 = vpack.c.b16 %v3665, %v3661
  %v5850 = vpack.c.b16 %v3666, %v3662
  %v5851 = vpack.c.b16 %v3671, %v3667
  %v5852 = vpack.c.b16 %v3672, %v3668
  %v5853 = vpack.c.b16 %v3673, %v3669
  %v5854 = vpack.c.b16 %v3674, %v3670
  %v5855 = vpack.c.b16 %v3679, %v3675
  %v5856 = vpack.c.b16 %v3680, %v3676
  %v5857 = vpack.c.b16 %v3681, %v3677
  %v5858 = vpack.c.b16 %v3682, %v3678
  %v5859 = vpack.c.b16 %v3687, %v3683
  %v5860 = vpack.c.b16 %v3688, %v3684
  %v5861 = vpack.c.b16 %v3689, %v3685
  %v5862 = vpack.c.b16 %v3690, %v3686
  %v5863 = vpack.c.b16 %v3695, %v3691
  %v5864 = vpack.c.b16 %v3696, %v3692
  %v5865 = vpack.c.b16 %v3697, %v3693
  %v5866 = vpack.c.b16 %v3698, %v3694
  %v5867 = vpack.c.b16 %v3703, %v3699
  %v5868 = vpack.c.b16 %v3704, %v3700
  %v5869 = vpack.c.b16 %v3705, %v3701
  %v5870 = vpack.c.b16 %v3706, %v3702
  %v5871 = vpack.c.b16 %v3711, %v3707
  %v5872 = vpack.c.b16 %v3712, %v3708
  %v5873 = vpack.c.b16 %v3713, %v3709
  %v5874 = vpack.c.b16 %v3714, %v3710
  %v5875 = vpack.c.b16 %v3719, %v3715
  %v5876 = vpack.c.b16 %v3720, %v3716
  %v5877 = vpack.c.b16 %v3721, %v3717
  %v5878 = vpack.c.b16 %v3722, %v3718
  %v5879 = vpack.c.b16 %v3727, %v3723
  %v5880 = vpack.c.b16 %v3728, %v3724
  %v5881 = vpack.c.b16 %v3729, %v3725
  %v5882 = vpack.c.b16 %v3730, %v3726
  %v5883 = vpack.c.b16 %v3735, %v3731
  %v5884 = vpack.c.b16 %v3736, %v3732
  %v5885 = vpack.c.b16 %v3737, %v3733
  %v5886 = vpack.c.b16 %v3738, %v3734
  %v5887 = vpack.c.b16 %v3743, %v3739
  %v5888 = vpack.c.b16 %v3744, %v3740
  %v5889 = vpack.c.b16 %v3745, %v3741
  %v5890 = vpack.c.b16 %v3746, %v3742
  %v5891 = vpack.c.b16 %v3751, %v3747
  %v5892 = vpack.c.b16 %v3752, %v3748
  %v5893 = vpack.c.b16 %v3753, %v3749
  %v5894 = vpack.c.b16 %v3754, %v3750
  %v5895 = vpack.c.b16 %v3759, %v3755
  %v5896 = vpack.c.b16 %v3760, %v3756
  %v5897 = vpack.c.b16 %v3761, %v3757
  %v5898 = vpack.c.b16 %v3762, %v3758
  %v5899 = vpack.c.b16 %v3767, %v3763
  %v5900 = vpack.c.b16 %v3768, %v3764
  %v5901 = vpack.c.b16 %v3769, %v3765
  %v5902 = vpack.c.b16 %v3770, %v3766
  %v5903 = vpack.c.b16 %v3775, %v3771
  %v5904 = vpack.c.b16 %v3776, %v3772
  %v5905 = vpack.c.b16 %v3777, %v3773
  %v5906 = vpack.c.b16 %v3778, %v3774
  %v5907 = vpack.c.b16 %v3783, %v3779
  %v5908 = vpack.c.b16 %v3784, %v3780
  %v5909 = vpack.c.b16 %v3785, %v3781
  %v5910 = vpack.c.b16 %v3786, %v3782
  %v5911 = vpack.c.b16 %v3791, %v3787
  %v5912 = vpack.c.b16 %v3792, %v3788
  %v5913 = vpack.c.b16 %v3793, %v3789
  %v5914 = vpack.c.b16 %v3794, %v3790
  %v5915 = vpack.c.b16 %v3799, %v3795
  %v5916 = vpack.c.b16 %v3800, %v3796
  %v5917 = vpack.c.b16 %v3801, %v3797
  %v5918 = vpack.c.b16 %v3802, %v3798
  %v5919 = vpack.c.b16 %v3807, %v3803
  %v5920 = vpack.c.b16 %v3808, %v3804
  %v5921 = vpack.c.b16 %v3809, %v3805
  %v5922 = vpack.c.b16 %v3810, %v3806
  %v5923 = vpack.c.b16 %v3815, %v3811
  %v5924 = vpack.c.b16 %v3816, %v3812
  %v5925 = vpack.c.b16 %v3817, %v3813
  %v5926 = vpack.c.b16 %v3818, %v3814
  %v5927 = vpack.c.b16 %v3823, %v3819
  %v5928 = vpack.c.b16 %v3824, %v3820
  %v5929 = vpack.c.b16 %v3825, %v3821
  %v5930 = vpack.c.b16 %v3826, %v3822
  %v5931 = vpack.c.b16 %v3831, %v3827
  %v5932 = vpack.c.b16 %v3832, %v3828
  %v5933 = vpack.c.b16 %v3833, %v3829
  %v5934 = vpack.c.b16 %v3834, %v3830
  %v5935 = vpack.c.b16 %v3839, %v3835
  %v5936 = vpack.c.b16 %v3840, %v3836
  %v5937 = vpack.c.b16 %v3841, %v3837
  %v5938 = vpack.c.b16 %v3842, %v3838
  %v5939 = vpack.c.b16 %v3847, %v3843
  %v5940 = vpack.c.b16 %v3848, %v3844
  %v5941 = vpack.c.b16 %v3849, %v3845
  %v5942 = vpack.c.b16 %v3850, %v3846
  %v5943 = vpack.c.b16 %v3855, %v3851
  %v5944 = vpack.c.b16 %v3856, %v3852
  %v5945 = vpack.c.b16 %v3857, %v3853
  %v5946 = vpack.c.b16 %v3858, %v3854
  %v5947 = vpack.c.b16 %v3863, %v3859
  %v5948 = vpack.c.b16 %v3864, %v3860
  %v5949 = vpack.c.b16 %v3865, %v3861
  %v5950 = vpack.c.b16 %v3866, %v3862
  %v5951 = vpack.c.b16 %v3871, %v3867
  %v5952 = vpack.c.b16 %v3872, %v3868
  %v5953 = vpack.c.b16 %v3873, %v3869
  %v5954 = vpack.c.b16 %v3874, %v3870
  %v5955 = vpack.c.b16 %v3879, %v3875
  %v5956 = vpack.c.b16 %v3880, %v3876
  %v5957 = vpack.c.b16 %v3881, %v3877
  %v5958 = vpack.c.b16 %v3882, %v3878
  %v5959 = vpack.c.b16 %v3887, %v3883
  %v5960 = vpack.c.b16 %v3888, %v3884
  %v5961 = vpack.c.b16 %v3889, %v3885
  %v5962 = vpack.c.b16 %v3890, %v3886
  %v5963 = vpack.c.b16 %v3895, %v3891
  %v5964 = vpack.c.b16 %v3896, %v3892
  %v5965 = vpack.c.b16 %v3897, %v3893
  %v5966 = vpack.c.b16 %v3898, %v3894
  %v5967 = vpack.c.b16 %v3903, %v3899
  %v5968 = vpack.c.b16 %v3904, %v3900
  %v5969 = vpack.c.b16 %v3905, %v3901
  %v5970 = vpack.c.b16 %v3906, %v3902
  %v5971 = vpack.c.b16 %v3911, %v3907
  %v5972 = vpack.c.b16 %v3912, %v3908
  %v5973 = vpack.c.b16 %v3913, %v3909
  %v5974 = vpack.c.b16 %v3914, %v3910
  %v5975 = vpack.c.b16 %v3919, %v3915
  %v5976 = vpack.c.b16 %v3920, %v3916
  %v5977 = vpack.c.b16 %v3921, %v3917
  %v5978 = vpack.c.b16 %v3922, %v3918
  %v5979 = vpack.c.b16 %v3927, %v3923
  %v5980 = vpack.c.b16 %v3928, %v3924
  %v5981 = vpack.c.b16 %v3929, %v3925
  %v5982 = vpack.c.b16 %v3930, %v3926
  %v5983 = vpack.c.b16 %v3935, %v3931
  %v5984 = vpack.c.b16 %v3936, %v3932
  %v5985 = vpack.c.b16 %v3937, %v3933
  %v5986 = vpack.c.b16 %v3938, %v3934
  %v5987 = vpack.c.b16 %v3943, %v3939
  %v5988 = vpack.c.b16 %v3944, %v3940
  %v5989 = vpack.c.b16 %v3945, %v3941
  %v5990 = vpack.c.b16 %v3946, %v3942
  %v5991 = vpack.c.b16 %v3951, %v3947
  %v5992 = vpack.c.b16 %v3952, %v3948
  %v5993 = vpack.c.b16 %v3953, %v3949
  %v5994 = vpack.c.b16 %v3954, %v3950
  %v5995 = vpack.c.b16 %v3959, %v3955
  %v5996 = vpack.c.b16 %v3960, %v3956
  %v5997 = vpack.c.b16 %v3961, %v3957
  %v5998 = vpack.c.b16 %v3962, %v3958
  %v5999 = vpack.c.b16 %v3967, %v3963
  %v6000 = vpack.c.b16 %v3968, %v3964
  %v6001 = vpack.c.b16 %v3969, %v3965
  %v6002 = vpack.c.b16 %v3970, %v3966
  %v6003 = vpack.c.b16 %v3975, %v3971
  %v6004 = vpack.c.b16 %v3976, %v3972
  %v6005 = vpack.c.b16 %v3977, %v3973
  %v6006 = vpack.c.b16 %v3978, %v3974
  %v6007 = vpack.c.b16 %v3983, %v3979
  %v6008 = vpack.c.b16 %v3984, %v3980
  %v6009 = vpack.c.b16 %v3985, %v3981
  %v6010 = vpack.c.b16 %v3986, %v3982
  %v6011 = vpack.c.b16 %v3991, %v3987
  %v6012 = vpack.c.b16 %v3992, %v3988
  %v6013 = vpack.c.b16 %v3993, %v3989
  %v6014 = vpack.c.b16 %v3994, %v3990
  %v6015 = vpack.c.b16 %v3999, %v3995
  %v6016 = vpack.c.b16 %v4000, %v3996
  %v6017 = vpack.c.b16 %v4001, %v3997
  %v6018 = vpack.c.b16 %v4002, %v3998
  %v6019 = vpack.c.b16 %v4007, %v4003
  %v6020 = vpack.c.b16 %v4008, %v4004
  %v6021 = vpack.c.b16 %v4009, %v4005
  %v6022 = vpack.c.b16 %v4010, %v4006
  %v6023 = vpack.c.b16 %v4015, %v4011
  %v6024 = vpack.c.b16 %v4016, %v4012
  %v6025 = vpack.c.b16 %v4017, %v4013
  %v6026 = vpack.c.b16 %v4018, %v4014
  %v6027 = vpack.c.b16 %v4023, %v4019
  %v6028 = vpack.c.b16 %v4024, %v4020
  %v6029 = vpack.c.b16 %v4025, %v4021
  %v6030 = vpack.c.b16 %v4026, %v4022
  %v6031 = vpack.c.b16 %v4031, %v4027
  %v6032 = vpack.c.b16 %v4032, %v4028
  %v6033 = vpack.c.b16 %v4033, %v4029
  %v6034 = vpack.c.b16 %v4034, %v4030
  %v6035 = vpack.c.b16 %v4039, %v4035
  %v6036 = vpack.c.b16 %v4040, %v4036
  %v6037 = vpack.c.b16 %v4041, %v4037
  %v6038 = vpack.c.b16 %v4042, %v4038
  %v6039 = vpack.c.b16 %v4047, %v4043
  %v6040 = vpack.c.b16 %v4048, %v4044
  %v6041 = vpack.c.b16 %v4049, %v4045
  %v6042 = vpack.c.b16 %v4050, %v4046
  %v6043 = vpack.c.b16 %v4055, %v4051
  %v6044 = vpack.c.b16 %v4056, %v4052
  %v6045 = vpack.c.b16 %v4057, %v4053
  %v6046 = vpack.c.b16 %v4058, %v4054
  %v6047 = vpack.c.b16 %v4063, %v4059
  %v6048 = vpack.c.b16 %v4064, %v4060
  %v6049 = vpack.c.b16 %v4065, %v4061
  %v6050 = vpack.c.b16 %v4066, %v4062
  %v6051 = vpack.c.b16 %v4071, %v4067
  %v6052 = vpack.c.b16 %v4072, %v4068
  %v6053 = vpack.c.b16 %v4073, %v4069
  %v6054 = vpack.c.b16 %v4074, %v4070
  %v6055 = vpack.c.b16 %v4079, %v4075
  %v6056 = vpack.c.b16 %v4080, %v4076
  %v6057 = vpack.c.b16 %v4081, %v4077
  %v6058 = vpack.c.b16 %v4082, %v4078
  %v6059 = vpack.c.b16 %v4087, %v4083
  %v6060 = vpack.c.b16 %v4088, %v4084
  %v6061 = vpack.c.b16 %v4089, %v4085
  %v6062 = vpack.c.b16 %v4090, %v4086
  %v6063 = vpack.c.b16 %v4095, %v4091
  %v6064 = vpack.c.b16 %v4096, %v4092
  %v6065 = vpack.c.b16 %v4097, %v4093
  %v6066 = vpack.c.b16 %v4098, %v4094
  %v6067 = vpack.c.b16 %v4103, %v4099
  %v6068 = vpack.c.b16 %v4104, %v4100
  %v6069 = vpack.c.b16 %v4105, %v4101
  %v6070 = vpack.c.b16 %v4106, %v4102
  %v6071 = vpack.c.b16 %v4111, %v4107
  %v6072 = vpack.c.b16 %v4112, %v4108
  %v6073 = vpack.c.b16 %v4113, %v4109
  %v6074 = vpack.c.b16 %v4114, %v4110
  %v6075 = vpack.c.b16 %v4119, %v4115
  %v6076 = vpack.c.b16 %v4120, %v4116
  %v6077 = vpack.c.b16 %v4121, %v4117
  %v6078 = vpack.c.b16 %v4122, %v4118
  %v6079 = vpack.c.b16 %v4127, %v4123
  %v6080 = vpack.c.b16 %v4128, %v4124
  %v6081 = vpack.c.b16 %v4129, %v4125
  %v6082 = vpack.c.b16 %v4130, %v4126
  %v6083 = vpack.c.b16 %v4135, %v4131
  %v6084 = vpack.c.b16 %v4136, %v4132
  %v6085 = vpack.c.b16 %v4137, %v4133
  %v6086 = vpack.c.b16 %v4138, %v4134
  %v6087 = vpack.c.b16 %v4143, %v4139
  %v6088 = vpack.c.b16 %v4144, %v4140
  %v6089 = vpack.c.b16 %v4145, %v4141
  %v6090 = vpack.c.b16 %v4146, %v4142
  %v6091 = vpack.c.b16 %v4151, %v4147
  %v6092 = vpack.c.b16 %v4152, %v4148
  %v6093 = vpack.c.b16 %v4153, %v4149
  %v6094 = vpack.c.b16 %v4154, %v4150
  %v6095 = vpack.c.b16 %v4159, %v4155
  %v6096 = vpack.c.b16 %v4160, %v4156
  %v6097 = vpack.c.b16 %v4161, %v4157
  %v6098 = vpack.c.b16 %v4162, %v4158
  %v6099 = vpack.c.b16 %v4167, %v4163
  %v6100 = vpack.c.b16 %v4168, %v4164
  %v6101 = vpack.c.b16 %v4169, %v4165
  %v6102 = vpack.c.b16 %v4170, %v4166
  %v6103 = vpack.c.b16 %v4175, %v4171
  %v6104 = vpack.c.b16 %v4176, %v4172
  %v6105 = vpack.c.b16 %v4177, %v4173
  %v6106 = vpack.c.b16 %v4178, %v4174
  %v6107 = vpack.c.b16 %v4183, %v4179
  %v6108 = vpack.c.b16 %v4184, %v4180
  %v6109 = vpack.c.b16 %v4185, %v4181
  %v6110 = vpack.c.b16 %v4186, %v4182
  %v6111 = vpack.c.b16 %v4191, %v4187
  %v6112 = vpack.c.b16 %v4192, %v4188
  %v6113 = vpack.c.b16 %v4193, %v4189
  %v6114 = vpack.c.b16 %v4194, %v4190
  %v6115 = vpack.c.b16 %v4199, %v4195
  %v6116 = vpack.c.b16 %v4200, %v4196
  %v6117 = vpack.c.b16 %v4201, %v4197
  %v6118 = vpack.c.b16 %v4202, %v4198
  %v6119 = vpack.c.b16 %v4207, %v4203
  %v6120 = vpack.c.b16 %v4208, %v4204
  %v6121 = vpack.c.b16 %v4209, %v4205
  %v6122 = vpack.c.b16 %v4210, %v4206
  %v6123 = vpack.c.b16 %v4215, %v4211
  %v6124 = vpack.c.b16 %v4216, %v4212
  %v6125 = vpack.c.b16 %v4217, %v4213
  %v6126 = vpack.c.b16 %v4218, %v4214
  %v6127 = vpack.c.b16 %v4223, %v4219
  %v6128 = vpack.c.b16 %v4224, %v4220
  %v6129 = vpack.c.b16 %v4225, %v4221
  %v6130 = vpack.c.b16 %v4226, %v4222
  %v6131 = vpack.c.b16 %v4231, %v4227
  %v6132 = vpack.c.b16 %v4232, %v4228
  %v6133 = vpack.c.b16 %v4233, %v4229
  %v6134 = vpack.c.b16 %v4234, %v4230
  %v6135 = vpack.c.b16 %v4239, %v4235
  %v6136 = vpack.c.b16 %v4240, %v4236
  %v6137 = vpack.c.b16 %v4241, %v4237
  %v6138 = vpack.c.b16 %v4242, %v4238
  %v6139 = vpack.c.b16 %v4247, %v4243
  %v6140 = vpack.c.b16 %v4248, %v4244
  %v6141 = vpack.c.b16 %v4249, %v4245
  %v6142 = vpack.c.b16 %v4250, %v4246
  %v6143 = vpack.c.b16 %v4255, %v4251
  %v6144 = vpack.c.b16 %v4256, %v4252
  %v6145 = vpack.c.b16 %v4257, %v4253
  %v6146 = vpack.c.b16 %v4258, %v4254
  %v6147 = vpack.c.b16 %v4263, %v4259
  %v6148 = vpack.c.b16 %v4264, %v4260
  %v6149 = vpack.c.b16 %v4265, %v4261
  %v6150 = vpack.c.b16 %v4266, %v4262
  %v6151 = vpack.c.b16 %v4271, %v4267
  %v6152 = vpack.c.b16 %v4272, %v4268
  %v6153 = vpack.c.b16 %v4273, %v4269
  %v6154 = vpack.c.b16 %v4274, %v4270
  %v6155 = vpack.c.b16 %v4279, %v4275
  %v6156 = vpack.c.b16 %v4280, %v4276
  %v6157 = vpack.c.b16 %v4281, %v4277
  %v6158 = vpack.c.b16 %v4282, %v4278
  %v6159 = vpack.c.b16 %v4287, %v4283
  %v6160 = vpack.c.b16 %v4288, %v4284
  %v6161 = vpack.c.b16 %v4289, %v4285
  %v6162 = vpack.c.b16 %v4290, %v4286
  %v6163 = vpack.c.b16 %v4295, %v4291
  %v6164 = vpack.c.b16 %v4296, %v4292
  %v6165 = vpack.c.b16 %v4297, %v4293
  %v6166 = vpack.c.b16 %v4298, %v4294
  %v6167 = vpack.c.b16 %v4303, %v4299
  %v6168 = vpack.c.b16 %v4304, %v4300
  %v6169 = vpack.c.b16 %v4305, %v4301
  %v6170 = vpack.c.b16 %v4306, %v4302
  %v6171 = vpack.c.b16 %v4311, %v4307
  %v6172 = vpack.c.b16 %v4312, %v4308
  %v6173 = vpack.c.b16 %v4313, %v4309
  %v6174 = vpack.c.b16 %v4314, %v4310
  %v6175 = vpack.c.b16 %v4319, %v4315
  %v6176 = vpack.c.b16 %v4320, %v4316
  %v6177 = vpack.c.b16 %v4321, %v4317
  %v6178 = vpack.c.b16 %v4322, %v4318
  %v6179 = vpack.c.b16 %v4327, %v4323
  %v6180 = vpack.c.b16 %v4328, %v4324
  %v6181 = vpack.c.b16 %v4329, %v4325
  %v6182 = vpack.c.b16 %v4330, %v4326
  %v6183 = vpack.c.b16 %v4335, %v4331
  %v6184 = vpack.c.b16 %v4336, %v4332
  %v6185 = vpack.c.b16 %v4337, %v4333
  %v6186 = vpack.c.b16 %v4338, %v4334
  %v6187 = vpack.c.b16 %v4343, %v4339
  %v6188 = vpack.c.b16 %v4344, %v4340
  %v6189 = vpack.c.b16 %v4345, %v4341
  %v6190 = vpack.c.b16 %v4346, %v4342
  %v6191 = vpack.c.b16 %v4351, %v4347
  %v6192 = vpack.c.b16 %v4352, %v4348
  %v6193 = vpack.c.b16 %v4353, %v4349
  %v6194 = vpack.c.b16 %v4354, %v4350
  %v6195 = vpack.c.b16 %v4359, %v4355
  %v6196 = vpack.c.b16 %v4360, %v4356
  %v6197 = vpack.c.b16 %v4361, %v4357
  %v6198 = vpack.c.b16 %v4362, %v4358
  %v6199 = vpack.c.b16 %v4367, %v4363
  %v6200 = vpack.c.b16 %v4368, %v4364
  %v6201 = vpack.c.b16 %v4369, %v4365
  %v6202 = vpack.c.b16 %v4370, %v4366
  %v6203 = vpack.c.b16 %v4375, %v4371
  %v6204 = vpack.c.b16 %v4376, %v4372
  %v6205 = vpack.c.b16 %v4377, %v4373
  %v6206 = vpack.c.b16 %v4378, %v4374
  %v6207 = vpack.c.b16 %v4383, %v4379
  %v6208 = vpack.c.b16 %v4384, %v4380
  %v6209 = vpack.c.b16 %v4385, %v4381
  %v6210 = vpack.c.b16 %v4386, %v4382
  %v6211 = vpack.c.b16 %v4391, %v4387
  %v6212 = vpack.c.b16 %v4392, %v4388
  %v6213 = vpack.c.b16 %v4393, %v4389
  %v6214 = vpack.c.b16 %v4394, %v4390
  %v6215 = vpack.c.b16 %v4399, %v4395
  %v6216 = vpack.c.b16 %v4400, %v4396
  %v6217 = vpack.c.b16 %v4401, %v4397
  %v6218 = vpack.c.b16 %v4402, %v4398
  %v6219 = vpack.c.b16 %v4407, %v4403
  %v6220 = vpack.c.b16 %v4408, %v4404
  %v6221 = vpack.c.b16 %v4409, %v4405
  %v6222 = vpack.c.b16 %v4410, %v4406
  %v6223 = vpack.c.b16 %v4415, %v4411
  %v6224 = vpack.c.b16 %v4416, %v4412
  %v6225 = vpack.c.b16 %v4417, %v4413
  %v6226 = vpack.c.b16 %v4418, %v4414
  %v6227 = vpack.c.b16 %v4423, %v4419
  %v6228 = vpack.c.b16 %v4424, %v4420
  %v6229 = vpack.c.b16 %v4425, %v4421
  %v6230 = vpack.c.b16 %v4426, %v4422
  %v6231 = vpack.c.b16 %v4431, %v4427
  %v6232 = vpack.c.b16 %v4432, %v4428
  %v6233 = vpack.c.b16 %v4433, %v4429
  %v6234 = vpack.c.b16 %v4434, %v4430
  %v6235 = vpack.c.b16 %v4439, %v4435
  %v6236 = vpack.c.b16 %v4440, %v4436
  %v6237 = vpack.c.b16 %v4441, %v4437
  %v6238 = vpack.c.b16 %v4442, %v4438
  %v6239 = vpack.c.b16 %v4447, %v4443
  %v6240 = vpack.c.b16 %v4448, %v4444
  %v6241 = vpack.c.b16 %v4449, %v4445
  %v6242 = vpack.c.b16 %v4450, %v4446
  %v6243 = vpack.c.b16 %v4455, %v4451
  %v6244 = vpack.c.b16 %v4456, %v4452
  %v6245 = vpack.c.b16 %v4457, %v4453
  %v6246 = vpack.c.b16 %v4458, %v4454
  %v6247 = vpack.c.b16 %v4463, %v4459
  %v6248 = vpack.c.b16 %v4464, %v4460
  %v6249 = vpack.c.b16 %v4465, %v4461
  %v6250 = vpack.c.b16 %v4466, %v4462
  %v6251 = vpack.c.b16 %v4471, %v4467
  %v6252 = vpack.c.b16 %v4472, %v4468
  %v6253 = vpack.c.b16 %v4473, %v4469
  %v6254 = vpack.c.b16 %v4474, %v4470
  %v6255 = vpack.c.b16 %v4479, %v4475
  %v6256 = vpack.c.b16 %v4480, %v4476
  %v6257 = vpack.c.b16 %v4481, %v4477
  %v6258 = vpack.c.b16 %v4482, %v4478
  %v6259 = vpack.c.b16 %v4487, %v4483
  %v6260 = vpack.c.b16 %v4488, %v4484
  %v6261 = vpack.c.b16 %v4489, %v4485
  %v6262 = vpack.c.b16 %v4490, %v4486
  %v6263 = vpack.c.b16 %v4495, %v4491
  %v6264 = vpack.c.b16 %v4496, %v4492
  %v6265 = vpack.c.b16 %v4497, %v4493
  %v6266 = vpack.c.b16 %v4498, %v4494
  %v6267 = vpack.c.b16 %v4503, %v4499
  %v6268 = vpack.c.b16 %v4504, %v4500
  %v6269 = vpack.c.b16 %v4505, %v4501
  %v6270 = vpack.c.b16 %v4506, %v4502
  %v6271 = vpack.c.b16 %v4511, %v4507
  %v6272 = vpack.c.b16 %v4512, %v4508
  %v6273 = vpack.c.b16 %v4513, %v4509
  %v6274 = vpack.c.b16 %v4514, %v4510
  %v6275 = vpack.c.b16 %v4519, %v4515
  %v6276 = vpack.c.b16 %v4520, %v4516
  %v6277 = vpack.c.b16 %v4521, %v4517
  %v6278 = vpack.c.b16 %v4522, %v4518
  %v6279 = vpack.c.b16 %v4527, %v4523
  %v6280 = vpack.c.b16 %v4528, %v4524
  %v6281 = vpack.c.b16 %v4529, %v4525
  %v6282 = vpack.c.b16 %v4530, %v4526
  %v6283 = vpack.c.b16 %v4535, %v4531
  %v6284 = vpack.c.b16 %v4536, %v4532
  %v6285 = vpack.c.b16 %v4537, %v4533
  %v6286 = vpack.c.b16 %v4538, %v4534
  %v6287 = vpack.c.b16 %v4543, %v4539
  %v6288 = vpack.c.b16 %v4544, %v4540
  %v6289 = vpack.c.b16 %v4545, %v4541
  %v6290 = vpack.c.b16 %v4546, %v4542
  %v6291 = vpack.c.b16 %v4551, %v4547
  %v6292 = vpack.c.b16 %v4552, %v4548
  %v6293 = vpack.c.b16 %v4553, %v4549
  %v6294 = vpack.c.b16 %v4554, %v4550
  %v6295 = vpack.c.b16 %v4559, %v4555
  %v6296 = vpack.c.b16 %v4560, %v4556
  %v6297 = vpack.c.b16 %v4561, %v4557
  %v6298 = vpack.c.b16 %v4562, %v4558
  %v6299 = vpack.c.b16 %v4567, %v4563
  %v6300 = vpack.c.b16 %v4568, %v4564
  %v6301 = vpack.c.b16 %v4569, %v4565
  %v6302 = vpack.c.b16 %v4570, %v4566
  %v6303 = vpack.c.b16 %v4575, %v4571
  %v6304 = vpack.c.b16 %v4576, %v4572
  %v6305 = vpack.c.b16 %v4577, %v4573
  %v6306 = vpack.c.b16 %v4578, %v4574
  %v6307 = vpack.c.b16 %v4583, %v4579
  %v6308 = vpack.c.b16 %v4584, %v4580
  %v6309 = vpack.c.b16 %v4585, %v4581
  %v6310 = vpack.c.b16 %v4586, %v4582
  %v6311 = vpack.c.b16 %v4591, %v4587
  %v6312 = vpack.c.b16 %v4592, %v4588
  %v6313 = vpack.c.b16 %v4593, %v4589
  %v6314 = vpack.c.b16 %v4594, %v4590
  %v6315 = vpack.c.b16 %v4599, %v4595
  %v6316 = vpack.c.b16 %v4600, %v4596
  %v6317 = vpack.c.b16 %v4601, %v4597
  %v6318 = vpack.c.b16 %v4602, %v4598
  %v6319 = vpack.c.b16 %v4607, %v4603
  %v6320 = vpack.c.b16 %v4608, %v4604
  %v6321 = vpack.c.b16 %v4609, %v4605
  %v6322 = vpack.c.b16 %v4610, %v4606
  %v6323 = vpack.c.b16 %v4615, %v4611
  %v6324 = vpack.c.b16 %v4616, %v4612
  %v6325 = vpack.c.b16 %v4617, %v4613
  %v6326 = vpack.c.b16 %v4618, %v4614
  %v6327 = vpack.c.b16 %v4623, %v4619
  %v6328 = vpack.c.b16 %v4624, %v4620
  %v6329 = vpack.c.b16 %v4625, %v4621
  %v6330 = vpack.c.b16 %v4626, %v4622
  %v6331 = vpack.c.b16 %v4631, %v4627
  %v6332 = vpack.c.b16 %v4632, %v4628
  %v6333 = vpack.c.b16 %v4633, %v4629
  %v6334 = vpack.c.b16 %v4634, %v4630
  %v6335 = vpack.c.b16 %v4639, %v4635
  %v6336 = vpack.c.b16 %v4640, %v4636
  %v6337 = vpack.c.b16 %v4641, %v4637
  %v6338 = vpack.c.b16 %v4642, %v4638
  %v6339 = vpack.c.b16 %v4647, %v4643
  %v6340 = vpack.c.b16 %v4648, %v4644
  %v6341 = vpack.c.b16 %v4649, %v4645
  %v6342 = vpack.c.b16 %v4650, %v4646
  %v6343 = vpack.c.b16 %v4655, %v4651
  %v6344 = vpack.c.b16 %v4656, %v4652
  %v6345 = vpack.c.b16 %v4657, %v4653
  %v6346 = vpack.c.b16 %v4658, %v4654
  %v6347 = vpack.c.b16 %v4663, %v4659
  %v6348 = vpack.c.b16 %v4664, %v4660
  %v6349 = vpack.c.b16 %v4665, %v4661
  %v6350 = vpack.c.b16 %v4666, %v4662
  %v6351 = vpack.c.b16 %v4671, %v4667
  %v6352 = vpack.c.b16 %v4672, %v4668
  %v6353 = vpack.c.b16 %v4673, %v4669
  %v6354 = vpack.c.b16 %v4674, %v4670
  %v6355 = vpack.c.b16 %v4679, %v4675
  %v6356 = vpack.c.b16 %v4680, %v4676
  %v6357 = vpack.c.b16 %v4681, %v4677
  %v6358 = vpack.c.b16 %v4682, %v4678
  %v6359 = vpack.c.b16 %v4687, %v4683
  %v6360 = vpack.c.b16 %v4688, %v4684
  %v6361 = vpack.c.b16 %v4689, %v4685
  %v6362 = vpack.c.b16 %v4690, %v4686
  %v6363 = vpack.c.b16 %v4695, %v4691
  %v6364 = vpack.c.b16 %v4696, %v4692
  %v6365 = vpack.c.b16 %v4697, %v4693
  %v6366 = vpack.c.b16 %v4698, %v4694
  %v6367 = vpack.c.b16 %v4703, %v4699
  %v6368 = vpack.c.b16 %v4704, %v4700
  %v6369 = vpack.c.b16 %v4705, %v4701
  %v6370 = vpack.c.b16 %v4706, %v4702
  %v6371 = vpack.c.b16 %v4711, %v4707
  %v6372 = vpack.c.b16 %v4712, %v4708
  %v6373 = vpack.c.b16 %v4713, %v4709
  %v6374 = vpack.c.b16 %v4714, %v4710
  %v6375 = vpack.c.b16 %v4719, %v4715
  %v6376 = vpack.c.b16 %v4720, %v4716
  %v6377 = vpack.c.b16 %v4721, %v4717
  %v6378 = vpack.c.b16 %v4722, %v4718
  %v6379 = vpack.c.b16 %v4727, %v4723
  %v6380 = vpack.c.b16 %v4728, %v4724
  %v6381 = vpack.c.b16 %v4729, %v4725
  %v6382 = vpack.c.b16 %v4730, %v4726
  %v6383 = vpack.c.b16 %v4735, %v4731
  %v6384 = vpack.c.b16 %v4736, %v4732
  %v6385 = vpack.c.b16 %v4737, %v4733
  %v6386 = vpack.c.b16 %v4738, %v4734
  %v6387 = vpack.c.b16 %v4743, %v4739
  %v6388 = vpack.c.b16 %v4744, %v4740
  %v6389 = vpack.c.b16 %v4745, %v4741
  %v6390 = vpack.c.b16 %v4746, %v4742
  %v6391 = vpack.c.b16 %v4751, %v4747
  %v6392 = vpack.c.b16 %v4752, %v4748
  %v6393 = vpack.c.b16 %v4753, %v4749
  %v6394 = vpack.c.b16 %v4754, %v4750
  %v6395 = vpack.c.b16 %v4759, %v4755
  %v6396 = vpack.c.b16 %v4760, %v4756
  %v6397 = vpack.c.b16 %v4761, %v4757
  %v6398 = vpack.c.b16 %v4762, %v4758
  %v6399 = vpack.c.b16 %v4767, %v4763
  %v6400 = vpack.c.b16 %v4768, %v4764
  %v6401 = vpack.c.b16 %v4769, %v4765
  %v6402 = vpack.c.b16 %v4770, %v4766
  %v6403 = vpack.c.b16 %v4775, %v4771
  %v6404 = vpack.c.b16 %v4776, %v4772
  %v6405 = vpack.c.b16 %v4777, %v4773
  %v6406 = vpack.c.b16 %v4778, %v4774
  %v6407 = vpack.c.b16 %v4783, %v4779
  %v6408 = vpack.c.b16 %v4784, %v4780
  %v6409 = vpack.c.b16 %v4785, %v4781
  %v6410 = vpack.c.b16 %v4786, %v4782
  %v6411 = vpack.c.b16 %v4791, %v4787
  %v6412 = vpack.c.b16 %v4792, %v4788
  %v6413 = vpack.c.b16 %v4793, %v4789
  %v6414 = vpack.c.b16 %v4794, %v4790
  %v6415 = vpack.c.b16 %v4799, %v4795
  %v6416 = vpack.c.b16 %v4800, %v4796
  %v6417 = vpack.c.b16 %v4801, %v4797
  %v6418 = vpack.c.b16 %v4802, %v4798
  %v6419 = vpack.c.b16 %v4807, %v4803
  %v6420 = vpack.c.b16 %v4808, %v4804
  %v6421 = vpack.c.b16 %v4809, %v4805
  %v6422 = vpack.c.b16 %v4810, %v4806
  %v6423 = vpack.c.b16 %v4815, %v4811
  %v6424 = vpack.c.b16 %v4816, %v4812
  %v6425 = vpack.c.b16 %v4817, %v4813
  %v6426 = vpack.c.b16 %v4818, %v4814
  %v6427 = vpack.c.b16 %v4823, %v4819
  %v6428 = vpack.c.b16 %v4824, %v4820
  %v6429 = vpack.c.b16 %v4825, %v4821
  %v6430 = vpack.c.b16 %v4826, %v4822
  %v6431 = vpack.c.b16 %v4831, %v4827
  %v6432 = vpack.c.b16 %v4832, %v4828
  %v6433 = vpack.c.b16 %v4833, %v4829
  %v6434 = vpack.c.b16 %v4834, %v4830
  %v6435 = vpack.c.b16 %v4839, %v4835
  %v6436 = vpack.c.b16 %v4840, %v4836
  %v6437 = vpack.c.b16 %v4841, %v4837
  %v6438 = vpack.c.b16 %v4842, %v4838
  %v6439 = vpack.c.b16 %v4847, %v4843
  %v6440 = vpack.c.b16 %v4848, %v4844
  %v6441 = vpack.c.b16 %v4849, %v4845
  %v6442 = vpack.c.b16 %v4850, %v4846
  %v6443 = vpack.c.b16 %v4855, %v4851
  %v6444 = vpack.c.b16 %v4856, %v4852
  %v6445 = vpack.c.b16 %v4857, %v4853
  %v6446 = vpack.c.b16 %v4858, %v4854
  %v6447 = vpack.c.b16 %v4863, %v4859
  %v6448 = vpack.c.b16 %v4864, %v4860
  %v6449 = vpack.c.b16 %v4865, %v4861
  %v6450 = vpack.c.b16 %v4866, %v4862
  %v6451 = vpack.c.b16 %v4871, %v4867
  %v6452 = vpack.c.b16 %v4872, %v4868
  %v6453 = vpack.c.b16 %v4873, %v4869
  %v6454 = vpack.c.b16 %v4874, %v4870
  %v6455 = vpack.c.b16 %v4879, %v4875
  %v6456 = vpack.c.b16 %v4880, %v4876
  %v6457 = vpack.c.b16 %v4881, %v4877
  %v6458 = vpack.c.b16 %v4882, %v4878
  %v6459 = vpack.c.b16 %v4887, %v4883
  %v6460 = vpack.c.b16 %v4888, %v4884
  %v6461 = vpack.c.b16 %v4889, %v4885
  %v6462 = vpack.c.b16 %v4890, %v4886
  %v6463 = vpack.c.b16 %v4895, %v4891
  %v6464 = vpack.c.b16 %v4896, %v4892
  %v6465 = vpack.c.b16 %v4897, %v4893
  %v6466 = vpack.c.b16 %v4898, %v4894
  %v6467 = vpack.c.b16 %v4903, %v4899
  %v6468 = vpack.c.b16 %v4904, %v4900
  %v6469 = vpack.c.b16 %v4905, %v4901
  %v6470 = vpack.c.b16 %v4906, %v4902
  %v6471 = vpack.c.b16 %v4911, %v4907
  %v6472 = vpack.c.b16 %v4912, %v4908
  %v6473 = vpack.c.b16 %v4913, %v4909
  %v6474 = vpack.c.b16 %v4914, %v4910
  %v6475 = vpack.c.b16 %v4919, %v4915
  %v6476 = vpack.c.b16 %v4920, %v4916
  %v6477 = vpack.c.b16 %v4921, %v4917
  %v6478 = vpack.c.b16 %v4922, %v4918
  %v6479 = vpack.c.b16 %v4927, %v4923
  %v6480 = vpack.c.b16 %v4928, %v4924
  %v6481 = vpack.c.b16 %v4929, %v4925
  %v6482 = vpack.c.b16 %v4930, %v4926
  %v6483 = vpack.c.b16 %v4935, %v4931
  %v6484 = vpack.c.b16 %v4936, %v4932
  %v6485 = vpack.c.b16 %v4937, %v4933
  %v6486 = vpack.c.b16 %v4938, %v4934
  %v6487 = vpack.c.b16 %v4943, %v4939
  %v6488 = vpack.c.b16 %v4944, %v4940
  %v6489 = vpack.c.b16 %v4945, %v4941
  %v6490 = vpack.c.b16 %v4946, %v4942
  %v6491 = vpack.c.b16 %v4951, %v4947
  %v6492 = vpack.c.b16 %v4952, %v4948
  %v6493 = vpack.c.b16 %v4953, %v4949
  %v6494 = vpack.c.b16 %v4954, %v4950
  %v6495 = vpack.c.b16 %v4959, %v4955
  %v6496 = vpack.c.b16 %v4960, %v4956
  %v6497 = vpack.c.b16 %v4961, %v4957
  %v6498 = vpack.c.b16 %v4962, %v4958
  %v6499 = vpack.c.b16 %v4967, %v4963
  %v6500 = vpack.c.b16 %v4968, %v4964
  %v6501 = vpack.c.b16 %v4969, %v4965
  %v6502 = vpack.c.b16 %v4970, %v4966
  %v6503 = vpack.c.b16 %v4975, %v4971
  %v6504 = vpack.c.b16 %v4976, %v4972
  %v6505 = vpack.c.b16 %v4977, %v4973
  %v6506 = vpack.c.b16 %v4978, %v4974
  %v6507 = vpack.c.b16 %v4983, %v4979
  %v6508 = vpack.c.b16 %v4984, %v4980
  %v6509 = vpack.c.b16 %v4985, %v4981
  %v6510 = vpack.c.b16 %v4986, %v4982
  %v6511 = vpack.c.b16 %v4991, %v4987
  %v6512 = vpack.c.b16 %v4992, %v4988
  %v6513 = vpack.c.b16 %v4993, %v4989
  %v6514 = vpack.c.b16 %v4994, %v4990
  %v6515 = vpack.c.b16 %v4999, %v4995
  %v6516 = vpack.c.b16 %v5000, %v4996
  %v6517 = vpack.c.b16 %v5001, %v4997
  %v6518 = vpack.c.b16 %v5002, %v4998
  %v6519 = vpack.c.b16 %v5007, %v5003
  %v6520 = vpack.c.b16 %v5008, %v5004
  %v6521 = vpack.c.b16 %v5009, %v5005
  %v6522 = vpack.c.b16 %v5010, %v5006
  %v6523 = vpack.c.b16 %v5015, %v5011
  %v6524 = vpack.c.b16 %v5016, %v5012
  %v6525 = vpack.c.b16 %v5017, %v5013
  %v6526 = vpack.c.b16 %v5018, %v5014
  %v6527 = vpack.c.b16 %v5023, %v5019
  %v6528 = vpack.c.b16 %v5024, %v5020
  %v6529 = vpack.c.b16 %v5025, %v5021
  %v6530 = vpack.c.b16 %v5026, %v5022
  %v6531 = vpack.c.b16 %v5031, %v5027
  %v6532 = vpack.c.b16 %v5032, %v5028
  %v6533 = vpack.c.b16 %v5033, %v5029
  %v6534 = vpack.c.b16 %v5034, %v5030
  %v6535 = vpack.c.b16 %v5039, %v5035
  %v6536 = vpack.c.b16 %v5040, %v5036
  %v6537 = vpack.c.b16 %v5041, %v5037
  %v6538 = vpack.c.b16 %v5042, %v5038
  %v6539 = vpack.c.b16 %v5047, %v5043
  %v6540 = vpack.c.b16 %v5048, %v5044
  %v6541 = vpack.c.b16 %v5049, %v5045
  %v6542 = vpack.c.b16 %v5050, %v5046
  %v6543 = vpack.c.b16 %v5055, %v5051
  %v6544 = vpack.c.b16 %v5056, %v5052
  %v6545 = vpack.c.b16 %v5057, %v5053
  %v6546 = vpack.c.b16 %v5058, %v5054
  %v6547 = vpack.c.b16 %v5063, %v5059
  %v6548 = vpack.c.b16 %v5064, %v5060
  %v6549 = vpack.c.b16 %v5065, %v5061
  %v6550 = vpack.c.b16 %v5066, %v5062
  %v6551 = vpack.c.b16 %v5071, %v5067
  %v6552 = vpack.c.b16 %v5072, %v5068
  %v6553 = vpack.c.b16 %v5073, %v5069
  %v6554 = vpack.c.b16 %v5074, %v5070
  %v6555 = vpack.c.b16 %v5079, %v5075
  %v6556 = vpack.c.b16 %v5080, %v5076
  %v6557 = vpack.c.b16 %v5081, %v5077
  %v6558 = vpack.c.b16 %v5082, %v5078
  %v6559 = vpack.c.b16 %v5087, %v5083
  %v6560 = vpack.c.b16 %v5088, %v5084
  %v6561 = vpack.c.b16 %v5089, %v5085
  %v6562 = vpack.c.b16 %v5090, %v5086
  %v6563 = vpack.c.b16 %v5095, %v5091
  %v6564 = vpack.c.b16 %v5096, %v5092
  %v6565 = vpack.c.b16 %v5097, %v5093
  %v6566 = vpack.c.b16 %v5098, %v5094
  %v6567 = vpack.c.b16 %v5103, %v5099
  %v6568 = vpack.c.b16 %v5104, %v5100
  %v6569 = vpack.c.b16 %v5105, %v5101
  %v6570 = vpack.c.b16 %v5106, %v5102
  %v6571 = vpack.c.b16 %v5111, %v5107
  %v6572 = vpack.c.b16 %v5112, %v5108
  %v6573 = vpack.c.b16 %v5113, %v5109
  %v6574 = vpack.c.b16 %v5114, %v5110
  %v6575 = vpack.c.b16 %v5119, %v5115
  %v6576 = vpack.c.b16 %v5120, %v5116
  %v6577 = vpack.c.b16 %v5121, %v5117
  %v6578 = vpack.c.b16 %v5122, %v5118
  %v6579 = vpack.c.b16 %v5127, %v5123
  %v6580 = vpack.c.b16 %v5128, %v5124
  %v6581 = vpack.c.b16 %v5129, %v5125
  %v6582 = vpack.c.b16 %v5130, %v5126
  %v6583 = vpack.c.b16 %v5135, %v5131
  %v6584 = vpack.c.b16 %v5136, %v5132
  %v6585 = vpack.c.b16 %v5137, %v5133
  %v6586 = vpack.c.b16 %v5138, %v5134
  %v6587 = vpack.c.b16 %v5143, %v5139
  %v6588 = vpack.c.b16 %v5144, %v5140
  %v6589 = vpack.c.b16 %v5145, %v5141
  %v6590 = vpack.c.b16 %v5146, %v5142
  %v6591 = vpack.c.b16 %v5151, %v5147
  %v6592 = vpack.c.b16 %v5152, %v5148
  %v6593 = vpack.c.b16 %v5153, %v5149
  %v6594 = vpack.c.b16 %v5154, %v5150
  %v6595 = vpack.c.b16 %v5159, %v5155
  %v6596 = vpack.c.b16 %v5160, %v5156
  %v6597 = vpack.c.b16 %v5161, %v5157
  %v6598 = vpack.c.b16 %v5162, %v5158
  %v6599 = vpack.c.b16 %v5167, %v5163
  %v6600 = vpack.c.b16 %v5168, %v5164
  %v6601 = vpack.c.b16 %v5169, %v5165
  %v6602 = vpack.c.b16 %v5170, %v5166
  %v6603 = vpack.c.b16 %v5175, %v5171
  %v6604 = vpack.c.b16 %v5176, %v5172
  %v6605 = vpack.c.b16 %v5177, %v5173
  %v6606 = vpack.c.b16 %v5178, %v5174
  %v6607 = vpack.c.b16 %v5183, %v5179
  %v6608 = vpack.c.b16 %v5184, %v5180
  %v6609 = vpack.c.b16 %v5185, %v5181
  %v6610 = vpack.c.b16 %v5186, %v5182
  %v6611 = vpack.c.b16 %v5191, %v5187
  %v6612 = vpack.c.b16 %v5192, %v5188
  %v6613 = vpack.c.b16 %v5193, %v5189
  %v6614 = vpack.c.b16 %v5194, %v5190
  %v6615 = vpack.c.b16 %v5199, %v5195
  %v6616 = vpack.c.b16 %v5200, %v5196
  %v6617 = vpack.c.b16 %v5201, %v5197
  %v6618 = vpack.c.b16 %v5202, %v5198
  %v6619 = vpack.c.b16 %v5207, %v5203
  %v6620 = vpack.c.b16 %v5208, %v5204
  %v6621 = vpack.c.b16 %v5209, %v5205
  %v6622 = vpack.c.b16 %v5210, %v5206
  %v6623 = vpack.c.b16 %v5215, %v5211
  %v6624 = vpack.c.b16 %v5216, %v5212
  %v6625 = vpack.c.b16 %v5217, %v5213
  %v6626 = vpack.c.b16 %v5218, %v5214
  %v6627 = vpack.c.b16 %v5223, %v5219
  %v6628 = vpack.c.b16 %v5224, %v5220
  %v6629 = vpack.c.b16 %v5225, %v5221
  %v6630 = vpack.c.b16 %v5226, %v5222
  %v6631 = vpack.c.b16 %v5231, %v5227
  %v6632 = vpack.c.b16 %v5232, %v5228
  %v6633 = vpack.c.b16 %v5233, %v5229
  %v6634 = vpack.c.b16 %v5234, %v5230
  %v6635 = vpack.c.b16 %v5239, %v5235
  %v6636 = vpack.c.b16 %v5240, %v5236
  %v6637 = vpack.c.b16 %v5241, %v5237
  %v6638 = vpack.c.b16 %v5242, %v5238
  %v6639 = vpack.c.b16 %v5247, %v5243
  %v6640 = vpack.c.b16 %v5248, %v5244
  %v6641 = vpack.c.b16 %v5249, %v5245
  %v6642 = vpack.c.b16 %v5250, %v5246
  %v6643 = vpack.c.b16 %v5255, %v5251
  %v6644 = vpack.c.b16 %v5256, %v5252
  %v6645 = vpack.c.b16 %v5257, %v5253
  %v6646 = vpack.c.b16 %v5258, %v5254
  %v6647 = vpack.c.b16 %v5263, %v5259
  %v6648 = vpack.c.b16 %v5264, %v5260
  %v6649 = vpack.c.b16 %v5265, %v5261
  %v6650 = vpack.c.b16 %v5266, %v5262
  %v6651 = vpack.c.b16 %v5271, %v5267
  %v6652 = vpack.c.b16 %v5272, %v5268
  %v6653 = vpack.c.b16 %v5273, %v5269
  %v6654 = vpack.c.b16 %v5274, %v5270
  %v6655 = vpack.c.b16 %v5279, %v5275
  %v6656 = vpack.c.b16 %v5280, %v5276
  %v6657 = vpack.c.b16 %v5281, %v5277
  %v6658 = vpack.c.b16 %v5282, %v5278
  %v6659 = vpack.c.b16 %v5287, %v5283
  %v6660 = vpack.c.b16 %v5288, %v5284
  %v6661 = vpack.c.b16 %v5289, %v5285
  %v6662 = vpack.c.b16 %v5290, %v5286
  %v6663 = vpack.c.b16 %v5295, %v5291
  %v6664 = vpack.c.b16 %v5296, %v5292
  %v6665 = vpack.c.b16 %v5297, %v5293
  %v6666 = vpack.c.b16 %v5298, %v5294
  %v6667 = vpack.c.b16 %v5303, %v5299
  %v6668 = vpack.c.b16 %v5304, %v5300
  %v6669 = vpack.c.b16 %v5305, %v5301
  %v6670 = vpack.c.b16 %v5306, %v5302
  %v6671 = vpack.c.b16 %v5311, %v5307
  %v6672 = vpack.c.b16 %v5312, %v5308
  %v6673 = vpack.c.b16 %v5313, %v5309
  %v6674 = vpack.c.b16 %v5314, %v5310
  %v6675 = vpack.c.b16 %v5319, %v5315
  %v6676 = vpack.c.b16 %v5320, %v5316
  %v6677 = vpack.c.b16 %v5321, %v5317
  %v6678 = vpack.c.b16 %v5322, %v5318
  %v6679 = vpack.c.b16 %v5327, %v5323
  %v6680 = vpack.c.b16 %v5328, %v5324
  %v6681 = vpack.c.b16 %v5329, %v5325
  %v6682 = vpack.c.b16 %v5330, %v5326
  %v6683 = vpack.c.b16 %v5335, %v5331
  %v6684 = vpack.c.b16 %v5336, %v5332
  %v6685 = vpack.c.b16 %v5337, %v5333
  %v6686 = vpack.c.b16 %v5338, %v5334
  %v6687 = vpack.c.b16 %v5343, %v5339
  %v6688 = vpack.c.b16 %v5344, %v5340
  %v6689 = vpack.c.b16 %v5345, %v5341
  %v6690 = vpack.c.b16 %v5346, %v5342
  %v6691 = vpack.c.b16 %v5351, %v5347
  %v6692 = vpack.c.b16 %v5352, %v5348
  %v6693 = vpack.c.b16 %v5353, %v5349
  %v6694 = vpack.c.b16 %v5354, %v5350
  %v6695 = vpack.c.b16 %v5359, %v5355
  %v6696 = vpack.c.b16 %v5360, %v5356
  %v6697 = vpack.c.b16 %v5361, %v5357
  %v6698 = vpack.c.b16 %v5362, %v5358
  %v6699 = vpack.c.b16 %v5367, %v5363
  %v6700 = vpack.c.b16 %v5368, %v5364
  %v6701 = vpack.c.b16 %v5369, %v5365
  %v6702 = vpack.c.b16 %v5370, %v5366
  %v6703 = vpack.c.b16 %v5375, %v5371
  %v6704 = vpack.c.b16 %v5376, %v5372
  %v6705 = vpack.c.b16 %v5377, %v5373
  %v6706 = vpack.c.b16 %v5378, %v5374
  %v6707 = vpack.c.b16 %v5383, %v5379
  %v6708 = vpack.c.b16 %v5384, %v5380
  %v6709 = vpack.c.b16 %v5385, %v5381
  %v6710 = vpack.c.b16 %v5386, %v5382
  %v6711 = vpack.c.b16 %v5391, %v5387
  %v6712 = vpack.c.b16 %v5392, %v5388
  %v6713 = vpack.c.b16 %v5393, %v5389
  %v6714 = vpack.c.b16 %v5394, %v5390
  %v6715 = vpack.c.b16 %v5399, %v5395
  %v6716 = vpack.c.b16 %v5400, %v5396
  %v6717 = vpack.c.b16 %v5401, %v5397
  %v6718 = vpack.c.b16 %v5402, %v5398
  %v6719 = vpack.c.b16 %v5407, %v5403
  %v6720 = vpack.c.b16 %v5408, %v5404
  %v6721 = vpack.c.b16 %v5409, %v5405
  %v6722 = vpack.c.b16 %v5410, %v5406
  %v6723 = vpack.c.b16 %v5415, %v5411
  %v6724 = vpack.c.b16 %v5416, %v5412
  %v6725 = vpack.c.b16 %v5417, %v5413
  %v6726 = vpack.c.b16 %v5418, %v5414
  %v6727 = vpack.c.b16 %v5423, %v5419
  %v6728 = vpack.c.b16 %v5424, %v5420
  %v6729 = vpack.c.b16 %v5425, %v5421
  %v6730 = vpack.c.b16 %v5426, %v5422
  %v6731 = vpack.c.b16 %v5431, %v5427
  %v6732 = vpack.c.b16 %v5432, %v5428
  %v6733 = vpack.c.b16 %v5433, %v5429
  %v6734 = vpack.c.b16 %v5434, %v5430
  %v6735 = vpack.c.b16 %v5439, %v5435
  %v6736 = vpack.c.b16 %v5440, %v5436
  %v6737 = vpack.c.b16 %v5441, %v5437
  %v6738 = vpack.c.b16 %v5442, %v5438
  %v6739 = vpack.c.b16 %v5447, %v5443
  %v6740 = vpack.c.b16 %v5448, %v5444
  %v6741 = vpack.c.b16 %v5449, %v5445
  %v6742 = vpack.c.b16 %v5450, %v5446
  %v6743 = vpack.c.b16 %v5455, %v5451
  %v6744 = vpack.c.b16 %v5456, %v5452
  %v6745 = vpack.c.b16 %v5457, %v5453
  %v6746 = vpack.c.b16 %v5458, %v5454
  %v6747 = vpack.c.b16 %v5463, %v5459
  %v6748 = vpack.c.b16 %v5464, %v5460
  %v6749 = vpack.c.b16 %v5465, %v5461
  %v6750 = vpack.c.b16 %v5466, %v5462
  %v6751 = vpack.c.b16 %v5471, %v5467
  %v6752 = vpack.c.b16 %v5472, %v5468
  %v6753 = vpack.c.b16 %v5473, %v5469
  %v6754 = vpack.c.b16 %v5474, %v5470
  %v6755 = vpack.c.b16 %v5479, %v5475
  %v6756 = vpack.c.b16 %v5480, %v5476
  %v6757 = vpack.c.b16 %v5481, %v5477
  %v6758 = vpack.c.b16 %v5482, %v5478
  %v6759 = vpack.c.b16 %v5487, %v5483
  %v6760 = vpack.c.b16 %v5488, %v5484
  %v6761 = vpack.c.b16 %v5489, %v5485
  %v6762 = vpack.c.b16 %v5490, %v5486
  %v6763 = vpack.c.b16 %v5495, %v5491
  %v6764 = vpack.c.b16 %v5496, %v5492
  %v6765 = vpack.c.b16 %v5497, %v5493
  %v6766 = vpack.c.b16 %v5498, %v5494
  %v6767 = vpack.c.b16 %v5503, %v5499
  %v6768 = vpack.c.b16 %v5504, %v5500
  %v6769 = vpack.c.b16 %v5505, %v5501
  %v6770 = vpack.c.b16 %v5506, %v5502
  %v6771 = vpack.c.b16 %v5511, %v5507
  %v6772 = vpack.c.b16 %v5512, %v5508
  %v6773 = vpack.c.b16 %v5513, %v5509
  %v6774 = vpack.c.b16 %v5514, %v5510
  %v6775 = vpack.c.b16 %v5519, %v5515
  %v6776 = vpack.c.b16 %v5520, %v5516
  %v6777 = vpack.c.b16 %v5521, %v5517
  %v6778 = vpack.c.b16 %v5522, %v5518
  %v6779 = vpack.c.b16 %v5527, %v5523
  %v6780 = vpack.c.b16 %v5528, %v5524
  %v6781 = vpack.c.b16 %v5529, %v5525
  %v6782 = vpack.c.b16 %v5530, %v5526
  %v6783 = vpack.c.b16 %v5535, %v5531
  %v6784 = vpack.c.b16 %v5536, %v5532
  %v6785 = vpack.c.b16 %v5537, %v5533
  %v6786 = vpack.c.b16 %v5538, %v5534
  %v6787 = vpack.c.b16 %v5543, %v5539
  %v6788 = vpack.c.b16 %v5544, %v5540
  %v6789 = vpack.c.b16 %v5545, %v5541
  %v6790 = vpack.c.b16 %v5546, %v5542
  %v6791 = vpack.c.b16 %v5551, %v5547
  %v6792 = vpack.c.b16 %v5552, %v5548
  %v6793 = vpack.c.b16 %v5553, %v5549
  %v6794 = vpack.c.b16 %v5554, %v5550
  %v6795 = vpack.c.b16 %v5559, %v5555
  %v6796 = vpack.c.b16 %v5560, %v5556
  %v6797 = vpack.c.b16 %v5561, %v5557
  %v6798 = vpack.c.b16 %v5562, %v5558
  %v6799 = vpack.c.b16 %v5567, %v5563
  %v6800 = vpack.c.b16 %v5568, %v5564
  %v6801 = vpack.c.b16 %v5569, %v5565
  %v6802 = vpack.c.b16 %v5570, %v5566
  %v6803 = vpack.c.b16 %v5575, %v5571
  %v6804 = vpack.c.b16 %v5576, %v5572
  %v6805 = vpack.c.b16 %v5577, %v5573
  %v6806 = vpack.c.b16 %v5578, %v5574
  %v6807 = vpack.c.b16 %v5583, %v5579
  %v6808 = vpack.c.b16 %v5584, %v5580
  %v6809 = vpack.c.b16 %v5585, %v5581
  %v6810 = vpack.c.b16 %v5586, %v5582
  %v6811 = vpack.c.b16 %v5591, %v5587
  %v6812 = vpack.c.b16 %v5592, %v5588
  %v6813 = vpack.c.b16 %v5593, %v5589
  %v6814 = vpack.c.b16 %v5594, %v5590
  %v6815 = vpack.c.b16 %v5599, %v5595
  %v6816 = vpack.c.b16 %v5600, %v5596
  %v6817 = vpack.c.b16 %v5601, %v5597
  %v6818 = vpack.c.b16 %v5602, %v5598
  %v6819 = vpack.c.b16 %v5607, %v5603
  %v6820 = vpack.c.b16 %v5608, %v5604
  %v6821 = vpack.c.b16 %v5609, %v5605
  %v6822 = vpack.c.b16 %v5610, %v5606
  %v6823 = vpack.c.b16 %v5615, %v5611
  %v6824 = vpack.c.b16 %v5616, %v5612
  %v6825 = vpack.c.b16 %v5617, %v5613
  %v6826 = vpack.c.b16 %v5618, %v5614
  %v6827 = vpack.c.b16 %v5623, %v5619
  %v6828 = vpack.c.b16 %v5624, %v5620
  %v6829 = vpack.c.b16 %v5625, %v5621
  %v6830 = vpack.c.b16 %v5626, %v5622
  %v6831 = vpack.c.b16 %v5631, %v5627
  %v6832 = vpack.c.b16 %v5632, %v5628
  %v6833 = vpack.c.b16 %v5633, %v5629
  %v6834 = vpack.c.b16 %v5634, %v5630
  %v6835 = vpack.c.b16 %v5639, %v5635
  %v6836 = vpack.c.b16 %v5640, %v5636
  %v6837 = vpack.c.b16 %v5641, %v5637
  %v6838 = vpack.c.b16 %v5642, %v5638
  %v6839 = vpack.c.b16 %v5647, %v5643
  %v6840 = vpack.c.b16 %v5648, %v5644
  %v6841 = vpack.c.b16 %v5649, %v5645
  %v6842 = vpack.c.b16 %v5650, %v5646
  %v6843 = vpack.c.b16 %v5655, %v5651
  %v6844 = vpack.c.b16 %v5656, %v5652
  %v6845 = vpack.c.b16 %v5657, %v5653
  %v6846 = vpack.c.b16 %v5658, %v5654
  %v6847 = vpack.c.b16 %v5663, %v5659
  %v6848 = vpack.c.b16 %v5664, %v5660
  %v6849 = vpack.c.b16 %v5665, %v5661
  %v6850 = vpack.c.b16 %v5666, %v5662
  %v6851 = vpack.c.b16 %v5671, %v5667
  %v6852 = vpack.c.b16 %v5672, %v5668
  %v6853 = vpack.c.b16 %v5673, %v5669
  %v6854 = vpack.c.b16 %v5674, %v5670
  %v6855 = vpack.c.b16 %v5679, %v5675
  %v6856 = vpack.c.b16 %v5680, %v5676
  %v6857 = vpack.c.b16 %v5681, %v5677
  %v6858 = vpack.c.b16 %v5682, %v5678
  %v6859 = vpack.c.b16 %v5687, %v5683
  %v6860 = vpack.c.b16 %v5688, %v5684
  %v6861 = vpack.c.b16 %v5689, %v5685
  %v6862 = vpack.c.b16 %v5690, %v5686
  %v6863 = vpack.c.b16 %v5695, %v5691
  %v6864 = vpack.c.b16 %v5696, %v5692
  %v6865 = vpack.c.b16 %v5697, %v5693
  %v6866 = vpack.c.b16 %v5698, %v5694
  %v6867 = vpack.c.b16 %v5703, %v5699
  %v6868 = vpack.c.b16 %v5704, %v5700
  %v6869 = vpack.c.b16 %v5705, %v5701
  %v6870 = vpack.c.b16 %v5706, %v5702
  %v6871 = vpack.c.b16 %v5711, %v5707
  %v6872 = vpack.c.b16 %v5712, %v5708
  %v6873 = vpack.c.b16 %v5713, %v5709
  %v6874 = vpack.c.b16 %v5714, %v5710
  %v6875 = vpack.c.b16 %v5719, %v5715
  %v6876 = vpack.c.b16 %v5720, %v5716
  %v6877 = vpack.c.b16 %v5721, %v5717
  %v6878 = vpack.c.b16 %v5722, %v5718
  %v6879 = vpack.c.b16 %v5727, %v5723
  %v6880 = vpack.c.b16 %v5728, %v5724
  %v6881 = vpack.c.b16 %v5729, %v5725
  %v6882 = vpack.c.b16 %v5730, %v5726
  %8035 = vmatprep.subr.bf16.mxu0 %v5732
  %8036 = vmatpush1.bf16.msra.mxu0 %v5731
  %8037 = vmatprep.subr.bf16.mxu0 %v5736
  %8038 = vmatpush1.bf16.msra.mxu0 %v5735
  %8039 = vmatprep.subr.bf16.mxu0 %v5740
  %8040 = vmatpush1.bf16.msra.mxu0 %v5739
  %8041 = vmatprep.subr.bf16.mxu0 %v5744
  %8042 = vmatpush1.bf16.msra.mxu0 %v5743
  %8043 = vmatprep.subr.bf16.mxu0 %v5748
  %8044 = vmatpush1.bf16.msra.mxu0 %v5747
  %8045 = vmatprep.subr.bf16.mxu0 %v5752
  %8046 = vmatpush1.bf16.msra.mxu0 %v5751
  %8047 = vmatprep.subr.bf16.mxu0 %v5756
  %8048 = vmatpush1.bf16.msra.mxu0 %v5755
  %8049 = vmatprep.subr.bf16.mxu0 %v5760
  %8050 = vmatpush1.bf16.msra.mxu0 %v5759
  %8051 = vmatprep.subr.bf16.mxu0 %v5764
  %8052 = vmatpush1.bf16.msra.mxu0 %v5763
  %8053 = vmatprep.subr.bf16.mxu0 %v5768
  %8054 = vmatpush1.bf16.msra.mxu0 %v5767
  %8055 = vmatprep.subr.bf16.mxu0 %v5772
  %8056 = vmatpush1.bf16.msra.mxu0 %v5771
  %8057 = vmatprep.subr.bf16.mxu0 %v5776
  %8058 = vmatpush1.bf16.msra.mxu0 %v5775
  %8059 = vmatprep.subr.bf16.mxu0 %v5780
  %8060 = vmatpush1.bf16.msra.mxu0 %v5779
  %8061 = vmatprep.subr.bf16.mxu0 %v5784
  %8062 = vmatpush1.bf16.msra.mxu0 %v5783
  %8063 = vmatprep.subr.bf16.mxu0 %v5788
  %8064 = vmatpush1.bf16.msra.mxu0 %v5787
  %8065 = vmatprep.subr.bf16.mxu0 %v5792
  %8066 = vmatpush1.bf16.msra.mxu0 %v5791
  %8067 = vmatprep.mubr.bf16.mxu0 %v1916
  %8068 = vmatmul.mubr.bf16.gmra.mrb[0].mxu0 %v1915
  %v8069 = vpop.f32.mrb[0].mxu0
  %v8070 = vadd.f32 %v1358, %v8069
  %v8071 = vpop.f32.mrb[0].mxu0
  %v8072 = vadd.f32 %v1362, %v8071
  %v8073 = vpop.f32.mrb[0].mxu0
  %v8074 = vadd.f32 %v1358, %v8073
  %v8075 = vpop.f32.mrb[0].mxu0
  %v8076 = vadd.f32 %v1362, %v8075
  %8077 = vmatprep.mubr.bf16.mxu0 %v1952
  %8078 = vmatmul.mubr.bf16.gmra.mrb[0].mxu0 %v1951
  %v8079 = vpop.f32.mrb[0].mxu0
  %v8080 = vadd.f32 %v1358, %v8079
  %v8081 = vpop.f32.mrb[0].mxu0
  %v8082 = vadd.f32 %v1362, %v8081
  %v8083 = vpop.f32.mrb[0].mxu0
  %v8084 = vadd.f32 %v1358, %v8083
  %v8085 = vpop.f32.mrb[0].mxu0
  %v8086 = vadd.f32 %v1362, %v8085
  %8087 = vmatprep.mubr.bf16.mxu0 %v1988
  %8088 = vmatmul.mubr.bf16.gmra.mrb[0].mxu0 %v1987
  %v8089 = vpop.f32.mrb[0].mxu0
  %v8090 = vadd.f32 %v1358, %v8089
  %v8091 = vpop.f32.mrb[0].mxu0
  %v8092 = vadd.f32 %v1362, %v8091
  %v8093 = vpop.f32.mrb[0].mxu0
  %v8094 = vadd.f32 %v1358, %v8093
  %v8095 = vpop.f32.mrb[0].mxu0
  %v8096 = vadd.f32 %v1362, %v8095
  %8097 = vmatprep.mubr.bf16.mxu0 %v2024
  %8098 = vmatmul.mubr.bf16.gmra.mrb[0].mxu0 %v2023
  %v8099 = vpop.f32.mrb[0].mxu0
  %v8100 = vadd.f32 %v1358, %v8099
  %v8101 = vpop.f32.mrb[0].mxu0
  %v8102 = vadd.f32 %v1362, %v8101
  %v8103 = vpop.f32.mrb[0].mxu0
  %v8104 = vadd.f32 %v1358, %v8103
  %v8105 = vpop.f32.mrb[0].mxu0
  %v8106 = vadd.f32 %v1362, %v8105
  %8107 = vmatprep.mubr.bf16.mxu0 %v2060
  %8108 = vmatmul.mubr.bf16.gmra.mrb[0].mxu0 %v2059
  %v8109 = vpop.f32.mrb[0].mxu0
  %v8110 = vadd.f32 %v1358, %v8109
  %v8111 = vpop.f32.mrb[0].mxu0
  %v8112 = vadd.f32 %v1362, %v8111
  %v8113 = vpop.f32.mrb[0].mxu0
  %v8114 = vadd.f32 %v1358, %v8113
  %v8115 = vpop.f32.mrb[0].mxu0
  %v8116 = vadd.f32 %v1362, %v8115
  %8117 = vdwg.mxu0
  %8118 = vmatprep.subr.bf16.mxu0 %v5796
  %8119 = vmatpush1.bf16.msra.mxu0 %v5795
  %8120 = vmatprep.subr.bf16.mxu0 %v5800
  %8121 = vmatpush1.bf16.msra.mxu0 %v5799
  %8122 = vmatprep.subr.bf16.mxu0 %v5804
  %8123 = vmatpush1.bf16.msra.mxu0 %v5803
  %8124 = vmatprep.subr.bf16.mxu0 %v5808
  %8125 = vmatpush1.bf16.msra.mxu0 %v5807
  %8126 = vmatprep.subr.bf16.mxu0 %v5812
  %8127 = vmatpush1.bf16.msra.mxu0 %v5811
  %8128 = vmatprep.subr.bf16.mxu0 %v5816
  %8129 = vmatpush1.bf16.msra.mxu0 %v5815
  %8130 = vmatprep.subr.bf16.mxu0 %v5820
  %8131 = vmatpush1.bf16.msra.mxu0 %v5819
  %8132 = vmatprep.subr.bf16.mxu0 %v5824
  %8133 = vmatpush1.bf16.msra.mxu0 %v5823
  %8134 = vmatprep.subr.bf16.mxu0 %v5828
  %8135 = vmatpush1.bf16.msra.mxu0 %v5827
  %8136 = vmatprep.subr.bf16.mxu0 %v5832
  %8137 = vmatpush1.bf16.msra.mxu0 %v5831
  %8138 = vmatprep.subr.bf16.mxu0 %v5836
  %8139 = vmatpush1.bf16.msra.mxu0 %v5835
  %8140 = vmatprep.subr.bf16.mxu0 %v5840
  %8141 = vmatpush1.bf16.msra.mxu0 %v5839
  %8142 = vmatprep.subr.bf16.mxu0 %v5844
  %8143 = vmatpush1.bf16.msra.mxu0 %v5843
  %8144 = vmatprep.subr.bf16.mxu0 %v5848
  %8145 = vmatpush1.bf16.msra.mxu0 %v5847
  %8146 = vmatprep.subr.bf16.mxu0 %v5852
  %8147 = vmatpush1.bf16.msra.mxu0 %v5851
  %8148 = vmatprep.subr.bf16.mxu0 %v5856
  %8149 = vmatpush1.bf16.msra.mxu0 %v5855
  %8150 = vmatprep.mubr.bf16.mxu0 %v1918
  %8151 = vmatmul.mubr.bf16.gmra.mrb[0].mxu0 %v1917
  %v8152 = vpop.f32.mrb[0].mxu0
  %v8153 = vadd.f32 %v8070, %v8152
  %v8154 = vpop.f32.mrb[0].mxu0
  %v8155 = vadd.f32 %v8072, %v8154
  %v8156 = vpop.f32.mrb[0].mxu0
  %v8157 = vadd.f32 %v8074, %v8156
  %v8158 = vpop.f32.mrb[0].mxu0
  %v8159 = vadd.f32 %v8076, %v8158
  %8160 = vmatprep.mubr.bf16.mxu0 %v1954
  %8161 = vmatmul.mubr.bf16.gmra.mrb[0].mxu0 %v1953
  %v8162 = vpop.f32.mrb[0].mxu0
  %v8163 = vadd.f32 %v8080, %v8162
  %v8164 = vpop.f32.mrb[0].mxu0
  %v8165 = vadd.f32 %v8082, %v8164
  %v8166 = vpop.f32.mrb[0].mxu0
  %v8167 = vadd.f32 %v8084, %v8166
  %v8168 = vpop.f32.mrb[0].mxu0
  %v8169 = vadd.f32 %v8086, %v8168
  %8170 = vmatprep.mubr.bf16.mxu0 %v1990
  %8171 = vmatmul.mubr.bf16.gmra.mrb[0].mxu0 %v1989
  %v8172 = vpop.f32.mrb[0].mxu0
  %v8173 = vadd.f32 %v8090, %v8172
  %v8174 = vpop.f32.mrb[0].mxu0
  %v8175 = vadd.f32 %v8092, %v8174
  %v8176 = vpop.f32.mrb[0].mxu0
  %v8177 = vadd.f32 %v8094, %v8176
  %v8178 = vpop.f32.mrb[0].mxu0
  %v8179 = vadd.f32 %v8096, %v8178
  %8180 = vmatprep.mubr.bf16.mxu0 %v2026
  %8181 = vmatmul.mubr.bf16.gmra.mrb[0].mxu0 %v2025
  %v8182 = vpop.f32.mrb[0].mxu0
  %v8183 = vadd.f32 %v8100, %v8182
  %v8184 = vpop.f32.mrb[0].mxu0
  %v8185 = vadd.f32 %v8102, %v8184
  %v8186 = vpop.f32.mrb[0].mxu0
  %v8187 = vadd.f32 %v8104, %v8186
  %v8188 = vpop.f32.mrb[0].mxu0
  %v8189 = vadd.f32 %v8106, %v8188
  %8190 = vmatprep.mubr.bf16.mxu0 %v2062
  %8191 = vmatmul.mubr.bf16.gmra.mrb[0].mxu0 %v2061
  %v8192 = vpop.f32.mrb[0].mxu0
  %v8193 = vadd.f32 %v8110, %v8192
  %v8194 = vpop.f32.mrb[0].mxu0
  %v8195 = vadd.f32 %v8112, %v8194
  %v8196 = vpop.f32.mrb[0].mxu0
  %v8197 = vadd.f32 %v8114, %v8196
  %v8198 = vpop.f32.mrb[0].mxu0
  %v8199 = vadd.f32 %v8116, %v8198
  %8200 = vdwg.mxu0
  %8201 = vmatprep.subr.bf16.mxu0 %v5860
  %8202 = vmatpush1.bf16.msra.mxu0 %v5859
  %8203 = vmatprep.subr.bf16.mxu0 %v5864
  %8204 = vmatpush1.bf16.msra.mxu0 %v5863
  %8205 = vmatprep.subr.bf16.mxu0 %v5868
  %8206 = vmatpush1.bf16.msra.mxu0 %v5867
  %8207 = vmatprep.subr.bf16.mxu0 %v5872
  %8208 = vmatpush1.bf16.msra.mxu0 %v5871
  %8209 = vmatprep.subr.bf16.mxu0 %v5876
  %8210 = vmatpush1.bf16.msra.mxu0 %v5875
  %8211 = vmatprep.subr.bf16.mxu0 %v5880
  %8212 = vmatpush1.bf16.msra.mxu0 %v5879
  %8213 = vmatprep.subr.bf16.mxu0 %v5884
  %8214 = vmatpush1.bf16.msra.mxu0 %v5883
  %8215 = vmatprep.subr.bf16.mxu0 %v5888
  %8216 = vmatpush1.bf16.msra.mxu0 %v5887
  %8217 = vmatprep.subr.bf16.mxu0 %v5892
  %8218 = vmatpush1.bf16.msra.mxu0 %v5891
  %8219 = vmatprep.subr.bf16.mxu0 %v5896
  %8220 = vmatpush1.bf16.msra.mxu0 %v5895
  %8221 = vmatprep.subr.bf16.mxu0 %v5900
  %8222 = vmatpush1.bf16.msra.mxu0 %v5899
  %8223 = vmatprep.subr.bf16.mxu0 %v5904
  %8224 = vmatpush1.bf16.msra.mxu0 %v5903
  %8225 = vmatprep.subr.bf16.mxu0 %v5908
  %8226 = vmatpush1.bf16.msra.mxu0 %v5907
  %8227 = vmatprep.subr.bf16.mxu0 %v5912
  %8228 = vmatpush1.bf16.msra.mxu0 %v5911
  %8229 = vmatprep.subr.bf16.mxu0 %v5916
  %8230 = vmatpush1.bf16.msra.mxu0 %v5915
  %8231 = vmatprep.subr.bf16.mxu0 %v5920
  %8232 = vmatpush1.bf16.msra.mxu0 %v5919
  %8233 = vmatprep.mubr.bf16.mxu0 %v1920
  %8234 = vmatmul.mubr.bf16.gmra.mrb[0].mxu0 %v1919
  %v8235 = vpop.f32.mrb[0].mxu0
  %v8236 = vadd.f32 %v8153, %v8235
  %v8237 = vpop.f32.mrb[0].mxu0
  %v8238 = vadd.f32 %v8155, %v8237
  %v8239 = vpop.f32.mrb[0].mxu0
  %v8240 = vadd.f32 %v8157, %v8239
  %v8241 = vpop.f32.mrb[0].mxu0
  %v8242 = vadd.f32 %v8159, %v8241
  %8243 = vmatprep.mubr.bf16.mxu0 %v1956
  %8244 = vmatmul.mubr.bf16.gmra.mrb[0].mxu0 %v1955
  %v8245 = vpop.f32.mrb[0].mxu0
  %v8246 = vadd.f32 %v8163, %v8245
  %v8247 = vpop.f32.mrb[0].mxu0
  %v8248 = vadd.f32 %v8165, %v8247
  %v8249 = vpop.f32.mrb[0].mxu0
  %v8250 = vadd.f32 %v8167, %v8249
  %v8251 = vpop.f32.mrb[0].mxu0
  %v8252 = vadd.f32 %v8169, %v8251
  %8253 = vmatprep.mubr.bf16.mxu0 %v1992
  %8254 = vmatmul.mubr.bf16.gmra.mrb[0].mxu0 %v1991
  %v8255 = vpop.f32.mrb[0].mxu0
  %v8256 = vadd.f32 %v8173, %v8255
  %v8257 = vpop.f32.mrb[0].mxu0
  %v8258 = vadd.f32 %v8175, %v8257
  %v8259 = vpop.f32.mrb[0].mxu0
  %v8260 = vadd.f32 %v8177, %v8259
  %v8261 = vpop.f32.mrb[0].mxu0
  %v8262 = vadd.f32 %v8179, %v8261
  %8263 = vmatprep.mubr.bf16.mxu0 %v2028
  %8264 = vmatmul.mubr.bf16.gmra.mrb[0].mxu0 %v2027
  %v8265 = vpop.f32.mrb[0].mxu0
  %v8266 = vadd.f32 %v8183, %v8265
  %v8267 = vpop.f32.mrb[0].mxu0
  %v8268 = vadd.f32 %v8185, %v8267
  %v8269 = vpop.f32.mrb[0].mxu0
  %v8270 = vadd.f32 %v8187, %v8269
  %v8271 = vpop.f32.mrb[0].mxu0
  %v8272 = vadd.f32 %v8189, %v8271
  %8273 = vmatprep.mubr.bf16.mxu0 %v2064
  %8274 = vmatmul.mubr.bf16.gmra.mrb[0].mxu0 %v2063
  %v8275 = vpop.f32.mrb[0].mxu0
  %v8276 = vadd.f32 %v8193, %v8275
  %v8277 = vpop.f32.mrb[0].mxu0
  %v8278 = vadd.f32 %v8195, %v8277
  %v8279 = vpop.f32.mrb[0].mxu0
  %v8280 = vadd.f32 %v8197, %v8279
  %v8281 = vpop.f32.mrb[0].mxu0
  %v8282 = vadd.f32 %v8199, %v8281
  %8283 = vdwg.mxu0
  %8284 = vmatprep.subr.bf16.mxu0 %v5924
  %8285 = vmatpush1.bf16.msra.mxu0 %v5923
  %8286 = vmatprep.subr.bf16.mxu0 %v5928
  %8287 = vmatpush1.bf16.msra.mxu0 %v5927
  %8288 = vmatprep.subr.bf16.mxu0 %v5932
  %8289 = vmatpush1.bf16.msra.mxu0 %v5931
  %8290 = vmatprep.subr.bf16.mxu0 %v5936
  %8291 = vmatpush1.bf16.msra.mxu0 %v5935
  %8292 = vmatprep.subr.bf16.mxu0 %v5940
  %8293 = vmatpush1.bf16.msra.mxu0 %v5939
  %8294 = vmatprep.subr.bf16.mxu0 %v5944
  %8295 = vmatpush1.bf16.msra.mxu0 %v5943
  %8296 = vmatprep.subr.bf16.mxu0 %v5948
  %8297 = vmatpush1.bf16.msra.mxu0 %v5947
  %8298 = vmatprep.subr.bf16.mxu0 %v5952
  %8299 = vmatpush1.bf16.msra.mxu0 %v5951
  %8300 = vmatprep.subr.bf16.mxu0 %v5956
  %8301 = vmatpush1.bf16.msra.mxu0 %v5955
  %8302 = vmatprep.subr.bf16.mxu0 %v5960
  %8303 = vmatpush1.bf16.msra.mxu0 %v5959
  %8304 = vmatprep.subr.bf16.mxu0 %v5964
  %8305 = vmatpush1.bf16.msra.mxu0 %v5963
  %8306 = vmatprep.subr.bf16.mxu0 %v5968
  %8307 = vmatpush1.bf16.msra.mxu0 %v5967
  %8308 = vmatprep.subr.bf16.mxu0 %v5972
  %8309 = vmatpush1.bf16.msra.mxu0 %v5971
  %8310 = vmatprep.subr.bf16.mxu0 %v5976
  %8311 = vmatpush1.bf16.msra.mxu0 %v5975
  %8312 = vmatprep.subr.bf16.mxu0 %v5980
  %8313 = vmatpush1.bf16.msra.mxu0 %v5979
  %8314 = vmatprep.subr.bf16.mxu0 %v5984
  %8315 = vmatpush1.bf16.msra.mxu0 %v5983
  %8316 = vmatprep.mubr.bf16.mxu0 %v1922
  %8317 = vmatmul.mubr.bf16.gmra.mrb[0].mxu0 %v1921
  %v8318 = vpop.f32.mrb[0].mxu0
  %v8319 = vadd.f32 %v8236, %v8318
  %v8320 = vpop.f32.mrb[0].mxu0
  %v8321 = vadd.f32 %v8238, %v8320
  %v8322 = vpop.f32.mrb[0].mxu0
  %v8323 = vadd.f32 %v8240, %v8322
  %v8324 = vpop.f32.mrb[0].mxu0
  %v8325 = vadd.f32 %v8242, %v8324
  %8326 = vmatprep.mubr.bf16.mxu0 %v1958
  %8327 = vmatmul.mubr.bf16.gmra.mrb[0].mxu0 %v1957
  %v8328 = vpop.f32.mrb[0].mxu0
  %v8329 = vadd.f32 %v8246, %v8328
  %v8330 = vpop.f32.mrb[0].mxu0
  %v8331 = vadd.f32 %v8248, %v8330
  %v8332 = vpop.f32.mrb[0].mxu0
  %v8333 = vadd.f32 %v8250, %v8332
  %v8334 = vpop.f32.mrb[0].mxu0
  %v8335 = vadd.f32 %v8252, %v8334
  %8336 = vmatprep.mubr.bf16.mxu0 %v1994
  %8337 = vmatmul.mubr.bf16.gmra.mrb[0].mxu0 %v1993
  %v8338 = vpop.f32.mrb[0].mxu0
  %v8339 = vadd.f32 %v8256, %v8338
  %v8340 = vpop.f32.mrb[0].mxu0
  %v8341 = vadd.f32 %v8258, %v8340
  %v8342 = vpop.f32.mrb[0].mxu0
  %v8343 = vadd.f32 %v8260, %v8342
  %v8344 = vpop.f32.mrb[0].mxu0
  %v8345 = vadd.f32 %v8262, %v8344
  %8346 = vmatprep.mubr.bf16.mxu0 %v2030
  %8347 = vmatmul.mubr.bf16.gmra.mrb[0].mxu0 %v2029
  %v8348 = vpop.f32.mrb[0].mxu0
  %v8349 = vadd.f32 %v8266, %v8348
  %v8350 = vpop.f32.mrb[0].mxu0
  %v8351 = vadd.f32 %v8268, %v8350
  %v8352 = vpop.f32.mrb[0].mxu0
  %v8353 = vadd.f32 %v8270, %v8352
  %v8354 = vpop.f32.mrb[0].mxu0
  %v8355 = vadd.f32 %v8272, %v8354
  %8356 = vmatprep.mubr.bf16.mxu0 %v2066
  %8357 = vmatmul.mubr.bf16.gmra.mrb[0].mxu0 %v2065
  %v8358 = vpop.f32.mrb[0].mxu0
  %v8359 = vadd.f32 %v8276, %v8358
  %v8360 = vpop.f32.mrb[0].mxu0
  %v8361 = vadd.f32 %v8278, %v8360
  %v8362 = vpop.f32.mrb[0].mxu0
  %v8363 = vadd.f32 %v8280, %v8362
  %v8364 = vpop.f32.mrb[0].mxu0
  %v8365 = vadd.f32 %v8282, %v8364
  %8366 = vdwg.mxu0
  %8367 = vmatprep.subr.bf16.mxu0 %v5988
  %8368 = vmatpush1.bf16.msra.mxu0 %v5987
  %8369 = vmatprep.subr.bf16.mxu0 %v5992
  %8370 = vmatpush1.bf16.msra.mxu0 %v5991
  %8371 = vmatprep.subr.bf16.mxu0 %v5996
  %8372 = vmatpush1.bf16.msra.mxu0 %v5995
  %8373 = vmatprep.subr.bf16.mxu0 %v6000
  %8374 = vmatpush1.bf16.msra.mxu0 %v5999
  %8375 = vmatprep.subr.bf16.mxu0 %v6004
  %8376 = vmatpush1.bf16.msra.mxu0 %v6003
  %8377 = vmatprep.subr.bf16.mxu0 %v6008
  %8378 = vmatpush1.bf16.msra.mxu0 %v6007
  %8379 = vmatprep.subr.bf16.mxu0 %v6012
  %8380 = vmatpush1.bf16.msra.mxu0 %v6011
  %8381 = vmatprep.subr.bf16.mxu0 %v6016
  %8382 = vmatpush1.bf16.msra.mxu0 %v6015
  %8383 = vmatprep.subr.bf16.mxu0 %v6020
  %8384 = vmatpush1.bf16.msra.mxu0 %v6019
  %8385 = vmatprep.subr.bf16.mxu0 %v6024
  %8386 = vmatpush1.bf16.msra.mxu0 %v6023
  %8387 = vmatprep.subr.bf16.mxu0 %v6028
  %8388 = vmatpush1.bf16.msra.mxu0 %v6027
  %8389 = vmatprep.subr.bf16.mxu0 %v6032
  %8390 = vmatpush1.bf16.msra.mxu0 %v6031
  %8391 = vmatprep.subr.bf16.mxu0 %v6036
  %8392 = vmatpush1.bf16.msra.mxu0 %v6035
  %8393 = vmatprep.subr.bf16.mxu0 %v6040
  %8394 = vmatpush1.bf16.msra.mxu0 %v6039
  %8395 = vmatprep.subr.bf16.mxu0 %v6044
  %8396 = vmatpush1.bf16.msra.mxu0 %v6043
  %8397 = vmatprep.subr.bf16.mxu0 %v6048
  %8398 = vmatpush1.bf16.msra.mxu0 %v6047
  %8399 = vmatprep.mubr.bf16.mxu0 %v1924
  %8400 = vmatmul.mubr.bf16.gmra.mrb[0].mxu0 %v1923
  %v8401 = vpop.f32.mrb[0].mxu0
  %v8402 = vadd.f32 %v8319, %v8401
  %v8403 = vpop.f32.mrb[0].mxu0
  %v8404 = vadd.f32 %v8321, %v8403
  %v8405 = vpop.f32.mrb[0].mxu0
  %v8406 = vadd.f32 %v8323, %v8405
  %v8407 = vpop.f32.mrb[0].mxu0
  %v8408 = vadd.f32 %v8325, %v8407
  %8409 = vmatprep.mubr.bf16.mxu0 %v1960
  %8410 = vmatmul.mubr.bf16.gmra.mrb[0].mxu0 %v1959
  %v8411 = vpop.f32.mrb[0].mxu0
  %v8412 = vadd.f32 %v8329, %v8411
  %v8413 = vpop.f32.mrb[0].mxu0
  %v8414 = vadd.f32 %v8331, %v8413
  %v8415 = vpop.f32.mrb[0].mxu0
  %v8416 = vadd.f32 %v8333, %v8415
  %v8417 = vpop.f32.mrb[0].mxu0
  %v8418 = vadd.f32 %v8335, %v8417
  %8419 = vmatprep.mubr.bf16.mxu0 %v1996
  %8420 = vmatmul.mubr.bf16.gmra.mrb[0].mxu0 %v1995
  %v8421 = vpop.f32.mrb[0].mxu0
  %v8422 = vadd.f32 %v8339, %v8421
  %v8423 = vpop.f32.mrb[0].mxu0
  %v8424 = vadd.f32 %v8341, %v8423
  %v8425 = vpop.f32.mrb[0].mxu0
  %v8426 = vadd.f32 %v8343, %v8425
  %v8427 = vpop.f32.mrb[0].mxu0
  %v8428 = vadd.f32 %v8345, %v8427
  %8429 = vmatprep.mubr.bf16.mxu0 %v2032
  %8430 = vmatmul.mubr.bf16.gmra.mrb[0].mxu0 %v2031
  %v8431 = vpop.f32.mrb[0].mxu0
  %v8432 = vadd.f32 %v8349, %v8431
  %v8433 = vpop.f32.mrb[0].mxu0
  %v8434 = vadd.f32 %v8351, %v8433
  %v8435 = vpop.f32.mrb[0].mxu0
  %v8436 = vadd.f32 %v8353, %v8435
  %v8437 = vpop.f32.mrb[0].mxu0
  %v8438 = vadd.f32 %v8355, %v8437
  %8439 = vmatprep.mubr.bf16.mxu0 %v2068
  %8440 = vmatmul.mubr.bf16.gmra.mrb[0].mxu0 %v2067
  %v8441 = vpop.f32.mrb[0].mxu0
  %v8442 = vadd.f32 %v8359, %v8441
  %v8443 = vpop.f32.mrb[0].mxu0
  %v8444 = vadd.f32 %v8361, %v8443
  %v8445 = vpop.f32.mrb[0].mxu0
  %v8446 = vadd.f32 %v8363, %v8445
  %v8447 = vpop.f32.mrb[0].mxu0
  %v8448 = vadd.f32 %v8365, %v8447
  %8449 = vdwg.mxu0
  %8450 = vmatprep.subr.bf16.mxu0 %v6052
  %8451 = vmatpush1.bf16.msra.mxu0 %v6051
  %8452 = vmatprep.subr.bf16.mxu0 %v6056
  %8453 = vmatpush1.bf16.msra.mxu0 %v6055
  %8454 = vmatprep.subr.bf16.mxu0 %v6060
  %8455 = vmatpush1.bf16.msra.mxu0 %v6059
  %8456 = vmatprep.subr.bf16.mxu0 %v6064
  %8457 = vmatpush1.bf16.msra.mxu0 %v6063
  %8458 = vmatprep.subr.bf16.mxu0 %v6068
  %8459 = vmatpush1.bf16.msra.mxu0 %v6067
  %8460 = vmatprep.subr.bf16.mxu0 %v6072
  %8461 = vmatpush1.bf16.msra.mxu0 %v6071
  %8462 = vmatprep.subr.bf16.mxu0 %v6076
  %8463 = vmatpush1.bf16.msra.mxu0 %v6075
  %8464 = vmatprep.subr.bf16.mxu0 %v6080
  %8465 = vmatpush1.bf16.msra.mxu0 %v6079
  %8466 = vmatprep.subr.bf16.mxu0 %v6084
  %8467 = vmatpush1.bf16.msra.mxu0 %v6083
  %8468 = vmatprep.subr.bf16.mxu0 %v6088
  %8469 = vmatpush1.bf16.msra.mxu0 %v6087
  %8470 = vmatprep.subr.bf16.mxu0 %v6092
  %8471 = vmatpush1.bf16.msra.mxu0 %v6091
  %8472 = vmatprep.subr.bf16.mxu0 %v6096
  %8473 = vmatpush1.bf16.msra.mxu0 %v6095
  %8474 = vmatprep.subr.bf16.mxu0 %v6100
  %8475 = vmatpush1.bf16.msra.mxu0 %v6099
  %8476 = vmatprep.subr.bf16.mxu0 %v6104
  %8477 = vmatpush1.bf16.msra.mxu0 %v6103
  %8478 = vmatprep.subr.bf16.mxu0 %v6108
  %8479 = vmatpush1.bf16.msra.mxu0 %v6107
  %8480 = vmatprep.subr.bf16.mxu0 %v6112
  %8481 = vmatpush1.bf16.msra.mxu0 %v6111
  %8482 = vmatprep.mubr.bf16.mxu0 %v1926
  %8483 = vmatmul.mubr.bf16.gmra.mrb[0].mxu0 %v1925
  %v8484 = vpop.f32.mrb[0].mxu0
  %v8485 = vadd.f32 %v8402, %v8484
  %v8486 = vpop.f32.mrb[0].mxu0
  %v8487 = vadd.f32 %v8404, %v8486
  %v8488 = vpop.f32.mrb[0].mxu0
  %v8489 = vadd.f32 %v8406, %v8488
  %v8490 = vpop.f32.mrb[0].mxu0
  %v8491 = vadd.f32 %v8408, %v8490
  %8492 = vmatprep.mubr.bf16.mxu0 %v1962
  %8493 = vmatmul.mubr.bf16.gmra.mrb[0].mxu0 %v1961
  %v8494 = vpop.f32.mrb[0].mxu0
  %v8495 = vadd.f32 %v8412, %v8494
  %v8496 = vpop.f32.mrb[0].mxu0
  %v8497 = vadd.f32 %v8414, %v8496
  %v8498 = vpop.f32.mrb[0].mxu0
  %v8499 = vadd.f32 %v8416, %v8498
  %v8500 = vpop.f32.mrb[0].mxu0
  %v8501 = vadd.f32 %v8418, %v8500
  %8502 = vmatprep.mubr.bf16.mxu0 %v1998
  %8503 = vmatmul.mubr.bf16.gmra.mrb[0].mxu0 %v1997
  %v8504 = vpop.f32.mrb[0].mxu0
  %v8505 = vadd.f32 %v8422, %v8504
  %v8506 = vpop.f32.mrb[0].mxu0
  %v8507 = vadd.f32 %v8424, %v8506
  %v8508 = vpop.f32.mrb[0].mxu0
  %v8509 = vadd.f32 %v8426, %v8508
  %v8510 = vpop.f32.mrb[0].mxu0
  %v8511 = vadd.f32 %v8428, %v8510
  %8512 = vmatprep.mubr.bf16.mxu0 %v2034
  %8513 = vmatmul.mubr.bf16.gmra.mrb[0].mxu0 %v2033
  %v8514 = vpop.f32.mrb[0].mxu0
  %v8515 = vadd.f32 %v8432, %v8514
  %v8516 = vpop.f32.mrb[0].mxu0
  %v8517 = vadd.f32 %v8434, %v8516
  %v8518 = vpop.f32.mrb[0].mxu0
  %v8519 = vadd.f32 %v8436, %v8518
  %v8520 = vpop.f32.mrb[0].mxu0
  %v8521 = vadd.f32 %v8438, %v8520
  %8522 = vmatprep.mubr.bf16.mxu0 %v2070
  %8523 = vmatmul.mubr.bf16.gmra.mrb[0].mxu0 %v2069
  %v8524 = vpop.f32.mrb[0].mxu0
  %v8525 = vadd.f32 %v8442, %v8524
  %v8526 = vpop.f32.mrb[0].mxu0
  %v8527 = vadd.f32 %v8444, %v8526
  %v8528 = vpop.f32.mrb[0].mxu0
  %v8529 = vadd.f32 %v8446, %v8528
  %v8530 = vpop.f32.mrb[0].mxu0
  %v8531 = vadd.f32 %v8448, %v8530
  %8532 = vdwg.mxu0
  %8533 = vmatprep.subr.bf16.mxu0 %v6116
  %8534 = vmatpush1.bf16.msra.mxu0 %v6115
  %8535 = vmatprep.subr.bf16.mxu0 %v6120
  %8536 = vmatpush1.bf16.msra.mxu0 %v6119
  %8537 = vmatprep.subr.bf16.mxu0 %v6124
  %8538 = vmatpush1.bf16.msra.mxu0 %v6123
  %8539 = vmatprep.subr.bf16.mxu0 %v6128
  %8540 = vmatpush1.bf16.msra.mxu0 %v6127
  %8541 = vmatprep.subr.bf16.mxu0 %v6132
  %8542 = vmatpush1.bf16.msra.mxu0 %v6131
  %8543 = vmatprep.subr.bf16.mxu0 %v6136
  %8544 = vmatpush1.bf16.msra.mxu0 %v6135
  %8545 = vmatprep.subr.bf16.mxu0 %v6140
  %8546 = vmatpush1.bf16.msra.mxu0 %v6139
  %8547 = vmatprep.subr.bf16.mxu0 %v6144
  %8548 = vmatpush1.bf16.msra.mxu0 %v6143
  %8549 = vmatprep.subr.bf16.mxu0 %v6148
  %8550 = vmatpush1.bf16.msra.mxu0 %v6147
  %8551 = vmatprep.subr.bf16.mxu0 %v6152
  %8552 = vmatpush1.bf16.msra.mxu0 %v6151
  %8553 = vmatprep.subr.bf16.mxu0 %v6156
  %8554 = vmatpush1.bf16.msra.mxu0 %v6155
  %8555 = vmatprep.subr.bf16.mxu0 %v6160
  %8556 = vmatpush1.bf16.msra.mxu0 %v6159
  %8557 = vmatprep.subr.bf16.mxu0 %v6164
  %8558 = vmatpush1.bf16.msra.mxu0 %v6163
  %8559 = vmatprep.subr.bf16.mxu0 %v6168
  %8560 = vmatpush1.bf16.msra.mxu0 %v6167
  %8561 = vmatprep.subr.bf16.mxu0 %v6172
  %8562 = vmatpush1.bf16.msra.mxu0 %v6171
  %8563 = vmatprep.subr.bf16.mxu0 %v6176
  %8564 = vmatpush1.bf16.msra.mxu0 %v6175
  %8565 = vmatprep.mubr.bf16.mxu0 %v1928
  %8566 = vmatmul.mubr.bf16.gmra.mrb[0].mxu0 %v1927
  %v8567 = vpop.f32.mrb[0].mxu0
  %v8568 = vadd.f32 %v8485, %v8567
  %v8569 = vpop.f32.mrb[0].mxu0
  %v8570 = vadd.f32 %v8487, %v8569
  %v8571 = vpop.f32.mrb[0].mxu0
  %v8572 = vadd.f32 %v8489, %v8571
  %v8573 = vpop.f32.mrb[0].mxu0
  %v8574 = vadd.f32 %v8491, %v8573
  %8575 = vmatprep.mubr.bf16.mxu0 %v1964
  %8576 = vmatmul.mubr.bf16.gmra.mrb[0].mxu0 %v1963
  %v8577 = vpop.f32.mrb[0].mxu0
  %v8578 = vadd.f32 %v8495, %v8577
  %v8579 = vpop.f32.mrb[0].mxu0
  %v8580 = vadd.f32 %v8497, %v8579
  %v8581 = vpop.f32.mrb[0].mxu0
  %v8582 = vadd.f32 %v8499, %v8581
  %v8583 = vpop.f32.mrb[0].mxu0
  %v8584 = vadd.f32 %v8501, %v8583
  %8585 = vmatprep.mubr.bf16.mxu0 %v2000
  %8586 = vmatmul.mubr.bf16.gmra.mrb[0].mxu0 %v1999
  %v8587 = vpop.f32.mrb[0].mxu0
  %v8588 = vadd.f32 %v8505, %v8587
  %v8589 = vpop.f32.mrb[0].mxu0
  %v8590 = vadd.f32 %v8507, %v8589
  %v8591 = vpop.f32.mrb[0].mxu0
  %v8592 = vadd.f32 %v8509, %v8591
  %v8593 = vpop.f32.mrb[0].mxu0
  %v8594 = vadd.f32 %v8511, %v8593
  %8595 = vmatprep.mubr.bf16.mxu0 %v2036
  %8596 = vmatmul.mubr.bf16.gmra.mrb[0].mxu0 %v2035
  %v8597 = vpop.f32.mrb[0].mxu0
  %v8598 = vadd.f32 %v8515, %v8597
  %v8599 = vpop.f32.mrb[0].mxu0
  %v8600 = vadd.f32 %v8517, %v8599
  %v8601 = vpop.f32.mrb[0].mxu0
  %v8602 = vadd.f32 %v8519, %v8601
  %v8603 = vpop.f32.mrb[0].mxu0
  %v8604 = vadd.f32 %v8521, %v8603
  %8605 = vmatprep.mubr.bf16.mxu0 %v2072
  %8606 = vmatmul.mubr.bf16.gmra.mrb[0].mxu0 %v2071
  %v8607 = vpop.f32.mrb[0].mxu0
  %v8608 = vadd.f32 %v8525, %v8607
  %v8609 = vpop.f32.mrb[0].mxu0
  %v8610 = vadd.f32 %v8527, %v8609
  %v8611 = vpop.f32.mrb[0].mxu0
  %v8612 = vadd.f32 %v8529, %v8611
  %v8613 = vpop.f32.mrb[0].mxu0
  %v8614 = vadd.f32 %v8531, %v8613
  %8615 = vdwg.mxu0
  %8616 = vmatprep.subr.bf16.mxu0 %v6180
  %8617 = vmatpush1.bf16.msra.mxu0 %v6179
  %8618 = vmatprep.subr.bf16.mxu0 %v6184
  %8619 = vmatpush1.bf16.msra.mxu0 %v6183
  %8620 = vmatprep.subr.bf16.mxu0 %v6188
  %8621 = vmatpush1.bf16.msra.mxu0 %v6187
  %8622 = vmatprep.subr.bf16.mxu0 %v6192
  %8623 = vmatpush1.bf16.msra.mxu0 %v6191
  %8624 = vmatprep.subr.bf16.mxu0 %v6196
  %8625 = vmatpush1.bf16.msra.mxu0 %v6195
  %8626 = vmatprep.subr.bf16.mxu0 %v6200
  %8627 = vmatpush1.bf16.msra.mxu0 %v6199
  %8628 = vmatprep.subr.bf16.mxu0 %v6204
  %8629 = vmatpush1.bf16.msra.mxu0 %v6203
  %8630 = vmatprep.subr.bf16.mxu0 %v6208
  %8631 = vmatpush1.bf16.msra.mxu0 %v6207
  %8632 = vmatprep.subr.bf16.mxu0 %v6212
  %8633 = vmatpush1.bf16.msra.mxu0 %v6211
  %8634 = vmatprep.subr.bf16.mxu0 %v6216
  %8635 = vmatpush1.bf16.msra.mxu0 %v6215
  %8636 = vmatprep.subr.bf16.mxu0 %v6220
  %8637 = vmatpush1.bf16.msra.mxu0 %v6219
  %8638 = vmatprep.subr.bf16.mxu0 %v6224
  %8639 = vmatpush1.bf16.msra.mxu0 %v6223
  %8640 = vmatprep.subr.bf16.mxu0 %v6228
  %8641 = vmatpush1.bf16.msra.mxu0 %v6227
  %8642 = vmatprep.subr.bf16.mxu0 %v6232
  %8643 = vmatpush1.bf16.msra.mxu0 %v6231
  %8644 = vmatprep.subr.bf16.mxu0 %v6236
  %8645 = vmatpush1.bf16.msra.mxu0 %v6235
  %8646 = vmatprep.subr.bf16.mxu0 %v6240
  %8647 = vmatpush1.bf16.msra.mxu0 %v6239
  %8648 = vmatprep.mubr.bf16.mxu0 %v1930
  %8649 = vmatmul.mubr.bf16.gmra.mrb[0].mxu0 %v1929
  %v8650 = vpop.f32.mrb[0].mxu0
  %v8651 = vadd.f32 %v8568, %v8650
  %v8652 = vpop.f32.mrb[0].mxu0
  %v8653 = vadd.f32 %v8570, %v8652
  %v8654 = vpop.f32.mrb[0].mxu0
  %v8655 = vadd.f32 %v8572, %v8654
  %v8656 = vpop.f32.mrb[0].mxu0
  %v8657 = vadd.f32 %v8574, %v8656
  %8658 = vmatprep.mubr.bf16.mxu0 %v1966
  %8659 = vmatmul.mubr.bf16.gmra.mrb[0].mxu0 %v1965
  %v8660 = vpop.f32.mrb[0].mxu0
  %v8661 = vadd.f32 %v8578, %v8660
  %v8662 = vpop.f32.mrb[0].mxu0
  %v8663 = vadd.f32 %v8580, %v8662
  %v8664 = vpop.f32.mrb[0].mxu0
  %v8665 = vadd.f32 %v8582, %v8664
  %v8666 = vpop.f32.mrb[0].mxu0
  %v8667 = vadd.f32 %v8584, %v8666
  %8668 = vmatprep.mubr.bf16.mxu0 %v2002
  %8669 = vmatmul.mubr.bf16.gmra.mrb[0].mxu0 %v2001
  %v8670 = vpop.f32.mrb[0].mxu0
  %v8671 = vadd.f32 %v8588, %v8670
  %v8672 = vpop.f32.mrb[0].mxu0
  %v8673 = vadd.f32 %v8590, %v8672
  %v8674 = vpop.f32.mrb[0].mxu0
  %v8675 = vadd.f32 %v8592, %v8674
  %v8676 = vpop.f32.mrb[0].mxu0
  %v8677 = vadd.f32 %v8594, %v8676
  %8678 = vmatprep.mubr.bf16.mxu0 %v2038
  %8679 = vmatmul.mubr.bf16.gmra.mrb[0].mxu0 %v2037
  %v8680 = vpop.f32.mrb[0].mxu0
  %v8681 = vadd.f32 %v8598, %v8680
  %v8682 = vpop.f32.mrb[0].mxu0
  %v8683 = vadd.f32 %v8600, %v8682
  %v8684 = vpop.f32.mrb[0].mxu0
  %v8685 = vadd.f32 %v8602, %v8684
  %v8686 = vpop.f32.mrb[0].mxu0
  %v8687 = vadd.f32 %v8604, %v8686
  %8688 = vmatprep.mubr.bf16.mxu0 %v2074
  %8689 = vmatmul.mubr.bf16.gmra.mrb[0].mxu0 %v2073
  %v8690 = vpop.f32.mrb[0].mxu0
  %v8691 = vadd.f32 %v8608, %v8690
  %v8692 = vpop.f32.mrb[0].mxu0
  %v8693 = vadd.f32 %v8610, %v8692
  %v8694 = vpop.f32.mrb[0].mxu0
  %v8695 = vadd.f32 %v8612, %v8694
  %v8696 = vpop.f32.mrb[0].mxu0
  %v8697 = vadd.f32 %v8614, %v8696
  %8698 = vdwg.mxu0
  %8699 = vmatprep.subr.bf16.mxu0 %v6244
  %8700 = vmatpush1.bf16.msra.mxu0 %v6243
  %8701 = vmatprep.subr.bf16.mxu0 %v6248
  %8702 = vmatpush1.bf16.msra.mxu0 %v6247
  %8703 = vmatprep.subr.bf16.mxu0 %v6252
  %8704 = vmatpush1.bf16.msra.mxu0 %v6251
  %8705 = vmatprep.subr.bf16.mxu0 %v6256
  %8706 = vmatpush1.bf16.msra.mxu0 %v6255
  %8707 = vmatprep.subr.bf16.mxu0 %v6260
  %8708 = vmatpush1.bf16.msra.mxu0 %v6259
  %8709 = vmatprep.subr.bf16.mxu0 %v6264
  %8710 = vmatpush1.bf16.msra.mxu0 %v6263
  %8711 = vmatprep.subr.bf16.mxu0 %v6268
  %8712 = vmatpush1.bf16.msra.mxu0 %v6267
  %8713 = vmatprep.subr.bf16.mxu0 %v6272
  %8714 = vmatpush1.bf16.msra.mxu0 %v6271
  %8715 = vmatprep.subr.bf16.mxu0 %v6276
  %8716 = vmatpush1.bf16.msra.mxu0 %v6275
  %8717 = vmatprep.subr.bf16.mxu0 %v6280
  %8718 = vmatpush1.bf16.msra.mxu0 %v6279
  %8719 = vmatprep.subr.bf16.mxu0 %v6284
  %8720 = vmatpush1.bf16.msra.mxu0 %v6283
  %8721 = vmatprep.subr.bf16.mxu0 %v6288
  %8722 = vmatpush1.bf16.msra.mxu0 %v6287
  %8723 = vmatprep.subr.bf16.mxu0 %v6292
  %8724 = vmatpush1.bf16.msra.mxu0 %v6291
  %8725 = vmatprep.subr.bf16.mxu0 %v6296
  %8726 = vmatpush1.bf16.msra.mxu0 %v6295
  %8727 = vmatprep.subr.bf16.mxu0 %v6300
  %8728 = vmatpush1.bf16.msra.mxu0 %v6299
  %8729 = vmatprep.subr.bf16.mxu0 %v6304
  %8730 = vmatpush1.bf16.msra.mxu0 %v6303
  %8731 = vmatprep.mubr.bf16.mxu0 %v1932
  %8732 = vmatmul.mubr.bf16.gmra.mrb[0].mxu0 %v1931
  %v8733 = vpop.f32.mrb[0].mxu0
  %v8734 = vadd.f32 %v8651, %v8733
  %v8735 = vpop.f32.mrb[0].mxu0
  %v8736 = vadd.f32 %v8653, %v8735
  %v8737 = vpop.f32.mrb[0].mxu0
  %v8738 = vadd.f32 %v8655, %v8737
  %v8739 = vpop.f32.mrb[0].mxu0
  %v8740 = vadd.f32 %v8657, %v8739
  %8741 = vmatprep.mubr.bf16.mxu0 %v1968
  %8742 = vmatmul.mubr.bf16.gmra.mrb[0].mxu0 %v1967
  %v8743 = vpop.f32.mrb[0].mxu0
  %v8744 = vadd.f32 %v8661, %v8743
  %v8745 = vpop.f32.mrb[0].mxu0
  %v8746 = vadd.f32 %v8663, %v8745
  %v8747 = vpop.f32.mrb[0].mxu0
  %v8748 = vadd.f32 %v8665, %v8747
  %v8749 = vpop.f32.mrb[0].mxu0
  %v8750 = vadd.f32 %v8667, %v8749
  %8751 = vmatprep.mubr.bf16.mxu0 %v2004
  %8752 = vmatmul.mubr.bf16.gmra.mrb[0].mxu0 %v2003
  %v8753 = vpop.f32.mrb[0].mxu0
  %v8754 = vadd.f32 %v8671, %v8753
  %v8755 = vpop.f32.mrb[0].mxu0
  %v8756 = vadd.f32 %v8673, %v8755
  %v8757 = vpop.f32.mrb[0].mxu0
  %v8758 = vadd.f32 %v8675, %v8757
  %v8759 = vpop.f32.mrb[0].mxu0
  %v8760 = vadd.f32 %v8677, %v8759
  %8761 = vmatprep.mubr.bf16.mxu0 %v2040
  %8762 = vmatmul.mubr.bf16.gmra.mrb[0].mxu0 %v2039
  %v8763 = vpop.f32.mrb[0].mxu0
  %v8764 = vadd.f32 %v8681, %v8763
  %v8765 = vpop.f32.mrb[0].mxu0
  %v8766 = vadd.f32 %v8683, %v8765
  %v8767 = vpop.f32.mrb[0].mxu0
  %v8768 = vadd.f32 %v8685, %v8767
  %v8769 = vpop.f32.mrb[0].mxu0
  %v8770 = vadd.f32 %v8687, %v8769
  %8771 = vmatprep.mubr.bf16.mxu0 %v2076
  %8772 = vmatmul.mubr.bf16.gmra.mrb[0].mxu0 %v2075
  %v8773 = vpop.f32.mrb[0].mxu0
  %v8774 = vadd.f32 %v8691, %v8773
  %v8775 = vpop.f32.mrb[0].mxu0
  %v8776 = vadd.f32 %v8693, %v8775
  %v8777 = vpop.f32.mrb[0].mxu0
  %v8778 = vadd.f32 %v8695, %v8777
  %v8779 = vpop.f32.mrb[0].mxu0
  %v8780 = vadd.f32 %v8697, %v8779
  %8781 = vdwg.mxu0
  %8782 = vmatprep.subr.bf16.mxu0 %v6308
  %8783 = vmatpush1.bf16.msra.mxu0 %v6307
  %8784 = vmatprep.subr.bf16.mxu0 %v6312
  %8785 = vmatpush1.bf16.msra.mxu0 %v6311
  %8786 = vmatprep.subr.bf16.mxu0 %v6316
  %8787 = vmatpush1.bf16.msra.mxu0 %v6315
  %8788 = vmatprep.subr.bf16.mxu0 %v6320
  %8789 = vmatpush1.bf16.msra.mxu0 %v6319
  %8790 = vmatprep.subr.bf16.mxu0 %v6324
  %8791 = vmatpush1.bf16.msra.mxu0 %v6323
  %8792 = vmatprep.subr.bf16.mxu0 %v6328
  %8793 = vmatpush1.bf16.msra.mxu0 %v6327
  %8794 = vmatprep.subr.bf16.mxu0 %v6332
  %8795 = vmatpush1.bf16.msra.mxu0 %v6331
  %8796 = vmatprep.subr.bf16.mxu0 %v6336
  %8797 = vmatpush1.bf16.msra.mxu0 %v6335
  %8798 = vmatprep.subr.bf16.mxu0 %v6340
  %8799 = vmatpush1.bf16.msra.mxu0 %v6339
  %8800 = vmatprep.subr.bf16.mxu0 %v6344
  %8801 = vmatpush1.bf16.msra.mxu0 %v6343
  %8802 = vmatprep.subr.bf16.mxu0 %v6348
  %8803 = vmatpush1.bf16.msra.mxu0 %v6347
  %8804 = vmatprep.subr.bf16.mxu0 %v6352
  %8805 = vmatpush1.bf16.msra.mxu0 %v6351
  %8806 = vmatprep.subr.bf16.mxu0 %v6356
  %8807 = vmatpush1.bf16.msra.mxu0 %v6355
  %8808 = vmatprep.subr.bf16.mxu0 %v6360
  %8809 = vmatpush1.bf16.msra.mxu0 %v6359
  %8810 = vmatprep.subr.bf16.mxu0 %v6364
  %8811 = vmatpush1.bf16.msra.mxu0 %v6363
  %8812 = vmatprep.subr.bf16.mxu0 %v6368
  %8813 = vmatpush1.bf16.msra.mxu0 %v6367
  %8814 = vmatprep.mubr.bf16.mxu0 %v1934
  %8815 = vmatmul.mubr.bf16.gmra.mrb[0].mxu0 %v1933
  %v8816 = vpop.f32.mrb[0].mxu0
  %v8817 = vadd.f32 %v8734, %v8816
  %v8818 = vpop.f32.mrb[0].mxu0
  %v8819 = vadd.f32 %v8736, %v8818
  %v8820 = vpop.f32.mrb[0].mxu0
  %v8821 = vadd.f32 %v8738, %v8820
  %v8822 = vpop.f32.mrb[0].mxu0
  %v8823 = vadd.f32 %v8740, %v8822
  %8824 = vmatprep.mubr.bf16.mxu0 %v1970
  %8825 = vmatmul.mubr.bf16.gmra.mrb[0].mxu0 %v1969
  %v8826 = vpop.f32.mrb[0].mxu0
  %v8827 = vadd.f32 %v8744, %v8826
  %v8828 = vpop.f32.mrb[0].mxu0
  %v8829 = vadd.f32 %v8746, %v8828
  %v8830 = vpop.f32.mrb[0].mxu0
  %v8831 = vadd.f32 %v8748, %v8830
  %v8832 = vpop.f32.mrb[0].mxu0
  %v8833 = vadd.f32 %v8750, %v8832
  %8834 = vmatprep.mubr.bf16.mxu0 %v2006
  %8835 = vmatmul.mubr.bf16.gmra.mrb[0].mxu0 %v2005
  %v8836 = vpop.f32.mrb[0].mxu0
  %v8837 = vadd.f32 %v8754, %v8836
  %v8838 = vpop.f32.mrb[0].mxu0
  %v8839 = vadd.f32 %v8756, %v8838
  %v8840 = vpop.f32.mrb[0].mxu0
  %v8841 = vadd.f32 %v8758, %v8840
  %v8842 = vpop.f32.mrb[0].mxu0
  %v8843 = vadd.f32 %v8760, %v8842
  %8844 = vmatprep.mubr.bf16.mxu0 %v2042
  %8845 = vmatmul.mubr.bf16.gmra.mrb[0].mxu0 %v2041
  %v8846 = vpop.f32.mrb[0].mxu0
  %v8847 = vadd.f32 %v8764, %v8846
  %v8848 = vpop.f32.mrb[0].mxu0
  %v8849 = vadd.f32 %v8766, %v8848
  %v8850 = vpop.f32.mrb[0].mxu0
  %v8851 = vadd.f32 %v8768, %v8850
  %v8852 = vpop.f32.mrb[0].mxu0
  %v8853 = vadd.f32 %v8770, %v8852
  %8854 = vmatprep.mubr.bf16.mxu0 %v2078
  %8855 = vmatmul.mubr.bf16.gmra.mrb[0].mxu0 %v2077
  %v8856 = vpop.f32.mrb[0].mxu0
  %v8857 = vadd.f32 %v8774, %v8856
  %v8858 = vpop.f32.mrb[0].mxu0
  %v8859 = vadd.f32 %v8776, %v8858
  %v8860 = vpop.f32.mrb[0].mxu0
  %v8861 = vadd.f32 %v8778, %v8860
  %v8862 = vpop.f32.mrb[0].mxu0
  %v8863 = vadd.f32 %v8780, %v8862
  %8864 = vdwg.mxu0
  %8865 = vmatprep.subr.bf16.mxu0 %v6372
  %8866 = vmatpush1.bf16.msra.mxu0 %v6371
  %8867 = vmatprep.subr.bf16.mxu0 %v6376
  %8868 = vmatpush1.bf16.msra.mxu0 %v6375
  %8869 = vmatprep.subr.bf16.mxu0 %v6380
  %8870 = vmatpush1.bf16.msra.mxu0 %v6379
  %8871 = vmatprep.subr.bf16.mxu0 %v6384
  %8872 = vmatpush1.bf16.msra.mxu0 %v6383
  %8873 = vmatprep.subr.bf16.mxu0 %v6388
  %8874 = vmatpush1.bf16.msra.mxu0 %v6387
  %8875 = vmatprep.subr.bf16.mxu0 %v6392
  %8876 = vmatpush1.bf16.msra.mxu0 %v6391
  %8877 = vmatprep.subr.bf16.mxu0 %v6396
  %8878 = vmatpush1.bf16.msra.mxu0 %v6395
  %8879 = vmatprep.subr.bf16.mxu0 %v6400
  %8880 = vmatpush1.bf16.msra.mxu0 %v6399
  %8881 = vmatprep.subr.bf16.mxu0 %v6404
  %8882 = vmatpush1.bf16.msra.mxu0 %v6403
  %8883 = vmatprep.subr.bf16.mxu0 %v6408
  %8884 = vmatpush1.bf16.msra.mxu0 %v6407
  %8885 = vmatprep.subr.bf16.mxu0 %v6412
  %8886 = vmatpush1.bf16.msra.mxu0 %v6411
  %8887 = vmatprep.subr.bf16.mxu0 %v6416
  %8888 = vmatpush1.bf16.msra.mxu0 %v6415
  %8889 = vmatprep.subr.bf16.mxu0 %v6420
  %8890 = vmatpush1.bf16.msra.mxu0 %v6419
  %8891 = vmatprep.subr.bf16.mxu0 %v6424
  %8892 = vmatpush1.bf16.msra.mxu0 %v6423
  %8893 = vmatprep.subr.bf16.mxu0 %v6428
  %8894 = vmatpush1.bf16.msra.mxu0 %v6427
  %8895 = vmatprep.subr.bf16.mxu0 %v6432
  %8896 = vmatpush1.bf16.msra.mxu0 %v6431
  %8897 = vmatprep.mubr.bf16.mxu0 %v1936
  %8898 = vmatmul.mubr.bf16.gmra.mrb[0].mxu0 %v1935
  %v8899 = vpop.f32.mrb[0].mxu0
  %v8900 = vadd.f32 %v8817, %v8899
  %v8901 = vpop.f32.mrb[0].mxu0
  %v8902 = vadd.f32 %v8819, %v8901
  %v8903 = vpop.f32.mrb[0].mxu0
  %v8904 = vadd.f32 %v8821, %v8903
  %v8905 = vpop.f32.mrb[0].mxu0
  %v8906 = vadd.f32 %v8823, %v8905
  %8907 = vmatprep.mubr.bf16.mxu0 %v1972
  %8908 = vmatmul.mubr.bf16.gmra.mrb[0].mxu0 %v1971
  %v8909 = vpop.f32.mrb[0].mxu0
  %v8910 = vadd.f32 %v8827, %v8909
  %v8911 = vpop.f32.mrb[0].mxu0
  %v8912 = vadd.f32 %v8829, %v8911
  %v8913 = vpop.f32.mrb[0].mxu0
  %v8914 = vadd.f32 %v8831, %v8913
  %v8915 = vpop.f32.mrb[0].mxu0
  %v8916 = vadd.f32 %v8833, %v8915
  %8917 = vmatprep.mubr.bf16.mxu0 %v2008
  %8918 = vmatmul.mubr.bf16.gmra.mrb[0].mxu0 %v2007
  %v8919 = vpop.f32.mrb[0].mxu0
  %v8920 = vadd.f32 %v8837, %v8919
  %v8921 = vpop.f32.mrb[0].mxu0
  %v8922 = vadd.f32 %v8839, %v8921
  %v8923 = vpop.f32.mrb[0].mxu0
  %v8924 = vadd.f32 %v8841, %v8923
  %v8925 = vpop.f32.mrb[0].mxu0
  %v8926 = vadd.f32 %v8843, %v8925
  %8927 = vmatprep.mubr.bf16.mxu0 %v2044
  %8928 = vmatmul.mubr.bf16.gmra.mrb[0].mxu0 %v2043
  %v8929 = vpop.f32.mrb[0].mxu0
  %v8930 = vadd.f32 %v8847, %v8929
  %v8931 = vpop.f32.mrb[0].mxu0
  %v8932 = vadd.f32 %v8849, %v8931
  %v8933 = vpop.f32.mrb[0].mxu0
  %v8934 = vadd.f32 %v8851, %v8933
  %v8935 = vpop.f32.mrb[0].mxu0
  %v8936 = vadd.f32 %v8853, %v8935
  %8937 = vmatprep.mubr.bf16.mxu0 %v2080
  %8938 = vmatmul.mubr.bf16.gmra.mrb[0].mxu0 %v2079
  %v8939 = vpop.f32.mrb[0].mxu0
  %v8940 = vadd.f32 %v8857, %v8939
  %v8941 = vpop.f32.mrb[0].mxu0
  %v8942 = vadd.f32 %v8859, %v8941
  %v8943 = vpop.f32.mrb[0].mxu0
  %v8944 = vadd.f32 %v8861, %v8943
  %v8945 = vpop.f32.mrb[0].mxu0
  %v8946 = vadd.f32 %v8863, %v8945
  %8947 = vdwg.mxu0
  %8948 = vmatprep.subr.bf16.mxu0 %v6436
  %8949 = vmatpush1.bf16.msra.mxu0 %v6435
  %8950 = vmatprep.subr.bf16.mxu0 %v6440
  %8951 = vmatpush1.bf16.msra.mxu0 %v6439
  %8952 = vmatprep.subr.bf16.mxu0 %v6444
  %8953 = vmatpush1.bf16.msra.mxu0 %v6443
  %8954 = vmatprep.subr.bf16.mxu0 %v6448
  %8955 = vmatpush1.bf16.msra.mxu0 %v6447
  %8956 = vmatprep.subr.bf16.mxu0 %v6452
  %8957 = vmatpush1.bf16.msra.mxu0 %v6451
  %8958 = vmatprep.subr.bf16.mxu0 %v6456
  %8959 = vmatpush1.bf16.msra.mxu0 %v6455
  %8960 = vmatprep.subr.bf16.mxu0 %v6460
  %8961 = vmatpush1.bf16.msra.mxu0 %v6459
  %8962 = vmatprep.subr.bf16.mxu0 %v6464
  %8963 = vmatpush1.bf16.msra.mxu0 %v6463
  %8964 = vmatprep.subr.bf16.mxu0 %v6468
  %8965 = vmatpush1.bf16.msra.mxu0 %v6467
  %8966 = vmatprep.subr.bf16.mxu0 %v6472
  %8967 = vmatpush1.bf16.msra.mxu0 %v6471
  %8968 = vmatprep.subr.bf16.mxu0 %v6476
  %8969 = vmatpush1.bf16.msra.mxu0 %v6475
  %8970 = vmatprep.subr.bf16.mxu0 %v6480
  %8971 = vmatpush1.bf16.msra.mxu0 %v6479
  %8972 = vmatprep.subr.bf16.mxu0 %v6484
  %8973 = vmatpush1.bf16.msra.mxu0 %v6483
  %8974 = vmatprep.subr.bf16.mxu0 %v6488
  %8975 = vmatpush1.bf16.msra.mxu0 %v6487
  %8976 = vmatprep.subr.bf16.mxu0 %v6492
  %8977 = vmatpush1.bf16.msra.mxu0 %v6491
  %8978 = vmatprep.subr.bf16.mxu0 %v6496
  %8979 = vmatpush1.bf16.msra.mxu0 %v6495
  %8980 = vmatprep.mubr.bf16.mxu0 %v1938
  %8981 = vmatmul.mubr.bf16.gmra.mrb[0].mxu0 %v1937
  %v8982 = vpop.f32.mrb[0].mxu0
  %v8983 = vadd.f32 %v8900, %v8982
  %v8984 = vpop.f32.mrb[0].mxu0
  %v8985 = vadd.f32 %v8902, %v8984
  %v8986 = vpop.f32.mrb[0].mxu0
  %v8987 = vadd.f32 %v8904, %v8986
  %v8988 = vpop.f32.mrb[0].mxu0
  %v8989 = vadd.f32 %v8906, %v8988
  %8990 = vmatprep.mubr.bf16.mxu0 %v1974
  %8991 = vmatmul.mubr.bf16.gmra.mrb[0].mxu0 %v1973
  %v8992 = vpop.f32.mrb[0].mxu0
  %v8993 = vadd.f32 %v8910, %v8992
  %v8994 = vpop.f32.mrb[0].mxu0
  %v8995 = vadd.f32 %v8912, %v8994
  %v8996 = vpop.f32.mrb[0].mxu0
  %v8997 = vadd.f32 %v8914, %v8996
  %v8998 = vpop.f32.mrb[0].mxu0
  %v8999 = vadd.f32 %v8916, %v8998
  %9000 = vmatprep.mubr.bf16.mxu0 %v2010
  %9001 = vmatmul.mubr.bf16.gmra.mrb[0].mxu0 %v2009
  %v9002 = vpop.f32.mrb[0].mxu0
  %v9003 = vadd.f32 %v8920, %v9002
  %v9004 = vpop.f32.mrb[0].mxu0
  %v9005 = vadd.f32 %v8922, %v9004
  %v9006 = vpop.f32.mrb[0].mxu0
  %v9007 = vadd.f32 %v8924, %v9006
  %v9008 = vpop.f32.mrb[0].mxu0
  %v9009 = vadd.f32 %v8926, %v9008
  %9010 = vmatprep.mubr.bf16.mxu0 %v2046
  %9011 = vmatmul.mubr.bf16.gmra.mrb[0].mxu0 %v2045
  %v9012 = vpop.f32.mrb[0].mxu0
  %v9013 = vadd.f32 %v8930, %v9012
  %v9014 = vpop.f32.mrb[0].mxu0
  %v9015 = vadd.f32 %v8932, %v9014
  %v9016 = vpop.f32.mrb[0].mxu0
  %v9017 = vadd.f32 %v8934, %v9016
  %v9018 = vpop.f32.mrb[0].mxu0
  %v9019 = vadd.f32 %v8936, %v9018
  %9020 = vmatprep.mubr.bf16.mxu0 %v2082
  %9021 = vmatmul.mubr.bf16.gmra.mrb[0].mxu0 %v2081
  %v9022 = vpop.f32.mrb[0].mxu0
  %v9023 = vadd.f32 %v8940, %v9022
  %v9024 = vpop.f32.mrb[0].mxu0
  %v9025 = vadd.f32 %v8942, %v9024
  %v9026 = vpop.f32.mrb[0].mxu0
  %v9027 = vadd.f32 %v8944, %v9026
  %v9028 = vpop.f32.mrb[0].mxu0
  %v9029 = vadd.f32 %v8946, %v9028
  %9030 = vdwg.mxu0
  %9031 = vmatprep.subr.bf16.mxu0 %v6500
  %9032 = vmatpush1.bf16.msra.mxu0 %v6499
  %9033 = vmatprep.subr.bf16.mxu0 %v6504
  %9034 = vmatpush1.bf16.msra.mxu0 %v6503
  %9035 = vmatprep.subr.bf16.mxu0 %v6508
  %9036 = vmatpush1.bf16.msra.mxu0 %v6507
  %9037 = vmatprep.subr.bf16.mxu0 %v6512
  %9038 = vmatpush1.bf16.msra.mxu0 %v6511
  %9039 = vmatprep.subr.bf16.mxu0 %v6516
  %9040 = vmatpush1.bf16.msra.mxu0 %v6515
  %9041 = vmatprep.subr.bf16.mxu0 %v6520
  %9042 = vmatpush1.bf16.msra.mxu0 %v6519
  %9043 = vmatprep.subr.bf16.mxu0 %v6524
  %9044 = vmatpush1.bf16.msra.mxu0 %v6523
  %9045 = vmatprep.subr.bf16.mxu0 %v6528
  %9046 = vmatpush1.bf16.msra.mxu0 %v6527
  %9047 = vmatprep.subr.bf16.mxu0 %v6532
  %9048 = vmatpush1.bf16.msra.mxu0 %v6531
  %9049 = vmatprep.subr.bf16.mxu0 %v6536
  %9050 = vmatpush1.bf16.msra.mxu0 %v6535
  %9051 = vmatprep.subr.bf16.mxu0 %v6540
  %9052 = vmatpush1.bf16.msra.mxu0 %v6539
  %9053 = vmatprep.subr.bf16.mxu0 %v6544
  %9054 = vmatpush1.bf16.msra.mxu0 %v6543
  %9055 = vmatprep.subr.bf16.mxu0 %v6548
  %9056 = vmatpush1.bf16.msra.mxu0 %v6547
  %9057 = vmatprep.subr.bf16.mxu0 %v6552
  %9058 = vmatpush1.bf16.msra.mxu0 %v6551
  %9059 = vmatprep.subr.bf16.mxu0 %v6556
  %9060 = vmatpush1.bf16.msra.mxu0 %v6555
  %9061 = vmatprep.subr.bf16.mxu0 %v6560
  %9062 = vmatpush1.bf16.msra.mxu0 %v6559
  %9063 = vmatprep.mubr.bf16.mxu0 %v1940
  %9064 = vmatmul.mubr.bf16.gmra.mrb[0].mxu0 %v1939
  %v9065 = vpop.f32.mrb[0].mxu0
  %v9066 = vadd.f32 %v8983, %v9065
  %v9067 = vpop.f32.mrb[0].mxu0
  %v9068 = vadd.f32 %v8985, %v9067
  %v9069 = vpop.f32.mrb[0].mxu0
  %v9070 = vadd.f32 %v8987, %v9069
  %v9071 = vpop.f32.mrb[0].mxu0
  %v9072 = vadd.f32 %v8989, %v9071
  %9073 = vmatprep.mubr.bf16.mxu0 %v1976
  %9074 = vmatmul.mubr.bf16.gmra.mrb[0].mxu0 %v1975
  %v9075 = vpop.f32.mrb[0].mxu0
  %v9076 = vadd.f32 %v8993, %v9075
  %v9077 = vpop.f32.mrb[0].mxu0
  %v9078 = vadd.f32 %v8995, %v9077
  %v9079 = vpop.f32.mrb[0].mxu0
  %v9080 = vadd.f32 %v8997, %v9079
  %v9081 = vpop.f32.mrb[0].mxu0
  %v9082 = vadd.f32 %v8999, %v9081
  %9083 = vmatprep.mubr.bf16.mxu0 %v2012
  %9084 = vmatmul.mubr.bf16.gmra.mrb[0].mxu0 %v2011
  %v9085 = vpop.f32.mrb[0].mxu0
  %v9086 = vadd.f32 %v9003, %v9085
  %v9087 = vpop.f32.mrb[0].mxu0
  %v9088 = vadd.f32 %v9005, %v9087
  %v9089 = vpop.f32.mrb[0].mxu0
  %v9090 = vadd.f32 %v9007, %v9089
  %v9091 = vpop.f32.mrb[0].mxu0
  %v9092 = vadd.f32 %v9009, %v9091
  %9093 = vmatprep.mubr.bf16.mxu0 %v2048
  %9094 = vmatmul.mubr.bf16.gmra.mrb[0].mxu0 %v2047
  %v9095 = vpop.f32.mrb[0].mxu0
  %v9096 = vadd.f32 %v9013, %v9095
  %v9097 = vpop.f32.mrb[0].mxu0
  %v9098 = vadd.f32 %v9015, %v9097
  %v9099 = vpop.f32.mrb[0].mxu0
  %v9100 = vadd.f32 %v9017, %v9099
  %v9101 = vpop.f32.mrb[0].mxu0
  %v9102 = vadd.f32 %v9019, %v9101
  %9103 = vmatprep.mubr.bf16.mxu0 %v2084
  %9104 = vmatmul.mubr.bf16.gmra.mrb[0].mxu0 %v2083
  %v9105 = vpop.f32.mrb[0].mxu0
  %v9106 = vadd.f32 %v9023, %v9105
  %v9107 = vpop.f32.mrb[0].mxu0
  %v9108 = vadd.f32 %v9025, %v9107
  %v9109 = vpop.f32.mrb[0].mxu0
  %v9110 = vadd.f32 %v9027, %v9109
  %v9111 = vpop.f32.mrb[0].mxu0
  %v9112 = vadd.f32 %v9029, %v9111
  %9113 = vdwg.mxu0
  %9114 = vmatprep.subr.bf16.mxu0 %v6564
  %9115 = vmatpush1.bf16.msra.mxu0 %v6563
  %9116 = vmatprep.subr.bf16.mxu0 %v6568
  %9117 = vmatpush1.bf16.msra.mxu0 %v6567
  %9118 = vmatprep.subr.bf16.mxu0 %v6572
  %9119 = vmatpush1.bf16.msra.mxu0 %v6571
  %9120 = vmatprep.subr.bf16.mxu0 %v6576
  %9121 = vmatpush1.bf16.msra.mxu0 %v6575
  %9122 = vmatprep.subr.bf16.mxu0 %v6580
  %9123 = vmatpush1.bf16.msra.mxu0 %v6579
  %9124 = vmatprep.subr.bf16.mxu0 %v6584
  %9125 = vmatpush1.bf16.msra.mxu0 %v6583
  %9126 = vmatprep.subr.bf16.mxu0 %v6588
  %9127 = vmatpush1.bf16.msra.mxu0 %v6587
  %9128 = vmatprep.subr.bf16.mxu0 %v6592
  %9129 = vmatpush1.bf16.msra.mxu0 %v6591
  %9130 = vmatprep.subr.bf16.mxu0 %v6596
  %9131 = vmatpush1.bf16.msra.mxu0 %v6595
  %9132 = vmatprep.subr.bf16.mxu0 %v6600
  %9133 = vmatpush1.bf16.msra.mxu0 %v6599
  %9134 = vmatprep.subr.bf16.mxu0 %v6604
  %9135 = vmatpush1.bf16.msra.mxu0 %v6603
  %9136 = vmatprep.subr.bf16.mxu0 %v6608
  %9137 = vmatpush1.bf16.msra.mxu0 %v6607
  %9138 = vmatprep.subr.bf16.mxu0 %v6612
  %9139 = vmatpush1.bf16.msra.mxu0 %v6611
  %9140 = vmatprep.subr.bf16.mxu0 %v6616
  %9141 = vmatpush1.bf16.msra.mxu0 %v6615
  %9142 = vmatprep.subr.bf16.mxu0 %v6620
  %9143 = vmatpush1.bf16.msra.mxu0 %v6619
  %9144 = vmatprep.subr.bf16.mxu0 %v6624
  %9145 = vmatpush1.bf16.msra.mxu0 %v6623
  %9146 = vmatprep.mubr.bf16.mxu0 %v1942
  %9147 = vmatmul.mubr.bf16.gmra.mrb[0].mxu0 %v1941
  %v9148 = vpop.f32.mrb[0].mxu0
  %v9149 = vadd.f32 %v9066, %v9148
  %v9150 = vpop.f32.mrb[0].mxu0
  %v9151 = vadd.f32 %v9068, %v9150
  %v9152 = vpop.f32.mrb[0].mxu0
  %v9153 = vadd.f32 %v9070, %v9152
  %v9154 = vpop.f32.mrb[0].mxu0
  %v9155 = vadd.f32 %v9072, %v9154
  %9156 = vmatprep.mubr.bf16.mxu0 %v1978
  %9157 = vmatmul.mubr.bf16.gmra.mrb[0].mxu0 %v1977
  %v9158 = vpop.f32.mrb[0].mxu0
  %v9159 = vadd.f32 %v9076, %v9158
  %v9160 = vpop.f32.mrb[0].mxu0
  %v9161 = vadd.f32 %v9078, %v9160
  %v9162 = vpop.f32.mrb[0].mxu0
  %v9163 = vadd.f32 %v9080, %v9162
  %v9164 = vpop.f32.mrb[0].mxu0
  %v9165 = vadd.f32 %v9082, %v9164
  %9166 = vmatprep.mubr.bf16.mxu0 %v2014
  %9167 = vmatmul.mubr.bf16.gmra.mrb[0].mxu0 %v2013
  %v9168 = vpop.f32.mrb[0].mxu0
  %v9169 = vadd.f32 %v9086, %v9168
  %v9170 = vpop.f32.mrb[0].mxu0
  %v9171 = vadd.f32 %v9088, %v9170
  %v9172 = vpop.f32.mrb[0].mxu0
  %v9173 = vadd.f32 %v9090, %v9172
  %v9174 = vpop.f32.mrb[0].mxu0
  %v9175 = vadd.f32 %v9092, %v9174
  %9176 = vmatprep.mubr.bf16.mxu0 %v2050
  %9177 = vmatmul.mubr.bf16.gmra.mrb[0].mxu0 %v2049
  %v9178 = vpop.f32.mrb[0].mxu0
  %v9179 = vadd.f32 %v9096, %v9178
  %v9180 = vpop.f32.mrb[0].mxu0
  %v9181 = vadd.f32 %v9098, %v9180
  %v9182 = vpop.f32.mrb[0].mxu0
  %v9183 = vadd.f32 %v9100, %v9182
  %v9184 = vpop.f32.mrb[0].mxu0
  %v9185 = vadd.f32 %v9102, %v9184
  %9186 = vmatprep.mubr.bf16.mxu0 %v2086
  %9187 = vmatmul.mubr.bf16.gmra.mrb[0].mxu0 %v2085
  %v9188 = vpop.f32.mrb[0].mxu0
  %v9189 = vadd.f32 %v9106, %v9188
  %v9190 = vpop.f32.mrb[0].mxu0
  %v9191 = vadd.f32 %v9108, %v9190
  %v9192 = vpop.f32.mrb[0].mxu0
  %v9193 = vadd.f32 %v9110, %v9192
  %v9194 = vpop.f32.mrb[0].mxu0
  %v9195 = vadd.f32 %v9112, %v9194
  %9196 = vdwg.mxu0
  %9197 = vmatprep.subr.bf16.mxu0 %v6628
  %9198 = vmatpush1.bf16.msra.mxu0 %v6627
  %9199 = vmatprep.subr.bf16.mxu0 %v6632
  %9200 = vmatpush1.bf16.msra.mxu0 %v6631
  %9201 = vmatprep.subr.bf16.mxu0 %v6636
  %9202 = vmatpush1.bf16.msra.mxu0 %v6635
  %9203 = vmatprep.subr.bf16.mxu0 %v6640
  %9204 = vmatpush1.bf16.msra.mxu0 %v6639
  %9205 = vmatprep.subr.bf16.mxu0 %v6644
  %9206 = vmatpush1.bf16.msra.mxu0 %v6643
  %9207 = vmatprep.subr.bf16.mxu0 %v6648
  %9208 = vmatpush1.bf16.msra.mxu0 %v6647
  %9209 = vmatprep.subr.bf16.mxu0 %v6652
  %9210 = vmatpush1.bf16.msra.mxu0 %v6651
  %9211 = vmatprep.subr.bf16.mxu0 %v6656
  %9212 = vmatpush1.bf16.msra.mxu0 %v6655
  %9213 = vmatprep.subr.bf16.mxu0 %v6660
  %9214 = vmatpush1.bf16.msra.mxu0 %v6659
  %9215 = vmatprep.subr.bf16.mxu0 %v6664
  %9216 = vmatpush1.bf16.msra.mxu0 %v6663
  %9217 = vmatprep.subr.bf16.mxu0 %v6668
  %9218 = vmatpush1.bf16.msra.mxu0 %v6667
  %9219 = vmatprep.subr.bf16.mxu0 %v6672
  %9220 = vmatpush1.bf16.msra.mxu0 %v6671
  %9221 = vmatprep.subr.bf16.mxu0 %v6676
  %9222 = vmatpush1.bf16.msra.mxu0 %v6675
  %9223 = vmatprep.subr.bf16.mxu0 %v6680
  %9224 = vmatpush1.bf16.msra.mxu0 %v6679
  %9225 = vmatprep.subr.bf16.mxu0 %v6684
  %9226 = vmatpush1.bf16.msra.mxu0 %v6683
  %9227 = vmatprep.subr.bf16.mxu0 %v6688
  %9228 = vmatpush1.bf16.msra.mxu0 %v6687
  %9229 = vmatprep.mubr.bf16.mxu0 %v1944
  %9230 = vmatmul.mubr.bf16.gmra.mrb[0].mxu0 %v1943
  %v9231 = vpop.f32.mrb[0].mxu0
  %v9232 = vadd.f32 %v9149, %v9231
  %v9233 = vpop.f32.mrb[0].mxu0
  %v9234 = vadd.f32 %v9151, %v9233
  %v9235 = vpop.f32.mrb[0].mxu0
  %v9236 = vadd.f32 %v9153, %v9235
  %v9237 = vpop.f32.mrb[0].mxu0
  %v9238 = vadd.f32 %v9155, %v9237
  %9239 = vmatprep.mubr.bf16.mxu0 %v1980
  %9240 = vmatmul.mubr.bf16.gmra.mrb[0].mxu0 %v1979
  %v9241 = vpop.f32.mrb[0].mxu0
  %v9242 = vadd.f32 %v9159, %v9241
  %v9243 = vpop.f32.mrb[0].mxu0
  %v9244 = vadd.f32 %v9161, %v9243
  %v9245 = vpop.f32.mrb[0].mxu0
  %v9246 = vadd.f32 %v9163, %v9245
  %v9247 = vpop.f32.mrb[0].mxu0
  %v9248 = vadd.f32 %v9165, %v9247
  %9249 = vmatprep.mubr.bf16.mxu0 %v2016
  %9250 = vmatmul.mubr.bf16.gmra.mrb[0].mxu0 %v2015
  %v9251 = vpop.f32.mrb[0].mxu0
  %v9252 = vadd.f32 %v9169, %v9251
  %v9253 = vpop.f32.mrb[0].mxu0
  %v9254 = vadd.f32 %v9171, %v9253
  %v9255 = vpop.f32.mrb[0].mxu0
  %v9256 = vadd.f32 %v9173, %v9255
  %v9257 = vpop.f32.mrb[0].mxu0
  %v9258 = vadd.f32 %v9175, %v9257
  %9259 = vmatprep.mubr.bf16.mxu0 %v2052
  %9260 = vmatmul.mubr.bf16.gmra.mrb[0].mxu0 %v2051
  %v9261 = vpop.f32.mrb[0].mxu0
  %v9262 = vadd.f32 %v9179, %v9261
  %v9263 = vpop.f32.mrb[0].mxu0
  %v9264 = vadd.f32 %v9181, %v9263
  %v9265 = vpop.f32.mrb[0].mxu0
  %v9266 = vadd.f32 %v9183, %v9265
  %v9267 = vpop.f32.mrb[0].mxu0
  %v9268 = vadd.f32 %v9185, %v9267
  %9269 = vmatprep.mubr.bf16.mxu0 %v2088
  %9270 = vmatmul.mubr.bf16.gmra.mrb[0].mxu0 %v2087
  %v9271 = vpop.f32.mrb[0].mxu0
  %v9272 = vadd.f32 %v9189, %v9271
  %v9273 = vpop.f32.mrb[0].mxu0
  %v9274 = vadd.f32 %v9191, %v9273
  %v9275 = vpop.f32.mrb[0].mxu0
  %v9276 = vadd.f32 %v9193, %v9275
  %v9277 = vpop.f32.mrb[0].mxu0
  %v9278 = vadd.f32 %v9195, %v9277
  %9279 = vdwg.mxu0
  %9280 = vmatprep.subr.bf16.mxu0 %v6692
  %9281 = vmatpush1.bf16.msra.mxu0 %v6691
  %9282 = vmatprep.subr.bf16.mxu0 %v6696
  %9283 = vmatpush1.bf16.msra.mxu0 %v6695
  %9284 = vmatprep.subr.bf16.mxu0 %v6700
  %9285 = vmatpush1.bf16.msra.mxu0 %v6699
  %9286 = vmatprep.subr.bf16.mxu0 %v6704
  %9287 = vmatpush1.bf16.msra.mxu0 %v6703
  %9288 = vmatprep.subr.bf16.mxu0 %v6708
  %9289 = vmatpush1.bf16.msra.mxu0 %v6707
  %9290 = vmatprep.subr.bf16.mxu0 %v6712
  %9291 = vmatpush1.bf16.msra.mxu0 %v6711
  %9292 = vmatprep.subr.bf16.mxu0 %v6716
  %9293 = vmatpush1.bf16.msra.mxu0 %v6715
  %9294 = vmatprep.subr.bf16.mxu0 %v6720
  %9295 = vmatpush1.bf16.msra.mxu0 %v6719
  %9296 = vmatprep.subr.bf16.mxu0 %v6724
  %9297 = vmatpush1.bf16.msra.mxu0 %v6723
  %9298 = vmatprep.subr.bf16.mxu0 %v6728
  %9299 = vmatpush1.bf16.msra.mxu0 %v6727
  %9300 = vmatprep.subr.bf16.mxu0 %v6732
  %9301 = vmatpush1.bf16.msra.mxu0 %v6731
  %9302 = vmatprep.subr.bf16.mxu0 %v6736
  %9303 = vmatpush1.bf16.msra.mxu0 %v6735
  %9304 = vmatprep.subr.bf16.mxu0 %v6740
  %9305 = vmatpush1.bf16.msra.mxu0 %v6739
  %9306 = vmatprep.subr.bf16.mxu0 %v6744
  %9307 = vmatpush1.bf16.msra.mxu0 %v6743
  %9308 = vmatprep.subr.bf16.mxu0 %v6748
  %9309 = vmatpush1.bf16.msra.mxu0 %v6747
  %9310 = vmatprep.subr.bf16.mxu0 %v6752
  %9311 = vmatpush1.bf16.msra.mxu0 %v6751
  %9312 = vmatprep.mubr.bf16.mxu0 %v1946
  %9313 = vmatmul.mubr.bf16.gmra.mrb[0].mxu0 %v1945
  %v9314 = vpop.f32.mrb[0].mxu0
  %v9315 = vadd.f32 %v9232, %v9314
  %v9316 = vpop.f32.mrb[0].mxu0
  %v9317 = vadd.f32 %v9234, %v9316
  %v9318 = vpop.f32.mrb[0].mxu0
  %v9319 = vadd.f32 %v9236, %v9318
  %v9320 = vpop.f32.mrb[0].mxu0
  %v9321 = vadd.f32 %v9238, %v9320
  %9322 = vmatprep.mubr.bf16.mxu0 %v1982
  %9323 = vmatmul.mubr.bf16.gmra.mrb[0].mxu0 %v1981
  %v9324 = vpop.f32.mrb[0].mxu0
  %v9325 = vadd.f32 %v9242, %v9324
  %v9326 = vpop.f32.mrb[0].mxu0
  %v9327 = vadd.f32 %v9244, %v9326
  %v9328 = vpop.f32.mrb[0].mxu0
  %v9329 = vadd.f32 %v9246, %v9328
  %v9330 = vpop.f32.mrb[0].mxu0
  %v9331 = vadd.f32 %v9248, %v9330
  %9332 = vmatprep.mubr.bf16.mxu0 %v2018
  %9333 = vmatmul.mubr.bf16.gmra.mrb[0].mxu0 %v2017
  %v9334 = vpop.f32.mrb[0].mxu0
  %v9335 = vadd.f32 %v9252, %v9334
  %v9336 = vpop.f32.mrb[0].mxu0
  %v9337 = vadd.f32 %v9254, %v9336
  %v9338 = vpop.f32.mrb[0].mxu0
  %v9339 = vadd.f32 %v9256, %v9338
  %v9340 = vpop.f32.mrb[0].mxu0
  %v9341 = vadd.f32 %v9258, %v9340
  %9342 = vmatprep.mubr.bf16.mxu0 %v2054
  %9343 = vmatmul.mubr.bf16.gmra.mrb[0].mxu0 %v2053
  %v9344 = vpop.f32.mrb[0].mxu0
  %v9345 = vadd.f32 %v9262, %v9344
  %v9346 = vpop.f32.mrb[0].mxu0
  %v9347 = vadd.f32 %v9264, %v9346
  %v9348 = vpop.f32.mrb[0].mxu0
  %v9349 = vadd.f32 %v9266, %v9348
  %v9350 = vpop.f32.mrb[0].mxu0
  %v9351 = vadd.f32 %v9268, %v9350
  %9352 = vmatprep.mubr.bf16.mxu0 %v2090
  %9353 = vmatmul.mubr.bf16.gmra.mrb[0].mxu0 %v2089
  %v9354 = vpop.f32.mrb[0].mxu0
  %v9355 = vadd.f32 %v9272, %v9354
  %v9356 = vpop.f32.mrb[0].mxu0
  %v9357 = vadd.f32 %v9274, %v9356
  %v9358 = vpop.f32.mrb[0].mxu0
  %v9359 = vadd.f32 %v9276, %v9358
  %v9360 = vpop.f32.mrb[0].mxu0
  %v9361 = vadd.f32 %v9278, %v9360
  %9362 = vdwg.mxu0
  %9363 = vmatprep.subr.bf16.mxu0 %v6756
  %9364 = vmatpush1.bf16.msra.mxu0 %v6755
  %9365 = vmatprep.subr.bf16.mxu0 %v6760
  %9366 = vmatpush1.bf16.msra.mxu0 %v6759
  %9367 = vmatprep.subr.bf16.mxu0 %v6764
  %9368 = vmatpush1.bf16.msra.mxu0 %v6763
  %9369 = vmatprep.subr.bf16.mxu0 %v6768
  %9370 = vmatpush1.bf16.msra.mxu0 %v6767
  %9371 = vmatprep.subr.bf16.mxu0 %v6772
  %9372 = vmatpush1.bf16.msra.mxu0 %v6771
  %9373 = vmatprep.subr.bf16.mxu0 %v6776
  %9374 = vmatpush1.bf16.msra.mxu0 %v6775
  %9375 = vmatprep.subr.bf16.mxu0 %v6780
  %9376 = vmatpush1.bf16.msra.mxu0 %v6779
  %9377 = vmatprep.subr.bf16.mxu0 %v6784
  %9378 = vmatpush1.bf16.msra.mxu0 %v6783
  %9379 = vmatprep.subr.bf16.mxu0 %v6788
  %9380 = vmatpush1.bf16.msra.mxu0 %v6787
  %9381 = vmatprep.subr.bf16.mxu0 %v6792
  %9382 = vmatpush1.bf16.msra.mxu0 %v6791
  %9383 = vmatprep.subr.bf16.mxu0 %v6796
  %9384 = vmatpush1.bf16.msra.mxu0 %v6795
  %9385 = vmatprep.subr.bf16.mxu0 %v6800
  %9386 = vmatpush1.bf16.msra.mxu0 %v6799
  %9387 = vmatprep.subr.bf16.mxu0 %v6804
  %9388 = vmatpush1.bf16.msra.mxu0 %v6803
  %9389 = vmatprep.subr.bf16.mxu0 %v6808
  %9390 = vmatpush1.bf16.msra.mxu0 %v6807
  %9391 = vmatprep.subr.bf16.mxu0 %v6812
  %9392 = vmatpush1.bf16.msra.mxu0 %v6811
  %9393 = vmatprep.subr.bf16.mxu0 %v6816
  %9394 = vmatpush1.bf16.msra.mxu0 %v6815
  %9395 = vmatprep.mubr.bf16.mxu0 %v1948
  %9396 = vmatmul.mubr.bf16.gmra.mrb[0].mxu0 %v1947
  %v9397 = vpop.f32.mrb[0].mxu0
  %v9398 = vadd.f32 %v9315, %v9397
  %v9399 = vpop.f32.mrb[0].mxu0
  %v9400 = vadd.f32 %v9317, %v9399
  %v9401 = vpop.f32.mrb[0].mxu0
  %v9402 = vadd.f32 %v9319, %v9401
  %v9403 = vpop.f32.mrb[0].mxu0
  %v9404 = vadd.f32 %v9321, %v9403
  %9405 = vmatprep.mubr.bf16.mxu0 %v1984
  %9406 = vmatmul.mubr.bf16.gmra.mrb[0].mxu0 %v1983
  %v9407 = vpop.f32.mrb[0].mxu0
  %v9408 = vadd.f32 %v9325, %v9407
  %v9409 = vpop.f32.mrb[0].mxu0
  %v9410 = vadd.f32 %v9327, %v9409
  %v9411 = vpop.f32.mrb[0].mxu0
  %v9412 = vadd.f32 %v9329, %v9411
  %v9413 = vpop.f32.mrb[0].mxu0
  %v9414 = vadd.f32 %v9331, %v9413
  %9415 = vmatprep.mubr.bf16.mxu0 %v2020
  %9416 = vmatmul.mubr.bf16.gmra.mrb[0].mxu0 %v2019
  %v9417 = vpop.f32.mrb[0].mxu0
  %v9418 = vadd.f32 %v9335, %v9417
  %v9419 = vpop.f32.mrb[0].mxu0
  %v9420 = vadd.f32 %v9337, %v9419
  %v9421 = vpop.f32.mrb[0].mxu0
  %v9422 = vadd.f32 %v9339, %v9421
  %v9423 = vpop.f32.mrb[0].mxu0
  %v9424 = vadd.f32 %v9341, %v9423
  %9425 = vmatprep.mubr.bf16.mxu0 %v2056
  %9426 = vmatmul.mubr.bf16.gmra.mrb[0].mxu0 %v2055
  %v9427 = vpop.f32.mrb[0].mxu0
  %v9428 = vadd.f32 %v9345, %v9427
  %v9429 = vpop.f32.mrb[0].mxu0
  %v9430 = vadd.f32 %v9347, %v9429
  %v9431 = vpop.f32.mrb[0].mxu0
  %v9432 = vadd.f32 %v9349, %v9431
  %v9433 = vpop.f32.mrb[0].mxu0
  %v9434 = vadd.f32 %v9351, %v9433
  %9435 = vmatprep.mubr.bf16.mxu0 %v2092
  %9436 = vmatmul.mubr.bf16.gmra.mrb[0].mxu0 %v2091
  %v9437 = vpop.f32.mrb[0].mxu0
  %v9438 = vadd.f32 %v9355, %v9437
  %v9439 = vpop.f32.mrb[0].mxu0
  %v9440 = vadd.f32 %v9357, %v9439
  %v9441 = vpop.f32.mrb[0].mxu0
  %v9442 = vadd.f32 %v9359, %v9441
  %v9443 = vpop.f32.mrb[0].mxu0
  %v9444 = vadd.f32 %v9361, %v9443
  %9445 = vdwg.mxu0
  %9446 = vmatprep.subr.bf16.mxu0 %v6820
  %9447 = vmatpush1.bf16.msra.mxu0 %v6819
  %9448 = vmatprep.subr.bf16.mxu0 %v6824
  %9449 = vmatpush1.bf16.msra.mxu0 %v6823
  %9450 = vmatprep.subr.bf16.mxu0 %v6828
  %9451 = vmatpush1.bf16.msra.mxu0 %v6827
  %9452 = vmatprep.subr.bf16.mxu0 %v6832
  %9453 = vmatpush1.bf16.msra.mxu0 %v6831
  %9454 = vmatprep.subr.bf16.mxu0 %v6836
  %9455 = vmatpush1.bf16.msra.mxu0 %v6835
  %9456 = vmatprep.subr.bf16.mxu0 %v6840
  %9457 = vmatpush1.bf16.msra.mxu0 %v6839
  %9458 = vmatprep.subr.bf16.mxu0 %v6844
  %9459 = vmatpush1.bf16.msra.mxu0 %v6843
  %9460 = vmatprep.subr.bf16.mxu0 %v6848
  %9461 = vmatpush1.bf16.msra.mxu0 %v6847
  %9462 = vmatprep.subr.bf16.mxu0 %v6852
  %9463 = vmatpush1.bf16.msra.mxu0 %v6851
  %9464 = vmatprep.subr.bf16.mxu0 %v6856
  %9465 = vmatpush1.bf16.msra.mxu0 %v6855
  %9466 = vmatprep.subr.bf16.mxu0 %v6860
  %9467 = vmatpush1.bf16.msra.mxu0 %v6859
  %9468 = vmatprep.subr.bf16.mxu0 %v6864
  %9469 = vmatpush1.bf16.msra.mxu0 %v6863
  %9470 = vmatprep.subr.bf16.mxu0 %v6868
  %9471 = vmatpush1.bf16.msra.mxu0 %v6867
  %9472 = vmatprep.subr.bf16.mxu0 %v6872
  %9473 = vmatpush1.bf16.msra.mxu0 %v6871
  %9474 = vmatprep.subr.bf16.mxu0 %v6876
  %9475 = vmatpush1.bf16.msra.mxu0 %v6875
  %9476 = vmatprep.subr.bf16.mxu0 %v6880
  %9477 = vmatpush1.bf16.msra.mxu0 %v6879
  %9478 = vmatprep.mubr.bf16.mxu0 %v1950
  %9479 = vmatmul.mubr.bf16.gmra.mrb[0].mxu0 %v1949
  %v9480 = vpop.f32.mrb[0].mxu0
  %v9481 = vadd.f32 %v9398, %v9480
  %v9482 = vpop.f32.mrb[0].mxu0
  %v9483 = vadd.f32 %v9400, %v9482
  %v9484 = vpop.f32.mrb[0].mxu0
  %v9485 = vadd.f32 %v9402, %v9484
  %v9486 = vpop.f32.mrb[0].mxu0
  %v9487 = vadd.f32 %v9404, %v9486
  %9488 = vmatprep.mubr.bf16.mxu0 %v1986
  %9489 = vmatmul.mubr.bf16.gmra.mrb[0].mxu0 %v1985
  %v9490 = vpop.f32.mrb[0].mxu0
  %v9491 = vadd.f32 %v9408, %v9490
  %v9492 = vpop.f32.mrb[0].mxu0
  %v9493 = vadd.f32 %v9410, %v9492
  %v9494 = vpop.f32.mrb[0].mxu0
  %v9495 = vadd.f32 %v9412, %v9494
  %v9496 = vpop.f32.mrb[0].mxu0
  %v9497 = vadd.f32 %v9414, %v9496
  %9498 = vmatprep.mubr.bf16.mxu0 %v2022
  %9499 = vmatmul.mubr.bf16.gmra.mrb[0].mxu0 %v2021
  %v9500 = vpop.f32.mrb[0].mxu0
  %v9501 = vadd.f32 %v9418, %v9500
  %v9502 = vpop.f32.mrb[0].mxu0
  %v9503 = vadd.f32 %v9420, %v9502
  %v9504 = vpop.f32.mrb[0].mxu0
  %v9505 = vadd.f32 %v9422, %v9504
  %v9506 = vpop.f32.mrb[0].mxu0
  %v9507 = vadd.f32 %v9424, %v9506
  %9508 = vmatprep.mubr.bf16.mxu0 %v2058
  %9509 = vmatmul.mubr.bf16.gmra.mrb[0].mxu0 %v2057
  %v9510 = vpop.f32.mrb[0].mxu0
  %v9511 = vadd.f32 %v9428, %v9510
  %v9512 = vpop.f32.mrb[0].mxu0
  %v9513 = vadd.f32 %v9430, %v9512
  %v9514 = vpop.f32.mrb[0].mxu0
  %v9515 = vadd.f32 %v9432, %v9514
  %v9516 = vpop.f32.mrb[0].mxu0
  %v9517 = vadd.f32 %v9434, %v9516
  %9518 = vmatprep.mubr.bf16.mxu0 %v2094
  %9519 = vmatmul.mubr.bf16.gmra.mrb[0].mxu0 %v2093
  %v9520 = vpop.f32.mrb[0].mxu0
  %v9521 = vadd.f32 %v9438, %v9520
  %v9522 = vpop.f32.mrb[0].mxu0
  %v9523 = vadd.f32 %v9440, %v9522
  %v9524 = vpop.f32.mrb[0].mxu0
  %v9525 = vadd.f32 %v9442, %v9524
  %v9526 = vpop.f32.mrb[0].mxu0
  %v9527 = vadd.f32 %v9444, %v9526
  %9528 = vdwg.mxu0
  %9529 = vmatprep.subr.bf16.mxu0 %v5734
  %9530 = vmatpush1.bf16.msra.mxu0 %v5733
  %9531 = vmatprep.subr.bf16.mxu0 %v5738
  %9532 = vmatpush1.bf16.msra.mxu0 %v5737
  %9533 = vmatprep.subr.bf16.mxu0 %v5742
  %9534 = vmatpush1.bf16.msra.mxu0 %v5741
  %9535 = vmatprep.subr.bf16.mxu0 %v5746
  %9536 = vmatpush1.bf16.msra.mxu0 %v5745
  %9537 = vmatprep.subr.bf16.mxu0 %v5750
  %9538 = vmatpush1.bf16.msra.mxu0 %v5749
  %9539 = vmatprep.subr.bf16.mxu0 %v5754
  %9540 = vmatpush1.bf16.msra.mxu0 %v5753
  %9541 = vmatprep.subr.bf16.mxu0 %v5758
  %9542 = vmatpush1.bf16.msra.mxu0 %v5757
  %9543 = vmatprep.subr.bf16.mxu0 %v5762
  %9544 = vmatpush1.bf16.msra.mxu0 %v5761
  %9545 = vmatprep.subr.bf16.mxu0 %v5766
  %9546 = vmatpush1.bf16.msra.mxu0 %v5765
  %9547 = vmatprep.subr.bf16.mxu0 %v5770
  %9548 = vmatpush1.bf16.msra.mxu0 %v5769
  %9549 = vmatprep.subr.bf16.mxu0 %v5774
  %9550 = vmatpush1.bf16.msra.mxu0 %v5773
  %9551 = vmatprep.subr.bf16.mxu0 %v5778
  %9552 = vmatpush1.bf16.msra.mxu0 %v5777
  %9553 = vmatprep.subr.bf16.mxu0 %v5782
  %9554 = vmatpush1.bf16.msra.mxu0 %v5781
  %9555 = vmatprep.subr.bf16.mxu0 %v5786
  %9556 = vmatpush1.bf16.msra.mxu0 %v5785
  %9557 = vmatprep.subr.bf16.mxu0 %v5790
  %9558 = vmatpush1.bf16.msra.mxu0 %v5789
  %9559 = vmatprep.subr.bf16.mxu0 %v5794
  %9560 = vmatpush1.bf16.msra.mxu0 %v5793
  %9561 = vmatprep.mubr.bf16.mxu0 %v1916
  %9562 = vmatmul.mubr.bf16.gmra.mrb[0].mxu0 %v1915
  %v9563 = vpop.f32.mrb[0].mxu0
  %v9564 = vadd.f32 %v1366, %v9563
  %v9565 = vpop.f32.mrb[0].mxu0
  %v9566 = vadd.f32 %v1370, %v9565
  %v9567 = vpop.f32.mrb[0].mxu0
  %v9568 = vadd.f32 %v1366, %v9567
  %v9569 = vpop.f32.mrb[0].mxu0
  %v9570 = vadd.f32 %v1370, %v9569
  %9571 = vmatprep.mubr.bf16.mxu0 %v1952
  %9572 = vmatmul.mubr.bf16.gmra.mrb[0].mxu0 %v1951
  %v9573 = vpop.f32.mrb[0].mxu0
  %v9574 = vadd.f32 %v1366, %v9573
  %v9575 = vpop.f32.mrb[0].mxu0
  %v9576 = vadd.f32 %v1370, %v9575
  %v9577 = vpop.f32.mrb[0].mxu0
  %v9578 = vadd.f32 %v1366, %v9577
  %v9579 = vpop.f32.mrb[0].mxu0
  %v9580 = vadd.f32 %v1370, %v9579
  %9581 = vmatprep.mubr.bf16.mxu0 %v1988
  %9582 = vmatmul.mubr.bf16.gmra.mrb[0].mxu0 %v1987
  %v9583 = vpop.f32.mrb[0].mxu0
  %v9584 = vadd.f32 %v1366, %v9583
  %v9585 = vpop.f32.mrb[0].mxu0
  %v9586 = vadd.f32 %v1370, %v9585
  %v9587 = vpop.f32.mrb[0].mxu0
  %v9588 = vadd.f32 %v1366, %v9587
  %v9589 = vpop.f32.mrb[0].mxu0
  %v9590 = vadd.f32 %v1370, %v9589
  %9591 = vmatprep.mubr.bf16.mxu0 %v2024
  %9592 = vmatmul.mubr.bf16.gmra.mrb[0].mxu0 %v2023
  %v9593 = vpop.f32.mrb[0].mxu0
  %v9594 = vadd.f32 %v1366, %v9593
  %v9595 = vpop.f32.mrb[0].mxu0
  %v9596 = vadd.f32 %v1370, %v9595
  %v9597 = vpop.f32.mrb[0].mxu0
  %v9598 = vadd.f32 %v1366, %v9597
  %v9599 = vpop.f32.mrb[0].mxu0
  %v9600 = vadd.f32 %v1370, %v9599
  %9601 = vmatprep.mubr.bf16.mxu0 %v2060
  %9602 = vmatmul.mubr.bf16.gmra.mrb[0].mxu0 %v2059
  %v9603 = vpop.f32.mrb[0].mxu0
  %v9604 = vadd.f32 %v1366, %v9603
  %v9605 = vpop.f32.mrb[0].mxu0
  %v9606 = vadd.f32 %v1370, %v9605
  %v9607 = vpop.f32.mrb[0].mxu0
  %v9608 = vadd.f32 %v1366, %v9607
  %v9609 = vpop.f32.mrb[0].mxu0
  %v9610 = vadd.f32 %v1370, %v9609
  %9611 = vdwg.mxu0
  %9612 = vmatprep.subr.bf16.mxu0 %v5798
  %9613 = vmatpush1.bf16.msra.mxu0 %v5797
  %9614 = vmatprep.subr.bf16.mxu0 %v5802
  %9615 = vmatpush1.bf16.msra.mxu0 %v5801
  %9616 = vmatprep.subr.bf16.mxu0 %v5806
  %9617 = vmatpush1.bf16.msra.mxu0 %v5805
  %9618 = vmatprep.subr.bf16.mxu0 %v5810
  %9619 = vmatpush1.bf16.msra.mxu0 %v5809
  %9620 = vmatprep.subr.bf16.mxu0 %v5814
  %9621 = vmatpush1.bf16.msra.mxu0 %v5813
  %9622 = vmatprep.subr.bf16.mxu0 %v5818
  %9623 = vmatpush1.bf16.msra.mxu0 %v5817
  %9624 = vmatprep.subr.bf16.mxu0 %v5822
  %9625 = vmatpush1.bf16.msra.mxu0 %v5821
  %9626 = vmatprep.subr.bf16.mxu0 %v5826
  %9627 = vmatpush1.bf16.msra.mxu0 %v5825
  %9628 = vmatprep.subr.bf16.mxu0 %v5830
  %9629 = vmatpush1.bf16.msra.mxu0 %v5829
  %9630 = vmatprep.subr.bf16.mxu0 %v5834
  %9631 = vmatpush1.bf16.msra.mxu0 %v5833
  %9632 = vmatprep.subr.bf16.mxu0 %v5838
  %9633 = vmatpush1.bf16.msra.mxu0 %v5837
  %9634 = vmatprep.subr.bf16.mxu0 %v5842
  %9635 = vmatpush1.bf16.msra.mxu0 %v5841
  %9636 = vmatprep.subr.bf16.mxu0 %v5846
  %9637 = vmatpush1.bf16.msra.mxu0 %v5845
  %9638 = vmatprep.subr.bf16.mxu0 %v5850
  %9639 = vmatpush1.bf16.msra.mxu0 %v5849
  %9640 = vmatprep.subr.bf16.mxu0 %v5854
  %9641 = vmatpush1.bf16.msra.mxu0 %v5853
  %9642 = vmatprep.subr.bf16.mxu0 %v5858
  %9643 = vmatpush1.bf16.msra.mxu0 %v5857
  %9644 = vmatprep.mubr.bf16.mxu0 %v1918
  %9645 = vmatmul.mubr.bf16.gmra.mrb[0].mxu0 %v1917
  %v9646 = vpop.f32.mrb[0].mxu0
  %v9647 = vadd.f32 %v9564, %v9646
  %v9648 = vpop.f32.mrb[0].mxu0
  %v9649 = vadd.f32 %v9566, %v9648
  %v9650 = vpop.f32.mrb[0].mxu0
  %v9651 = vadd.f32 %v9568, %v9650
  %v9652 = vpop.f32.mrb[0].mxu0
  %v9653 = vadd.f32 %v9570, %v9652
  %9654 = vmatprep.mubr.bf16.mxu0 %v1954
  %9655 = vmatmul.mubr.bf16.gmra.mrb[0].mxu0 %v1953
  %v9656 = vpop.f32.mrb[0].mxu0
  %v9657 = vadd.f32 %v9574, %v9656
  %v9658 = vpop.f32.mrb[0].mxu0
  %v9659 = vadd.f32 %v9576, %v9658
  %v9660 = vpop.f32.mrb[0].mxu0
  %v9661 = vadd.f32 %v9578, %v9660
  %v9662 = vpop.f32.mrb[0].mxu0
  %v9663 = vadd.f32 %v9580, %v9662
  %9664 = vmatprep.mubr.bf16.mxu0 %v1990
  %9665 = vmatmul.mubr.bf16.gmra.mrb[0].mxu0 %v1989
  %v9666 = vpop.f32.mrb[0].mxu0
  %v9667 = vadd.f32 %v9584, %v9666
  %v9668 = vpop.f32.mrb[0].mxu0
  %v9669 = vadd.f32 %v9586, %v9668
  %v9670 = vpop.f32.mrb[0].mxu0
  %v9671 = vadd.f32 %v9588, %v9670
  %v9672 = vpop.f32.mrb[0].mxu0
  %v9673 = vadd.f32 %v9590, %v9672
  %9674 = vmatprep.mubr.bf16.mxu0 %v2026
  %9675 = vmatmul.mubr.bf16.gmra.mrb[0].mxu0 %v2025
  %v9676 = vpop.f32.mrb[0].mxu0
  %v9677 = vadd.f32 %v9594, %v9676
  %v9678 = vpop.f32.mrb[0].mxu0
  %v9679 = vadd.f32 %v9596, %v9678
  %v9680 = vpop.f32.mrb[0].mxu0
  %v9681 = vadd.f32 %v9598, %v9680
  %v9682 = vpop.f32.mrb[0].mxu0
  %v9683 = vadd.f32 %v9600, %v9682
  %9684 = vmatprep.mubr.bf16.mxu0 %v2062
  %9685 = vmatmul.mubr.bf16.gmra.mrb[0].mxu0 %v2061
  %v9686 = vpop.f32.mrb[0].mxu0
  %v9687 = vadd.f32 %v9604, %v9686
  %v9688 = vpop.f32.mrb[0].mxu0
  %v9689 = vadd.f32 %v9606, %v9688
  %v9690 = vpop.f32.mrb[0].mxu0
  %v9691 = vadd.f32 %v9608, %v9690
  %v9692 = vpop.f32.mrb[0].mxu0
  %v9693 = vadd.f32 %v9610, %v9692
  %9694 = vdwg.mxu0
  %9695 = vmatprep.subr.bf16.mxu0 %v5862
  %9696 = vmatpush1.bf16.msra.mxu0 %v5861
  %9697 = vmatprep.subr.bf16.mxu0 %v5866
  %9698 = vmatpush1.bf16.msra.mxu0 %v5865
  %9699 = vmatprep.subr.bf16.mxu0 %v5870
  %9700 = vmatpush1.bf16.msra.mxu0 %v5869
  %9701 = vmatprep.subr.bf16.mxu0 %v5874
  %9702 = vmatpush1.bf16.msra.mxu0 %v5873
  %9703 = vmatprep.subr.bf16.mxu0 %v5878
  %9704 = vmatpush1.bf16.msra.mxu0 %v5877
  %9705 = vmatprep.subr.bf16.mxu0 %v5882
  %9706 = vmatpush1.bf16.msra.mxu0 %v5881
  %9707 = vmatprep.subr.bf16.mxu0 %v5886
  %9708 = vmatpush1.bf16.msra.mxu0 %v5885
  %9709 = vmatprep.subr.bf16.mxu0 %v5890
  %9710 = vmatpush1.bf16.msra.mxu0 %v5889
  %9711 = vmatprep.subr.bf16.mxu0 %v5894
  %9712 = vmatpush1.bf16.msra.mxu0 %v5893
  %9713 = vmatprep.subr.bf16.mxu0 %v5898
  %9714 = vmatpush1.bf16.msra.mxu0 %v5897
  %9715 = vmatprep.subr.bf16.mxu0 %v5902
  %9716 = vmatpush1.bf16.msra.mxu0 %v5901
  %9717 = vmatprep.subr.bf16.mxu0 %v5906
  %9718 = vmatpush1.bf16.msra.mxu0 %v5905
  %9719 = vmatprep.subr.bf16.mxu0 %v5910
  %9720 = vmatpush1.bf16.msra.mxu0 %v5909
  %9721 = vmatprep.subr.bf16.mxu0 %v5914
  %9722 = vmatpush1.bf16.msra.mxu0 %v5913
  %9723 = vmatprep.subr.bf16.mxu0 %v5918
  %9724 = vmatpush1.bf16.msra.mxu0 %v5917
  %9725 = vmatprep.subr.bf16.mxu0 %v5922
  %9726 = vmatpush1.bf16.msra.mxu0 %v5921
  %9727 = vmatprep.mubr.bf16.mxu0 %v1920
  %9728 = vmatmul.mubr.bf16.gmra.mrb[0].mxu0 %v1919
  %v9729 = vpop.f32.mrb[0].mxu0
  %v9730 = vadd.f32 %v9647, %v9729
  %v9731 = vpop.f32.mrb[0].mxu0
  %v9732 = vadd.f32 %v9649, %v9731
  %v9733 = vpop.f32.mrb[0].mxu0
  %v9734 = vadd.f32 %v9651, %v9733
  %v9735 = vpop.f32.mrb[0].mxu0
  %v9736 = vadd.f32 %v9653, %v9735
  %9737 = vmatprep.mubr.bf16.mxu0 %v1956
  %9738 = vmatmul.mubr.bf16.gmra.mrb[0].mxu0 %v1955
  %v9739 = vpop.f32.mrb[0].mxu0
  %v9740 = vadd.f32 %v9657, %v9739
  %v9741 = vpop.f32.mrb[0].mxu0
  %v9742 = vadd.f32 %v9659, %v9741
  %v9743 = vpop.f32.mrb[0].mxu0
  %v9744 = vadd.f32 %v9661, %v9743
  %v9745 = vpop.f32.mrb[0].mxu0
  %v9746 = vadd.f32 %v9663, %v9745
  %9747 = vmatprep.mubr.bf16.mxu0 %v1992
  %9748 = vmatmul.mubr.bf16.gmra.mrb[0].mxu0 %v1991
  %v9749 = vpop.f32.mrb[0].mxu0
  %v9750 = vadd.f32 %v9667, %v9749
  %v9751 = vpop.f32.mrb[0].mxu0
  %v9752 = vadd.f32 %v9669, %v9751
  %v9753 = vpop.f32.mrb[0].mxu0
  %v9754 = vadd.f32 %v9671, %v9753
  %v9755 = vpop.f32.mrb[0].mxu0
  %v9756 = vadd.f32 %v9673, %v9755
  %9757 = vmatprep.mubr.bf16.mxu0 %v2028
  %9758 = vmatmul.mubr.bf16.gmra.mrb[0].mxu0 %v2027
  %v9759 = vpop.f32.mrb[0].mxu0
  %v9760 = vadd.f32 %v9677, %v9759
  %v9761 = vpop.f32.mrb[0].mxu0
  %v9762 = vadd.f32 %v9679, %v9761
  %v9763 = vpop.f32.mrb[0].mxu0
  %v9764 = vadd.f32 %v9681, %v9763
  %v9765 = vpop.f32.mrb[0].mxu0
  %v9766 = vadd.f32 %v9683, %v9765
  %9767 = vmatprep.mubr.bf16.mxu0 %v2064
  %9768 = vmatmul.mubr.bf16.gmra.mrb[0].mxu0 %v2063
  %v9769 = vpop.f32.mrb[0].mxu0
  %v9770 = vadd.f32 %v9687, %v9769
  %v9771 = vpop.f32.mrb[0].mxu0
  %v9772 = vadd.f32 %v9689, %v9771
  %v9773 = vpop.f32.mrb[0].mxu0
  %v9774 = vadd.f32 %v9691, %v9773
  %v9775 = vpop.f32.mrb[0].mxu0
  %v9776 = vadd.f32 %v9693, %v9775
  %9777 = vdwg.mxu0
  %9778 = vmatprep.subr.bf16.mxu0 %v5926
  %9779 = vmatpush1.bf16.msra.mxu0 %v5925
  %9780 = vmatprep.subr.bf16.mxu0 %v5930
  %9781 = vmatpush1.bf16.msra.mxu0 %v5929
  %9782 = vmatprep.subr.bf16.mxu0 %v5934
  %9783 = vmatpush1.bf16.msra.mxu0 %v5933
  %9784 = vmatprep.subr.bf16.mxu0 %v5938
  %9785 = vmatpush1.bf16.msra.mxu0 %v5937
  %9786 = vmatprep.subr.bf16.mxu0 %v5942
  %9787 = vmatpush1.bf16.msra.mxu0 %v5941
  %9788 = vmatprep.subr.bf16.mxu0 %v5946
  %9789 = vmatpush1.bf16.msra.mxu0 %v5945
  %9790 = vmatprep.subr.bf16.mxu0 %v5950
  %9791 = vmatpush1.bf16.msra.mxu0 %v5949
  %9792 = vmatprep.subr.bf16.mxu0 %v5954
  %9793 = vmatpush1.bf16.msra.mxu0 %v5953
  %9794 = vmatprep.subr.bf16.mxu0 %v5958
  %9795 = vmatpush1.bf16.msra.mxu0 %v5957
  %9796 = vmatprep.subr.bf16.mxu0 %v5962
  %9797 = vmatpush1.bf16.msra.mxu0 %v5961
  %9798 = vmatprep.subr.bf16.mxu0 %v5966
  %9799 = vmatpush1.bf16.msra.mxu0 %v5965
  %9800 = vmatprep.subr.bf16.mxu0 %v5970
  %9801 = vmatpush1.bf16.msra.mxu0 %v5969
  %9802 = vmatprep.subr.bf16.mxu0 %v5974
  %9803 = vmatpush1.bf16.msra.mxu0 %v5973
  %9804 = vmatprep.subr.bf16.mxu0 %v5978
  %9805 = vmatpush1.bf16.msra.mxu0 %v5977
  %9806 = vmatprep.subr.bf16.mxu0 %v5982
  %9807 = vmatpush1.bf16.msra.mxu0 %v5981
  %9808 = vmatprep.subr.bf16.mxu0 %v5986
  %9809 = vmatpush1.bf16.msra.mxu0 %v5985
  %9810 = vmatprep.mubr.bf16.mxu0 %v1922
  %9811 = vmatmul.mubr.bf16.gmra.mrb[0].mxu0 %v1921
  %v9812 = vpop.f32.mrb[0].mxu0
  %v9813 = vadd.f32 %v9730, %v9812
  %v9814 = vpop.f32.mrb[0].mxu0
  %v9815 = vadd.f32 %v9732, %v9814
  %v9816 = vpop.f32.mrb[0].mxu0
  %v9817 = vadd.f32 %v9734, %v9816
  %v9818 = vpop.f32.mrb[0].mxu0
  %v9819 = vadd.f32 %v9736, %v9818
  %9820 = vmatprep.mubr.bf16.mxu0 %v1958
  %9821 = vmatmul.mubr.bf16.gmra.mrb[0].mxu0 %v1957
  %v9822 = vpop.f32.mrb[0].mxu0
  %v9823 = vadd.f32 %v9740, %v9822
  %v9824 = vpop.f32.mrb[0].mxu0
  %v9825 = vadd.f32 %v9742, %v9824
  %v9826 = vpop.f32.mrb[0].mxu0
  %v9827 = vadd.f32 %v9744, %v9826
  %v9828 = vpop.f32.mrb[0].mxu0
  %v9829 = vadd.f32 %v9746, %v9828
  %9830 = vmatprep.mubr.bf16.mxu0 %v1994
  %9831 = vmatmul.mubr.bf16.gmra.mrb[0].mxu0 %v1993
  %v9832 = vpop.f32.mrb[0].mxu0
  %v9833 = vadd.f32 %v9750, %v9832
  %v9834 = vpop.f32.mrb[0].mxu0
  %v9835 = vadd.f32 %v9752, %v9834
  %v9836 = vpop.f32.mrb[0].mxu0
  %v9837 = vadd.f32 %v9754, %v9836
  %v9838 = vpop.f32.mrb[0].mxu0
  %v9839 = vadd.f32 %v9756, %v9838
  %9840 = vmatprep.mubr.bf16.mxu0 %v2030
  %9841 = vmatmul.mubr.bf16.gmra.mrb[0].mxu0 %v2029
  %v9842 = vpop.f32.mrb[0].mxu0
  %v9843 = vadd.f32 %v9760, %v9842
  %v9844 = vpop.f32.mrb[0].mxu0
  %v9845 = vadd.f32 %v9762, %v9844
  %v9846 = vpop.f32.mrb[0].mxu0
  %v9847 = vadd.f32 %v9764, %v9846
  %v9848 = vpop.f32.mrb[0].mxu0
  %v9849 = vadd.f32 %v9766, %v9848
  %9850 = vmatprep.mubr.bf16.mxu0 %v2066
  %9851 = vmatmul.mubr.bf16.gmra.mrb[0].mxu0 %v2065
  %v9852 = vpop.f32.mrb[0].mxu0
  %v9853 = vadd.f32 %v9770, %v9852
  %v9854 = vpop.f32.mrb[0].mxu0
  %v9855 = vadd.f32 %v9772, %v9854
  %v9856 = vpop.f32.mrb[0].mxu0
  %v9857 = vadd.f32 %v9774, %v9856
  %v9858 = vpop.f32.mrb[0].mxu0
  %v9859 = vadd.f32 %v9776, %v9858
  %9860 = vdwg.mxu0
  %9861 = vmatprep.subr.bf16.mxu0 %v5990
  %9862 = vmatpush1.bf16.msra.mxu0 %v5989
  %9863 = vmatprep.subr.bf16.mxu0 %v5994
  %9864 = vmatpush1.bf16.msra.mxu0 %v5993
  %9865 = vmatprep.subr.bf16.mxu0 %v5998
  %9866 = vmatpush1.bf16.msra.mxu0 %v5997
  %9867 = vmatprep.subr.bf16.mxu0 %v6002
  %9868 = vmatpush1.bf16.msra.mxu0 %v6001
  %9869 = vmatprep.subr.bf16.mxu0 %v6006
  %9870 = vmatpush1.bf16.msra.mxu0 %v6005
  %9871 = vmatprep.subr.bf16.mxu0 %v6010
  %9872 = vmatpush1.bf16.msra.mxu0 %v6009
  %9873 = vmatprep.subr.bf16.mxu0 %v6014
  %9874 = vmatpush1.bf16.msra.mxu0 %v6013
  %9875 = vmatprep.subr.bf16.mxu0 %v6018
  %9876 = vmatpush1.bf16.msra.mxu0 %v6017
  %9877 = vmatprep.subr.bf16.mxu0 %v6022
  %9878 = vmatpush1.bf16.msra.mxu0 %v6021
  %9879 = vmatprep.subr.bf16.mxu0 %v6026
  %9880 = vmatpush1.bf16.msra.mxu0 %v6025
  %9881 = vmatprep.subr.bf16.mxu0 %v6030
  %9882 = vmatpush1.bf16.msra.mxu0 %v6029
  %9883 = vmatprep.subr.bf16.mxu0 %v6034
  %9884 = vmatpush1.bf16.msra.mxu0 %v6033
  %9885 = vmatprep.subr.bf16.mxu0 %v6038
  %9886 = vmatpush1.bf16.msra.mxu0 %v6037
  %9887 = vmatprep.subr.bf16.mxu0 %v6042
  %9888 = vmatpush1.bf16.msra.mxu0 %v6041
  %9889 = vmatprep.subr.bf16.mxu0 %v6046
  %9890 = vmatpush1.bf16.msra.mxu0 %v6045
  %9891 = vmatprep.subr.bf16.mxu0 %v6050
  %9892 = vmatpush1.bf16.msra.mxu0 %v6049
  %9893 = vmatprep.mubr.bf16.mxu0 %v1924
  %9894 = vmatmul.mubr.bf16.gmra.mrb[0].mxu0 %v1923
  %v9895 = vpop.f32.mrb[0].mxu0
  %v9896 = vadd.f32 %v9813, %v9895
  %v9897 = vpop.f32.mrb[0].mxu0
  %v9898 = vadd.f32 %v9815, %v9897
  %v9899 = vpop.f32.mrb[0].mxu0
  %v9900 = vadd.f32 %v9817, %v9899
  %v9901 = vpop.f32.mrb[0].mxu0
  %v9902 = vadd.f32 %v9819, %v9901
  %9903 = vmatprep.mubr.bf16.mxu0 %v1960
  %9904 = vmatmul.mubr.bf16.gmra.mrb[0].mxu0 %v1959
  %v9905 = vpop.f32.mrb[0].mxu0
  %v9906 = vadd.f32 %v9823, %v9905
  %v9907 = vpop.f32.mrb[0].mxu0
  %v9908 = vadd.f32 %v9825, %v9907
  %v9909 = vpop.f32.mrb[0].mxu0
  %v9910 = vadd.f32 %v9827, %v9909
  %v9911 = vpop.f32.mrb[0].mxu0
  %v9912 = vadd.f32 %v9829, %v9911
  %9913 = vmatprep.mubr.bf16.mxu0 %v1996
  %9914 = vmatmul.mubr.bf16.gmra.mrb[0].mxu0 %v1995
  %v9915 = vpop.f32.mrb[0].mxu0
  %v9916 = vadd.f32 %v9833, %v9915
  %v9917 = vpop.f32.mrb[0].mxu0
  %v9918 = vadd.f32 %v9835, %v9917
  %v9919 = vpop.f32.mrb[0].mxu0
  %v9920 = vadd.f32 %v9837, %v9919
  %v9921 = vpop.f32.mrb[0].mxu0
  %v9922 = vadd.f32 %v9839, %v9921
  %9923 = vmatprep.mubr.bf16.mxu0 %v2032
  %9924 = vmatmul.mubr.bf16.gmra.mrb[0].mxu0 %v2031
  %v9925 = vpop.f32.mrb[0].mxu0
  %v9926 = vadd.f32 %v9843, %v9925
  %v9927 = vpop.f32.mrb[0].mxu0
  %v9928 = vadd.f32 %v9845, %v9927
  %v9929 = vpop.f32.mrb[0].mxu0
  %v9930 = vadd.f32 %v9847, %v9929
  %v9931 = vpop.f32.mrb[0].mxu0
  %v9932 = vadd.f32 %v9849, %v9931
  %9933 = vmatprep.mubr.bf16.mxu0 %v2068
  %9934 = vmatmul.mubr.bf16.gmra.mrb[0].mxu0 %v2067
  %v9935 = vpop.f32.mrb[0].mxu0
  %v9936 = vadd.f32 %v9853, %v9935
  %v9937 = vpop.f32.mrb[0].mxu0
  %v9938 = vadd.f32 %v9855, %v9937
  %v9939 = vpop.f32.mrb[0].mxu0
  %v9940 = vadd.f32 %v9857, %v9939
  %v9941 = vpop.f32.mrb[0].mxu0
  %v9942 = vadd.f32 %v9859, %v9941
  %9943 = vdwg.mxu0
  %9944 = vmatprep.subr.bf16.mxu0 %v6054
  %9945 = vmatpush1.bf16.msra.mxu0 %v6053
  %9946 = vmatprep.subr.bf16.mxu0 %v6058
  %9947 = vmatpush1.bf16.msra.mxu0 %v6057
  %9948 = vmatprep.subr.bf16.mxu0 %v6062
  %9949 = vmatpush1.bf16.msra.mxu0 %v6061
  %9950 = vmatprep.subr.bf16.mxu0 %v6066
  %9951 = vmatpush1.bf16.msra.mxu0 %v6065
  %9952 = vmatprep.subr.bf16.mxu0 %v6070
  %9953 = vmatpush1.bf16.msra.mxu0 %v6069
  %9954 = vmatprep.subr.bf16.mxu0 %v6074
  %9955 = vmatpush1.bf16.msra.mxu0 %v6073
  %9956 = vmatprep.subr.bf16.mxu0 %v6078
  %9957 = vmatpush1.bf16.msra.mxu0 %v6077
  %9958 = vmatprep.subr.bf16.mxu0 %v6082
  %9959 = vmatpush1.bf16.msra.mxu0 %v6081
  %9960 = vmatprep.subr.bf16.mxu0 %v6086
  %9961 = vmatpush1.bf16.msra.mxu0 %v6085
  %9962 = vmatprep.subr.bf16.mxu0 %v6090
  %9963 = vmatpush1.bf16.msra.mxu0 %v6089
  %9964 = vmatprep.subr.bf16.mxu0 %v6094
  %9965 = vmatpush1.bf16.msra.mxu0 %v6093
  %9966 = vmatprep.subr.bf16.mxu0 %v6098
  %9967 = vmatpush1.bf16.msra.mxu0 %v6097
  %9968 = vmatprep.subr.bf16.mxu0 %v6102
  %9969 = vmatpush1.bf16.msra.mxu0 %v6101
  %9970 = vmatprep.subr.bf16.mxu0 %v6106
  %9971 = vmatpush1.bf16.msra.mxu0 %v6105
  %9972 = vmatprep.subr.bf16.mxu0 %v6110
  %9973 = vmatpush1.bf16.msra.mxu0 %v6109
  %9974 = vmatprep.subr.bf16.mxu0 %v6114
  %9975 = vmatpush1.bf16.msra.mxu0 %v6113
  %9976 = vmatprep.mubr.bf16.mxu0 %v1926
  %9977 = vmatmul.mubr.bf16.gmra.mrb[0].mxu0 %v1925
  %v9978 = vpop.f32.mrb[0].mxu0
  %v9979 = vadd.f32 %v9896, %v9978
  %v9980 = vpop.f32.mrb[0].mxu0
  %v9981 = vadd.f32 %v9898, %v9980
  %v9982 = vpop.f32.mrb[0].mxu0
  %v9983 = vadd.f32 %v9900, %v9982
  %v9984 = vpop.f32.mrb[0].mxu0
  %v9985 = vadd.f32 %v9902, %v9984
  %9986 = vmatprep.mubr.bf16.mxu0 %v1962
  %9987 = vmatmul.mubr.bf16.gmra.mrb[0].mxu0 %v1961
  %v9988 = vpop.f32.mrb[0].mxu0
  %v9989 = vadd.f32 %v9906, %v9988
  %v9990 = vpop.f32.mrb[0].mxu0
  %v9991 = vadd.f32 %v9908, %v9990
  %v9992 = vpop.f32.mrb[0].mxu0
  %v9993 = vadd.f32 %v9910, %v9992
  %v9994 = vpop.f32.mrb[0].mxu0
  %v9995 = vadd.f32 %v9912, %v9994
  %9996 = vmatprep.mubr.bf16.mxu0 %v1998
  %9997 = vmatmul.mubr.bf16.gmra.mrb[0].mxu0 %v1997
  %v9998 = vpop.f32.mrb[0].mxu0
  %v9999 = vadd.f32 %v9916, %v9998
  %v10000 = vpop.f32.mrb[0].mxu0
  %v10001 = vadd.f32 %v9918, %v10000
  %v10002 = vpop.f32.mrb[0].mxu0
  %v10003 = vadd.f32 %v9920, %v10002
  %v10004 = vpop.f32.mrb[0].mxu0
  %v10005 = vadd.f32 %v9922, %v10004
  %10006 = vmatprep.mubr.bf16.mxu0 %v2034
  %10007 = vmatmul.mubr.bf16.gmra.mrb[0].mxu0 %v2033
  %v10008 = vpop.f32.mrb[0].mxu0
  %v10009 = vadd.f32 %v9926, %v10008
  %v10010 = vpop.f32.mrb[0].mxu0
  %v10011 = vadd.f32 %v9928, %v10010
  %v10012 = vpop.f32.mrb[0].mxu0
  %v10013 = vadd.f32 %v9930, %v10012
  %v10014 = vpop.f32.mrb[0].mxu0
  %v10015 = vadd.f32 %v9932, %v10014
  %10016 = vmatprep.mubr.bf16.mxu0 %v2070
  %10017 = vmatmul.mubr.bf16.gmra.mrb[0].mxu0 %v2069
  %v10018 = vpop.f32.mrb[0].mxu0
  %v10019 = vadd.f32 %v9936, %v10018
  %v10020 = vpop.f32.mrb[0].mxu0
  %v10021 = vadd.f32 %v9938, %v10020
  %v10022 = vpop.f32.mrb[0].mxu0
  %v10023 = vadd.f32 %v9940, %v10022
  %v10024 = vpop.f32.mrb[0].mxu0
  %v10025 = vadd.f32 %v9942, %v10024
  %10026 = vdwg.mxu0
  %10027 = vmatprep.subr.bf16.mxu0 %v6118
  %10028 = vmatpush1.bf16.msra.mxu0 %v6117
  %10029 = vmatprep.subr.bf16.mxu0 %v6122
  %10030 = vmatpush1.bf16.msra.mxu0 %v6121
  %10031 = vmatprep.subr.bf16.mxu0 %v6126
  %10032 = vmatpush1.bf16.msra.mxu0 %v6125
  %10033 = vmatprep.subr.bf16.mxu0 %v6130
  %10034 = vmatpush1.bf16.msra.mxu0 %v6129
  %10035 = vmatprep.subr.bf16.mxu0 %v6134
  %10036 = vmatpush1.bf16.msra.mxu0 %v6133
  %10037 = vmatprep.subr.bf16.mxu0 %v6138
  %10038 = vmatpush1.bf16.msra.mxu0 %v6137
  %10039 = vmatprep.subr.bf16.mxu0 %v6142
  %10040 = vmatpush1.bf16.msra.mxu0 %v6141
  %10041 = vmatprep.subr.bf16.mxu0 %v6146
  %10042 = vmatpush1.bf16.msra.mxu0 %v6145
  %10043 = vmatprep.subr.bf16.mxu0 %v6150
  %10044 = vmatpush1.bf16.msra.mxu0 %v6149
  %10045 = vmatprep.subr.bf16.mxu0 %v6154
  %10046 = vmatpush1.bf16.msra.mxu0 %v6153
  %10047 = vmatprep.subr.bf16.mxu0 %v6158
  %10048 = vmatpush1.bf16.msra.mxu0 %v6157
  %10049 = vmatprep.subr.bf16.mxu0 %v6162
  %10050 = vmatpush1.bf16.msra.mxu0 %v6161
  %10051 = vmatprep.subr.bf16.mxu0 %v6166
  %10052 = vmatpush1.bf16.msra.mxu0 %v6165
  %10053 = vmatprep.subr.bf16.mxu0 %v6170
  %10054 = vmatpush1.bf16.msra.mxu0 %v6169
  %10055 = vmatprep.subr.bf16.mxu0 %v6174
  %10056 = vmatpush1.bf16.msra.mxu0 %v6173
  %10057 = vmatprep.subr.bf16.mxu0 %v6178
  %10058 = vmatpush1.bf16.msra.mxu0 %v6177
  %10059 = vmatprep.mubr.bf16.mxu0 %v1928
  %10060 = vmatmul.mubr.bf16.gmra.mrb[0].mxu0 %v1927
  %v10061 = vpop.f32.mrb[0].mxu0
  %v10062 = vadd.f32 %v9979, %v10061
  %v10063 = vpop.f32.mrb[0].mxu0
  %v10064 = vadd.f32 %v9981, %v10063
  %v10065 = vpop.f32.mrb[0].mxu0
  %v10066 = vadd.f32 %v9983, %v10065
  %v10067 = vpop.f32.mrb[0].mxu0
  %v10068 = vadd.f32 %v9985, %v10067
  %10069 = vmatprep.mubr.bf16.mxu0 %v1964
  %10070 = vmatmul.mubr.bf16.gmra.mrb[0].mxu0 %v1963
  %v10071 = vpop.f32.mrb[0].mxu0
  %v10072 = vadd.f32 %v9989, %v10071
  %v10073 = vpop.f32.mrb[0].mxu0
  %v10074 = vadd.f32 %v9991, %v10073
  %v10075 = vpop.f32.mrb[0].mxu0
  %v10076 = vadd.f32 %v9993, %v10075
  %v10077 = vpop.f32.mrb[0].mxu0
  %v10078 = vadd.f32 %v9995, %v10077
  %10079 = vmatprep.mubr.bf16.mxu0 %v2000
  %10080 = vmatmul.mubr.bf16.gmra.mrb[0].mxu0 %v1999
  %v10081 = vpop.f32.mrb[0].mxu0
  %v10082 = vadd.f32 %v9999, %v10081
  %v10083 = vpop.f32.mrb[0].mxu0
  %v10084 = vadd.f32 %v10001, %v10083
  %v10085 = vpop.f32.mrb[0].mxu0
  %v10086 = vadd.f32 %v10003, %v10085
  %v10087 = vpop.f32.mrb[0].mxu0
  %v10088 = vadd.f32 %v10005, %v10087
  %10089 = vmatprep.mubr.bf16.mxu0 %v2036
  %10090 = vmatmul.mubr.bf16.gmra.mrb[0].mxu0 %v2035
  %v10091 = vpop.f32.mrb[0].mxu0
  %v10092 = vadd.f32 %v10009, %v10091
  %v10093 = vpop.f32.mrb[0].mxu0
  %v10094 = vadd.f32 %v10011, %v10093
  %v10095 = vpop.f32.mrb[0].mxu0
  %v10096 = vadd.f32 %v10013, %v10095
  %v10097 = vpop.f32.mrb[0].mxu0
  %v10098 = vadd.f32 %v10015, %v10097
  %10099 = vmatprep.mubr.bf16.mxu0 %v2072
  %10100 = vmatmul.mubr.bf16.gmra.mrb[0].mxu0 %v2071
  %v10101 = vpop.f32.mrb[0].mxu0
  %v10102 = vadd.f32 %v10019, %v10101
  %v10103 = vpop.f32.mrb[0].mxu0
  %v10104 = vadd.f32 %v10021, %v10103
  %v10105 = vpop.f32.mrb[0].mxu0
  %v10106 = vadd.f32 %v10023, %v10105
  %v10107 = vpop.f32.mrb[0].mxu0
  %v10108 = vadd.f32 %v10025, %v10107
  %10109 = vdwg.mxu0
  %10110 = vmatprep.subr.bf16.mxu0 %v6182
  %10111 = vmatpush1.bf16.msra.mxu0 %v6181
  %10112 = vmatprep.subr.bf16.mxu0 %v6186
  %10113 = vmatpush1.bf16.msra.mxu0 %v6185
  %10114 = vmatprep.subr.bf16.mxu0 %v6190
  %10115 = vmatpush1.bf16.msra.mxu0 %v6189
  %10116 = vmatprep.subr.bf16.mxu0 %v6194
  %10117 = vmatpush1.bf16.msra.mxu0 %v6193
  %10118 = vmatprep.subr.bf16.mxu0 %v6198
  %10119 = vmatpush1.bf16.msra.mxu0 %v6197
  %10120 = vmatprep.subr.bf16.mxu0 %v6202
  %10121 = vmatpush1.bf16.msra.mxu0 %v6201
  %10122 = vmatprep.subr.bf16.mxu0 %v6206
  %10123 = vmatpush1.bf16.msra.mxu0 %v6205
  %10124 = vmatprep.subr.bf16.mxu0 %v6210
  %10125 = vmatpush1.bf16.msra.mxu0 %v6209
  %10126 = vmatprep.subr.bf16.mxu0 %v6214
  %10127 = vmatpush1.bf16.msra.mxu0 %v6213
  %10128 = vmatprep.subr.bf16.mxu0 %v6218
  %10129 = vmatpush1.bf16.msra.mxu0 %v6217
  %10130 = vmatprep.subr.bf16.mxu0 %v6222
  %10131 = vmatpush1.bf16.msra.mxu0 %v6221
  %10132 = vmatprep.subr.bf16.mxu0 %v6226
  %10133 = vmatpush1.bf16.msra.mxu0 %v6225
  %10134 = vmatprep.subr.bf16.mxu0 %v6230
  %10135 = vmatpush1.bf16.msra.mxu0 %v6229
  %10136 = vmatprep.subr.bf16.mxu0 %v6234
  %10137 = vmatpush1.bf16.msra.mxu0 %v6233
  %10138 = vmatprep.subr.bf16.mxu0 %v6238
  %10139 = vmatpush1.bf16.msra.mxu0 %v6237
  %10140 = vmatprep.subr.bf16.mxu0 %v6242
  %10141 = vmatpush1.bf16.msra.mxu0 %v6241
  %10142 = vmatprep.mubr.bf16.mxu0 %v1930
  %10143 = vmatmul.mubr.bf16.gmra.mrb[0].mxu0 %v1929
  %v10144 = vpop.f32.mrb[0].mxu0
  %v10145 = vadd.f32 %v10062, %v10144
  %v10146 = vpop.f32.mrb[0].mxu0
  %v10147 = vadd.f32 %v10064, %v10146
  %v10148 = vpop.f32.mrb[0].mxu0
  %v10149 = vadd.f32 %v10066, %v10148
  %v10150 = vpop.f32.mrb[0].mxu0
  %v10151 = vadd.f32 %v10068, %v10150
  %10152 = vmatprep.mubr.bf16.mxu0 %v1966
  %10153 = vmatmul.mubr.bf16.gmra.mrb[0].mxu0 %v1965
  %v10154 = vpop.f32.mrb[0].mxu0
  %v10155 = vadd.f32 %v10072, %v10154
  %v10156 = vpop.f32.mrb[0].mxu0
  %v10157 = vadd.f32 %v10074, %v10156
  %v10158 = vpop.f32.mrb[0].mxu0
  %v10159 = vadd.f32 %v10076, %v10158
  %v10160 = vpop.f32.mrb[0].mxu0
  %v10161 = vadd.f32 %v10078, %v10160
  %10162 = vmatprep.mubr.bf16.mxu0 %v2002
  %10163 = vmatmul.mubr.bf16.gmra.mrb[0].mxu0 %v2001
  %v10164 = vpop.f32.mrb[0].mxu0
  %v10165 = vadd.f32 %v10082, %v10164
  %v10166 = vpop.f32.mrb[0].mxu0
  %v10167 = vadd.f32 %v10084, %v10166
  %v10168 = vpop.f32.mrb[0].mxu0
  %v10169 = vadd.f32 %v10086, %v10168
  %v10170 = vpop.f32.mrb[0].mxu0
  %v10171 = vadd.f32 %v10088, %v10170
  %10172 = vmatprep.mubr.bf16.mxu0 %v2038
  %10173 = vmatmul.mubr.bf16.gmra.mrb[0].mxu0 %v2037
  %v10174 = vpop.f32.mrb[0].mxu0
  %v10175 = vadd.f32 %v10092, %v10174
  %v10176 = vpop.f32.mrb[0].mxu0
  %v10177 = vadd.f32 %v10094, %v10176
  %v10178 = vpop.f32.mrb[0].mxu0
  %v10179 = vadd.f32 %v10096, %v10178
  %v10180 = vpop.f32.mrb[0].mxu0
  %v10181 = vadd.f32 %v10098, %v10180
  %10182 = vmatprep.mubr.bf16.mxu0 %v2074
  %10183 = vmatmul.mubr.bf16.gmra.mrb[0].mxu0 %v2073
  %v10184 = vpop.f32.mrb[0].mxu0
  %v10185 = vadd.f32 %v10102, %v10184
  %v10186 = vpop.f32.mrb[0].mxu0
  %v10187 = vadd.f32 %v10104, %v10186
  %v10188 = vpop.f32.mrb[0].mxu0
  %v10189 = vadd.f32 %v10106, %v10188
  %v10190 = vpop.f32.mrb[0].mxu0
  %v10191 = vadd.f32 %v10108, %v10190
  %10192 = vdwg.mxu0
  %10193 = vmatprep.subr.bf16.mxu0 %v6246
  %10194 = vmatpush1.bf16.msra.mxu0 %v6245
  %10195 = vmatprep.subr.bf16.mxu0 %v6250
  %10196 = vmatpush1.bf16.msra.mxu0 %v6249
  %10197 = vmatprep.subr.bf16.mxu0 %v6254
  %10198 = vmatpush1.bf16.msra.mxu0 %v6253
  %10199 = vmatprep.subr.bf16.mxu0 %v6258
  %10200 = vmatpush1.bf16.msra.mxu0 %v6257
  %10201 = vmatprep.subr.bf16.mxu0 %v6262
  %10202 = vmatpush1.bf16.msra.mxu0 %v6261
  %10203 = vmatprep.subr.bf16.mxu0 %v6266
  %10204 = vmatpush1.bf16.msra.mxu0 %v6265
  %10205 = vmatprep.subr.bf16.mxu0 %v6270
  %10206 = vmatpush1.bf16.msra.mxu0 %v6269
  %10207 = vmatprep.subr.bf16.mxu0 %v6274
  %10208 = vmatpush1.bf16.msra.mxu0 %v6273
  %10209 = vmatprep.subr.bf16.mxu0 %v6278
  %10210 = vmatpush1.bf16.msra.mxu0 %v6277
  %10211 = vmatprep.subr.bf16.mxu0 %v6282
  %10212 = vmatpush1.bf16.msra.mxu0 %v6281
  %10213 = vmatprep.subr.bf16.mxu0 %v6286
  %10214 = vmatpush1.bf16.msra.mxu0 %v6285
  %10215 = vmatprep.subr.bf16.mxu0 %v6290
  %10216 = vmatpush1.bf16.msra.mxu0 %v6289
  %10217 = vmatprep.subr.bf16.mxu0 %v6294
  %10218 = vmatpush1.bf16.msra.mxu0 %v6293
  %10219 = vmatprep.subr.bf16.mxu0 %v6298
  %10220 = vmatpush1.bf16.msra.mxu0 %v6297
  %10221 = vmatprep.subr.bf16.mxu0 %v6302
  %10222 = vmatpush1.bf16.msra.mxu0 %v6301
  %10223 = vmatprep.subr.bf16.mxu0 %v6306
  %10224 = vmatpush1.bf16.msra.mxu0 %v6305
  %10225 = vmatprep.mubr.bf16.mxu0 %v1932
  %10226 = vmatmul.mubr.bf16.gmra.mrb[0].mxu0 %v1931
  %v10227 = vpop.f32.mrb[0].mxu0
  %v10228 = vadd.f32 %v10145, %v10227
  %v10229 = vpop.f32.mrb[0].mxu0
  %v10230 = vadd.f32 %v10147, %v10229
  %v10231 = vpop.f32.mrb[0].mxu0
  %v10232 = vadd.f32 %v10149, %v10231
  %v10233 = vpop.f32.mrb[0].mxu0
  %v10234 = vadd.f32 %v10151, %v10233
  %10235 = vmatprep.mubr.bf16.mxu0 %v1968
  %10236 = vmatmul.mubr.bf16.gmra.mrb[0].mxu0 %v1967
  %v10237 = vpop.f32.mrb[0].mxu0
  %v10238 = vadd.f32 %v10155, %v10237
  %v10239 = vpop.f32.mrb[0].mxu0
  %v10240 = vadd.f32 %v10157, %v10239
  %v10241 = vpop.f32.mrb[0].mxu0
  %v10242 = vadd.f32 %v10159, %v10241
  %v10243 = vpop.f32.mrb[0].mxu0
  %v10244 = vadd.f32 %v10161, %v10243
  %10245 = vmatprep.mubr.bf16.mxu0 %v2004
  %10246 = vmatmul.mubr.bf16.gmra.mrb[0].mxu0 %v2003
  %v10247 = vpop.f32.mrb[0].mxu0
  %v10248 = vadd.f32 %v10165, %v10247
  %v10249 = vpop.f32.mrb[0].mxu0
  %v10250 = vadd.f32 %v10167, %v10249
  %v10251 = vpop.f32.mrb[0].mxu0
  %v10252 = vadd.f32 %v10169, %v10251
  %v10253 = vpop.f32.mrb[0].mxu0
  %v10254 = vadd.f32 %v10171, %v10253
  %10255 = vmatprep.mubr.bf16.mxu0 %v2040
  %10256 = vmatmul.mubr.bf16.gmra.mrb[0].mxu0 %v2039
  %v10257 = vpop.f32.mrb[0].mxu0
  %v10258 = vadd.f32 %v10175, %v10257
  %v10259 = vpop.f32.mrb[0].mxu0
  %v10260 = vadd.f32 %v10177, %v10259
  %v10261 = vpop.f32.mrb[0].mxu0
  %v10262 = vadd.f32 %v10179, %v10261
  %v10263 = vpop.f32.mrb[0].mxu0
  %v10264 = vadd.f32 %v10181, %v10263
  %10265 = vmatprep.mubr.bf16.mxu0 %v2076
  %10266 = vmatmul.mubr.bf16.gmra.mrb[0].mxu0 %v2075
  %v10267 = vpop.f32.mrb[0].mxu0
  %v10268 = vadd.f32 %v10185, %v10267
  %v10269 = vpop.f32.mrb[0].mxu0
  %v10270 = vadd.f32 %v10187, %v10269
  %v10271 = vpop.f32.mrb[0].mxu0
  %v10272 = vadd.f32 %v10189, %v10271
  %v10273 = vpop.f32.mrb[0].mxu0
  %v10274 = vadd.f32 %v10191, %v10273
  %10275 = vdwg.mxu0
  %10276 = vmatprep.subr.bf16.mxu0 %v6310
  %10277 = vmatpush1.bf16.msra.mxu0 %v6309
  %10278 = vmatprep.subr.bf16.mxu0 %v6314
  %10279 = vmatpush1.bf16.msra.mxu0 %v6313
  %10280 = vmatprep.subr.bf16.mxu0 %v6318
  %10281 = vmatpush1.bf16.msra.mxu0 %v6317
  %10282 = vmatprep.subr.bf16.mxu0 %v6322
  %10283 = vmatpush1.bf16.msra.mxu0 %v6321
  %10284 = vmatprep.subr.bf16.mxu0 %v6326
  %10285 = vmatpush1.bf16.msra.mxu0 %v6325
  %10286 = vmatprep.subr.bf16.mxu0 %v6330
  %10287 = vmatpush1.bf16.msra.mxu0 %v6329
  %10288 = vmatprep.subr.bf16.mxu0 %v6334
  %10289 = vmatpush1.bf16.msra.mxu0 %v6333
  %10290 = vmatprep.subr.bf16.mxu0 %v6338
  %10291 = vmatpush1.bf16.msra.mxu0 %v6337
  %10292 = vmatprep.subr.bf16.mxu0 %v6342
  %10293 = vmatpush1.bf16.msra.mxu0 %v6341
  %10294 = vmatprep.subr.bf16.mxu0 %v6346
  %10295 = vmatpush1.bf16.msra.mxu0 %v6345
  %10296 = vmatprep.subr.bf16.mxu0 %v6350
  %10297 = vmatpush1.bf16.msra.mxu0 %v6349
  %10298 = vmatprep.subr.bf16.mxu0 %v6354
  %10299 = vmatpush1.bf16.msra.mxu0 %v6353
  %10300 = vmatprep.subr.bf16.mxu0 %v6358
  %10301 = vmatpush1.bf16.msra.mxu0 %v6357
  %10302 = vmatprep.subr.bf16.mxu0 %v6362
  %10303 = vmatpush1.bf16.msra.mxu0 %v6361
  %10304 = vmatprep.subr.bf16.mxu0 %v6366
  %10305 = vmatpush1.bf16.msra.mxu0 %v6365
  %10306 = vmatprep.subr.bf16.mxu0 %v6370
  %10307 = vmatpush1.bf16.msra.mxu0 %v6369
  %10308 = vmatprep.mubr.bf16.mxu0 %v1934
  %10309 = vmatmul.mubr.bf16.gmra.mrb[0].mxu0 %v1933
  %v10310 = vpop.f32.mrb[0].mxu0
  %v10311 = vadd.f32 %v10228, %v10310
  %v10312 = vpop.f32.mrb[0].mxu0
  %v10313 = vadd.f32 %v10230, %v10312
  %v10314 = vpop.f32.mrb[0].mxu0
  %v10315 = vadd.f32 %v10232, %v10314
  %v10316 = vpop.f32.mrb[0].mxu0
  %v10317 = vadd.f32 %v10234, %v10316
  %10318 = vmatprep.mubr.bf16.mxu0 %v1970
  %10319 = vmatmul.mubr.bf16.gmra.mrb[0].mxu0 %v1969
  %v10320 = vpop.f32.mrb[0].mxu0
  %v10321 = vadd.f32 %v10238, %v10320
  %v10322 = vpop.f32.mrb[0].mxu0
  %v10323 = vadd.f32 %v10240, %v10322
  %v10324 = vpop.f32.mrb[0].mxu0
  %v10325 = vadd.f32 %v10242, %v10324
  %v10326 = vpop.f32.mrb[0].mxu0
  %v10327 = vadd.f32 %v10244, %v10326
  %10328 = vmatprep.mubr.bf16.mxu0 %v2006
  %10329 = vmatmul.mubr.bf16.gmra.mrb[0].mxu0 %v2005
  %v10330 = vpop.f32.mrb[0].mxu0
  %v10331 = vadd.f32 %v10248, %v10330
  %v10332 = vpop.f32.mrb[0].mxu0
  %v10333 = vadd.f32 %v10250, %v10332
  %v10334 = vpop.f32.mrb[0].mxu0
  %v10335 = vadd.f32 %v10252, %v10334
  %v10336 = vpop.f32.mrb[0].mxu0
  %v10337 = vadd.f32 %v10254, %v10336
  %10338 = vmatprep.mubr.bf16.mxu0 %v2042
  %10339 = vmatmul.mubr.bf16.gmra.mrb[0].mxu0 %v2041
  %v10340 = vpop.f32.mrb[0].mxu0
  %v10341 = vadd.f32 %v10258, %v10340
  %v10342 = vpop.f32.mrb[0].mxu0
  %v10343 = vadd.f32 %v10260, %v10342
  %v10344 = vpop.f32.mrb[0].mxu0
  %v10345 = vadd.f32 %v10262, %v10344
  %v10346 = vpop.f32.mrb[0].mxu0
  %v10347 = vadd.f32 %v10264, %v10346
  %10348 = vmatprep.mubr.bf16.mxu0 %v2078
  %10349 = vmatmul.mubr.bf16.gmra.mrb[0].mxu0 %v2077
  %v10350 = vpop.f32.mrb[0].mxu0
  %v10351 = vadd.f32 %v10268, %v10350
  %v10352 = vpop.f32.mrb[0].mxu0
  %v10353 = vadd.f32 %v10270, %v10352
  %v10354 = vpop.f32.mrb[0].mxu0
  %v10355 = vadd.f32 %v10272, %v10354
  %v10356 = vpop.f32.mrb[0].mxu0
  %v10357 = vadd.f32 %v10274, %v10356
  %10358 = vdwg.mxu0
  %10359 = vmatprep.subr.bf16.mxu0 %v6374
  %10360 = vmatpush1.bf16.msra.mxu0 %v6373
  %10361 = vmatprep.subr.bf16.mxu0 %v6378
  %10362 = vmatpush1.bf16.msra.mxu0 %v6377
  %10363 = vmatprep.subr.bf16.mxu0 %v6382
  %10364 = vmatpush1.bf16.msra.mxu0 %v6381
  %10365 = vmatprep.subr.bf16.mxu0 %v6386
  %10366 = vmatpush1.bf16.msra.mxu0 %v6385
  %10367 = vmatprep.subr.bf16.mxu0 %v6390
  %10368 = vmatpush1.bf16.msra.mxu0 %v6389
  %10369 = vmatprep.subr.bf16.mxu0 %v6394
  %10370 = vmatpush1.bf16.msra.mxu0 %v6393
  %10371 = vmatprep.subr.bf16.mxu0 %v6398
  %10372 = vmatpush1.bf16.msra.mxu0 %v6397
  %10373 = vmatprep.subr.bf16.mxu0 %v6402
  %10374 = vmatpush1.bf16.msra.mxu0 %v6401
  %10375 = vmatprep.subr.bf16.mxu0 %v6406
  %10376 = vmatpush1.bf16.msra.mxu0 %v6405
  %10377 = vmatprep.subr.bf16.mxu0 %v6410
  %10378 = vmatpush1.bf16.msra.mxu0 %v6409
  %10379 = vmatprep.subr.bf16.mxu0 %v6414
  %10380 = vmatpush1.bf16.msra.mxu0 %v6413
  %10381 = vmatprep.subr.bf16.mxu0 %v6418
  %10382 = vmatpush1.bf16.msra.mxu0 %v6417
  %10383 = vmatprep.subr.bf16.mxu0 %v6422
  %10384 = vmatpush1.bf16.msra.mxu0 %v6421
  %10385 = vmatprep.subr.bf16.mxu0 %v6426
  %10386 = vmatpush1.bf16.msra.mxu0 %v6425
  %10387 = vmatprep.subr.bf16.mxu0 %v6430
  %10388 = vmatpush1.bf16.msra.mxu0 %v6429
  %10389 = vmatprep.subr.bf16.mxu0 %v6434
  %10390 = vmatpush1.bf16.msra.mxu0 %v6433
  %10391 = vmatprep.mubr.bf16.mxu0 %v1936
  %10392 = vmatmul.mubr.bf16.gmra.mrb[0].mxu0 %v1935
  %v10393 = vpop.f32.mrb[0].mxu0
  %v10394 = vadd.f32 %v10311, %v10393
  %v10395 = vpop.f32.mrb[0].mxu0
  %v10396 = vadd.f32 %v10313, %v10395
  %v10397 = vpop.f32.mrb[0].mxu0
  %v10398 = vadd.f32 %v10315, %v10397
  %v10399 = vpop.f32.mrb[0].mxu0
  %v10400 = vadd.f32 %v10317, %v10399
  %10401 = vmatprep.mubr.bf16.mxu0 %v1972
  %10402 = vmatmul.mubr.bf16.gmra.mrb[0].mxu0 %v1971
  %v10403 = vpop.f32.mrb[0].mxu0
  %v10404 = vadd.f32 %v10321, %v10403
  %v10405 = vpop.f32.mrb[0].mxu0
  %v10406 = vadd.f32 %v10323, %v10405
  %v10407 = vpop.f32.mrb[0].mxu0
  %v10408 = vadd.f32 %v10325, %v10407
  %v10409 = vpop.f32.mrb[0].mxu0
  %v10410 = vadd.f32 %v10327, %v10409
  %10411 = vmatprep.mubr.bf16.mxu0 %v2008
  %10412 = vmatmul.mubr.bf16.gmra.mrb[0].mxu0 %v2007
  %v10413 = vpop.f32.mrb[0].mxu0
  %v10414 = vadd.f32 %v10331, %v10413
  %v10415 = vpop.f32.mrb[0].mxu0
  %v10416 = vadd.f32 %v10333, %v10415
  %v10417 = vpop.f32.mrb[0].mxu0
  %v10418 = vadd.f32 %v10335, %v10417
  %v10419 = vpop.f32.mrb[0].mxu0
  %v10420 = vadd.f32 %v10337, %v10419
  %10421 = vmatprep.mubr.bf16.mxu0 %v2044
  %10422 = vmatmul.mubr.bf16.gmra.mrb[0].mxu0 %v2043
  %v10423 = vpop.f32.mrb[0].mxu0
  %v10424 = vadd.f32 %v10341, %v10423
  %v10425 = vpop.f32.mrb[0].mxu0
  %v10426 = vadd.f32 %v10343, %v10425
  %v10427 = vpop.f32.mrb[0].mxu0
  %v10428 = vadd.f32 %v10345, %v10427
  %v10429 = vpop.f32.mrb[0].mxu0
  %v10430 = vadd.f32 %v10347, %v10429
  %10431 = vmatprep.mubr.bf16.mxu0 %v2080
  %10432 = vmatmul.mubr.bf16.gmra.mrb[0].mxu0 %v2079
  %v10433 = vpop.f32.mrb[0].mxu0
  %v10434 = vadd.f32 %v10351, %v10433
  %v10435 = vpop.f32.mrb[0].mxu0
  %v10436 = vadd.f32 %v10353, %v10435
  %v10437 = vpop.f32.mrb[0].mxu0
  %v10438 = vadd.f32 %v10355, %v10437
  %v10439 = vpop.f32.mrb[0].mxu0
  %v10440 = vadd.f32 %v10357, %v10439
  %10441 = vdwg.mxu0
  %10442 = vmatprep.subr.bf16.mxu0 %v6438
  %10443 = vmatpush1.bf16.msra.mxu0 %v6437
  %10444 = vmatprep.subr.bf16.mxu0 %v6442
  %10445 = vmatpush1.bf16.msra.mxu0 %v6441
  %10446 = vmatprep.subr.bf16.mxu0 %v6446
  %10447 = vmatpush1.bf16.msra.mxu0 %v6445
  %10448 = vmatprep.subr.bf16.mxu0 %v6450
  %10449 = vmatpush1.bf16.msra.mxu0 %v6449
  %10450 = vmatprep.subr.bf16.mxu0 %v6454
  %10451 = vmatpush1.bf16.msra.mxu0 %v6453
  %10452 = vmatprep.subr.bf16.mxu0 %v6458
  %10453 = vmatpush1.bf16.msra.mxu0 %v6457
  %10454 = vmatprep.subr.bf16.mxu0 %v6462
  %10455 = vmatpush1.bf16.msra.mxu0 %v6461
  %10456 = vmatprep.subr.bf16.mxu0 %v6466
  %10457 = vmatpush1.bf16.msra.mxu0 %v6465
  %10458 = vmatprep.subr.bf16.mxu0 %v6470
  %10459 = vmatpush1.bf16.msra.mxu0 %v6469
  %10460 = vmatprep.subr.bf16.mxu0 %v6474
  %10461 = vmatpush1.bf16.msra.mxu0 %v6473
  %10462 = vmatprep.subr.bf16.mxu0 %v6478
  %10463 = vmatpush1.bf16.msra.mxu0 %v6477
  %10464 = vmatprep.subr.bf16.mxu0 %v6482
  %10465 = vmatpush1.bf16.msra.mxu0 %v6481
  %10466 = vmatprep.subr.bf16.mxu0 %v6486
  %10467 = vmatpush1.bf16.msra.mxu0 %v6485
  %10468 = vmatprep.subr.bf16.mxu0 %v6490
  %10469 = vmatpush1.bf16.msra.mxu0 %v6489
  %10470 = vmatprep.subr.bf16.mxu0 %v6494
  %10471 = vmatpush1.bf16.msra.mxu0 %v6493
  %10472 = vmatprep.subr.bf16.mxu0 %v6498
  %10473 = vmatpush1.bf16.msra.mxu0 %v6497
  %10474 = vmatprep.mubr.bf16.mxu0 %v1938
  %10475 = vmatmul.mubr.bf16.gmra.mrb[0].mxu0 %v1937
  %v10476 = vpop.f32.mrb[0].mxu0
  %v10477 = vadd.f32 %v10394, %v10476
  %v10478 = vpop.f32.mrb[0].mxu0
  %v10479 = vadd.f32 %v10396, %v10478
  %v10480 = vpop.f32.mrb[0].mxu0
  %v10481 = vadd.f32 %v10398, %v10480
  %v10482 = vpop.f32.mrb[0].mxu0
  %v10483 = vadd.f32 %v10400, %v10482
  %10484 = vmatprep.mubr.bf16.mxu0 %v1974
  %10485 = vmatmul.mubr.bf16.gmra.mrb[0].mxu0 %v1973
  %v10486 = vpop.f32.mrb[0].mxu0
  %v10487 = vadd.f32 %v10404, %v10486
  %v10488 = vpop.f32.mrb[0].mxu0
  %v10489 = vadd.f32 %v10406, %v10488
  %v10490 = vpop.f32.mrb[0].mxu0
  %v10491 = vadd.f32 %v10408, %v10490
  %v10492 = vpop.f32.mrb[0].mxu0
  %v10493 = vadd.f32 %v10410, %v10492
  %10494 = vmatprep.mubr.bf16.mxu0 %v2010
  %10495 = vmatmul.mubr.bf16.gmra.mrb[0].mxu0 %v2009
  %v10496 = vpop.f32.mrb[0].mxu0
  %v10497 = vadd.f32 %v10414, %v10496
  %v10498 = vpop.f32.mrb[0].mxu0
  %v10499 = vadd.f32 %v10416, %v10498
  %v10500 = vpop.f32.mrb[0].mxu0
  %v10501 = vadd.f32 %v10418, %v10500
  %v10502 = vpop.f32.mrb[0].mxu0
  %v10503 = vadd.f32 %v10420, %v10502
  %10504 = vmatprep.mubr.bf16.mxu0 %v2046
  %10505 = vmatmul.mubr.bf16.gmra.mrb[0].mxu0 %v2045
  %v10506 = vpop.f32.mrb[0].mxu0
  %v10507 = vadd.f32 %v10424, %v10506
  %v10508 = vpop.f32.mrb[0].mxu0
  %v10509 = vadd.f32 %v10426, %v10508
  %v10510 = vpop.f32.mrb[0].mxu0
  %v10511 = vadd.f32 %v10428, %v10510
  %v10512 = vpop.f32.mrb[0].mxu0
  %v10513 = vadd.f32 %v10430, %v10512
  %10514 = vmatprep.mubr.bf16.mxu0 %v2082
  %10515 = vmatmul.mubr.bf16.gmra.mrb[0].mxu0 %v2081
  %v10516 = vpop.f32.mrb[0].mxu0
  %v10517 = vadd.f32 %v10434, %v10516
  %v10518 = vpop.f32.mrb[0].mxu0
  %v10519 = vadd.f32 %v10436, %v10518
  %v10520 = vpop.f32.mrb[0].mxu0
  %v10521 = vadd.f32 %v10438, %v10520
  %v10522 = vpop.f32.mrb[0].mxu0
  %v10523 = vadd.f32 %v10440, %v10522
  %10524 = vdwg.mxu0
  %10525 = vmatprep.subr.bf16.mxu0 %v6502
  %10526 = vmatpush1.bf16.msra.mxu0 %v6501
  %10527 = vmatprep.subr.bf16.mxu0 %v6506
  %10528 = vmatpush1.bf16.msra.mxu0 %v6505
  %10529 = vmatprep.subr.bf16.mxu0 %v6510
  %10530 = vmatpush1.bf16.msra.mxu0 %v6509
  %10531 = vmatprep.subr.bf16.mxu0 %v6514
  %10532 = vmatpush1.bf16.msra.mxu0 %v6513
  %10533 = vmatprep.subr.bf16.mxu0 %v6518
  %10534 = vmatpush1.bf16.msra.mxu0 %v6517
  %10535 = vmatprep.subr.bf16.mxu0 %v6522
  %10536 = vmatpush1.bf16.msra.mxu0 %v6521
  %10537 = vmatprep.subr.bf16.mxu0 %v6526
  %10538 = vmatpush1.bf16.msra.mxu0 %v6525
  %10539 = vmatprep.subr.bf16.mxu0 %v6530
  %10540 = vmatpush1.bf16.msra.mxu0 %v6529
  %10541 = vmatprep.subr.bf16.mxu0 %v6534
  %10542 = vmatpush1.bf16.msra.mxu0 %v6533
  %10543 = vmatprep.subr.bf16.mxu0 %v6538
  %10544 = vmatpush1.bf16.msra.mxu0 %v6537
  %10545 = vmatprep.subr.bf16.mxu0 %v6542
  %10546 = vmatpush1.bf16.msra.mxu0 %v6541
  %10547 = vmatprep.subr.bf16.mxu0 %v6546
  %10548 = vmatpush1.bf16.msra.mxu0 %v6545
  %10549 = vmatprep.subr.bf16.mxu0 %v6550
  %10550 = vmatpush1.bf16.msra.mxu0 %v6549
  %10551 = vmatprep.subr.bf16.mxu0 %v6554
  %10552 = vmatpush1.bf16.msra.mxu0 %v6553
  %10553 = vmatprep.subr.bf16.mxu0 %v6558
  %10554 = vmatpush1.bf16.msra.mxu0 %v6557
  %10555 = vmatprep.subr.bf16.mxu0 %v6562
  %10556 = vmatpush1.bf16.msra.mxu0 %v6561
  %10557 = vmatprep.mubr.bf16.mxu0 %v1940
  %10558 = vmatmul.mubr.bf16.gmra.mrb[0].mxu0 %v1939
  %v10559 = vpop.f32.mrb[0].mxu0
  %v10560 = vadd.f32 %v10477, %v10559
  %v10561 = vpop.f32.mrb[0].mxu0
  %v10562 = vadd.f32 %v10479, %v10561
  %v10563 = vpop.f32.mrb[0].mxu0
  %v10564 = vadd.f32 %v10481, %v10563
  %v10565 = vpop.f32.mrb[0].mxu0
  %v10566 = vadd.f32 %v10483, %v10565
  %10567 = vmatprep.mubr.bf16.mxu0 %v1976
  %10568 = vmatmul.mubr.bf16.gmra.mrb[0].mxu0 %v1975
  %v10569 = vpop.f32.mrb[0].mxu0
  %v10570 = vadd.f32 %v10487, %v10569
  %v10571 = vpop.f32.mrb[0].mxu0
  %v10572 = vadd.f32 %v10489, %v10571
  %v10573 = vpop.f32.mrb[0].mxu0
  %v10574 = vadd.f32 %v10491, %v10573
  %v10575 = vpop.f32.mrb[0].mxu0
  %v10576 = vadd.f32 %v10493, %v10575
  %10577 = vmatprep.mubr.bf16.mxu0 %v2012
  %10578 = vmatmul.mubr.bf16.gmra.mrb[0].mxu0 %v2011
  %v10579 = vpop.f32.mrb[0].mxu0
  %v10580 = vadd.f32 %v10497, %v10579
  %v10581 = vpop.f32.mrb[0].mxu0
  %v10582 = vadd.f32 %v10499, %v10581
  %v10583 = vpop.f32.mrb[0].mxu0
  %v10584 = vadd.f32 %v10501, %v10583
  %v10585 = vpop.f32.mrb[0].mxu0
  %v10586 = vadd.f32 %v10503, %v10585
  %10587 = vmatprep.mubr.bf16.mxu0 %v2048
  %10588 = vmatmul.mubr.bf16.gmra.mrb[0].mxu0 %v2047
  %v10589 = vpop.f32.mrb[0].mxu0
  %v10590 = vadd.f32 %v10507, %v10589
  %v10591 = vpop.f32.mrb[0].mxu0
  %v10592 = vadd.f32 %v10509, %v10591
  %v10593 = vpop.f32.mrb[0].mxu0
  %v10594 = vadd.f32 %v10511, %v10593
  %v10595 = vpop.f32.mrb[0].mxu0
  %v10596 = vadd.f32 %v10513, %v10595
  %10597 = vmatprep.mubr.bf16.mxu0 %v2084
  %10598 = vmatmul.mubr.bf16.gmra.mrb[0].mxu0 %v2083
  %v10599 = vpop.f32.mrb[0].mxu0
  %v10600 = vadd.f32 %v10517, %v10599
  %v10601 = vpop.f32.mrb[0].mxu0
  %v10602 = vadd.f32 %v10519, %v10601
  %v10603 = vpop.f32.mrb[0].mxu0
  %v10604 = vadd.f32 %v10521, %v10603
  %v10605 = vpop.f32.mrb[0].mxu0
  %v10606 = vadd.f32 %v10523, %v10605
  %10607 = vdwg.mxu0
  %10608 = vmatprep.subr.bf16.mxu0 %v6566
  %10609 = vmatpush1.bf16.msra.mxu0 %v6565
  %10610 = vmatprep.subr.bf16.mxu0 %v6570
  %10611 = vmatpush1.bf16.msra.mxu0 %v6569
  %10612 = vmatprep.subr.bf16.mxu0 %v6574
  %10613 = vmatpush1.bf16.msra.mxu0 %v6573
  %10614 = vmatprep.subr.bf16.mxu0 %v6578
  %10615 = vmatpush1.bf16.msra.mxu0 %v6577
  %10616 = vmatprep.subr.bf16.mxu0 %v6582
  %10617 = vmatpush1.bf16.msra.mxu0 %v6581
  %10618 = vmatprep.subr.bf16.mxu0 %v6586
  %10619 = vmatpush1.bf16.msra.mxu0 %v6585
  %10620 = vmatprep.subr.bf16.mxu0 %v6590
  %10621 = vmatpush1.bf16.msra.mxu0 %v6589
  %10622 = vmatprep.subr.bf16.mxu0 %v6594
  %10623 = vmatpush1.bf16.msra.mxu0 %v6593
  %10624 = vmatprep.subr.bf16.mxu0 %v6598
  %10625 = vmatpush1.bf16.msra.mxu0 %v6597
  %10626 = vmatprep.subr.bf16.mxu0 %v6602
  %10627 = vmatpush1.bf16.msra.mxu0 %v6601
  %10628 = vmatprep.subr.bf16.mxu0 %v6606
  %10629 = vmatpush1.bf16.msra.mxu0 %v6605
  %10630 = vmatprep.subr.bf16.mxu0 %v6610
  %10631 = vmatpush1.bf16.msra.mxu0 %v6609
  %10632 = vmatprep.subr.bf16.mxu0 %v6614
  %10633 = vmatpush1.bf16.msra.mxu0 %v6613
  %10634 = vmatprep.subr.bf16.mxu0 %v6618
  %10635 = vmatpush1.bf16.msra.mxu0 %v6617
  %10636 = vmatprep.subr.bf16.mxu0 %v6622
  %10637 = vmatpush1.bf16.msra.mxu0 %v6621
  %10638 = vmatprep.subr.bf16.mxu0 %v6626
  %10639 = vmatpush1.bf16.msra.mxu0 %v6625
  %10640 = vmatprep.mubr.bf16.mxu0 %v1942
  %10641 = vmatmul.mubr.bf16.gmra.mrb[0].mxu0 %v1941
  %v10642 = vpop.f32.mrb[0].mxu0
  %v10643 = vadd.f32 %v10560, %v10642
  %v10644 = vpop.f32.mrb[0].mxu0
  %v10645 = vadd.f32 %v10562, %v10644
  %v10646 = vpop.f32.mrb[0].mxu0
  %v10647 = vadd.f32 %v10564, %v10646
  %v10648 = vpop.f32.mrb[0].mxu0
  %v10649 = vadd.f32 %v10566, %v10648
  %10650 = vmatprep.mubr.bf16.mxu0 %v1978
  %10651 = vmatmul.mubr.bf16.gmra.mrb[0].mxu0 %v1977
  %v10652 = vpop.f32.mrb[0].mxu0
  %v10653 = vadd.f32 %v10570, %v10652
  %v10654 = vpop.f32.mrb[0].mxu0
  %v10655 = vadd.f32 %v10572, %v10654
  %v10656 = vpop.f32.mrb[0].mxu0
  %v10657 = vadd.f32 %v10574, %v10656
  %v10658 = vpop.f32.mrb[0].mxu0
  %v10659 = vadd.f32 %v10576, %v10658
  %10660 = vmatprep.mubr.bf16.mxu0 %v2014
  %10661 = vmatmul.mubr.bf16.gmra.mrb[0].mxu0 %v2013
  %v10662 = vpop.f32.mrb[0].mxu0
  %v10663 = vadd.f32 %v10580, %v10662
  %v10664 = vpop.f32.mrb[0].mxu0
  %v10665 = vadd.f32 %v10582, %v10664
  %v10666 = vpop.f32.mrb[0].mxu0
  %v10667 = vadd.f32 %v10584, %v10666
  %v10668 = vpop.f32.mrb[0].mxu0
  %v10669 = vadd.f32 %v10586, %v10668
  %10670 = vmatprep.mubr.bf16.mxu0 %v2050
  %10671 = vmatmul.mubr.bf16.gmra.mrb[0].mxu0 %v2049
  %v10672 = vpop.f32.mrb[0].mxu0
  %v10673 = vadd.f32 %v10590, %v10672
  %v10674 = vpop.f32.mrb[0].mxu0
  %v10675 = vadd.f32 %v10592, %v10674
  %v10676 = vpop.f32.mrb[0].mxu0
  %v10677 = vadd.f32 %v10594, %v10676
  %v10678 = vpop.f32.mrb[0].mxu0
  %v10679 = vadd.f32 %v10596, %v10678
  %10680 = vmatprep.mubr.bf16.mxu0 %v2086
  %10681 = vmatmul.mubr.bf16.gmra.mrb[0].mxu0 %v2085
  %v10682 = vpop.f32.mrb[0].mxu0
  %v10683 = vadd.f32 %v10600, %v10682
  %v10684 = vpop.f32.mrb[0].mxu0
  %v10685 = vadd.f32 %v10602, %v10684
  %v10686 = vpop.f32.mrb[0].mxu0
  %v10687 = vadd.f32 %v10604, %v10686
  %v10688 = vpop.f32.mrb[0].mxu0
  %v10689 = vadd.f32 %v10606, %v10688
  %10690 = vdwg.mxu0
  %10691 = vmatprep.subr.bf16.mxu0 %v6630
  %10692 = vmatpush1.bf16.msra.mxu0 %v6629
  %10693 = vmatprep.subr.bf16.mxu0 %v6634
  %10694 = vmatpush1.bf16.msra.mxu0 %v6633
  %10695 = vmatprep.subr.bf16.mxu0 %v6638
  %10696 = vmatpush1.bf16.msra.mxu0 %v6637
  %10697 = vmatprep.subr.bf16.mxu0 %v6642
  %10698 = vmatpush1.bf16.msra.mxu0 %v6641
  %10699 = vmatprep.subr.bf16.mxu0 %v6646
  %10700 = vmatpush1.bf16.msra.mxu0 %v6645
  %10701 = vmatprep.subr.bf16.mxu0 %v6650
  %10702 = vmatpush1.bf16.msra.mxu0 %v6649
  %10703 = vmatprep.subr.bf16.mxu0 %v6654
  %10704 = vmatpush1.bf16.msra.mxu0 %v6653
  %10705 = vmatprep.subr.bf16.mxu0 %v6658
  %10706 = vmatpush1.bf16.msra.mxu0 %v6657
  %10707 = vmatprep.subr.bf16.mxu0 %v6662
  %10708 = vmatpush1.bf16.msra.mxu0 %v6661
  %10709 = vmatprep.subr.bf16.mxu0 %v6666
  %10710 = vmatpush1.bf16.msra.mxu0 %v6665
  %10711 = vmatprep.subr.bf16.mxu0 %v6670
  %10712 = vmatpush1.bf16.msra.mxu0 %v6669
  %10713 = vmatprep.subr.bf16.mxu0 %v6674
  %10714 = vmatpush1.bf16.msra.mxu0 %v6673
  %10715 = vmatprep.subr.bf16.mxu0 %v6678
  %10716 = vmatpush1.bf16.msra.mxu0 %v6677
  %10717 = vmatprep.subr.bf16.mxu0 %v6682
  %10718 = vmatpush1.bf16.msra.mxu0 %v6681
  %10719 = vmatprep.subr.bf16.mxu0 %v6686
  %10720 = vmatpush1.bf16.msra.mxu0 %v6685
  %10721 = vmatprep.subr.bf16.mxu0 %v6690
  %10722 = vmatpush1.bf16.msra.mxu0 %v6689
  %10723 = vmatprep.mubr.bf16.mxu0 %v1944
  %10724 = vmatmul.mubr.bf16.gmra.mrb[0].mxu0 %v1943
  %v10725 = vpop.f32.mrb[0].mxu0
  %v10726 = vadd.f32 %v10643, %v10725
  %v10727 = vpop.f32.mrb[0].mxu0
  %v10728 = vadd.f32 %v10645, %v10727
  %v10729 = vpop.f32.mrb[0].mxu0
  %v10730 = vadd.f32 %v10647, %v10729
  %v10731 = vpop.f32.mrb[0].mxu0
  %v10732 = vadd.f32 %v10649, %v10731
  %10733 = vmatprep.mubr.bf16.mxu0 %v1980
  %10734 = vmatmul.mubr.bf16.gmra.mrb[0].mxu0 %v1979
  %v10735 = vpop.f32.mrb[0].mxu0
  %v10736 = vadd.f32 %v10653, %v10735
  %v10737 = vpop.f32.mrb[0].mxu0
  %v10738 = vadd.f32 %v10655, %v10737
  %v10739 = vpop.f32.mrb[0].mxu0
  %v10740 = vadd.f32 %v10657, %v10739
  %v10741 = vpop.f32.mrb[0].mxu0
  %v10742 = vadd.f32 %v10659, %v10741
  %10743 = vmatprep.mubr.bf16.mxu0 %v2016
  %10744 = vmatmul.mubr.bf16.gmra.mrb[0].mxu0 %v2015
  %v10745 = vpop.f32.mrb[0].mxu0
  %v10746 = vadd.f32 %v10663, %v10745
  %v10747 = vpop.f32.mrb[0].mxu0
  %v10748 = vadd.f32 %v10665, %v10747
  %v10749 = vpop.f32.mrb[0].mxu0
  %v10750 = vadd.f32 %v10667, %v10749
  %v10751 = vpop.f32.mrb[0].mxu0
  %v10752 = vadd.f32 %v10669, %v10751
  %10753 = vmatprep.mubr.bf16.mxu0 %v2052
  %10754 = vmatmul.mubr.bf16.gmra.mrb[0].mxu0 %v2051
  %v10755 = vpop.f32.mrb[0].mxu0
  %v10756 = vadd.f32 %v10673, %v10755
  %v10757 = vpop.f32.mrb[0].mxu0
  %v10758 = vadd.f32 %v10675, %v10757
  %v10759 = vpop.f32.mrb[0].mxu0
  %v10760 = vadd.f32 %v10677, %v10759
  %v10761 = vpop.f32.mrb[0].mxu0
  %v10762 = vadd.f32 %v10679, %v10761
  %10763 = vmatprep.mubr.bf16.mxu0 %v2088
  %10764 = vmatmul.mubr.bf16.gmra.mrb[0].mxu0 %v2087
  %v10765 = vpop.f32.mrb[0].mxu0
  %v10766 = vadd.f32 %v10683, %v10765
  %v10767 = vpop.f32.mrb[0].mxu0
  %v10768 = vadd.f32 %v10685, %v10767
  %v10769 = vpop.f32.mrb[0].mxu0
  %v10770 = vadd.f32 %v10687, %v10769
  %v10771 = vpop.f32.mrb[0].mxu0
  %v10772 = vadd.f32 %v10689, %v10771
  %10773 = vdwg.mxu0
  %10774 = vmatprep.subr.bf16.mxu0 %v6694
  %10775 = vmatpush1.bf16.msra.mxu0 %v6693
  %10776 = vmatprep.subr.bf16.mxu0 %v6698
  %10777 = vmatpush1.bf16.msra.mxu0 %v6697
  %10778 = vmatprep.subr.bf16.mxu0 %v6702
  %10779 = vmatpush1.bf16.msra.mxu0 %v6701
  %10780 = vmatprep.subr.bf16.mxu0 %v6706
  %10781 = vmatpush1.bf16.msra.mxu0 %v6705
  %10782 = vmatprep.subr.bf16.mxu0 %v6710
  %10783 = vmatpush1.bf16.msra.mxu0 %v6709
  %10784 = vmatprep.subr.bf16.mxu0 %v6714
  %10785 = vmatpush1.bf16.msra.mxu0 %v6713
  %10786 = vmatprep.subr.bf16.mxu0 %v6718
  %10787 = vmatpush1.bf16.msra.mxu0 %v6717
  %10788 = vmatprep.subr.bf16.mxu0 %v6722
  %10789 = vmatpush1.bf16.msra.mxu0 %v6721
  %10790 = vmatprep.subr.bf16.mxu0 %v6726
  %10791 = vmatpush1.bf16.msra.mxu0 %v6725
  %10792 = vmatprep.subr.bf16.mxu0 %v6730
  %10793 = vmatpush1.bf16.msra.mxu0 %v6729
  %10794 = vmatprep.subr.bf16.mxu0 %v6734
  %10795 = vmatpush1.bf16.msra.mxu0 %v6733
  %10796 = vmatprep.subr.bf16.mxu0 %v6738
  %10797 = vmatpush1.bf16.msra.mxu0 %v6737
  %10798 = vmatprep.subr.bf16.mxu0 %v6742
  %10799 = vmatpush1.bf16.msra.mxu0 %v6741
  %10800 = vmatprep.subr.bf16.mxu0 %v6746
  %10801 = vmatpush1.bf16.msra.mxu0 %v6745
  %10802 = vmatprep.subr.bf16.mxu0 %v6750
  %10803 = vmatpush1.bf16.msra.mxu0 %v6749
  %10804 = vmatprep.subr.bf16.mxu0 %v6754
  %10805 = vmatpush1.bf16.msra.mxu0 %v6753
  %10806 = vmatprep.mubr.bf16.mxu0 %v1946
  %10807 = vmatmul.mubr.bf16.gmra.mrb[0].mxu0 %v1945
  %v10808 = vpop.f32.mrb[0].mxu0
  %v10809 = vadd.f32 %v10726, %v10808
  %v10810 = vpop.f32.mrb[0].mxu0
  %v10811 = vadd.f32 %v10728, %v10810
  %v10812 = vpop.f32.mrb[0].mxu0
  %v10813 = vadd.f32 %v10730, %v10812
  %v10814 = vpop.f32.mrb[0].mxu0
  %v10815 = vadd.f32 %v10732, %v10814
  %10816 = vmatprep.mubr.bf16.mxu0 %v1982
  %10817 = vmatmul.mubr.bf16.gmra.mrb[0].mxu0 %v1981
  %v10818 = vpop.f32.mrb[0].mxu0
  %v10819 = vadd.f32 %v10736, %v10818
  %v10820 = vpop.f32.mrb[0].mxu0
  %v10821 = vadd.f32 %v10738, %v10820
  %v10822 = vpop.f32.mrb[0].mxu0
  %v10823 = vadd.f32 %v10740, %v10822
  %v10824 = vpop.f32.mrb[0].mxu0
  %v10825 = vadd.f32 %v10742, %v10824
  %10826 = vmatprep.mubr.bf16.mxu0 %v2018
  %10827 = vmatmul.mubr.bf16.gmra.mrb[0].mxu0 %v2017
  %v10828 = vpop.f32.mrb[0].mxu0
  %v10829 = vadd.f32 %v10746, %v10828
  %v10830 = vpop.f32.mrb[0].mxu0
  %v10831 = vadd.f32 %v10748, %v10830
  %v10832 = vpop.f32.mrb[0].mxu0
  %v10833 = vadd.f32 %v10750, %v10832
  %v10834 = vpop.f32.mrb[0].mxu0
  %v10835 = vadd.f32 %v10752, %v10834
  %10836 = vmatprep.mubr.bf16.mxu0 %v2054
  %10837 = vmatmul.mubr.bf16.gmra.mrb[0].mxu0 %v2053
  %v10838 = vpop.f32.mrb[0].mxu0
  %v10839 = vadd.f32 %v10756, %v10838
  %v10840 = vpop.f32.mrb[0].mxu0
  %v10841 = vadd.f32 %v10758, %v10840
  %v10842 = vpop.f32.mrb[0].mxu0
  %v10843 = vadd.f32 %v10760, %v10842
  %v10844 = vpop.f32.mrb[0].mxu0
  %v10845 = vadd.f32 %v10762, %v10844
  %10846 = vmatprep.mubr.bf16.mxu0 %v2090
  %10847 = vmatmul.mubr.bf16.gmra.mrb[0].mxu0 %v2089
  %v10848 = vpop.f32.mrb[0].mxu0
  %v10849 = vadd.f32 %v10766, %v10848
  %v10850 = vpop.f32.mrb[0].mxu0
  %v10851 = vadd.f32 %v10768, %v10850
  %v10852 = vpop.f32.mrb[0].mxu0
  %v10853 = vadd.f32 %v10770, %v10852
  %v10854 = vpop.f32.mrb[0].mxu0
  %v10855 = vadd.f32 %v10772, %v10854
  %10856 = vdwg.mxu0
  %10857 = vmatprep.subr.bf16.mxu0 %v6758
  %10858 = vmatpush1.bf16.msra.mxu0 %v6757
  %10859 = vmatprep.subr.bf16.mxu0 %v6762
  %10860 = vmatpush1.bf16.msra.mxu0 %v6761
  %10861 = vmatprep.subr.bf16.mxu0 %v6766
  %10862 = vmatpush1.bf16.msra.mxu0 %v6765
  %10863 = vmatprep.subr.bf16.mxu0 %v6770
  %10864 = vmatpush1.bf16.msra.mxu0 %v6769
  %10865 = vmatprep.subr.bf16.mxu0 %v6774
  %10866 = vmatpush1.bf16.msra.mxu0 %v6773
  %10867 = vmatprep.subr.bf16.mxu0 %v6778
  %10868 = vmatpush1.bf16.msra.mxu0 %v6777
  %10869 = vmatprep.subr.bf16.mxu0 %v6782
  %10870 = vmatpush1.bf16.msra.mxu0 %v6781
  %10871 = vmatprep.subr.bf16.mxu0 %v6786
  %10872 = vmatpush1.bf16.msra.mxu0 %v6785
  %10873 = vmatprep.subr.bf16.mxu0 %v6790
  %10874 = vmatpush1.bf16.msra.mxu0 %v6789
  %10875 = vmatprep.subr.bf16.mxu0 %v6794
  %10876 = vmatpush1.bf16.msra.mxu0 %v6793
  %10877 = vmatprep.subr.bf16.mxu0 %v6798
  %10878 = vmatpush1.bf16.msra.mxu0 %v6797
  %10879 = vmatprep.subr.bf16.mxu0 %v6802
  %10880 = vmatpush1.bf16.msra.mxu0 %v6801
  %10881 = vmatprep.subr.bf16.mxu0 %v6806
  %10882 = vmatpush1.bf16.msra.mxu0 %v6805
  %10883 = vmatprep.subr.bf16.mxu0 %v6810
  %10884 = vmatpush1.bf16.msra.mxu0 %v6809
  %10885 = vmatprep.subr.bf16.mxu0 %v6814
  %10886 = vmatpush1.bf16.msra.mxu0 %v6813
  %10887 = vmatprep.subr.bf16.mxu0 %v6818
  %10888 = vmatpush1.bf16.msra.mxu0 %v6817
  %10889 = vmatprep.mubr.bf16.mxu0 %v1948
  %10890 = vmatmul.mubr.bf16.gmra.mrb[0].mxu0 %v1947
  %v10891 = vpop.f32.mrb[0].mxu0
  %v10892 = vadd.f32 %v10809, %v10891
  %v10893 = vpop.f32.mrb[0].mxu0
  %v10894 = vadd.f32 %v10811, %v10893
  %v10895 = vpop.f32.mrb[0].mxu0
  %v10896 = vadd.f32 %v10813, %v10895
  %v10897 = vpop.f32.mrb[0].mxu0
  %v10898 = vadd.f32 %v10815, %v10897
  %10899 = vmatprep.mubr.bf16.mxu0 %v1984
  %10900 = vmatmul.mubr.bf16.gmra.mrb[0].mxu0 %v1983
  %v10901 = vpop.f32.mrb[0].mxu0
  %v10902 = vadd.f32 %v10819, %v10901
  %v10903 = vpop.f32.mrb[0].mxu0
  %v10904 = vadd.f32 %v10821, %v10903
  %v10905 = vpop.f32.mrb[0].mxu0
  %v10906 = vadd.f32 %v10823, %v10905
  %v10907 = vpop.f32.mrb[0].mxu0
  %v10908 = vadd.f32 %v10825, %v10907
  %10909 = vmatprep.mubr.bf16.mxu0 %v2020
  %10910 = vmatmul.mubr.bf16.gmra.mrb[0].mxu0 %v2019
  %v10911 = vpop.f32.mrb[0].mxu0
  %v10912 = vadd.f32 %v10829, %v10911
  %v10913 = vpop.f32.mrb[0].mxu0
  %v10914 = vadd.f32 %v10831, %v10913
  %v10915 = vpop.f32.mrb[0].mxu0
  %v10916 = vadd.f32 %v10833, %v10915
  %v10917 = vpop.f32.mrb[0].mxu0
  %v10918 = vadd.f32 %v10835, %v10917
  %10919 = vmatprep.mubr.bf16.mxu0 %v2056
  %10920 = vmatmul.mubr.bf16.gmra.mrb[0].mxu0 %v2055
  %v10921 = vpop.f32.mrb[0].mxu0
  %v10922 = vadd.f32 %v10839, %v10921
  %v10923 = vpop.f32.mrb[0].mxu0
  %v10924 = vadd.f32 %v10841, %v10923
  %v10925 = vpop.f32.mrb[0].mxu0
  %v10926 = vadd.f32 %v10843, %v10925
  %v10927 = vpop.f32.mrb[0].mxu0
  %v10928 = vadd.f32 %v10845, %v10927
  %10929 = vmatprep.mubr.bf16.mxu0 %v2092
  %10930 = vmatmul.mubr.bf16.gmra.mrb[0].mxu0 %v2091
  %v10931 = vpop.f32.mrb[0].mxu0
  %v10932 = vadd.f32 %v10849, %v10931
  %v10933 = vpop.f32.mrb[0].mxu0
  %v10934 = vadd.f32 %v10851, %v10933
  %v10935 = vpop.f32.mrb[0].mxu0
  %v10936 = vadd.f32 %v10853, %v10935
  %v10937 = vpop.f32.mrb[0].mxu0
  %v10938 = vadd.f32 %v10855, %v10937
  %10939 = vdwg.mxu0
  %10940 = vmatprep.subr.bf16.mxu0 %v6822
  %10941 = vmatpush1.bf16.msra.mxu0 %v6821
  %10942 = vmatprep.subr.bf16.mxu0 %v6826
  %10943 = vmatpush1.bf16.msra.mxu0 %v6825
  %10944 = vmatprep.subr.bf16.mxu0 %v6830
  %10945 = vmatpush1.bf16.msra.mxu0 %v6829
  %10946 = vmatprep.subr.bf16.mxu0 %v6834
  %10947 = vmatpush1.bf16.msra.mxu0 %v6833
  %10948 = vmatprep.subr.bf16.mxu0 %v6838
  %10949 = vmatpush1.bf16.msra.mxu0 %v6837
  %10950 = vmatprep.subr.bf16.mxu0 %v6842
  %10951 = vmatpush1.bf16.msra.mxu0 %v6841
  %10952 = vmatprep.subr.bf16.mxu0 %v6846
  %10953 = vmatpush1.bf16.msra.mxu0 %v6845
  %10954 = vmatprep.subr.bf16.mxu0 %v6850
  %10955 = vmatpush1.bf16.msra.mxu0 %v6849
  %10956 = vmatprep.subr.bf16.mxu0 %v6854
  %10957 = vmatpush1.bf16.msra.mxu0 %v6853
  %10958 = vmatprep.subr.bf16.mxu0 %v6858
  %10959 = vmatpush1.bf16.msra.mxu0 %v6857
  %10960 = vmatprep.subr.bf16.mxu0 %v6862
  %10961 = vmatpush1.bf16.msra.mxu0 %v6861
  %10962 = vmatprep.subr.bf16.mxu0 %v6866
  %10963 = vmatpush1.bf16.msra.mxu0 %v6865
  %10964 = vmatprep.subr.bf16.mxu0 %v6870
  %10965 = vmatpush1.bf16.msra.mxu0 %v6869
  %10966 = vmatprep.subr.bf16.mxu0 %v6874
  %10967 = vmatpush1.bf16.msra.mxu0 %v6873
  %10968 = vmatprep.subr.bf16.mxu0 %v6878
  %10969 = vmatpush1.bf16.msra.mxu0 %v6877
  %10970 = vmatprep.subr.bf16.mxu0 %v6882
  %10971 = vmatpush1.bf16.msra.mxu0 %v6881
  %10972 = vmatprep.mubr.bf16.mxu0 %v1950
  %10973 = vmatmul.mubr.bf16.gmra.mrb[0].mxu0 %v1949
  %v10974 = vpop.f32.mrb[0].mxu0
  %v10975 = vadd.f32 %v10892, %v10974
  %v10976 = vpop.f32.mrb[0].mxu0
  %v10977 = vadd.f32 %v10894, %v10976
  %v10978 = vpop.f32.mrb[0].mxu0
  %v10979 = vadd.f32 %v10896, %v10978
  %v10980 = vpop.f32.mrb[0].mxu0
  %v10981 = vadd.f32 %v10898, %v10980
  %10982 = vmatprep.mubr.bf16.mxu0 %v1986
  %10983 = vmatmul.mubr.bf16.gmra.mrb[0].mxu0 %v1985
  %v10984 = vpop.f32.mrb[0].mxu0
  %v10985 = vadd.f32 %v10902, %v10984
  %v10986 = vpop.f32.mrb[0].mxu0
  %v10987 = vadd.f32 %v10904, %v10986
  %v10988 = vpop.f32.mrb[0].mxu0
  %v10989 = vadd.f32 %v10906, %v10988
  %v10990 = vpop.f32.mrb[0].mxu0
  %v10991 = vadd.f32 %v10908, %v10990
  %10992 = vmatprep.mubr.bf16.mxu0 %v2022
  %10993 = vmatmul.mubr.bf16.gmra.mrb[0].mxu0 %v2021
  %v10994 = vpop.f32.mrb[0].mxu0
  %v10995 = vadd.f32 %v10912, %v10994
  %v10996 = vpop.f32.mrb[0].mxu0
  %v10997 = vadd.f32 %v10914, %v10996
  %v10998 = vpop.f32.mrb[0].mxu0
  %v10999 = vadd.f32 %v10916, %v10998
  %v11000 = vpop.f32.mrb[0].mxu0
  %v11001 = vadd.f32 %v10918, %v11000
  %11002 = vmatprep.mubr.bf16.mxu0 %v2058
  %11003 = vmatmul.mubr.bf16.gmra.mrb[0].mxu0 %v2057
  %v11004 = vpop.f32.mrb[0].mxu0
  %v11005 = vadd.f32 %v10922, %v11004
  %v11006 = vpop.f32.mrb[0].mxu0
  %v11007 = vadd.f32 %v10924, %v11006
  %v11008 = vpop.f32.mrb[0].mxu0
  %v11009 = vadd.f32 %v10926, %v11008
  %v11010 = vpop.f32.mrb[0].mxu0
  %v11011 = vadd.f32 %v10928, %v11010
  %11012 = vmatprep.mubr.bf16.mxu0 %v2094
  %11013 = vmatmul.mubr.bf16.gmra.mrb[0].mxu0 %v2093
  %v11014 = vpop.f32.mrb[0].mxu0
  %v11015 = vadd.f32 %v10932, %v11014
  %v11016 = vpop.f32.mrb[0].mxu0
  %v11017 = vadd.f32 %v10934, %v11016
  %v11018 = vpop.f32.mrb[0].mxu0
  %v11019 = vadd.f32 %v10936, %v11018
  %v11020 = vpop.f32.mrb[0].mxu0
  %v11021 = vadd.f32 %v10938, %v11020
  %11022 = vdwg.mxu0
  %v11023 = vmax.f32 %v9481, 0.0
  %v11024 = vmax.f32 %v9483, 0.0
  %v11025 = vmax.f32 %v10975, 0.0
  %v11026 = vmax.f32 %v10977, 0.0
  %v11027 = vmax.f32 %v9485, 0.0
  %v11028 = vmax.f32 %v9487, 0.0
  %v11029 = vmax.f32 %v10979, 0.0
  %v11030 = vmax.f32 %v10981, 0.0
  %v11031 = vmax.f32 %v9491, 0.0
  %v11032 = vmax.f32 %v9493, 0.0
  %v11033 = vmax.f32 %v10985, 0.0
  %v11034 = vmax.f32 %v10987, 0.0
  %v11035 = vmax.f32 %v9495, 0.0
  %v11036 = vmax.f32 %v9497, 0.0
  %v11037 = vmax.f32 %v10989, 0.0
  %v11038 = vmax.f32 %v10991, 0.0
  %v11039 = vmax.f32 %v9501, 0.0
  %v11040 = vmax.f32 %v9503, 0.0
  %v11041 = vmax.f32 %v10995, 0.0
  %v11042 = vmax.f32 %v10997, 0.0
  %v11043 = vmax.f32 %v9505, 0.0
  %v11044 = vmax.f32 %v9507, 0.0
  %v11045 = vmax.f32 %v10999, 0.0
  %v11046 = vmax.f32 %v11001, 0.0
  %v11047 = vmax.f32 %v9511, 0.0
  %v11048 = vmax.f32 %v9513, 0.0
  %v11049 = vmax.f32 %v11005, 0.0
  %v11050 = vmax.f32 %v11007, 0.0
  %v11051 = vmax.f32 %v9515, 0.0
  %v11052 = vmax.f32 %v9517, 0.0
  %v11053 = vmax.f32 %v11009, 0.0
  %v11054 = vmax.f32 %v11011, 0.0
  %v11055 = vmax.f32 %v9521, 0.0
  %v11056 = vmax.f32 %v9523, 0.0
  %v11057 = vmax.f32 %v11015, 0.0
  %v11058 = vmax.f32 %v11017, 0.0
  %v11059 = vmax.f32 %v9525, 0.0
  %v11060 = vmax.f32 %v9527, 0.0
  %v11061 = vmax.f32 %v11019, 0.0
  %v11062 = vmax.f32 %v11021, 0.0
  %v11063 = vpack.c.bf16 %v11027, %v11023
  %v11064 = vpack.c.bf16 %v11028, %v11024
  %v11065 = vpack.c.bf16 %v11029, %v11025
  %v11066 = vpack.c.bf16 %v11030, %v11026
  %v11067 = vpack.c.bf16 %v11035, %v11031
  %v11068 = vpack.c.bf16 %v11036, %v11032
  %v11069 = vpack.c.bf16 %v11037, %v11033
  %v11070 = vpack.c.bf16 %v11038, %v11034
  %v11071 = vpack.c.bf16 %v11043, %v11039
  %v11072 = vpack.c.bf16 %v11044, %v11040
  %v11073 = vpack.c.bf16 %v11045, %v11041
  %v11074 = vpack.c.bf16 %v11046, %v11042
  %v11075 = vpack.c.bf16 %v11051, %v11047
  %v11076 = vpack.c.bf16 %v11052, %v11048
  %v11077 = vpack.c.bf16 %v11053, %v11049
  %v11078 = vpack.c.bf16 %v11054, %v11050
  %v11079 = vpack.c.bf16 %v11059, %v11055
  %v11080 = vpack.c.bf16 %v11060, %v11056
  %v11081 = vpack.c.bf16 %v11061, %v11057
  %v11082 = vpack.c.bf16 %v11062, %v11058
  %v11083 = vld [vmem:[%s3] sm:$0xf]
  %v11084 = vld [vmem:[%s3 + $0x4] sm:$0xf]
  %v11085 = vld [vmem:[%s3 + $0x8] sm:$0xf]
  %v11086 = vld [vmem:[%s3 + $0xc] sm:$0xf]
  %v11087 = vld [vmem:[%s3 + $0x10] sm:$0xf]
  %v11088 = vld [vmem:[%s3 + $0x14] sm:$0xf]
  %v11089 = vld [vmem:[%s3 + $0x18] sm:$0xf]
  %v11090 = vld [vmem:[%s3 + $0x1c] sm:$0xf]
  %v11091 = vld [vmem:[%s3 + $0x20] sm:$0xf]
  %v11092 = vld [vmem:[%s3 + $0x24] sm:$0xf]
  %v11093 = vld [vmem:[%s3 + $0x28] sm:$0xf]
  %v11094 = vld [vmem:[%s3 + $0x2c] sm:$0xf]
  %v11095 = vld [vmem:[%s3 + $0x30] sm:$0xf]
  %v11096 = vld [vmem:[%s3 + $0x34] sm:$0xf]
  %v11097 = vld [vmem:[%s3 + $0x38] sm:$0xf]
  %v11098 = vld [vmem:[%s3 + $0x3c] sm:$0xf]
  %v11099 = vld [vmem:[%s3 + $0x40] sm:$0xf]
  %v11100 = vld [vmem:[%s3 + $0x44] sm:$0xf]
  %v11101 = vld [vmem:[%s3 + $0x48] sm:$0xf]
  %v11102 = vld [vmem:[%s3 + $0x4c] sm:$0xf]
  %v11103 = vld [vmem:[%s3 + $0x50] sm:$0xf]
  %v11104 = vld [vmem:[%s3 + $0x54] sm:$0xf]
  %v11105 = vld [vmem:[%s3 + $0x58] sm:$0xf]
  %v11106 = vld [vmem:[%s3 + $0x5c] sm:$0xf]
  %v11107 = vld [vmem:[%s3 + $0x60] sm:$0xf]
  %v11108 = vld [vmem:[%s3 + $0x64] sm:$0xf]
  %v11109 = vld [vmem:[%s3 + $0x68] sm:$0xf]
  %v11110 = vld [vmem:[%s3 + $0x6c] sm:$0xf]
  %v11111 = vld [vmem:[%s3 + $0x70] sm:$0xf]
  %v11112 = vld [vmem:[%s3 + $0x74] sm:$0xf]
  %v11113 = vld [vmem:[%s3 + $0x78] sm:$0xf]
  %v11114 = vld [vmem:[%s3 + $0x7c] sm:$0xf]
  %v11115 = vld [vmem:[%s3 + $0x80] sm:$0xf]
  %v11116 = vld [vmem:[%s3 + $0x84] sm:$0xf]
  %v11117 = vld [vmem:[%s3 + $0x88] sm:$0xf]
  %v11118 = vld [vmem:[%s3 + $0x8c] sm:$0xf]
  %v11119 = vld [vmem:[%s3 + $0x90] sm:$0xf]
  %v11120 = vld [vmem:[%s3 + $0x94] sm:$0xf]
  %v11121 = vld [vmem:[%s3 + $0x98] sm:$0xf]
  %v11122 = vld [vmem:[%s3 + $0x9c] sm:$0xf]
  %v11123 = vld [vmem:[%s3 + $0xa0] sm:$0xf]
  %v11124 = vld [vmem:[%s3 + $0xa4] sm:$0xf]
  %v11125 = vld [vmem:[%s3 + $0xa8] sm:$0xf]
  %v11126 = vld [vmem:[%s3 + $0xac] sm:$0xf]
  %v11127 = vld [vmem:[%s3 + $0xb0] sm:$0xf]
  %v11128 = vld [vmem:[%s3 + $0xb4] sm:$0xf]
  %v11129 = vld [vmem:[%s3 + $0xb8] sm:$0xf]
  %v11130 = vld [vmem:[%s3 + $0xbc] sm:$0xf]
  %v11131 = vld [vmem:[%s3 + $0xc0] sm:$0xf]
  %v11132 = vld [vmem:[%s3 + $0xc4] sm:$0xf]
  %v11133 = vld [vmem:[%s3 + $0xc8] sm:$0xf]
  %v11134 = vld [vmem:[%s3 + $0xcc] sm:$0xf]
  %v11135 = vld [vmem:[%s3 + $0xd0] sm:$0xf]
  %v11136 = vld [vmem:[%s3 + $0xd4] sm:$0xf]
  %v11137 = vld [vmem:[%s3 + $0xd8] sm:$0xf]
  %v11138 = vld [vmem:[%s3 + $0xdc] sm:$0xf]
  %v11139 = vld [vmem:[%s3 + $0xe0] sm:$0xf]
  %v11140 = vld [vmem:[%s3 + $0xe4] sm:$0xf]
  %v11141 = vld [vmem:[%s3 + $0xe8] sm:$0xf]
  %v11142 = vld [vmem:[%s3 + $0xec] sm:$0xf]
  %v11143 = vld [vmem:[%s3 + $0xf0] sm:$0xf]
  %v11144 = vld [vmem:[%s3 + $0xf4] sm:$0xf]
  %v11145 = vld [vmem:[%s3 + $0xf8] sm:$0xf]
  %v11146 = vld [vmem:[%s3 + $0xfc] sm:$0xf]
  %v11147 = vld [vmem:[%s4] sm:$0x1]
  %v11149 = vlaneseq
  %v11150 = vshrl.u32 %v11149, 7
  %v11151 = vsub.s32 0, %v11150
  %v11152 = vrot.slane %v11147, %v11151
  %v11218 = vunpack.c.l.b16 %v11083
  %v11219 = vunpack.c.l.b16 %v11084
  %v11220 = vunpack.c.l.b16 %v11085
  %v11221 = vunpack.c.l.b16 %v11086
  %v11222 = vunpack.c.l.b16 %v11087
  %v11223 = vunpack.c.l.b16 %v11088
  %v11224 = vunpack.c.l.b16 %v11089
  %v11225 = vunpack.c.l.b16 %v11090
  %v11226 = vunpack.c.l.b16 %v11091
  %v11227 = vunpack.c.l.b16 %v11092
  %v11228 = vunpack.c.l.b16 %v11093
  %v11229 = vunpack.c.l.b16 %v11094
  %v11230 = vunpack.c.l.b16 %v11095
  %v11231 = vunpack.c.l.b16 %v11096
  %v11232 = vunpack.c.l.b16 %v11097
  %v11233 = vunpack.c.l.b16 %v11098
  %v11234 = vunpack.c.l.b16 %v11099
  %v11235 = vunpack.c.l.b16 %v11100
  %v11236 = vunpack.c.l.b16 %v11101
  %v11237 = vunpack.c.l.b16 %v11102
  %v11238 = vunpack.c.l.b16 %v11103
  %v11239 = vunpack.c.l.b16 %v11104
  %v11240 = vunpack.c.l.b16 %v11105
  %v11241 = vunpack.c.l.b16 %v11106
  %v11242 = vunpack.c.l.b16 %v11107
  %v11243 = vunpack.c.l.b16 %v11108
  %v11244 = vunpack.c.l.b16 %v11109
  %v11245 = vunpack.c.l.b16 %v11110
  %v11246 = vunpack.c.l.b16 %v11111
  %v11247 = vunpack.c.l.b16 %v11112
  %v11248 = vunpack.c.l.b16 %v11113
  %v11249 = vunpack.c.l.b16 %v11114
  %v11250 = vunpack.c.l.b16 %v11115
  %v11251 = vunpack.c.l.b16 %v11116
  %v11252 = vunpack.c.l.b16 %v11117
  %v11253 = vunpack.c.l.b16 %v11118
  %v11254 = vunpack.c.l.b16 %v11119
  %v11255 = vunpack.c.l.b16 %v11120
  %v11256 = vunpack.c.l.b16 %v11121
  %v11257 = vunpack.c.l.b16 %v11122
  %v11258 = vunpack.c.l.b16 %v11123
  %v11259 = vunpack.c.l.b16 %v11124
  %v11260 = vunpack.c.l.b16 %v11125
  %v11261 = vunpack.c.l.b16 %v11126
  %v11262 = vunpack.c.l.b16 %v11127
  %v11263 = vunpack.c.l.b16 %v11128
  %v11264 = vunpack.c.l.b16 %v11129
  %v11265 = vunpack.c.l.b16 %v11130
  %v11266 = vunpack.c.l.b16 %v11131
  %v11267 = vunpack.c.l.b16 %v11132
  %v11268 = vunpack.c.l.b16 %v11133
  %v11269 = vunpack.c.l.b16 %v11134
  %v11270 = vunpack.c.l.b16 %v11135
  %v11271 = vunpack.c.l.b16 %v11136
  %v11272 = vunpack.c.l.b16 %v11137
  %v11273 = vunpack.c.l.b16 %v11138
  %v11274 = vunpack.c.l.b16 %v11139
  %v11275 = vunpack.c.l.b16 %v11140
  %v11276 = vunpack.c.l.b16 %v11141
  %v11277 = vunpack.c.l.b16 %v11142
  %v11278 = vunpack.c.l.b16 %v11143
  %v11279 = vunpack.c.l.b16 %v11144
  %v11280 = vunpack.c.l.b16 %v11145
  %v11281 = vunpack.c.l.b16 %v11146
  %v11282 = vpack.c.b16 %v11219, %v11218
  %v11283 = vpack.c.b16 %v11221, %v11220
  %v11284 = vpack.c.b16 %v11223, %v11222
  %v11285 = vpack.c.b16 %v11225, %v11224
  %v11286 = vpack.c.b16 %v11227, %v11226
  %v11287 = vpack.c.b16 %v11229, %v11228
  %v11288 = vpack.c.b16 %v11231, %v11230
  %v11289 = vpack.c.b16 %v11233, %v11232
  %v11290 = vpack.c.b16 %v11235, %v11234
  %v11291 = vpack.c.b16 %v11237, %v11236
  %v11292 = vpack.c.b16 %v11239, %v11238
  %v11293 = vpack.c.b16 %v11241, %v11240
  %v11294 = vpack.c.b16 %v11243, %v11242
  %v11295 = vpack.c.b16 %v11245, %v11244
  %v11296 = vpack.c.b16 %v11247, %v11246
  %v11297 = vpack.c.b16 %v11249, %v11248
  %v11298 = vpack.c.b16 %v11251, %v11250
  %v11299 = vpack.c.b16 %v11253, %v11252
  %v11300 = vpack.c.b16 %v11255, %v11254
  %v11301 = vpack.c.b16 %v11257, %v11256
  %v11302 = vpack.c.b16 %v11259, %v11258
  %v11303 = vpack.c.b16 %v11261, %v11260
  %v11304 = vpack.c.b16 %v11263, %v11262
  %v11305 = vpack.c.b16 %v11265, %v11264
  %v11306 = vpack.c.b16 %v11267, %v11266
  %v11307 = vpack.c.b16 %v11269, %v11268
  %v11308 = vpack.c.b16 %v11271, %v11270
  %v11309 = vpack.c.b16 %v11273, %v11272
  %v11310 = vpack.c.b16 %v11275, %v11274
  %v11311 = vpack.c.b16 %v11277, %v11276
  %v11312 = vpack.c.b16 %v11279, %v11278
  %v11313 = vpack.c.b16 %v11281, %v11280
  %11346 = vmatprep.subr.bf16.mxu0 0
  %11347 = vmatpush1.bf16.msra.mxu0 %v11282
  %11348 = vmatprep.subr.bf16.mxu0 0
  %11349 = vmatpush1.bf16.msra.mxu0 %v11283
  %11350 = vmatprep.subr.bf16.mxu0 0
  %11351 = vmatpush1.bf16.msra.mxu0 %v11284
  %11352 = vmatprep.subr.bf16.mxu0 0
  %11353 = vmatpush1.bf16.msra.mxu0 %v11285
  %11354 = vmatprep.subr.bf16.mxu0 0
  %11355 = vmatpush1.bf16.msra.mxu0 %v11286
  %11356 = vmatprep.subr.bf16.mxu0 0
  %11357 = vmatpush1.bf16.msra.mxu0 %v11287
  %11358 = vmatprep.subr.bf16.mxu0 0
  %11359 = vmatpush1.bf16.msra.mxu0 %v11288
  %11360 = vmatprep.subr.bf16.mxu0 0
  %11361 = vmatpush1.bf16.msra.mxu0 %v11289
  %11362 = vmatprep.subr.bf16.mxu0 0
  %11363 = vmatpush1.bf16.msra.mxu0 %v11290
  %11364 = vmatprep.subr.bf16.mxu0 0
  %11365 = vmatpush1.bf16.msra.mxu0 %v11291
  %11366 = vmatprep.subr.bf16.mxu0 0
  %11367 = vmatpush1.bf16.msra.mxu0 %v11292
  %11368 = vmatprep.subr.bf16.mxu0 0
  %11369 = vmatpush1.bf16.msra.mxu0 %v11293
  %11370 = vmatprep.subr.bf16.mxu0 0
  %11371 = vmatpush1.bf16.msra.mxu0 %v11294
  %11372 = vmatprep.subr.bf16.mxu0 0
  %11373 = vmatpush1.bf16.msra.mxu0 %v11295
  %11374 = vmatprep.subr.bf16.mxu0 0
  %11375 = vmatpush1.bf16.msra.mxu0 %v11296
  %11376 = vmatprep.subr.bf16.mxu0 0
  %11377 = vmatpush1.bf16.msra.mxu0 %v11297
  %11378 = vmatprep.mubr.bf16.mxu0 %v11064
  %11379 = vmatmul.mubr.bf16.gmra.mrb[0].mxu0 %v11063
  %v11380 = vpop.f32.mrb[0].mxu0
  %v11381 = vadd.f32 %v11152, %v11380
  %v11382 = vpop.f32.mrb[0].mxu0
  %v11383 = vpop.f32.mrb[0].mxu0
  %v11384 = vadd.f32 %v11152, %v11383
  %v11385 = vpop.f32.mrb[0].mxu0
  %11386 = vmatprep.mubr.bf16.mxu0 %v11068
  %11387 = vmatmul.mubr.bf16.gmra.mrb[0].mxu0 %v11067
  %v11388 = vpop.f32.mrb[0].mxu0
  %v11389 = vadd.f32 %v11152, %v11388
  %v11390 = vpop.f32.mrb[0].mxu0
  %v11391 = vpop.f32.mrb[0].mxu0
  %v11392 = vadd.f32 %v11152, %v11391
  %v11393 = vpop.f32.mrb[0].mxu0
  %11394 = vmatprep.mubr.bf16.mxu0 %v11072
  %11395 = vmatmul.mubr.bf16.gmra.mrb[0].mxu0 %v11071
  %v11396 = vpop.f32.mrb[0].mxu0
  %v11397 = vadd.f32 %v11152, %v11396
  %v11398 = vpop.f32.mrb[0].mxu0
  %v11399 = vpop.f32.mrb[0].mxu0
  %v11400 = vadd.f32 %v11152, %v11399
  %v11401 = vpop.f32.mrb[0].mxu0
  %11402 = vmatprep.mubr.bf16.mxu0 %v11076
  %11403 = vmatmul.mubr.bf16.gmra.mrb[0].mxu0 %v11075
  %v11404 = vpop.f32.mrb[0].mxu0
  %v11405 = vadd.f32 %v11152, %v11404
  %v11406 = vpop.f32.mrb[0].mxu0
  %v11407 = vpop.f32.mrb[0].mxu0
  %v11408 = vadd.f32 %v11152, %v11407
  %v11409 = vpop.f32.mrb[0].mxu0
  %11410 = vmatprep.mubr.bf16.mxu0 %v11080
  %11411 = vmatmul.mubr.bf16.gmra.mrb[0].mxu0 %v11079
  %v11412 = vpop.f32.mrb[0].mxu0
  %v11413 = vadd.f32 %v11152, %v11412
  %v11414 = vpop.f32.mrb[0].mxu0
  %v11415 = vpop.f32.mrb[0].mxu0
  %v11416 = vadd.f32 %v11152, %v11415
  %v11417 = vpop.f32.mrb[0].mxu0
  %11418 = vdwg.mxu0
  %11419 = vmatprep.subr.bf16.mxu0 0
  %11420 = vmatpush1.bf16.msra.mxu0 %v11298
  %11421 = vmatprep.subr.bf16.mxu0 0
  %11422 = vmatpush1.bf16.msra.mxu0 %v11299
  %11423 = vmatprep.subr.bf16.mxu0 0
  %11424 = vmatpush1.bf16.msra.mxu0 %v11300
  %11425 = vmatprep.subr.bf16.mxu0 0
  %11426 = vmatpush1.bf16.msra.mxu0 %v11301
  %11427 = vmatprep.subr.bf16.mxu0 0
  %11428 = vmatpush1.bf16.msra.mxu0 %v11302
  %11429 = vmatprep.subr.bf16.mxu0 0
  %11430 = vmatpush1.bf16.msra.mxu0 %v11303
  %11431 = vmatprep.subr.bf16.mxu0 0
  %11432 = vmatpush1.bf16.msra.mxu0 %v11304
  %11433 = vmatprep.subr.bf16.mxu0 0
  %11434 = vmatpush1.bf16.msra.mxu0 %v11305
  %11435 = vmatprep.subr.bf16.mxu0 0
  %11436 = vmatpush1.bf16.msra.mxu0 %v11306
  %11437 = vmatprep.subr.bf16.mxu0 0
  %11438 = vmatpush1.bf16.msra.mxu0 %v11307
  %11439 = vmatprep.subr.bf16.mxu0 0
  %11440 = vmatpush1.bf16.msra.mxu0 %v11308
  %11441 = vmatprep.subr.bf16.mxu0 0
  %11442 = vmatpush1.bf16.msra.mxu0 %v11309
  %11443 = vmatprep.subr.bf16.mxu0 0
  %11444 = vmatpush1.bf16.msra.mxu0 %v11310
  %11445 = vmatprep.subr.bf16.mxu0 0
  %11446 = vmatpush1.bf16.msra.mxu0 %v11311
  %11447 = vmatprep.subr.bf16.mxu0 0
  %11448 = vmatpush1.bf16.msra.mxu0 %v11312
  %11449 = vmatprep.subr.bf16.mxu0 0
  %11450 = vmatpush1.bf16.msra.mxu0 %v11313
  %11451 = vmatprep.mubr.bf16.mxu0 %v11066
  %11452 = vmatmul.mubr.bf16.gmra.mrb[0].mxu0 %v11065
  %v11453 = vpop.f32.mrb[0].mxu0
  %v11454 = vadd.f32 %v11381, %v11453
  %v11455 = vpop.f32.mrb[0].mxu0
  %v11456 = vpop.f32.mrb[0].mxu0
  %v11457 = vadd.f32 %v11384, %v11456
  %v11458 = vpop.f32.mrb[0].mxu0
  %11459 = vmatprep.mubr.bf16.mxu0 %v11070
  %11460 = vmatmul.mubr.bf16.gmra.mrb[0].mxu0 %v11069
  %v11461 = vpop.f32.mrb[0].mxu0
  %v11462 = vadd.f32 %v11389, %v11461
  %v11463 = vpop.f32.mrb[0].mxu0
  %v11464 = vpop.f32.mrb[0].mxu0
  %v11465 = vadd.f32 %v11392, %v11464
  %v11466 = vpop.f32.mrb[0].mxu0
  %11467 = vmatprep.mubr.bf16.mxu0 %v11074
  %11468 = vmatmul.mubr.bf16.gmra.mrb[0].mxu0 %v11073
  %v11469 = vpop.f32.mrb[0].mxu0
  %v11470 = vadd.f32 %v11397, %v11469
  %v11471 = vpop.f32.mrb[0].mxu0
  %v11472 = vpop.f32.mrb[0].mxu0
  %v11473 = vadd.f32 %v11400, %v11472
  %v11474 = vpop.f32.mrb[0].mxu0
  %11475 = vmatprep.mubr.bf16.mxu0 %v11078
  %11476 = vmatmul.mubr.bf16.gmra.mrb[0].mxu0 %v11077
  %v11477 = vpop.f32.mrb[0].mxu0
  %v11478 = vadd.f32 %v11405, %v11477
  %v11479 = vpop.f32.mrb[0].mxu0
  %v11480 = vpop.f32.mrb[0].mxu0
  %v11481 = vadd.f32 %v11408, %v11480
  %v11482 = vpop.f32.mrb[0].mxu0
  %11483 = vmatprep.mubr.bf16.mxu0 %v11082
  %11484 = vmatmul.mubr.bf16.gmra.mrb[0].mxu0 %v11081
  %v11485 = vpop.f32.mrb[0].mxu0
  %v11486 = vadd.f32 %v11413, %v11485
  %v11487 = vpop.f32.mrb[0].mxu0
  %v11488 = vpop.f32.mrb[0].mxu0
  %v11489 = vadd.f32 %v11416, %v11488
  %v11490 = vpop.f32.mrb[0].mxu0
  %11491 = vdwg.mxu0
  %11492 = vst [vmem:[%s5] sm:$0xff] %v11454
  %11493 = vst [vmem:[%s5 + $0x8] sm:$0xff] %v11457
  %11494 = vst [vmem:[%s5 + $0x10] sm:$0xff] %v11462
  %11495 = vst [vmem:[%s5 + $0x18] sm:$0xff] %v11465
  %11496 = vst [vmem:[%s5 + $0x20] sm:$0xff] %v11470
  %11497 = vst [vmem:[%s5 + $0x28] sm:$0xff] %v11473
  %11498 = vst [vmem:[%s5 + $0x30] sm:$0xff] %v11478
  %11499 = vst [vmem:[%s5 + $0x38] sm:$0xff] %v11481
  %11500 = vst [vmem:[%s5 + $0x40] sm:$0xff] %v11486
  %11501 = vst [vmem:[%s5 + $0x48] sm:$0xff] %v11489
  // Predicated region
  $region22: #{secondary_layers_rpn.1} parent=0 // pred_check
    _
  $region23: #{secondary_layers_rpn.1} parent=0 // pred_check_branch
    %11503 = sbr.rel (0) target = $region25
  $region24: #{secondary_layers_rpn.1} parent=0 // pred_region
    _
  $region25: #{secondary_layers_rpn.1} parent=0 // pred_fallthru
    _
  // Predicated region
  $region26: #{secondary_layers_rpn.1} parent=0 // pred_check
    _
  $region27: #{secondary_layers_rpn.1} parent=0 // pred_check_branch
    %11505 = sbr.rel (0) target = $region29
  $region28: #{secondary_layers_rpn.1} parent=0 // pred_region
    _
  $region29: #{secondary_layers_rpn.1} parent=0 // pred_fallthru
    _

</llo_original>
